<compile_context>
chip_gen: v7x
topology: tpu7x:2x2x1
jax: 0.10.0
libtpu: 0.0.40
codegen_flags: <defaults>
</compile_context>

<pallas_src>
import numpy as np
import jax
import jax.numpy as jnp
from jax.experimental import pallas as pl
from jax.experimental.pallas import tpu as pltpu


# ---------------------------------------------------------------------------
# Host-side constant construction
# ---------------------------------------------------------------------------
def _upsample_matrix_align_corners(n_in: int, n_out: int) -> np.ndarray:
    """1-D bilinear interpolation matrix M (n_out, n_in): out = M @ in, align_corners=True."""
    M = np.zeros((n_out, n_in), dtype=np.float32)
    if n_in == 1:
        M[:, 0] = 1.0
        return M
    scale = (n_in - 1) / (n_out - 1)
    for i in range(n_out):
        src = i * scale
        i0 = min(int(np.floor(src)), n_in - 2)
        frac = src - i0
        M[i, i0] += 1.0 - frac
        M[i, i0 + 1] += frac
    return M


def _shift_rows(M: np.ndarray, s: int) -> np.ndarray:
    """out[i, :] = M[i + s, :] if 0 <= i + s < rows else 0 (zero-padded shift)."""
    rows = M.shape[0]
    out = np.zeros_like(M)
    if s >= 0:
        out[:rows - s, :] = M[s:, :]
    else:
        out[-s:, :] = M[:rows + s, :]
    return out


def _build_tap_matrix(H: int, W: int):
    """Returns (taps, Lh, Lw).

    taps: (H*W, 9*H2*W2) f32.  Column block t = dy*3+dx gives, for flattened
    input x_flat (.., H*W), the flattened zero-padded shift (dy-1, dx-1) of the
    bilinear-upsampled image:  shift_t(up(x)) = x_flat @ taps[:, t*H2*W2:(t+1)*H2*W2].
    """
    H2, W2 = 2 * H, 2 * W
    Lh = _upsample_matrix_align_corners(H, H2)   # (H2, H)
    Lw = _upsample_matrix_align_corners(W, W2)   # (W2, W)
    blocks = []
    for dy in range(3):
        for dx in range(3):
            Lh_s = _shift_rows(Lh, dy - 1)
            Lw_s = _shift_rows(Lw, dx - 1)
            blocks.append(np.kron(Lh_s, Lw_s).T.astype(np.float32))  # (H*W, H2*W2)
    taps = np.concatenate(blocks, axis=1)                            # (H*W, 9*H2*W2)
    return taps, Lh, Lw


# ---------------------------------------------------------------------------
# Pallas kernel
# ---------------------------------------------------------------------------
def ucb_kernel(x_ref, taps_ref, w9_ref, wp_ref, b_ref, o_ref):
    # x_ref   : (R_in,  H*W)        lane-dense input slab  (R_in = Bt*Cin)
    # taps_ref: (H*W,   9*HW2)      folded upsample+shift matrix (constant)
    # w9_ref  : (R_in,  9)          depthwise taps, tiled over Bt
    # wp_ref  : (R_out, R_in)       kron(I_Bt, bn_scale * pointwise_w)
    # b_ref   : (R_out, 1)          fused bias (dw bias + pw bias + BN affine)
    # o_ref   : (R_out, HW2)        lane-dense output slab (R_out = Bt*Cout)
    hw2 = o_ref.shape[-1]

    # Upsample + all 9 zero-padded shifts in one MXU matmul.
    y = jnp.dot(x_ref[...], taps_ref[...], preferred_element_type=jnp.float32)

    # Depthwise 3x3: contract the 9 tap blocks with per-channel weights (VPU MACs).
    w9 = w9_ref[...]
    acc = w9[:, 0:1] * y[:, 0:hw2]
    for t in range(1, 9):
        acc = acc + w9[:, t:t + 1] * y[:, t * hw2:(t + 1) * hw2]

    # Pointwise 1x1 conv (block-diag over images) + fused bias/BN + ReLU.
    z = jnp.dot(wp_ref[...], acc, preferred_element_type=jnp.float32) + b_ref[...]
    o_ref[...] = jnp.maximum(z, 0.0)


# ---------------------------------------------------------------------------
# Wrapper
# ---------------------------------------------------------------------------
def ucb_forward(x, dw_w, dw_b, pw_w, pw_b, bn_scale, bn_shift, taps,
                block_batch=None):
    B, Cin, H, W = x.shape
    H2, W2 = 2 * H, 2 * W
    HW, HW2 = H * W, H2 * W2
    Cout = pw_w.shape[0]

    # Images per grid step: aim for >= 8 sublanes on the matmul M axis.
    if block_batch is None:
        block_batch = min(B, max(1, -(-8 // Cin)))
        while B % block_batch:
            block_batch -= 1
    Bt = block_batch
    G = B // Bt
    R_in, R_out = Bt * Cin, Bt * Cout

    # ---- host-side fusion of dw bias + pw bias + BN(eval) into the 1x1 conv ----
    wp_f = bn_scale * pw_w                                 # (Cout, Cin)
    b_f = bn_scale * (pw_b + pw_w @ dw_b) + bn_shift       # (Cout, 1)
    wp_blk = jnp.kron(jnp.eye(Bt, dtype=jnp.float32), wp_f)  # (R_out, R_in)
    b_blk = jnp.tile(b_f, (Bt, 1))                           # (R_out, 1)
    w9 = jnp.tile(dw_w.reshape(Cin, 9), (Bt, 1))             # (R_in, 9)

    # Lane-dense input slab: (G, Bt*Cin, H*W)
    x_blk = x.reshape(G, R_in, HW)

    out = pl.pallas_call(
        ucb_kernel,
        out_shape=jax.ShapeDtypeStruct((G, R_out, HW2), jnp.float32),
        grid=(G,),
        in_specs=[
            pl.BlockSpec((None, R_in, HW), lambda g: (g, 0, 0)),
            pl.BlockSpec((HW, 9 * HW2), lambda g: (0, 0)),
            pl.BlockSpec((R_in, 9), lambda g: (0, 0)),
            pl.BlockSpec((R_out, R_in), lambda g: (0, 0)),
            pl.BlockSpec((R_out, 1), lambda g: (0, 0)),
        ],
        out_specs=pl.BlockSpec((None, R_out, HW2), lambda g: (g, 0, 0)),
        compiler_params=pltpu.CompilerParams(
            dimension_semantics=("parallel",),
            vmem_limit_bytes=48 * 1024 * 1024,
        ),
    )(x_blk, taps, w9, wp_blk, b_blk)

    return out.reshape(B, Cout, H2, W2)


# ---------------------------------------------------------------------------
# Pure-JAX reference (un-fused math) for correctness checking
# ---------------------------------------------------------------------------
def ucb_reference(x, dw_w, dw_b, pw_w, pw_b, bn_scale, bn_shift, Lh, Lw):
    lh = jnp.asarray(Lh)        # (H2, H)
    lwT = jnp.asarray(Lw.T)     # (W, W2)
    t = jnp.einsum('bchw,wq->bchq', x, lwT)
    y = jnp.einsum('ph,bchq->bcpq', lh, t)
    Cin = x.shape[1]
    w_dw = dw_w.reshape(Cin, 1, 3, 3)
    yd = jax.lax.conv_general_dilated(
        y, w_dw, window_strides=(1, 1), padding=((1, 1), (1, 1)),
        dimension_numbers=('NCHW', 'OIHW', 'NCHW'),
        feature_group_count=Cin) + dw_b.reshape(1, Cin, 1, 1)
    z = jnp.einsum('oc,bchw->bohw', pw_w, yd) + pw_b.reshape(1, -1, 1, 1)
    z = z * bn_scale.reshape(1, -1, 1, 1) + bn_shift.reshape(1, -1, 1, 1)
    return jnp.maximum(z, 0.0)


if __name__ == "__main__":
    B, Cin, Cout, H, W = 2, 4, 8, 16, 16
    H2, W2 = 2 * H, 2 * W

    key = jax.random.PRNGKey(0)
    kx, kdw, kdb, kpw, kpb = jax.random.split(key, 5)

    x = jax.random.normal(kx, (B, Cin, H, W), dtype=jnp.float32)

    # Deterministic synthetic parameters (no checkpoint).
    dw_w = 0.2 * jax.random.normal(kdw, (Cin, 3, 3), dtype=jnp.float32)
    dw_b = 0.1 * jax.random.normal(kdb, (Cin, 1), dtype=jnp.float32)
    pw_w = 0.2 * jax.random.normal(kpw, (Cout, Cin), dtype=jnp.float32)
    pw_b = 0.1 * jax.random.normal(kpb, (Cout, 1), dtype=jnp.float32)

    eps = 1e-5
    gamma = 1.0 + 0.05 * jnp.arange(Cout, dtype=jnp.float32)
    beta = 0.01 * jnp.arange(Cout, dtype=jnp.float32)
    run_mean = 0.02 * jnp.arange(Cout, dtype=jnp.float32)
    run_var = 1.0 + 0.03 * jnp.arange(Cout, dtype=jnp.float32)
    bn_scale = (gamma / jnp.sqrt(run_var + eps)).reshape(Cout, 1)
    bn_shift = (beta - run_mean * bn_scale[:, 0]).reshape(Cout, 1)

    # Folded upsample + 9-shift tap matrix (depends on shapes only).
    taps_np, Lh, Lw = _build_tap_matrix(H, W)
    taps = jnp.asarray(taps_np)

    out = ucb_forward(x, dw_w, dw_b, pw_w, pw_b, bn_scale, bn_shift, taps)
    out = jax.block_until_ready(out)

    ref = jax.block_until_ready(
        ucb_reference(x, dw_w, dw_b, pw_w, pw_b, bn_scale, bn_shift, Lh, Lw))

    assert out.shape == (B, Cout, H2, W2), out.shape
    np.testing.assert_allclose(np.asarray(out), np.asarray(ref),
                               rtol=1e-4, atol=1e-4)

    print("KERNEL_OK")
</pallas_src>

<mosaic_0001>
module attributes {stable_mosaic.version = 11 : i64} {
  func.func @ucb_kernel(%arg0: i32, %arg1: memref<1x8x256xf32, #tpu.memory_space<vmem>>, %arg2: memref<256x9216xf32, #tpu.memory_space<vmem>>, %arg3: memref<8x9xf32, #tpu.memory_space<vmem>>, %arg4: memref<16x8xf32, #tpu.memory_space<vmem>>, %arg5: memref<16x1xf32, #tpu.memory_space<vmem>>, %arg6: memref<1x16x1024xf32, #tpu.memory_space<vmem>>) attributes {dimension_semantics = [#tpu.dimension_semantics<parallel>], iteration_bounds = array<i64: 1>, scalar_prefetch = 0 : i64, scratch_operands = 0 : i64, tpu.core_type = #tpu.core_type<tc>, window_params = [{transform_indices = @transform_0, window_bounds = array<i64: 1, 8, 256>}, {pipeline_mode = #tpu.pipeline_mode<synchronous>, transform_indices = @transform_1, window_bounds = array<i64: 256, 9216>}, {pipeline_mode = #tpu.pipeline_mode<synchronous>, transform_indices = @transform_2, window_bounds = array<i64: 8, 9>}, {pipeline_mode = #tpu.pipeline_mode<synchronous>, transform_indices = @transform_3, window_bounds = array<i64: 16, 8>}, {pipeline_mode = #tpu.pipeline_mode<synchronous>, transform_indices = @transform_4, window_bounds = array<i64: 16, 1>}, {transform_indices = @transform_5, window_bounds = array<i64: 1, 16, 1024>}]} {
    %c0 = arith.constant 0 : index
    %c0_0 = arith.constant 0 : index
    %c0_1 = arith.constant 0 : index
    %0 = vector.load %arg1[%c0, %c0_0, %c0_1] : memref<1x8x256xf32, #tpu.memory_space<vmem>>, vector<1x8x256xf32>
    %1 = vector.shape_cast %0 : vector<1x8x256xf32> to vector<8x256xf32>
    %c0_2 = arith.constant 0 : index
    %c0_3 = arith.constant 0 : index
    %2 = vector.load %arg2[%c0_2, %c0_3] : memref<256x9216xf32, #tpu.memory_space<vmem>>, vector<256x9216xf32>
    %cst = arith.constant dense<0.000000e+00> : vector<8x9216xf32>
    %3 = tpu.matmul %1, %2, %cst {dimension_numbers = #tpu.dot_dimension_numbers<[1], [0], [0], [1], [0, 0, 1, 1], [], []>} : vector<8x256xf32>, vector<256x9216xf32>, vector<8x9216xf32> -> vector<8x9216xf32>
    %c0_4 = arith.constant 0 : index
    %c0_5 = arith.constant 0 : index
    %4 = vector.load %arg3[%c0_4, %c0_5] : memref<8x9xf32, #tpu.memory_space<vmem>>, vector<8x9xf32>
    %5 = vector.extract_strided_slice %4 {offsets = [0, 0], sizes = [8, 1], strides = [1, 1]} : vector<8x9xf32> to vector<8x1xf32>
    %6 = vector.extract_strided_slice %3 {offsets = [0, 0], sizes = [8, 1024], strides = [1, 1]} : vector<8x9216xf32> to vector<8x1024xf32>
    %7 = vector.broadcast %5 : vector<8x1xf32> to vector<8x1024xf32>
    %8 = arith.mulf %7, %6 : vector<8x1024xf32>
    %9 = vector.extract_strided_slice %4 {offsets = [0, 1], sizes = [8, 1], strides = [1, 1]} : vector<8x9xf32> to vector<8x1xf32>
    %10 = vector.extract_strided_slice %3 {offsets = [0, 1024], sizes = [8, 1024], strides = [1, 1]} : vector<8x9216xf32> to vector<8x1024xf32>
    %11 = vector.broadcast %9 : vector<8x1xf32> to vector<8x1024xf32>
    %12 = arith.mulf %11, %10 : vector<8x1024xf32>
    %13 = arith.addf %8, %12 : vector<8x1024xf32>
    %14 = vector.extract_strided_slice %4 {offsets = [0, 2], sizes = [8, 1], strides = [1, 1]} : vector<8x9xf32> to vector<8x1xf32>
    %15 = vector.extract_strided_slice %3 {offsets = [0, 2048], sizes = [8, 1024], strides = [1, 1]} : vector<8x9216xf32> to vector<8x1024xf32>
    %16 = vector.broadcast %14 : vector<8x1xf32> to vector<8x1024xf32>
    %17 = arith.mulf %16, %15 : vector<8x1024xf32>
    %18 = arith.addf %13, %17 : vector<8x1024xf32>
    %19 = vector.extract_strided_slice %4 {offsets = [0, 3], sizes = [8, 1], strides = [1, 1]} : vector<8x9xf32> to vector<8x1xf32>
    %20 = vector.extract_strided_slice %3 {offsets = [0, 3072], sizes = [8, 1024], strides = [1, 1]} : vector<8x9216xf32> to vector<8x1024xf32>
    %21 = vector.broadcast %19 : vector<8x1xf32> to vector<8x1024xf32>
    %22 = arith.mulf %21, %20 : vector<8x1024xf32>
    %23 = arith.addf %18, %22 : vector<8x1024xf32>
    %24 = vector.extract_strided_slice %4 {offsets = [0, 4], sizes = [8, 1], strides = [1, 1]} : vector<8x9xf32> to vector<8x1xf32>
    %25 = vector.extract_strided_slice %3 {offsets = [0, 4096], sizes = [8, 1024], strides = [1, 1]} : vector<8x9216xf32> to vector<8x1024xf32>
    %26 = vector.broadcast %24 : vector<8x1xf32> to vector<8x1024xf32>
    %27 = arith.mulf %26, %25 : vector<8x1024xf32>
    %28 = arith.addf %23, %27 : vector<8x1024xf32>
    %29 = vector.extract_strided_slice %4 {offsets = [0, 5], sizes = [8, 1], strides = [1, 1]} : vector<8x9xf32> to vector<8x1xf32>
    %30 = vector.extract_strided_slice %3 {offsets = [0, 5120], sizes = [8, 1024], strides = [1, 1]} : vector<8x9216xf32> to vector<8x1024xf32>
    %31 = vector.broadcast %29 : vector<8x1xf32> to vector<8x1024xf32>
    %32 = arith.mulf %31, %30 : vector<8x1024xf32>
    %33 = arith.addf %28, %32 : vector<8x1024xf32>
    %34 = vector.extract_strided_slice %4 {offsets = [0, 6], sizes = [8, 1], strides = [1, 1]} : vector<8x9xf32> to vector<8x1xf32>
    %35 = vector.extract_strided_slice %3 {offsets = [0, 6144], sizes = [8, 1024], strides = [1, 1]} : vector<8x9216xf32> to vector<8x1024xf32>
    %36 = vector.broadcast %34 : vector<8x1xf32> to vector<8x1024xf32>
    %37 = arith.mulf %36, %35 : vector<8x1024xf32>
    %38 = arith.addf %33, %37 : vector<8x1024xf32>
    %39 = vector.extract_strided_slice %4 {offsets = [0, 7], sizes = [8, 1], strides = [1, 1]} : vector<8x9xf32> to vector<8x1xf32>
    %40 = vector.extract_strided_slice %3 {offsets = [0, 7168], sizes = [8, 1024], strides = [1, 1]} : vector<8x9216xf32> to vector<8x1024xf32>
    %41 = vector.broadcast %39 : vector<8x1xf32> to vector<8x1024xf32>
    %42 = arith.mulf %41, %40 : vector<8x1024xf32>
    %43 = arith.addf %38, %42 : vector<8x1024xf32>
    %44 = vector.extract_strided_slice %4 {offsets = [0, 8], sizes = [8, 1], strides = [1, 1]} : vector<8x9xf32> to vector<8x1xf32>
    %45 = vector.extract_strided_slice %3 {offsets = [0, 8192], sizes = [8, 1024], strides = [1, 1]} : vector<8x9216xf32> to vector<8x1024xf32>
    %46 = vector.broadcast %44 : vector<8x1xf32> to vector<8x1024xf32>
    %47 = arith.mulf %46, %45 : vector<8x1024xf32>
    %48 = arith.addf %43, %47 : vector<8x1024xf32>
    %c0_6 = arith.constant 0 : index
    %c0_7 = arith.constant 0 : index
    %49 = vector.load %arg4[%c0_6, %c0_7] : memref<16x8xf32, #tpu.memory_space<vmem>>, vector<16x8xf32>
    %cst_8 = arith.constant dense<0.000000e+00> : vector<16x1024xf32>
    %50 = tpu.matmul %49, %48, %cst_8 {dimension_numbers = #tpu.dot_dimension_numbers<[1], [0], [0], [1], [0, 0, 1, 1], [], []>} : vector<16x8xf32>, vector<8x1024xf32>, vector<16x1024xf32> -> vector<16x1024xf32>
    %c0_9 = arith.constant 0 : index
    %c0_10 = arith.constant 0 : index
    %51 = vector.load %arg5[%c0_9, %c0_10] : memref<16x1xf32, #tpu.memory_space<vmem>>, vector<16x1xf32>
    %52 = vector.broadcast %51 : vector<16x1xf32> to vector<16x1024xf32>
    %53 = arith.addf %50, %52 : vector<16x1024xf32>
    %cst_11 = arith.constant 0.000000e+00 : f32
    %54 = vector.broadcast %cst_11 : f32 to vector<16x1024xf32>
    %55 = arith.maximumf %53, %54 : vector<16x1024xf32>
    %c0_12 = arith.constant 0 : index
    %c0_13 = arith.constant 0 : index
    %c0_14 = arith.constant 0 : index
    %56 = vector.load %arg6[%c0_12, %c0_13, %c0_14] : memref<1x16x1024xf32, #tpu.memory_space<vmem>>, vector<1x16x1024xf32>
    %57 = vector.shape_cast %56 : vector<1x16x1024xf32> to vector<16x1024xf32>
    %58 = vector.shape_cast %55 : vector<16x1024xf32> to vector<1x16x1024xf32>
    tpu.vector_store %arg6[%c0_12, %c0_13, %c0_14], %58 {strides = array<i32>} : memref<1x16x1024xf32, #tpu.memory_space<vmem>>, vector<1x16x1024xf32>,
    return
  }
  func.func @transform_0(%arg0: i32) -> (i32, i32, i32) {
    %c0_i32 = arith.constant 0 : i32
    %c0_i32_0 = arith.constant 0 : i32
    %c0_i32_1 = arith.constant 0 : i32
    return %arg0, %c0_i32, %c0_i32_0 : i32, i32, i32
  }
  func.func @transform_1(%arg0: i32) -> (i32, i32) {
    %c0_i32 = arith.constant 0 : i32
    %c0_i32_0 = arith.constant 0 : i32
    %c0_i32_1 = arith.constant 0 : i32
    return %c0_i32, %c0_i32_0 : i32, i32
  }
  func.func @transform_2(%arg0: i32) -> (i32, i32) {
    %c0_i32 = arith.constant 0 : i32
    %c0_i32_0 = arith.constant 0 : i32
    %c0_i32_1 = arith.constant 0 : i32
    return %c0_i32, %c0_i32_0 : i32, i32
  }
  func.func @transform_3(%arg0: i32) -> (i32, i32) {
    %c0_i32 = arith.constant 0 : i32
    %c0_i32_0 = arith.constant 0 : i32
    %c0_i32_1 = arith.constant 0 : i32
    return %c0_i32, %c0_i32_0 : i32, i32
  }
  func.func @transform_4(%arg0: i32) -> (i32, i32) {
    %c0_i32 = arith.constant 0 : i32
    %c0_i32_0 = arith.constant 0 : i32
    %c0_i32_1 = arith.constant 0 : i32
    return %c0_i32, %c0_i32_0 : i32, i32
  }
  func.func @transform_5(%arg0: i32) -> (i32, i32, i32) {
    %c0_i32 = arith.constant 0 : i32
    %c0_i32_0 = arith.constant 0 : i32
    %c0_i32_1 = arith.constant 0 : i32
    return %arg0, %c0_i32, %c0_i32_0 : i32, i32, i32
  }
}

</mosaic_0001>

<llo_original>
// kernel: tpu_custom_call.1
$region0: #{tpu_custom_call.1}
  #allocation0 [shape = 'u32[]', space=smem, size = 0x4, offset = 0x4, fixed_abs, tag = 'smem constant byte address 0x4 - core index']
  #allocation1 [shape = 'u32[144,128]{1,0:T(1,128)}', space=vmem, size = 0x12000, scoped, tag = 'internal scratch']
  %s0 = inlined_call_operand.hbm [shape: f32[1,8,256], index: 0, kind: input, shape index: {}]
  %s1 = inlined_call_operand.hbm [shape: f32[256,9216], index: 1, kind: input, shape index: {}]
  %s2 = inlined_call_operand.hbm [shape: f32[8,9], index: 2, kind: input, shape index: {}]
  %s3 = inlined_call_operand.vmem [shape: f32[16,8], index: 3, kind: input, shape index: {}]
  %s4 = inlined_call_operand.vmem [shape: f32[16,1], index: 4, kind: input, shape index: {}]
  %s5 = inlined_call_operand.hbm [shape: f32[1,16,1024], index: 5, kind: output, shape index: {}]
  %s6 = sld [smem:[#allocation0]]
  $region42: #{tpu_custom_call.1} parent=0
    _
  %s8 = ssub.s32 1, %s6
  %s9 = scalar_select 0, %s8, %s6
  $region1: #{tpu_custom_call.1} parent=0
    #allocation2 [shape = 'u8[8192]{0}', space=vmem, size = 0x2000, scoped, tag = 'input window, operand 0, single buffered']
    #allocation3 [shape = 's32[1]{0}', space=sflag, size = 0x4, scoped, tag = 'scoped memory for tpu_custom_call.1']
    #allocation4 [shape = 's32[1]{0}', space=sflag, size = 0x4, scoped, tag = 'scoped memory for tpu_custom_call.1']
    #allocation5 [shape = 'u8[9437184]{0}', space=vmem, size = 0x900000, scoped, tag = 'input window, operand 1, single buffered']
    #allocation6 [shape = 's32[1]{0}', space=sflag, size = 0x4, scoped, tag = 'scoped memory for tpu_custom_call.1']
    #allocation7 [shape = 'u8[4096]{0}', space=vmem, size = 0x1000, scoped, tag = 'input window, operand 2, single buffered']
    #allocation8 [shape = 'u8[65536]{0}', space=vmem, size = 0x10000, scoped, tag = 'output window, operand 0, single buffered']
    %10 = vsyncpa [#allocation3], 0
    %11 = vsyncpa [#allocation6], 0
    %12 = vsyncpa [#allocation4], 0
    // Predicated region
    $region2: #{tpu_custom_call.1} parent=1 // pred_check
      _
    $region3: #{tpu_custom_call.1} parent=1 // pred_check_branch
      %14 = sbr.rel (0) target = $region5
    $region4: #{tpu_custom_call.1} parent=1 // pred_region
      %s16 = ssub.s32 256, 256
      %17 = vsyncadd [#allocation3], %s16
      %s19 = sshll.u32 [#allocation2], 4
      %s20 = int_to_ptr.vmem [resolvable:$true] %s19
      %22 = dma.hbm_to_vmem [thread:$0]  %s0, 256, %s20, [#allocation3]
    $region5: #{tpu_custom_call.1} parent=1 // pred_fallthru
      _
    // Predicated region
    $region6: #{tpu_custom_call.1} parent=1 // pred_check
      _
    $region7: #{tpu_custom_call.1} parent=1 // pred_check_branch
      %24 = sbr.rel (0) target = $region9
    $region8: #{tpu_custom_call.1} parent=1 // pred_region
      %s26 = ssub.s32 294912, 294912
      %27 = vsyncadd [#allocation6], %s26
      %s28 = sshll.u32 [#allocation5], 4
      %s29 = int_to_ptr.vmem [resolvable:$true] %s28
      %34 = dma.hbm_to_vmem [thread:$0]  %s1, 294912, %s29, [#allocation6], 9216, 9216, 576
    $region9: #{tpu_custom_call.1} parent=1 // pred_fallthru
      _
    // Predicated region
    $region10: #{tpu_custom_call.1} parent=1 // pred_check
      _
    $region11: #{tpu_custom_call.1} parent=1 // pred_check_branch
      %36 = sbr.rel (0) target = $region13
    $region12: #{tpu_custom_call.1} parent=1 // pred_region
      %s38 = ssub.s32 128, 128
      %39 = vsyncadd [#allocation6], %s38
      %s41 = sshll.u32 [#allocation7], 4
      %s42 = int_to_ptr.vmem [resolvable:$true] %s41
      %44 = dma.hbm_to_vmem [thread:$0]  %s2, 128, %s42, [#allocation6]
    $region13: #{tpu_custom_call.1} parent=1 // pred_fallthru
      _
    // Predicated region
    $region14: #{tpu_custom_call.1} parent=1 // pred_check
      _
    $region15: #{tpu_custom_call.1} parent=1 // pred_check_branch
      %46 = sbr.rel (0) target = $region17
    $region16: #{tpu_custom_call.1} parent=1 // pred_region
      _
    $region17: #{tpu_custom_call.1} parent=1 // pred_fallthru
      _
    // Predicated region
    $region18: #{tpu_custom_call.1} parent=1 // pred_check
      _
    $region19: #{tpu_custom_call.1} parent=1 // pred_check_branch
      %48 = sbr.rel (0) target = $region21
    $region20: #{tpu_custom_call.1} parent=1 // pred_region
      _
    $region21: #{tpu_custom_call.1} parent=1 // pred_fallthru
      _
    // Predicated region
    $region22: #{tpu_custom_call.1} parent=1 // pred_check
      _
    $region23: #{tpu_custom_call.1} parent=1 // pred_check_branch
      %50 = sbr.rel (0) target = $region25
    $region24: #{tpu_custom_call.1} parent=1 // pred_region
      %51 = dma.done [#allocation3], 256
    $region25: #{tpu_custom_call.1} parent=1 // pred_fallthru
      _
    // Predicated region
    $region26: #{tpu_custom_call.1} parent=1 // pred_check
      _
    $region27: #{tpu_custom_call.1} parent=1 // pred_check_branch
      %53 = sbr.rel (0) target = $region29
    $region28: #{tpu_custom_call.1} parent=1 // pred_region
      %54 = dma.done [#allocation6], 294912
    $region29: #{tpu_custom_call.1} parent=1 // pred_fallthru
      _
    // Predicated region
    $region30: #{tpu_custom_call.1} parent=1 // pred_check
      _
    $region31: #{tpu_custom_call.1} parent=1 // pred_check_branch
      %56 = sbr.rel (0) target = $region33
    $region32: #{tpu_custom_call.1} parent=1 // pred_region
      %57 = dma.done [#allocation6], 128
    $region33: #{tpu_custom_call.1} parent=1 // pred_fallthru
      _
    %v58 = vld [vmem:[#allocation2] sm:$0xff]
    %v59 = vld [vmem:[#allocation2 + $0x8] sm:$0xff]
    %v60 = vld [vmem:[#allocation5] sm:$0xff]
    %v61 = vld [vmem:[#allocation5 + $0x8] sm:$0xff]
    %v62 = vld [vmem:[#allocation5 + $0x10] sm:$0xff]
    %v63 = vld [vmem:[#allocation5 + $0x18] sm:$0xff]
    %v64 = vld [vmem:[#allocation5 + $0x20] sm:$0xff]
    %v65 = vld [vmem:[#allocation5 + $0x28] sm:$0xff]
    %v66 = vld [vmem:[#allocation5 + $0x30] sm:$0xff]
    %v67 = vld [vmem:[#allocation5 + $0x38] sm:$0xff]
    %v68 = vld [vmem:[#allocation5 + $0x40] sm:$0xff]
    %v69 = vld [vmem:[#allocation5 + $0x48] sm:$0xff]
    %v70 = vld [vmem:[#allocation5 + $0x50] sm:$0xff]
    %v71 = vld [vmem:[#allocation5 + $0x58] sm:$0xff]
    %v72 = vld [vmem:[#allocation5 + $0x60] sm:$0xff]
    %v73 = vld [vmem:[#allocation5 + $0x68] sm:$0xff]
    %v74 = vld [vmem:[#allocation5 + $0x70] sm:$0xff]
    %v75 = vld [vmem:[#allocation5 + $0x78] sm:$0xff]
    %v76 = vld [vmem:[#allocation5 + $0x80] sm:$0xff]
    %v77 = vld [vmem:[#allocation5 + $0x88] sm:$0xff]
    %v78 = vld [vmem:[#allocation5 + $0x90] sm:$0xff]
    %v79 = vld [vmem:[#allocation5 + $0x98] sm:$0xff]
    %v80 = vld [vmem:[#allocation5 + $0xa0] sm:$0xff]
    %v81 = vld [vmem:[#allocation5 + $0xa8] sm:$0xff]
    %v82 = vld [vmem:[#allocation5 + $0xb0] sm:$0xff]
    %v83 = vld [vmem:[#allocation5 + $0xb8] sm:$0xff]
    %v84 = vld [vmem:[#allocation5 + $0xc0] sm:$0xff]
    %v85 = vld [vmem:[#allocation5 + $0xc8] sm:$0xff]
    %v86 = vld [vmem:[#allocation5 + $0xd0] sm:$0xff]
    %v87 = vld [vmem:[#allocation5 + $0xd8] sm:$0xff]
    %v88 = vld [vmem:[#allocation5 + $0xe0] sm:$0xff]
    %v89 = vld [vmem:[#allocation5 + $0xe8] sm:$0xff]
    %v90 = vld [vmem:[#allocation5 + $0xf0] sm:$0xff]
    %v91 = vld [vmem:[#allocation5 + $0xf8] sm:$0xff]
    %v92 = vld [vmem:[#allocation5 + $0x100] sm:$0xff]
    %v93 = vld [vmem:[#allocation5 + $0x108] sm:$0xff]
    %v94 = vld [vmem:[#allocation5 + $0x110] sm:$0xff]
    %v95 = vld [vmem:[#allocation5 + $0x118] sm:$0xff]
    %v96 = vld [vmem:[#allocation5 + $0x120] sm:$0xff]
    %v97 = vld [vmem:[#allocation5 + $0x128] sm:$0xff]
    %v98 = vld [vmem:[#allocation5 + $0x130] sm:$0xff]
    %v99 = vld [vmem:[#allocation5 + $0x138] sm:$0xff]
    %v100 = vld [vmem:[#allocation5 + $0x140] sm:$0xff]
    %v101 = vld [vmem:[#allocation5 + $0x148] sm:$0xff]
    %v102 = vld [vmem:[#allocation5 + $0x150] sm:$0xff]
    %v103 = vld [vmem:[#allocation5 + $0x158] sm:$0xff]
    %v104 = vld [vmem:[#allocation5 + $0x160] sm:$0xff]
    %v105 = vld [vmem:[#allocation5 + $0x168] sm:$0xff]
    %v106 = vld [vmem:[#allocation5 + $0x170] sm:$0xff]
    %v107 = vld [vmem:[#allocation5 + $0x178] sm:$0xff]
    %v108 = vld [vmem:[#allocation5 + $0x180] sm:$0xff]
    %v109 = vld [vmem:[#allocation5 + $0x188] sm:$0xff]
    %v110 = vld [vmem:[#allocation5 + $0x190] sm:$0xff]
    %v111 = vld [vmem:[#allocation5 + $0x198] sm:$0xff]
    %v112 = vld [vmem:[#allocation5 + $0x1a0] sm:$0xff]
    %v113 = vld [vmem:[#allocation5 + $0x1a8] sm:$0xff]
    %v114 = vld [vmem:[#allocation5 + $0x1b0] sm:$0xff]
    %v115 = vld [vmem:[#allocation5 + $0x1b8] sm:$0xff]
    %v116 = vld [vmem:[#allocation5 + $0x1c0] sm:$0xff]
    %v117 = vld [vmem:[#allocation5 + $0x1c8] sm:$0xff]
    %v118 = vld [vmem:[#allocation5 + $0x1d0] sm:$0xff]
    %v119 = vld [vmem:[#allocation5 + $0x1d8] sm:$0xff]
    %v120 = vld [vmem:[#allocation5 + $0x1e0] sm:$0xff]
    %v121 = vld [vmem:[#allocation5 + $0x1e8] sm:$0xff]
    %v122 = vld [vmem:[#allocation5 + $0x1f0] sm:$0xff]
    %v123 = vld [vmem:[#allocation5 + $0x1f8] sm:$0xff]
    %v124 = vld [vmem:[#allocation5 + $0x200] sm:$0xff]
    %v125 = vld [vmem:[#allocation5 + $0x208] sm:$0xff]
    %v126 = vld [vmem:[#allocation5 + $0x210] sm:$0xff]
    %v127 = vld [vmem:[#allocation5 + $0x218] sm:$0xff]
    %v128 = vld [vmem:[#allocation5 + $0x220] sm:$0xff]
    %v129 = vld [vmem:[#allocation5 + $0x228] sm:$0xff]
    %v130 = vld [vmem:[#allocation5 + $0x230] sm:$0xff]
    %v131 = vld [vmem:[#allocation5 + $0x238] sm:$0xff]
    %v132 = vld [vmem:[#allocation5 + $0x240] sm:$0xff]
    %v133 = vld [vmem:[#allocation5 + $0x248] sm:$0xff]
    %v134 = vld [vmem:[#allocation5 + $0x250] sm:$0xff]
    %v135 = vld [vmem:[#allocation5 + $0x258] sm:$0xff]
    %v136 = vld [vmem:[#allocation5 + $0x260] sm:$0xff]
    %v137 = vld [vmem:[#allocation5 + $0x268] sm:$0xff]
    %v138 = vld [vmem:[#allocation5 + $0x270] sm:$0xff]
    %v139 = vld [vmem:[#allocation5 + $0x278] sm:$0xff]
    %v140 = vld [vmem:[#allocation5 + $0x280] sm:$0xff]
    %v141 = vld [vmem:[#allocation5 + $0x288] sm:$0xff]
    %v142 = vld [vmem:[#allocation5 + $0x290] sm:$0xff]
    %v143 = vld [vmem:[#allocation5 + $0x298] sm:$0xff]
    %v144 = vld [vmem:[#allocation5 + $0x2a0] sm:$0xff]
    %v145 = vld [vmem:[#allocation5 + $0x2a8] sm:$0xff]
    %v146 = vld [vmem:[#allocation5 + $0x2b0] sm:$0xff]
    %v147 = vld [vmem:[#allocation5 + $0x2b8] sm:$0xff]
    %v148 = vld [vmem:[#allocation5 + $0x2c0] sm:$0xff]
    %v149 = vld [vmem:[#allocation5 + $0x2c8] sm:$0xff]
    %v150 = vld [vmem:[#allocation5 + $0x2d0] sm:$0xff]
    %v151 = vld [vmem:[#allocation5 + $0x2d8] sm:$0xff]
    %v152 = vld [vmem:[#allocation5 + $0x2e0] sm:$0xff]
    %v153 = vld [vmem:[#allocation5 + $0x2e8] sm:$0xff]
    %v154 = vld [vmem:[#allocation5 + $0x2f0] sm:$0xff]
    %v155 = vld [vmem:[#allocation5 + $0x2f8] sm:$0xff]
    %v156 = vld [vmem:[#allocation5 + $0x300] sm:$0xff]
    %v157 = vld [vmem:[#allocation5 + $0x308] sm:$0xff]
    %v158 = vld [vmem:[#allocation5 + $0x310] sm:$0xff]
    %v159 = vld [vmem:[#allocation5 + $0x318] sm:$0xff]
    %v160 = vld [vmem:[#allocation5 + $0x320] sm:$0xff]
    %v161 = vld [vmem:[#allocation5 + $0x328] sm:$0xff]
    %v162 = vld [vmem:[#allocation5 + $0x330] sm:$0xff]
    %v163 = vld [vmem:[#allocation5 + $0x338] sm:$0xff]
    %v164 = vld [vmem:[#allocation5 + $0x340] sm:$0xff]
    %v165 = vld [vmem:[#allocation5 + $0x348] sm:$0xff]
    %v166 = vld [vmem:[#allocation5 + $0x350] sm:$0xff]
    %v167 = vld [vmem:[#allocation5 + $0x358] sm:$0xff]
    %v168 = vld [vmem:[#allocation5 + $0x360] sm:$0xff]
    %v169 = vld [vmem:[#allocation5 + $0x368] sm:$0xff]
    %v170 = vld [vmem:[#allocation5 + $0x370] sm:$0xff]
    %v171 = vld [vmem:[#allocation5 + $0x378] sm:$0xff]
    %v172 = vld [vmem:[#allocation5 + $0x380] sm:$0xff]
    %v173 = vld [vmem:[#allocation5 + $0x388] sm:$0xff]
    %v174 = vld [vmem:[#allocation5 + $0x390] sm:$0xff]
    %v175 = vld [vmem:[#allocation5 + $0x398] sm:$0xff]
    %v176 = vld [vmem:[#allocation5 + $0x3a0] sm:$0xff]
    %v177 = vld [vmem:[#allocation5 + $0x3a8] sm:$0xff]
    %v178 = vld [vmem:[#allocation5 + $0x3b0] sm:$0xff]
    %v179 = vld [vmem:[#allocation5 + $0x3b8] sm:$0xff]
    %v180 = vld [vmem:[#allocation5 + $0x3c0] sm:$0xff]
    %v181 = vld [vmem:[#allocation5 + $0x3c8] sm:$0xff]
    %v182 = vld [vmem:[#allocation5 + $0x3d0] sm:$0xff]
    %v183 = vld [vmem:[#allocation5 + $0x3d8] sm:$0xff]
    %v184 = vld [vmem:[#allocation5 + $0x3e0] sm:$0xff]
    %v185 = vld [vmem:[#allocation5 + $0x3e8] sm:$0xff]
    %v186 = vld [vmem:[#allocation5 + $0x3f0] sm:$0xff]
    %v187 = vld [vmem:[#allocation5 + $0x3f8] sm:$0xff]
    %v188 = vld [vmem:[#allocation5 + $0x400] sm:$0xff]
    %v189 = vld [vmem:[#allocation5 + $0x408] sm:$0xff]
    %v190 = vld [vmem:[#allocation5 + $0x410] sm:$0xff]
    %v191 = vld [vmem:[#allocation5 + $0x418] sm:$0xff]
    %v192 = vld [vmem:[#allocation5 + $0x420] sm:$0xff]
    %v193 = vld [vmem:[#allocation5 + $0x428] sm:$0xff]
    %v194 = vld [vmem:[#allocation5 + $0x430] sm:$0xff]
    %v195 = vld [vmem:[#allocation5 + $0x438] sm:$0xff]
    %v196 = vld [vmem:[#allocation5 + $0x440] sm:$0xff]
    %v197 = vld [vmem:[#allocation5 + $0x448] sm:$0xff]
    %v198 = vld [vmem:[#allocation5 + $0x450] sm:$0xff]
    %v199 = vld [vmem:[#allocation5 + $0x458] sm:$0xff]
    %v200 = vld [vmem:[#allocation5 + $0x460] sm:$0xff]
    %v201 = vld [vmem:[#allocation5 + $0x468] sm:$0xff]
    %v202 = vld [vmem:[#allocation5 + $0x470] sm:$0xff]
    %v203 = vld [vmem:[#allocation5 + $0x478] sm:$0xff]
    %v204 = vld [vmem:[#allocation5 + $0x480] sm:$0xff]
    %v205 = vld [vmem:[#allocation5 + $0x488] sm:$0xff]
    %v206 = vld [vmem:[#allocation5 + $0x490] sm:$0xff]
    %v207 = vld [vmem:[#allocation5 + $0x498] sm:$0xff]
    %v208 = vld [vmem:[#allocation5 + $0x4a0] sm:$0xff]
    %v209 = vld [vmem:[#allocation5 + $0x4a8] sm:$0xff]
    %v210 = vld [vmem:[#allocation5 + $0x4b0] sm:$0xff]
    %v211 = vld [vmem:[#allocation5 + $0x4b8] sm:$0xff]
    %v212 = vld [vmem:[#allocation5 + $0x4c0] sm:$0xff]
    %v213 = vld [vmem:[#allocation5 + $0x4c8] sm:$0xff]
    %v214 = vld [vmem:[#allocation5 + $0x4d0] sm:$0xff]
    %v215 = vld [vmem:[#allocation5 + $0x4d8] sm:$0xff]
    %v216 = vld [vmem:[#allocation5 + $0x4e0] sm:$0xff]
    %v217 = vld [vmem:[#allocation5 + $0x4e8] sm:$0xff]
    %v218 = vld [vmem:[#allocation5 + $0x4f0] sm:$0xff]
    %v219 = vld [vmem:[#allocation5 + $0x4f8] sm:$0xff]
    %v220 = vld [vmem:[#allocation5 + $0x500] sm:$0xff]
    %v221 = vld [vmem:[#allocation5 + $0x508] sm:$0xff]
    %v222 = vld [vmem:[#allocation5 + $0x510] sm:$0xff]
    %v223 = vld [vmem:[#allocation5 + $0x518] sm:$0xff]
    %v224 = vld [vmem:[#allocation5 + $0x520] sm:$0xff]
    %v225 = vld [vmem:[#allocation5 + $0x528] sm:$0xff]
    %v226 = vld [vmem:[#allocation5 + $0x530] sm:$0xff]
    %v227 = vld [vmem:[#allocation5 + $0x538] sm:$0xff]
    %v228 = vld [vmem:[#allocation5 + $0x540] sm:$0xff]
    %v229 = vld [vmem:[#allocation5 + $0x548] sm:$0xff]
    %v230 = vld [vmem:[#allocation5 + $0x550] sm:$0xff]
    %v231 = vld [vmem:[#allocation5 + $0x558] sm:$0xff]
    %v232 = vld [vmem:[#allocation5 + $0x560] sm:$0xff]
    %v233 = vld [vmem:[#allocation5 + $0x568] sm:$0xff]
    %v234 = vld [vmem:[#allocation5 + $0x570] sm:$0xff]
    %v235 = vld [vmem:[#allocation5 + $0x578] sm:$0xff]
    %v236 = vld [vmem:[#allocation5 + $0x580] sm:$0xff]
    %v237 = vld [vmem:[#allocation5 + $0x588] sm:$0xff]
    %v238 = vld [vmem:[#allocation5 + $0x590] sm:$0xff]
    %v239 = vld [vmem:[#allocation5 + $0x598] sm:$0xff]
    %v240 = vld [vmem:[#allocation5 + $0x5a0] sm:$0xff]
    %v241 = vld [vmem:[#allocation5 + $0x5a8] sm:$0xff]
    %v242 = vld [vmem:[#allocation5 + $0x5b0] sm:$0xff]
    %v243 = vld [vmem:[#allocation5 + $0x5b8] sm:$0xff]
    %v244 = vld [vmem:[#allocation5 + $0x5c0] sm:$0xff]
    %v245 = vld [vmem:[#allocation5 + $0x5c8] sm:$0xff]
    %v246 = vld [vmem:[#allocation5 + $0x5d0] sm:$0xff]
    %v247 = vld [vmem:[#allocation5 + $0x5d8] sm:$0xff]
    %v248 = vld [vmem:[#allocation5 + $0x5e0] sm:$0xff]
    %v249 = vld [vmem:[#allocation5 + $0x5e8] sm:$0xff]
    %v250 = vld [vmem:[#allocation5 + $0x5f0] sm:$0xff]
    %v251 = vld [vmem:[#allocation5 + $0x5f8] sm:$0xff]
    %v252 = vld [vmem:[#allocation5 + $0x600] sm:$0xff]
    %v253 = vld [vmem:[#allocation5 + $0x608] sm:$0xff]
    %v254 = vld [vmem:[#allocation5 + $0x610] sm:$0xff]
    %v255 = vld [vmem:[#allocation5 + $0x618] sm:$0xff]
    %v256 = vld [vmem:[#allocation5 + $0x620] sm:$0xff]
    %v257 = vld [vmem:[#allocation5 + $0x628] sm:$0xff]
    %v258 = vld [vmem:[#allocation5 + $0x630] sm:$0xff]
    %v259 = vld [vmem:[#allocation5 + $0x638] sm:$0xff]
    %v260 = vld [vmem:[#allocation5 + $0x640] sm:$0xff]
    %v261 = vld [vmem:[#allocation5 + $0x648] sm:$0xff]
    %v262 = vld [vmem:[#allocation5 + $0x650] sm:$0xff]
    %v263 = vld [vmem:[#allocation5 + $0x658] sm:$0xff]
    %v264 = vld [vmem:[#allocation5 + $0x660] sm:$0xff]
    %v265 = vld [vmem:[#allocation5 + $0x668] sm:$0xff]
    %v266 = vld [vmem:[#allocation5 + $0x670] sm:$0xff]
    %v267 = vld [vmem:[#allocation5 + $0x678] sm:$0xff]
    %v268 = vld [vmem:[#allocation5 + $0x680] sm:$0xff]
    %v269 = vld [vmem:[#allocation5 + $0x688] sm:$0xff]
    %v270 = vld [vmem:[#allocation5 + $0x690] sm:$0xff]
    %v271 = vld [vmem:[#allocation5 + $0x698] sm:$0xff]
    %v272 = vld [vmem:[#allocation5 + $0x6a0] sm:$0xff]
    %v273 = vld [vmem:[#allocation5 + $0x6a8] sm:$0xff]
    %v274 = vld [vmem:[#allocation5 + $0x6b0] sm:$0xff]
    %v275 = vld [vmem:[#allocation5 + $0x6b8] sm:$0xff]
    %v276 = vld [vmem:[#allocation5 + $0x6c0] sm:$0xff]
    %v277 = vld [vmem:[#allocation5 + $0x6c8] sm:$0xff]
    %v278 = vld [vmem:[#allocation5 + $0x6d0] sm:$0xff]
    %v279 = vld [vmem:[#allocation5 + $0x6d8] sm:$0xff]
    %v280 = vld [vmem:[#allocation5 + $0x6e0] sm:$0xff]
    %v281 = vld [vmem:[#allocation5 + $0x6e8] sm:$0xff]
    %v282 = vld [vmem:[#allocation5 + $0x6f0] sm:$0xff]
    %v283 = vld [vmem:[#allocation5 + $0x6f8] sm:$0xff]
    %v284 = vld [vmem:[#allocation5 + $0x700] sm:$0xff]
    %v285 = vld [vmem:[#allocation5 + $0x708] sm:$0xff]
    %v286 = vld [vmem:[#allocation5 + $0x710] sm:$0xff]
    %v287 = vld [vmem:[#allocation5 + $0x718] sm:$0xff]
    %v288 = vld [vmem:[#allocation5 + $0x720] sm:$0xff]
    %v289 = vld [vmem:[#allocation5 + $0x728] sm:$0xff]
    %v290 = vld [vmem:[#allocation5 + $0x730] sm:$0xff]
    %v291 = vld [vmem:[#allocation5 + $0x738] sm:$0xff]
    %v292 = vld [vmem:[#allocation5 + $0x740] sm:$0xff]
    %v293 = vld [vmem:[#allocation5 + $0x748] sm:$0xff]
    %v294 = vld [vmem:[#allocation5 + $0x750] sm:$0xff]
    %v295 = vld [vmem:[#allocation5 + $0x758] sm:$0xff]
    %v296 = vld [vmem:[#allocation5 + $0x760] sm:$0xff]
    %v297 = vld [vmem:[#allocation5 + $0x768] sm:$0xff]
    %v298 = vld [vmem:[#allocation5 + $0x770] sm:$0xff]
    %v299 = vld [vmem:[#allocation5 + $0x778] sm:$0xff]
    %v300 = vld [vmem:[#allocation5 + $0x780] sm:$0xff]
    %v301 = vld [vmem:[#allocation5 + $0x788] sm:$0xff]
    %v302 = vld [vmem:[#allocation5 + $0x790] sm:$0xff]
    %v303 = vld [vmem:[#allocation5 + $0x798] sm:$0xff]
    %v304 = vld [vmem:[#allocation5 + $0x7a0] sm:$0xff]
    %v305 = vld [vmem:[#allocation5 + $0x7a8] sm:$0xff]
    %v306 = vld [vmem:[#allocation5 + $0x7b0] sm:$0xff]
    %v307 = vld [vmem:[#allocation5 + $0x7b8] sm:$0xff]
    %v308 = vld [vmem:[#allocation5 + $0x7c0] sm:$0xff]
    %v309 = vld [vmem:[#allocation5 + $0x7c8] sm:$0xff]
    %v310 = vld [vmem:[#allocation5 + $0x7d0] sm:$0xff]
    %v311 = vld [vmem:[#allocation5 + $0x7d8] sm:$0xff]
    %v312 = vld [vmem:[#allocation5 + $0x7e0] sm:$0xff]
    %v313 = vld [vmem:[#allocation5 + $0x7e8] sm:$0xff]
    %v314 = vld [vmem:[#allocation5 + $0x7f0] sm:$0xff]
    %v315 = vld [vmem:[#allocation5 + $0x7f8] sm:$0xff]
    %v316 = vld [vmem:[#allocation5 + $0x800] sm:$0xff]
    %v317 = vld [vmem:[#allocation5 + $0x808] sm:$0xff]
    %v318 = vld [vmem:[#allocation5 + $0x810] sm:$0xff]
    %v319 = vld [vmem:[#allocation5 + $0x818] sm:$0xff]
    %v320 = vld [vmem:[#allocation5 + $0x820] sm:$0xff]
    %v321 = vld [vmem:[#allocation5 + $0x828] sm:$0xff]
    %v322 = vld [vmem:[#allocation5 + $0x830] sm:$0xff]
    %v323 = vld [vmem:[#allocation5 + $0x838] sm:$0xff]
    %v324 = vld [vmem:[#allocation5 + $0x840] sm:$0xff]
    %v325 = vld [vmem:[#allocation5 + $0x848] sm:$0xff]
    %v326 = vld [vmem:[#allocation5 + $0x850] sm:$0xff]
    %v327 = vld [vmem:[#allocation5 + $0x858] sm:$0xff]
    %v328 = vld [vmem:[#allocation5 + $0x860] sm:$0xff]
    %v329 = vld [vmem:[#allocation5 + $0x868] sm:$0xff]
    %v330 = vld [vmem:[#allocation5 + $0x870] sm:$0xff]
    %v331 = vld [vmem:[#allocation5 + $0x878] sm:$0xff]
    %v332 = vld [vmem:[#allocation5 + $0x880] sm:$0xff]
    %v333 = vld [vmem:[#allocation5 + $0x888] sm:$0xff]
    %v334 = vld [vmem:[#allocation5 + $0x890] sm:$0xff]
    %v335 = vld [vmem:[#allocation5 + $0x898] sm:$0xff]
    %v336 = vld [vmem:[#allocation5 + $0x8a0] sm:$0xff]
    %v337 = vld [vmem:[#allocation5 + $0x8a8] sm:$0xff]
    %v338 = vld [vmem:[#allocation5 + $0x8b0] sm:$0xff]
    %v339 = vld [vmem:[#allocation5 + $0x8b8] sm:$0xff]
    %v340 = vld [vmem:[#allocation5 + $0x8c0] sm:$0xff]
    %v341 = vld [vmem:[#allocation5 + $0x8c8] sm:$0xff]
    %v342 = vld [vmem:[#allocation5 + $0x8d0] sm:$0xff]
    %v343 = vld [vmem:[#allocation5 + $0x8d8] sm:$0xff]
    %v344 = vld [vmem:[#allocation5 + $0x8e0] sm:$0xff]
    %v345 = vld [vmem:[#allocation5 + $0x8e8] sm:$0xff]
    %v346 = vld [vmem:[#allocation5 + $0x8f0] sm:$0xff]
    %v347 = vld [vmem:[#allocation5 + $0x8f8] sm:$0xff]
    %v348 = vld [vmem:[#allocation5 + $0x900] sm:$0xff]
    %v349 = vld [vmem:[#allocation5 + $0x908] sm:$0xff]
    %v350 = vld [vmem:[#allocation5 + $0x910] sm:$0xff]
    %v351 = vld [vmem:[#allocation5 + $0x918] sm:$0xff]
    %v352 = vld [vmem:[#allocation5 + $0x920] sm:$0xff]
    %v353 = vld [vmem:[#allocation5 + $0x928] sm:$0xff]
    %v354 = vld [vmem:[#allocation5 + $0x930] sm:$0xff]
    %v355 = vld [vmem:[#allocation5 + $0x938] sm:$0xff]
    %v356 = vld [vmem:[#allocation5 + $0x940] sm:$0xff]
    %v357 = vld [vmem:[#allocation5 + $0x948] sm:$0xff]
    %v358 = vld [vmem:[#allocation5 + $0x950] sm:$0xff]
    %v359 = vld [vmem:[#allocation5 + $0x958] sm:$0xff]
    %v360 = vld [vmem:[#allocation5 + $0x960] sm:$0xff]
    %v361 = vld [vmem:[#allocation5 + $0x968] sm:$0xff]
    %v362 = vld [vmem:[#allocation5 + $0x970] sm:$0xff]
    %v363 = vld [vmem:[#allocation5 + $0x978] sm:$0xff]
    %v364 = vld [vmem:[#allocation5 + $0x980] sm:$0xff]
    %v365 = vld [vmem:[#allocation5 + $0x988] sm:$0xff]
    %v366 = vld [vmem:[#allocation5 + $0x990] sm:$0xff]
    %v367 = vld [vmem:[#allocation5 + $0x998] sm:$0xff]
    %v368 = vld [vmem:[#allocation5 + $0x9a0] sm:$0xff]
    %v369 = vld [vmem:[#allocation5 + $0x9a8] sm:$0xff]
    %v370 = vld [vmem:[#allocation5 + $0x9b0] sm:$0xff]
    %v371 = vld [vmem:[#allocation5 + $0x9b8] sm:$0xff]
    %v372 = vld [vmem:[#allocation5 + $0x9c0] sm:$0xff]
    %v373 = vld [vmem:[#allocation5 + $0x9c8] sm:$0xff]
    %v374 = vld [vmem:[#allocation5 + $0x9d0] sm:$0xff]
    %v375 = vld [vmem:[#allocation5 + $0x9d8] sm:$0xff]
    %v376 = vld [vmem:[#allocation5 + $0x9e0] sm:$0xff]
    %v377 = vld [vmem:[#allocation5 + $0x9e8] sm:$0xff]
    %v378 = vld [vmem:[#allocation5 + $0x9f0] sm:$0xff]
    %v379 = vld [vmem:[#allocation5 + $0x9f8] sm:$0xff]
    %v380 = vld [vmem:[#allocation5 + $0xa00] sm:$0xff]
    %v381 = vld [vmem:[#allocation5 + $0xa08] sm:$0xff]
    %v382 = vld [vmem:[#allocation5 + $0xa10] sm:$0xff]
    %v383 = vld [vmem:[#allocation5 + $0xa18] sm:$0xff]
    %v384 = vld [vmem:[#allocation5 + $0xa20] sm:$0xff]
    %v385 = vld [vmem:[#allocation5 + $0xa28] sm:$0xff]
    %v386 = vld [vmem:[#allocation5 + $0xa30] sm:$0xff]
    %v387 = vld [vmem:[#allocation5 + $0xa38] sm:$0xff]
    %v388 = vld [vmem:[#allocation5 + $0xa40] sm:$0xff]
    %v389 = vld [vmem:[#allocation5 + $0xa48] sm:$0xff]
    %v390 = vld [vmem:[#allocation5 + $0xa50] sm:$0xff]
    %v391 = vld [vmem:[#allocation5 + $0xa58] sm:$0xff]
    %v392 = vld [vmem:[#allocation5 + $0xa60] sm:$0xff]
    %v393 = vld [vmem:[#allocation5 + $0xa68] sm:$0xff]
    %v394 = vld [vmem:[#allocation5 + $0xa70] sm:$0xff]
    %v395 = vld [vmem:[#allocation5 + $0xa78] sm:$0xff]
    %v396 = vld [vmem:[#allocation5 + $0xa80] sm:$0xff]
    %v397 = vld [vmem:[#allocation5 + $0xa88] sm:$0xff]
    %v398 = vld [vmem:[#allocation5 + $0xa90] sm:$0xff]
    %v399 = vld [vmem:[#allocation5 + $0xa98] sm:$0xff]
    %v400 = vld [vmem:[#allocation5 + $0xaa0] sm:$0xff]
    %v401 = vld [vmem:[#allocation5 + $0xaa8] sm:$0xff]
    %v402 = vld [vmem:[#allocation5 + $0xab0] sm:$0xff]
    %v403 = vld [vmem:[#allocation5 + $0xab8] sm:$0xff]
    %v404 = vld [vmem:[#allocation5 + $0xac0] sm:$0xff]
    %v405 = vld [vmem:[#allocation5 + $0xac8] sm:$0xff]
    %v406 = vld [vmem:[#allocation5 + $0xad0] sm:$0xff]
    %v407 = vld [vmem:[#allocation5 + $0xad8] sm:$0xff]
    %v408 = vld [vmem:[#allocation5 + $0xae0] sm:$0xff]
    %v409 = vld [vmem:[#allocation5 + $0xae8] sm:$0xff]
    %v410 = vld [vmem:[#allocation5 + $0xaf0] sm:$0xff]
    %v411 = vld [vmem:[#allocation5 + $0xaf8] sm:$0xff]
    %v412 = vld [vmem:[#allocation5 + $0xb00] sm:$0xff]
    %v413 = vld [vmem:[#allocation5 + $0xb08] sm:$0xff]
    %v414 = vld [vmem:[#allocation5 + $0xb10] sm:$0xff]
    %v415 = vld [vmem:[#allocation5 + $0xb18] sm:$0xff]
    %v416 = vld [vmem:[#allocation5 + $0xb20] sm:$0xff]
    %v417 = vld [vmem:[#allocation5 + $0xb28] sm:$0xff]
    %v418 = vld [vmem:[#allocation5 + $0xb30] sm:$0xff]
    %v419 = vld [vmem:[#allocation5 + $0xb38] sm:$0xff]
    %v420 = vld [vmem:[#allocation5 + $0xb40] sm:$0xff]
    %v421 = vld [vmem:[#allocation5 + $0xb48] sm:$0xff]
    %v422 = vld [vmem:[#allocation5 + $0xb50] sm:$0xff]
    %v423 = vld [vmem:[#allocation5 + $0xb58] sm:$0xff]
    %v424 = vld [vmem:[#allocation5 + $0xb60] sm:$0xff]
    %v425 = vld [vmem:[#allocation5 + $0xb68] sm:$0xff]
    %v426 = vld [vmem:[#allocation5 + $0xb70] sm:$0xff]
    %v427 = vld [vmem:[#allocation5 + $0xb78] sm:$0xff]
    %v428 = vld [vmem:[#allocation5 + $0xb80] sm:$0xff]
    %v429 = vld [vmem:[#allocation5 + $0xb88] sm:$0xff]
    %v430 = vld [vmem:[#allocation5 + $0xb90] sm:$0xff]
    %v431 = vld [vmem:[#allocation5 + $0xb98] sm:$0xff]
    %v432 = vld [vmem:[#allocation5 + $0xba0] sm:$0xff]
    %v433 = vld [vmem:[#allocation5 + $0xba8] sm:$0xff]
    %v434 = vld [vmem:[#allocation5 + $0xbb0] sm:$0xff]
    %v435 = vld [vmem:[#allocation5 + $0xbb8] sm:$0xff]
    %v436 = vld [vmem:[#allocation5 + $0xbc0] sm:$0xff]
    %v437 = vld [vmem:[#allocation5 + $0xbc8] sm:$0xff]
    %v438 = vld [vmem:[#allocation5 + $0xbd0] sm:$0xff]
    %v439 = vld [vmem:[#allocation5 + $0xbd8] sm:$0xff]
    %v440 = vld [vmem:[#allocation5 + $0xbe0] sm:$0xff]
    %v441 = vld [vmem:[#allocation5 + $0xbe8] sm:$0xff]
    %v442 = vld [vmem:[#allocation5 + $0xbf0] sm:$0xff]
    %v443 = vld [vmem:[#allocation5 + $0xbf8] sm:$0xff]
    %v444 = vld [vmem:[#allocation5 + $0xc00] sm:$0xff]
    %v445 = vld [vmem:[#allocation5 + $0xc08] sm:$0xff]
    %v446 = vld [vmem:[#allocation5 + $0xc10] sm:$0xff]
    %v447 = vld [vmem:[#allocation5 + $0xc18] sm:$0xff]
    %v448 = vld [vmem:[#allocation5 + $0xc20] sm:$0xff]
    %v449 = vld [vmem:[#allocation5 + $0xc28] sm:$0xff]
    %v450 = vld [vmem:[#allocation5 + $0xc30] sm:$0xff]
    %v451 = vld [vmem:[#allocation5 + $0xc38] sm:$0xff]
    %v452 = vld [vmem:[#allocation5 + $0xc40] sm:$0xff]
    %v453 = vld [vmem:[#allocation5 + $0xc48] sm:$0xff]
    %v454 = vld [vmem:[#allocation5 + $0xc50] sm:$0xff]
    %v455 = vld [vmem:[#allocation5 + $0xc58] sm:$0xff]
    %v456 = vld [vmem:[#allocation5 + $0xc60] sm:$0xff]
    %v457 = vld [vmem:[#allocation5 + $0xc68] sm:$0xff]
    %v458 = vld [vmem:[#allocation5 + $0xc70] sm:$0xff]
    %v459 = vld [vmem:[#allocation5 + $0xc78] sm:$0xff]
    %v460 = vld [vmem:[#allocation5 + $0xc80] sm:$0xff]
    %v461 = vld [vmem:[#allocation5 + $0xc88] sm:$0xff]
    %v462 = vld [vmem:[#allocation5 + $0xc90] sm:$0xff]
    %v463 = vld [vmem:[#allocation5 + $0xc98] sm:$0xff]
    %v464 = vld [vmem:[#allocation5 + $0xca0] sm:$0xff]
    %v465 = vld [vmem:[#allocation5 + $0xca8] sm:$0xff]
    %v466 = vld [vmem:[#allocation5 + $0xcb0] sm:$0xff]
    %v467 = vld [vmem:[#allocation5 + $0xcb8] sm:$0xff]
    %v468 = vld [vmem:[#allocation5 + $0xcc0] sm:$0xff]
    %v469 = vld [vmem:[#allocation5 + $0xcc8] sm:$0xff]
    %v470 = vld [vmem:[#allocation5 + $0xcd0] sm:$0xff]
    %v471 = vld [vmem:[#allocation5 + $0xcd8] sm:$0xff]
    %v472 = vld [vmem:[#allocation5 + $0xce0] sm:$0xff]
    %v473 = vld [vmem:[#allocation5 + $0xce8] sm:$0xff]
    %v474 = vld [vmem:[#allocation5 + $0xcf0] sm:$0xff]
    %v475 = vld [vmem:[#allocation5 + $0xcf8] sm:$0xff]
    %v476 = vld [vmem:[#allocation5 + $0xd00] sm:$0xff]
    %v477 = vld [vmem:[#allocation5 + $0xd08] sm:$0xff]
    %v478 = vld [vmem:[#allocation5 + $0xd10] sm:$0xff]
    %v479 = vld [vmem:[#allocation5 + $0xd18] sm:$0xff]
    %v480 = vld [vmem:[#allocation5 + $0xd20] sm:$0xff]
    %v481 = vld [vmem:[#allocation5 + $0xd28] sm:$0xff]
    %v482 = vld [vmem:[#allocation5 + $0xd30] sm:$0xff]
    %v483 = vld [vmem:[#allocation5 + $0xd38] sm:$0xff]
    %v484 = vld [vmem:[#allocation5 + $0xd40] sm:$0xff]
    %v485 = vld [vmem:[#allocation5 + $0xd48] sm:$0xff]
    %v486 = vld [vmem:[#allocation5 + $0xd50] sm:$0xff]
    %v487 = vld [vmem:[#allocation5 + $0xd58] sm:$0xff]
    %v488 = vld [vmem:[#allocation5 + $0xd60] sm:$0xff]
    %v489 = vld [vmem:[#allocation5 + $0xd68] sm:$0xff]
    %v490 = vld [vmem:[#allocation5 + $0xd70] sm:$0xff]
    %v491 = vld [vmem:[#allocation5 + $0xd78] sm:$0xff]
    %v492 = vld [vmem:[#allocation5 + $0xd80] sm:$0xff]
    %v493 = vld [vmem:[#allocation5 + $0xd88] sm:$0xff]
    %v494 = vld [vmem:[#allocation5 + $0xd90] sm:$0xff]
    %v495 = vld [vmem:[#allocation5 + $0xd98] sm:$0xff]
    %v496 = vld [vmem:[#allocation5 + $0xda0] sm:$0xff]
    %v497 = vld [vmem:[#allocation5 + $0xda8] sm:$0xff]
    %v498 = vld [vmem:[#allocation5 + $0xdb0] sm:$0xff]
    %v499 = vld [vmem:[#allocation5 + $0xdb8] sm:$0xff]
    %v500 = vld [vmem:[#allocation5 + $0xdc0] sm:$0xff]
    %v501 = vld [vmem:[#allocation5 + $0xdc8] sm:$0xff]
    %v502 = vld [vmem:[#allocation5 + $0xdd0] sm:$0xff]
    %v503 = vld [vmem:[#allocation5 + $0xdd8] sm:$0xff]
    %v504 = vld [vmem:[#allocation5 + $0xde0] sm:$0xff]
    %v505 = vld [vmem:[#allocation5 + $0xde8] sm:$0xff]
    %v506 = vld [vmem:[#allocation5 + $0xdf0] sm:$0xff]
    %v507 = vld [vmem:[#allocation5 + $0xdf8] sm:$0xff]
    %v508 = vld [vmem:[#allocation5 + $0xe00] sm:$0xff]
    %v509 = vld [vmem:[#allocation5 + $0xe08] sm:$0xff]
    %v510 = vld [vmem:[#allocation5 + $0xe10] sm:$0xff]
    %v511 = vld [vmem:[#allocation5 + $0xe18] sm:$0xff]
    %v512 = vld [vmem:[#allocation5 + $0xe20] sm:$0xff]
    %v513 = vld [vmem:[#allocation5 + $0xe28] sm:$0xff]
    %v514 = vld [vmem:[#allocation5 + $0xe30] sm:$0xff]
    %v515 = vld [vmem:[#allocation5 + $0xe38] sm:$0xff]
    %v516 = vld [vmem:[#allocation5 + $0xe40] sm:$0xff]
    %v517 = vld [vmem:[#allocation5 + $0xe48] sm:$0xff]
    %v518 = vld [vmem:[#allocation5 + $0xe50] sm:$0xff]
    %v519 = vld [vmem:[#allocation5 + $0xe58] sm:$0xff]
    %v520 = vld [vmem:[#allocation5 + $0xe60] sm:$0xff]
    %v521 = vld [vmem:[#allocation5 + $0xe68] sm:$0xff]
    %v522 = vld [vmem:[#allocation5 + $0xe70] sm:$0xff]
    %v523 = vld [vmem:[#allocation5 + $0xe78] sm:$0xff]
    %v524 = vld [vmem:[#allocation5 + $0xe80] sm:$0xff]
    %v525 = vld [vmem:[#allocation5 + $0xe88] sm:$0xff]
    %v526 = vld [vmem:[#allocation5 + $0xe90] sm:$0xff]
    %v527 = vld [vmem:[#allocation5 + $0xe98] sm:$0xff]
    %v528 = vld [vmem:[#allocation5 + $0xea0] sm:$0xff]
    %v529 = vld [vmem:[#allocation5 + $0xea8] sm:$0xff]
    %v530 = vld [vmem:[#allocation5 + $0xeb0] sm:$0xff]
    %v531 = vld [vmem:[#allocation5 + $0xeb8] sm:$0xff]
    %v532 = vld [vmem:[#allocation5 + $0xec0] sm:$0xff]
    %v533 = vld [vmem:[#allocation5 + $0xec8] sm:$0xff]
    %v534 = vld [vmem:[#allocation5 + $0xed0] sm:$0xff]
    %v535 = vld [vmem:[#allocation5 + $0xed8] sm:$0xff]
    %v536 = vld [vmem:[#allocation5 + $0xee0] sm:$0xff]
    %v537 = vld [vmem:[#allocation5 + $0xee8] sm:$0xff]
    %v538 = vld [vmem:[#allocation5 + $0xef0] sm:$0xff]
    %v539 = vld [vmem:[#allocation5 + $0xef8] sm:$0xff]
    %v540 = vld [vmem:[#allocation5 + $0xf00] sm:$0xff]
    %v541 = vld [vmem:[#allocation5 + $0xf08] sm:$0xff]
    %v542 = vld [vmem:[#allocation5 + $0xf10] sm:$0xff]
    %v543 = vld [vmem:[#allocation5 + $0xf18] sm:$0xff]
    %v544 = vld [vmem:[#allocation5 + $0xf20] sm:$0xff]
    %v545 = vld [vmem:[#allocation5 + $0xf28] sm:$0xff]
    %v546 = vld [vmem:[#allocation5 + $0xf30] sm:$0xff]
    %v547 = vld [vmem:[#allocation5 + $0xf38] sm:$0xff]
    %v548 = vld [vmem:[#allocation5 + $0xf40] sm:$0xff]
    %v549 = vld [vmem:[#allocation5 + $0xf48] sm:$0xff]
    %v550 = vld [vmem:[#allocation5 + $0xf50] sm:$0xff]
    %v551 = vld [vmem:[#allocation5 + $0xf58] sm:$0xff]
    %v552 = vld [vmem:[#allocation5 + $0xf60] sm:$0xff]
    %v553 = vld [vmem:[#allocation5 + $0xf68] sm:$0xff]
    %v554 = vld [vmem:[#allocation5 + $0xf70] sm:$0xff]
    %v555 = vld [vmem:[#allocation5 + $0xf78] sm:$0xff]
    %v556 = vld [vmem:[#allocation5 + $0xf80] sm:$0xff]
    %v557 = vld [vmem:[#allocation5 + $0xf88] sm:$0xff]
    %v558 = vld [vmem:[#allocation5 + $0xf90] sm:$0xff]
    %v559 = vld [vmem:[#allocation5 + $0xf98] sm:$0xff]
    %v560 = vld [vmem:[#allocation5 + $0xfa0] sm:$0xff]
    %v561 = vld [vmem:[#allocation5 + $0xfa8] sm:$0xff]
    %v562 = vld [vmem:[#allocation5 + $0xfb0] sm:$0xff]
    %v563 = vld [vmem:[#allocation5 + $0xfb8] sm:$0xff]
    %v564 = vld [vmem:[#allocation5 + $0xfc0] sm:$0xff]
    %v565 = vld [vmem:[#allocation5 + $0xfc8] sm:$0xff]
    %v566 = vld [vmem:[#allocation5 + $0xfd0] sm:$0xff]
    %v567 = vld [vmem:[#allocation5 + $0xfd8] sm:$0xff]
    %v568 = vld [vmem:[#allocation5 + $0xfe0] sm:$0xff]
    %v569 = vld [vmem:[#allocation5 + $0xfe8] sm:$0xff]
    %v570 = vld [vmem:[#allocation5 + $0xff0] sm:$0xff]
    %v571 = vld [vmem:[#allocation5 + $0xff8] sm:$0xff]
    %v572 = vld [vmem:[#allocation5 + $0x1000] sm:$0xff]
    %v573 = vld [vmem:[#allocation5 + $0x1008] sm:$0xff]
    %v574 = vld [vmem:[#allocation5 + $0x1010] sm:$0xff]
    %v575 = vld [vmem:[#allocation5 + $0x1018] sm:$0xff]
    %v576 = vld [vmem:[#allocation5 + $0x1020] sm:$0xff]
    %v577 = vld [vmem:[#allocation5 + $0x1028] sm:$0xff]
    %v578 = vld [vmem:[#allocation5 + $0x1030] sm:$0xff]
    %v579 = vld [vmem:[#allocation5 + $0x1038] sm:$0xff]
    %v580 = vld [vmem:[#allocation5 + $0x1040] sm:$0xff]
    %v581 = vld [vmem:[#allocation5 + $0x1048] sm:$0xff]
    %v582 = vld [vmem:[#allocation5 + $0x1050] sm:$0xff]
    %v583 = vld [vmem:[#allocation5 + $0x1058] sm:$0xff]
    %v584 = vld [vmem:[#allocation5 + $0x1060] sm:$0xff]
    %v585 = vld [vmem:[#allocation5 + $0x1068] sm:$0xff]
    %v586 = vld [vmem:[#allocation5 + $0x1070] sm:$0xff]
    %v587 = vld [vmem:[#allocation5 + $0x1078] sm:$0xff]
    %v588 = vld [vmem:[#allocation5 + $0x1080] sm:$0xff]
    %v589 = vld [vmem:[#allocation5 + $0x1088] sm:$0xff]
    %v590 = vld [vmem:[#allocation5 + $0x1090] sm:$0xff]
    %v591 = vld [vmem:[#allocation5 + $0x1098] sm:$0xff]
    %v592 = vld [vmem:[#allocation5 + $0x10a0] sm:$0xff]
    %v593 = vld [vmem:[#allocation5 + $0x10a8] sm:$0xff]
    %v594 = vld [vmem:[#allocation5 + $0x10b0] sm:$0xff]
    %v595 = vld [vmem:[#allocation5 + $0x10b8] sm:$0xff]
    %v596 = vld [vmem:[#allocation5 + $0x10c0] sm:$0xff]
    %v597 = vld [vmem:[#allocation5 + $0x10c8] sm:$0xff]
    %v598 = vld [vmem:[#allocation5 + $0x10d0] sm:$0xff]
    %v599 = vld [vmem:[#allocation5 + $0x10d8] sm:$0xff]
    %v600 = vld [vmem:[#allocation5 + $0x10e0] sm:$0xff]
    %v601 = vld [vmem:[#allocation5 + $0x10e8] sm:$0xff]
    %v602 = vld [vmem:[#allocation5 + $0x10f0] sm:$0xff]
    %v603 = vld [vmem:[#allocation5 + $0x10f8] sm:$0xff]
    %v604 = vld [vmem:[#allocation5 + $0x1100] sm:$0xff]
    %v605 = vld [vmem:[#allocation5 + $0x1108] sm:$0xff]
    %v606 = vld [vmem:[#allocation5 + $0x1110] sm:$0xff]
    %v607 = vld [vmem:[#allocation5 + $0x1118] sm:$0xff]
    %v608 = vld [vmem:[#allocation5 + $0x1120] sm:$0xff]
    %v609 = vld [vmem:[#allocation5 + $0x1128] sm:$0xff]
    %v610 = vld [vmem:[#allocation5 + $0x1130] sm:$0xff]
    %v611 = vld [vmem:[#allocation5 + $0x1138] sm:$0xff]
    %v612 = vld [vmem:[#allocation5 + $0x1140] sm:$0xff]
    %v613 = vld [vmem:[#allocation5 + $0x1148] sm:$0xff]
    %v614 = vld [vmem:[#allocation5 + $0x1150] sm:$0xff]
    %v615 = vld [vmem:[#allocation5 + $0x1158] sm:$0xff]
    %v616 = vld [vmem:[#allocation5 + $0x1160] sm:$0xff]
    %v617 = vld [vmem:[#allocation5 + $0x1168] sm:$0xff]
    %v618 = vld [vmem:[#allocation5 + $0x1170] sm:$0xff]
    %v619 = vld [vmem:[#allocation5 + $0x1178] sm:$0xff]
    %v620 = vld [vmem:[#allocation5 + $0x1180] sm:$0xff]
    %v621 = vld [vmem:[#allocation5 + $0x1188] sm:$0xff]
    %v622 = vld [vmem:[#allocation5 + $0x1190] sm:$0xff]
    %v623 = vld [vmem:[#allocation5 + $0x1198] sm:$0xff]
    %v624 = vld [vmem:[#allocation5 + $0x11a0] sm:$0xff]
    %v625 = vld [vmem:[#allocation5 + $0x11a8] sm:$0xff]
    %v626 = vld [vmem:[#allocation5 + $0x11b0] sm:$0xff]
    %v627 = vld [vmem:[#allocation5 + $0x11b8] sm:$0xff]
    %v628 = vld [vmem:[#allocation5 + $0x11c0] sm:$0xff]
    %v629 = vld [vmem:[#allocation5 + $0x11c8] sm:$0xff]
    %v630 = vld [vmem:[#allocation5 + $0x11d0] sm:$0xff]
    %v631 = vld [vmem:[#allocation5 + $0x11d8] sm:$0xff]
    %v632 = vld [vmem:[#allocation5 + $0x11e0] sm:$0xff]
    %v633 = vld [vmem:[#allocation5 + $0x11e8] sm:$0xff]
    %v634 = vld [vmem:[#allocation5 + $0x11f0] sm:$0xff]
    %v635 = vld [vmem:[#allocation5 + $0x11f8] sm:$0xff]
    %v636 = vld [vmem:[#allocation5 + $0x1200] sm:$0xff]
    %v637 = vld [vmem:[#allocation5 + $0x1208] sm:$0xff]
    %v638 = vld [vmem:[#allocation5 + $0x1210] sm:$0xff]
    %v639 = vld [vmem:[#allocation5 + $0x1218] sm:$0xff]
    %v640 = vld [vmem:[#allocation5 + $0x1220] sm:$0xff]
    %v641 = vld [vmem:[#allocation5 + $0x1228] sm:$0xff]
    %v642 = vld [vmem:[#allocation5 + $0x1230] sm:$0xff]
    %v643 = vld [vmem:[#allocation5 + $0x1238] sm:$0xff]
    %v644 = vld [vmem:[#allocation5 + $0x1240] sm:$0xff]
    %v645 = vld [vmem:[#allocation5 + $0x1248] sm:$0xff]
    %v646 = vld [vmem:[#allocation5 + $0x1250] sm:$0xff]
    %v647 = vld [vmem:[#allocation5 + $0x1258] sm:$0xff]
    %v648 = vld [vmem:[#allocation5 + $0x1260] sm:$0xff]
    %v649 = vld [vmem:[#allocation5 + $0x1268] sm:$0xff]
    %v650 = vld [vmem:[#allocation5 + $0x1270] sm:$0xff]
    %v651 = vld [vmem:[#allocation5 + $0x1278] sm:$0xff]
    %v652 = vld [vmem:[#allocation5 + $0x1280] sm:$0xff]
    %v653 = vld [vmem:[#allocation5 + $0x1288] sm:$0xff]
    %v654 = vld [vmem:[#allocation5 + $0x1290] sm:$0xff]
    %v655 = vld [vmem:[#allocation5 + $0x1298] sm:$0xff]
    %v656 = vld [vmem:[#allocation5 + $0x12a0] sm:$0xff]
    %v657 = vld [vmem:[#allocation5 + $0x12a8] sm:$0xff]
    %v658 = vld [vmem:[#allocation5 + $0x12b0] sm:$0xff]
    %v659 = vld [vmem:[#allocation5 + $0x12b8] sm:$0xff]
    %v660 = vld [vmem:[#allocation5 + $0x12c0] sm:$0xff]
    %v661 = vld [vmem:[#allocation5 + $0x12c8] sm:$0xff]
    %v662 = vld [vmem:[#allocation5 + $0x12d0] sm:$0xff]
    %v663 = vld [vmem:[#allocation5 + $0x12d8] sm:$0xff]
    %v664 = vld [vmem:[#allocation5 + $0x12e0] sm:$0xff]
    %v665 = vld [vmem:[#allocation5 + $0x12e8] sm:$0xff]
    %v666 = vld [vmem:[#allocation5 + $0x12f0] sm:$0xff]
    %v667 = vld [vmem:[#allocation5 + $0x12f8] sm:$0xff]
    %v668 = vld [vmem:[#allocation5 + $0x1300] sm:$0xff]
    %v669 = vld [vmem:[#allocation5 + $0x1308] sm:$0xff]
    %v670 = vld [vmem:[#allocation5 + $0x1310] sm:$0xff]
    %v671 = vld [vmem:[#allocation5 + $0x1318] sm:$0xff]
    %v672 = vld [vmem:[#allocation5 + $0x1320] sm:$0xff]
    %v673 = vld [vmem:[#allocation5 + $0x1328] sm:$0xff]
    %v674 = vld [vmem:[#allocation5 + $0x1330] sm:$0xff]
    %v675 = vld [vmem:[#allocation5 + $0x1338] sm:$0xff]
    %v676 = vld [vmem:[#allocation5 + $0x1340] sm:$0xff]
    %v677 = vld [vmem:[#allocation5 + $0x1348] sm:$0xff]
    %v678 = vld [vmem:[#allocation5 + $0x1350] sm:$0xff]
    %v679 = vld [vmem:[#allocation5 + $0x1358] sm:$0xff]
    %v680 = vld [vmem:[#allocation5 + $0x1360] sm:$0xff]
    %v681 = vld [vmem:[#allocation5 + $0x1368] sm:$0xff]
    %v682 = vld [vmem:[#allocation5 + $0x1370] sm:$0xff]
    %v683 = vld [vmem:[#allocation5 + $0x1378] sm:$0xff]
    %v684 = vld [vmem:[#allocation5 + $0x1380] sm:$0xff]
    %v685 = vld [vmem:[#allocation5 + $0x1388] sm:$0xff]
    %v686 = vld [vmem:[#allocation5 + $0x1390] sm:$0xff]
    %v687 = vld [vmem:[#allocation5 + $0x1398] sm:$0xff]
    %v688 = vld [vmem:[#allocation5 + $0x13a0] sm:$0xff]
    %v689 = vld [vmem:[#allocation5 + $0x13a8] sm:$0xff]
    %v690 = vld [vmem:[#allocation5 + $0x13b0] sm:$0xff]
    %v691 = vld [vmem:[#allocation5 + $0x13b8] sm:$0xff]
    %v692 = vld [vmem:[#allocation5 + $0x13c0] sm:$0xff]
    %v693 = vld [vmem:[#allocation5 + $0x13c8] sm:$0xff]
    %v694 = vld [vmem:[#allocation5 + $0x13d0] sm:$0xff]
    %v695 = vld [vmem:[#allocation5 + $0x13d8] sm:$0xff]
    %v696 = vld [vmem:[#allocation5 + $0x13e0] sm:$0xff]
    %v697 = vld [vmem:[#allocation5 + $0x13e8] sm:$0xff]
    %v698 = vld [vmem:[#allocation5 + $0x13f0] sm:$0xff]
    %v699 = vld [vmem:[#allocation5 + $0x13f8] sm:$0xff]
    %v700 = vld [vmem:[#allocation5 + $0x1400] sm:$0xff]
    %v701 = vld [vmem:[#allocation5 + $0x1408] sm:$0xff]
    %v702 = vld [vmem:[#allocation5 + $0x1410] sm:$0xff]
    %v703 = vld [vmem:[#allocation5 + $0x1418] sm:$0xff]
    %v704 = vld [vmem:[#allocation5 + $0x1420] sm:$0xff]
    %v705 = vld [vmem:[#allocation5 + $0x1428] sm:$0xff]
    %v706 = vld [vmem:[#allocation5 + $0x1430] sm:$0xff]
    %v707 = vld [vmem:[#allocation5 + $0x1438] sm:$0xff]
    %v708 = vld [vmem:[#allocation5 + $0x1440] sm:$0xff]
    %v709 = vld [vmem:[#allocation5 + $0x1448] sm:$0xff]
    %v710 = vld [vmem:[#allocation5 + $0x1450] sm:$0xff]
    %v711 = vld [vmem:[#allocation5 + $0x1458] sm:$0xff]
    %v712 = vld [vmem:[#allocation5 + $0x1460] sm:$0xff]
    %v713 = vld [vmem:[#allocation5 + $0x1468] sm:$0xff]
    %v714 = vld [vmem:[#allocation5 + $0x1470] sm:$0xff]
    %v715 = vld [vmem:[#allocation5 + $0x1478] sm:$0xff]
    %v716 = vld [vmem:[#allocation5 + $0x1480] sm:$0xff]
    %v717 = vld [vmem:[#allocation5 + $0x1488] sm:$0xff]
    %v718 = vld [vmem:[#allocation5 + $0x1490] sm:$0xff]
    %v719 = vld [vmem:[#allocation5 + $0x1498] sm:$0xff]
    %v720 = vld [vmem:[#allocation5 + $0x14a0] sm:$0xff]
    %v721 = vld [vmem:[#allocation5 + $0x14a8] sm:$0xff]
    %v722 = vld [vmem:[#allocation5 + $0x14b0] sm:$0xff]
    %v723 = vld [vmem:[#allocation5 + $0x14b8] sm:$0xff]
    %v724 = vld [vmem:[#allocation5 + $0x14c0] sm:$0xff]
    %v725 = vld [vmem:[#allocation5 + $0x14c8] sm:$0xff]
    %v726 = vld [vmem:[#allocation5 + $0x14d0] sm:$0xff]
    %v727 = vld [vmem:[#allocation5 + $0x14d8] sm:$0xff]
    %v728 = vld [vmem:[#allocation5 + $0x14e0] sm:$0xff]
    %v729 = vld [vmem:[#allocation5 + $0x14e8] sm:$0xff]
    %v730 = vld [vmem:[#allocation5 + $0x14f0] sm:$0xff]
    %v731 = vld [vmem:[#allocation5 + $0x14f8] sm:$0xff]
    %v732 = vld [vmem:[#allocation5 + $0x1500] sm:$0xff]
    %v733 = vld [vmem:[#allocation5 + $0x1508] sm:$0xff]
    %v734 = vld [vmem:[#allocation5 + $0x1510] sm:$0xff]
    %v735 = vld [vmem:[#allocation5 + $0x1518] sm:$0xff]
    %v736 = vld [vmem:[#allocation5 + $0x1520] sm:$0xff]
    %v737 = vld [vmem:[#allocation5 + $0x1528] sm:$0xff]
    %v738 = vld [vmem:[#allocation5 + $0x1530] sm:$0xff]
    %v739 = vld [vmem:[#allocation5 + $0x1538] sm:$0xff]
    %v740 = vld [vmem:[#allocation5 + $0x1540] sm:$0xff]
    %v741 = vld [vmem:[#allocation5 + $0x1548] sm:$0xff]
    %v742 = vld [vmem:[#allocation5 + $0x1550] sm:$0xff]
    %v743 = vld [vmem:[#allocation5 + $0x1558] sm:$0xff]
    %v744 = vld [vmem:[#allocation5 + $0x1560] sm:$0xff]
    %v745 = vld [vmem:[#allocation5 + $0x1568] sm:$0xff]
    %v746 = vld [vmem:[#allocation5 + $0x1570] sm:$0xff]
    %v747 = vld [vmem:[#allocation5 + $0x1578] sm:$0xff]
    %v748 = vld [vmem:[#allocation5 + $0x1580] sm:$0xff]
    %v749 = vld [vmem:[#allocation5 + $0x1588] sm:$0xff]
    %v750 = vld [vmem:[#allocation5 + $0x1590] sm:$0xff]
    %v751 = vld [vmem:[#allocation5 + $0x1598] sm:$0xff]
    %v752 = vld [vmem:[#allocation5 + $0x15a0] sm:$0xff]
    %v753 = vld [vmem:[#allocation5 + $0x15a8] sm:$0xff]
    %v754 = vld [vmem:[#allocation5 + $0x15b0] sm:$0xff]
    %v755 = vld [vmem:[#allocation5 + $0x15b8] sm:$0xff]
    %v756 = vld [vmem:[#allocation5 + $0x15c0] sm:$0xff]
    %v757 = vld [vmem:[#allocation5 + $0x15c8] sm:$0xff]
    %v758 = vld [vmem:[#allocation5 + $0x15d0] sm:$0xff]
    %v759 = vld [vmem:[#allocation5 + $0x15d8] sm:$0xff]
    %v760 = vld [vmem:[#allocation5 + $0x15e0] sm:$0xff]
    %v761 = vld [vmem:[#allocation5 + $0x15e8] sm:$0xff]
    %v762 = vld [vmem:[#allocation5 + $0x15f0] sm:$0xff]
    %v763 = vld [vmem:[#allocation5 + $0x15f8] sm:$0xff]
    %v764 = vld [vmem:[#allocation5 + $0x1600] sm:$0xff]
    %v765 = vld [vmem:[#allocation5 + $0x1608] sm:$0xff]
    %v766 = vld [vmem:[#allocation5 + $0x1610] sm:$0xff]
    %v767 = vld [vmem:[#allocation5 + $0x1618] sm:$0xff]
    %v768 = vld [vmem:[#allocation5 + $0x1620] sm:$0xff]
    %v769 = vld [vmem:[#allocation5 + $0x1628] sm:$0xff]
    %v770 = vld [vmem:[#allocation5 + $0x1630] sm:$0xff]
    %v771 = vld [vmem:[#allocation5 + $0x1638] sm:$0xff]
    %v772 = vld [vmem:[#allocation5 + $0x1640] sm:$0xff]
    %v773 = vld [vmem:[#allocation5 + $0x1648] sm:$0xff]
    %v774 = vld [vmem:[#allocation5 + $0x1650] sm:$0xff]
    %v775 = vld [vmem:[#allocation5 + $0x1658] sm:$0xff]
    %v776 = vld [vmem:[#allocation5 + $0x1660] sm:$0xff]
    %v777 = vld [vmem:[#allocation5 + $0x1668] sm:$0xff]
    %v778 = vld [vmem:[#allocation5 + $0x1670] sm:$0xff]
    %v779 = vld [vmem:[#allocation5 + $0x1678] sm:$0xff]
    %v780 = vld [vmem:[#allocation5 + $0x1680] sm:$0xff]
    %v781 = vld [vmem:[#allocation5 + $0x1688] sm:$0xff]
    %v782 = vld [vmem:[#allocation5 + $0x1690] sm:$0xff]
    %v783 = vld [vmem:[#allocation5 + $0x1698] sm:$0xff]
    %v784 = vld [vmem:[#allocation5 + $0x16a0] sm:$0xff]
    %v785 = vld [vmem:[#allocation5 + $0x16a8] sm:$0xff]
    %v786 = vld [vmem:[#allocation5 + $0x16b0] sm:$0xff]
    %v787 = vld [vmem:[#allocation5 + $0x16b8] sm:$0xff]
    %v788 = vld [vmem:[#allocation5 + $0x16c0] sm:$0xff]
    %v789 = vld [vmem:[#allocation5 + $0x16c8] sm:$0xff]
    %v790 = vld [vmem:[#allocation5 + $0x16d0] sm:$0xff]
    %v791 = vld [vmem:[#allocation5 + $0x16d8] sm:$0xff]
    %v792 = vld [vmem:[#allocation5 + $0x16e0] sm:$0xff]
    %v793 = vld [vmem:[#allocation5 + $0x16e8] sm:$0xff]
    %v794 = vld [vmem:[#allocation5 + $0x16f0] sm:$0xff]
    %v795 = vld [vmem:[#allocation5 + $0x16f8] sm:$0xff]
    %v796 = vld [vmem:[#allocation5 + $0x1700] sm:$0xff]
    %v797 = vld [vmem:[#allocation5 + $0x1708] sm:$0xff]
    %v798 = vld [vmem:[#allocation5 + $0x1710] sm:$0xff]
    %v799 = vld [vmem:[#allocation5 + $0x1718] sm:$0xff]
    %v800 = vld [vmem:[#allocation5 + $0x1720] sm:$0xff]
    %v801 = vld [vmem:[#allocation5 + $0x1728] sm:$0xff]
    %v802 = vld [vmem:[#allocation5 + $0x1730] sm:$0xff]
    %v803 = vld [vmem:[#allocation5 + $0x1738] sm:$0xff]
    %v804 = vld [vmem:[#allocation5 + $0x1740] sm:$0xff]
    %v805 = vld [vmem:[#allocation5 + $0x1748] sm:$0xff]
    %v806 = vld [vmem:[#allocation5 + $0x1750] sm:$0xff]
    %v807 = vld [vmem:[#allocation5 + $0x1758] sm:$0xff]
    %v808 = vld [vmem:[#allocation5 + $0x1760] sm:$0xff]
    %v809 = vld [vmem:[#allocation5 + $0x1768] sm:$0xff]
    %v810 = vld [vmem:[#allocation5 + $0x1770] sm:$0xff]
    %v811 = vld [vmem:[#allocation5 + $0x1778] sm:$0xff]
    %v812 = vld [vmem:[#allocation5 + $0x1780] sm:$0xff]
    %v813 = vld [vmem:[#allocation5 + $0x1788] sm:$0xff]
    %v814 = vld [vmem:[#allocation5 + $0x1790] sm:$0xff]
    %v815 = vld [vmem:[#allocation5 + $0x1798] sm:$0xff]
    %v816 = vld [vmem:[#allocation5 + $0x17a0] sm:$0xff]
    %v817 = vld [vmem:[#allocation5 + $0x17a8] sm:$0xff]
    %v818 = vld [vmem:[#allocation5 + $0x17b0] sm:$0xff]
    %v819 = vld [vmem:[#allocation5 + $0x17b8] sm:$0xff]
    %v820 = vld [vmem:[#allocation5 + $0x17c0] sm:$0xff]
    %v821 = vld [vmem:[#allocation5 + $0x17c8] sm:$0xff]
    %v822 = vld [vmem:[#allocation5 + $0x17d0] sm:$0xff]
    %v823 = vld [vmem:[#allocation5 + $0x17d8] sm:$0xff]
    %v824 = vld [vmem:[#allocation5 + $0x17e0] sm:$0xff]
    %v825 = vld [vmem:[#allocation5 + $0x17e8] sm:$0xff]
    %v826 = vld [vmem:[#allocation5 + $0x17f0] sm:$0xff]
    %v827 = vld [vmem:[#allocation5 + $0x17f8] sm:$0xff]
    %v828 = vld [vmem:[#allocation5 + $0x1800] sm:$0xff]
    %v829 = vld [vmem:[#allocation5 + $0x1808] sm:$0xff]
    %v830 = vld [vmem:[#allocation5 + $0x1810] sm:$0xff]
    %v831 = vld [vmem:[#allocation5 + $0x1818] sm:$0xff]
    %v832 = vld [vmem:[#allocation5 + $0x1820] sm:$0xff]
    %v833 = vld [vmem:[#allocation5 + $0x1828] sm:$0xff]
    %v834 = vld [vmem:[#allocation5 + $0x1830] sm:$0xff]
    %v835 = vld [vmem:[#allocation5 + $0x1838] sm:$0xff]
    %v836 = vld [vmem:[#allocation5 + $0x1840] sm:$0xff]
    %v837 = vld [vmem:[#allocation5 + $0x1848] sm:$0xff]
    %v838 = vld [vmem:[#allocation5 + $0x1850] sm:$0xff]
    %v839 = vld [vmem:[#allocation5 + $0x1858] sm:$0xff]
    %v840 = vld [vmem:[#allocation5 + $0x1860] sm:$0xff]
    %v841 = vld [vmem:[#allocation5 + $0x1868] sm:$0xff]
    %v842 = vld [vmem:[#allocation5 + $0x1870] sm:$0xff]
    %v843 = vld [vmem:[#allocation5 + $0x1878] sm:$0xff]
    %v844 = vld [vmem:[#allocation5 + $0x1880] sm:$0xff]
    %v845 = vld [vmem:[#allocation5 + $0x1888] sm:$0xff]
    %v846 = vld [vmem:[#allocation5 + $0x1890] sm:$0xff]
    %v847 = vld [vmem:[#allocation5 + $0x1898] sm:$0xff]
    %v848 = vld [vmem:[#allocation5 + $0x18a0] sm:$0xff]
    %v849 = vld [vmem:[#allocation5 + $0x18a8] sm:$0xff]
    %v850 = vld [vmem:[#allocation5 + $0x18b0] sm:$0xff]
    %v851 = vld [vmem:[#allocation5 + $0x18b8] sm:$0xff]
    %v852 = vld [vmem:[#allocation5 + $0x18c0] sm:$0xff]
    %v853 = vld [vmem:[#allocation5 + $0x18c8] sm:$0xff]
    %v854 = vld [vmem:[#allocation5 + $0x18d0] sm:$0xff]
    %v855 = vld [vmem:[#allocation5 + $0x18d8] sm:$0xff]
    %v856 = vld [vmem:[#allocation5 + $0x18e0] sm:$0xff]
    %v857 = vld [vmem:[#allocation5 + $0x18e8] sm:$0xff]
    %v858 = vld [vmem:[#allocation5 + $0x18f0] sm:$0xff]
    %v859 = vld [vmem:[#allocation5 + $0x18f8] sm:$0xff]
    %v860 = vld [vmem:[#allocation5 + $0x1900] sm:$0xff]
    %v861 = vld [vmem:[#allocation5 + $0x1908] sm:$0xff]
    %v862 = vld [vmem:[#allocation5 + $0x1910] sm:$0xff]
    %v863 = vld [vmem:[#allocation5 + $0x1918] sm:$0xff]
    %v864 = vld [vmem:[#allocation5 + $0x1920] sm:$0xff]
    %v865 = vld [vmem:[#allocation5 + $0x1928] sm:$0xff]
    %v866 = vld [vmem:[#allocation5 + $0x1930] sm:$0xff]
    %v867 = vld [vmem:[#allocation5 + $0x1938] sm:$0xff]
    %v868 = vld [vmem:[#allocation5 + $0x1940] sm:$0xff]
    %v869 = vld [vmem:[#allocation5 + $0x1948] sm:$0xff]
    %v870 = vld [vmem:[#allocation5 + $0x1950] sm:$0xff]
    %v871 = vld [vmem:[#allocation5 + $0x1958] sm:$0xff]
    %v872 = vld [vmem:[#allocation5 + $0x1960] sm:$0xff]
    %v873 = vld [vmem:[#allocation5 + $0x1968] sm:$0xff]
    %v874 = vld [vmem:[#allocation5 + $0x1970] sm:$0xff]
    %v875 = vld [vmem:[#allocation5 + $0x1978] sm:$0xff]
    %v876 = vld [vmem:[#allocation5 + $0x1980] sm:$0xff]
    %v877 = vld [vmem:[#allocation5 + $0x1988] sm:$0xff]
    %v878 = vld [vmem:[#allocation5 + $0x1990] sm:$0xff]
    %v879 = vld [vmem:[#allocation5 + $0x1998] sm:$0xff]
    %v880 = vld [vmem:[#allocation5 + $0x19a0] sm:$0xff]
    %v881 = vld [vmem:[#allocation5 + $0x19a8] sm:$0xff]
    %v882 = vld [vmem:[#allocation5 + $0x19b0] sm:$0xff]
    %v883 = vld [vmem:[#allocation5 + $0x19b8] sm:$0xff]
    %v884 = vld [vmem:[#allocation5 + $0x19c0] sm:$0xff]
    %v885 = vld [vmem:[#allocation5 + $0x19c8] sm:$0xff]
    %v886 = vld [vmem:[#allocation5 + $0x19d0] sm:$0xff]
    %v887 = vld [vmem:[#allocation5 + $0x19d8] sm:$0xff]
    %v888 = vld [vmem:[#allocation5 + $0x19e0] sm:$0xff]
    %v889 = vld [vmem:[#allocation5 + $0x19e8] sm:$0xff]
    %v890 = vld [vmem:[#allocation5 + $0x19f0] sm:$0xff]
    %v891 = vld [vmem:[#allocation5 + $0x19f8] sm:$0xff]
    %v892 = vld [vmem:[#allocation5 + $0x1a00] sm:$0xff]
    %v893 = vld [vmem:[#allocation5 + $0x1a08] sm:$0xff]
    %v894 = vld [vmem:[#allocation5 + $0x1a10] sm:$0xff]
    %v895 = vld [vmem:[#allocation5 + $0x1a18] sm:$0xff]
    %v896 = vld [vmem:[#allocation5 + $0x1a20] sm:$0xff]
    %v897 = vld [vmem:[#allocation5 + $0x1a28] sm:$0xff]
    %v898 = vld [vmem:[#allocation5 + $0x1a30] sm:$0xff]
    %v899 = vld [vmem:[#allocation5 + $0x1a38] sm:$0xff]
    %v900 = vld [vmem:[#allocation5 + $0x1a40] sm:$0xff]
    %v901 = vld [vmem:[#allocation5 + $0x1a48] sm:$0xff]
    %v902 = vld [vmem:[#allocation5 + $0x1a50] sm:$0xff]
    %v903 = vld [vmem:[#allocation5 + $0x1a58] sm:$0xff]
    %v904 = vld [vmem:[#allocation5 + $0x1a60] sm:$0xff]
    %v905 = vld [vmem:[#allocation5 + $0x1a68] sm:$0xff]
    %v906 = vld [vmem:[#allocation5 + $0x1a70] sm:$0xff]
    %v907 = vld [vmem:[#allocation5 + $0x1a78] sm:$0xff]
    %v908 = vld [vmem:[#allocation5 + $0x1a80] sm:$0xff]
    %v909 = vld [vmem:[#allocation5 + $0x1a88] sm:$0xff]
    %v910 = vld [vmem:[#allocation5 + $0x1a90] sm:$0xff]
    %v911 = vld [vmem:[#allocation5 + $0x1a98] sm:$0xff]
    %v912 = vld [vmem:[#allocation5 + $0x1aa0] sm:$0xff]
    %v913 = vld [vmem:[#allocation5 + $0x1aa8] sm:$0xff]
    %v914 = vld [vmem:[#allocation5 + $0x1ab0] sm:$0xff]
    %v915 = vld [vmem:[#allocation5 + $0x1ab8] sm:$0xff]
    %v916 = vld [vmem:[#allocation5 + $0x1ac0] sm:$0xff]
    %v917 = vld [vmem:[#allocation5 + $0x1ac8] sm:$0xff]
    %v918 = vld [vmem:[#allocation5 + $0x1ad0] sm:$0xff]
    %v919 = vld [vmem:[#allocation5 + $0x1ad8] sm:$0xff]
    %v920 = vld [vmem:[#allocation5 + $0x1ae0] sm:$0xff]
    %v921 = vld [vmem:[#allocation5 + $0x1ae8] sm:$0xff]
    %v922 = vld [vmem:[#allocation5 + $0x1af0] sm:$0xff]
    %v923 = vld [vmem:[#allocation5 + $0x1af8] sm:$0xff]
    %v924 = vld [vmem:[#allocation5 + $0x1b00] sm:$0xff]
    %v925 = vld [vmem:[#allocation5 + $0x1b08] sm:$0xff]
    %v926 = vld [vmem:[#allocation5 + $0x1b10] sm:$0xff]
    %v927 = vld [vmem:[#allocation5 + $0x1b18] sm:$0xff]
    %v928 = vld [vmem:[#allocation5 + $0x1b20] sm:$0xff]
    %v929 = vld [vmem:[#allocation5 + $0x1b28] sm:$0xff]
    %v930 = vld [vmem:[#allocation5 + $0x1b30] sm:$0xff]
    %v931 = vld [vmem:[#allocation5 + $0x1b38] sm:$0xff]
    %v932 = vld [vmem:[#allocation5 + $0x1b40] sm:$0xff]
    %v933 = vld [vmem:[#allocation5 + $0x1b48] sm:$0xff]
    %v934 = vld [vmem:[#allocation5 + $0x1b50] sm:$0xff]
    %v935 = vld [vmem:[#allocation5 + $0x1b58] sm:$0xff]
    %v936 = vld [vmem:[#allocation5 + $0x1b60] sm:$0xff]
    %v937 = vld [vmem:[#allocation5 + $0x1b68] sm:$0xff]
    %v938 = vld [vmem:[#allocation5 + $0x1b70] sm:$0xff]
    %v939 = vld [vmem:[#allocation5 + $0x1b78] sm:$0xff]
    %v940 = vld [vmem:[#allocation5 + $0x1b80] sm:$0xff]
    %v941 = vld [vmem:[#allocation5 + $0x1b88] sm:$0xff]
    %v942 = vld [vmem:[#allocation5 + $0x1b90] sm:$0xff]
    %v943 = vld [vmem:[#allocation5 + $0x1b98] sm:$0xff]
    %v944 = vld [vmem:[#allocation5 + $0x1ba0] sm:$0xff]
    %v945 = vld [vmem:[#allocation5 + $0x1ba8] sm:$0xff]
    %v946 = vld [vmem:[#allocation5 + $0x1bb0] sm:$0xff]
    %v947 = vld [vmem:[#allocation5 + $0x1bb8] sm:$0xff]
    %v948 = vld [vmem:[#allocation5 + $0x1bc0] sm:$0xff]
    %v949 = vld [vmem:[#allocation5 + $0x1bc8] sm:$0xff]
    %v950 = vld [vmem:[#allocation5 + $0x1bd0] sm:$0xff]
    %v951 = vld [vmem:[#allocation5 + $0x1bd8] sm:$0xff]
    %v952 = vld [vmem:[#allocation5 + $0x1be0] sm:$0xff]
    %v953 = vld [vmem:[#allocation5 + $0x1be8] sm:$0xff]
    %v954 = vld [vmem:[#allocation5 + $0x1bf0] sm:$0xff]
    %v955 = vld [vmem:[#allocation5 + $0x1bf8] sm:$0xff]
    %v956 = vld [vmem:[#allocation5 + $0x1c00] sm:$0xff]
    %v957 = vld [vmem:[#allocation5 + $0x1c08] sm:$0xff]
    %v958 = vld [vmem:[#allocation5 + $0x1c10] sm:$0xff]
    %v959 = vld [vmem:[#allocation5 + $0x1c18] sm:$0xff]
    %v960 = vld [vmem:[#allocation5 + $0x1c20] sm:$0xff]
    %v961 = vld [vmem:[#allocation5 + $0x1c28] sm:$0xff]
    %v962 = vld [vmem:[#allocation5 + $0x1c30] sm:$0xff]
    %v963 = vld [vmem:[#allocation5 + $0x1c38] sm:$0xff]
    %v964 = vld [vmem:[#allocation5 + $0x1c40] sm:$0xff]
    %v965 = vld [vmem:[#allocation5 + $0x1c48] sm:$0xff]
    %v966 = vld [vmem:[#allocation5 + $0x1c50] sm:$0xff]
    %v967 = vld [vmem:[#allocation5 + $0x1c58] sm:$0xff]
    %v968 = vld [vmem:[#allocation5 + $0x1c60] sm:$0xff]
    %v969 = vld [vmem:[#allocation5 + $0x1c68] sm:$0xff]
    %v970 = vld [vmem:[#allocation5 + $0x1c70] sm:$0xff]
    %v971 = vld [vmem:[#allocation5 + $0x1c78] sm:$0xff]
    %v972 = vld [vmem:[#allocation5 + $0x1c80] sm:$0xff]
    %v973 = vld [vmem:[#allocation5 + $0x1c88] sm:$0xff]
    %v974 = vld [vmem:[#allocation5 + $0x1c90] sm:$0xff]
    %v975 = vld [vmem:[#allocation5 + $0x1c98] sm:$0xff]
    %v976 = vld [vmem:[#allocation5 + $0x1ca0] sm:$0xff]
    %v977 = vld [vmem:[#allocation5 + $0x1ca8] sm:$0xff]
    %v978 = vld [vmem:[#allocation5 + $0x1cb0] sm:$0xff]
    %v979 = vld [vmem:[#allocation5 + $0x1cb8] sm:$0xff]
    %v980 = vld [vmem:[#allocation5 + $0x1cc0] sm:$0xff]
    %v981 = vld [vmem:[#allocation5 + $0x1cc8] sm:$0xff]
    %v982 = vld [vmem:[#allocation5 + $0x1cd0] sm:$0xff]
    %v983 = vld [vmem:[#allocation5 + $0x1cd8] sm:$0xff]
    %v984 = vld [vmem:[#allocation5 + $0x1ce0] sm:$0xff]
    %v985 = vld [vmem:[#allocation5 + $0x1ce8] sm:$0xff]
    %v986 = vld [vmem:[#allocation5 + $0x1cf0] sm:$0xff]
    %v987 = vld [vmem:[#allocation5 + $0x1cf8] sm:$0xff]
    %v988 = vld [vmem:[#allocation5 + $0x1d00] sm:$0xff]
    %v989 = vld [vmem:[#allocation5 + $0x1d08] sm:$0xff]
    %v990 = vld [vmem:[#allocation5 + $0x1d10] sm:$0xff]
    %v991 = vld [vmem:[#allocation5 + $0x1d18] sm:$0xff]
    %v992 = vld [vmem:[#allocation5 + $0x1d20] sm:$0xff]
    %v993 = vld [vmem:[#allocation5 + $0x1d28] sm:$0xff]
    %v994 = vld [vmem:[#allocation5 + $0x1d30] sm:$0xff]
    %v995 = vld [vmem:[#allocation5 + $0x1d38] sm:$0xff]
    %v996 = vld [vmem:[#allocation5 + $0x1d40] sm:$0xff]
    %v997 = vld [vmem:[#allocation5 + $0x1d48] sm:$0xff]
    %v998 = vld [vmem:[#allocation5 + $0x1d50] sm:$0xff]
    %v999 = vld [vmem:[#allocation5 + $0x1d58] sm:$0xff]
    %v1000 = vld [vmem:[#allocation5 + $0x1d60] sm:$0xff]
    %v1001 = vld [vmem:[#allocation5 + $0x1d68] sm:$0xff]
    %v1002 = vld [vmem:[#allocation5 + $0x1d70] sm:$0xff]
    %v1003 = vld [vmem:[#allocation5 + $0x1d78] sm:$0xff]
    %v1004 = vld [vmem:[#allocation5 + $0x1d80] sm:$0xff]
    %v1005 = vld [vmem:[#allocation5 + $0x1d88] sm:$0xff]
    %v1006 = vld [vmem:[#allocation5 + $0x1d90] sm:$0xff]
    %v1007 = vld [vmem:[#allocation5 + $0x1d98] sm:$0xff]
    %v1008 = vld [vmem:[#allocation5 + $0x1da0] sm:$0xff]
    %v1009 = vld [vmem:[#allocation5 + $0x1da8] sm:$0xff]
    %v1010 = vld [vmem:[#allocation5 + $0x1db0] sm:$0xff]
    %v1011 = vld [vmem:[#allocation5 + $0x1db8] sm:$0xff]
    %v1012 = vld [vmem:[#allocation5 + $0x1dc0] sm:$0xff]
    %v1013 = vld [vmem:[#allocation5 + $0x1dc8] sm:$0xff]
    %v1014 = vld [vmem:[#allocation5 + $0x1dd0] sm:$0xff]
    %v1015 = vld [vmem:[#allocation5 + $0x1dd8] sm:$0xff]
    %v1016 = vld [vmem:[#allocation5 + $0x1de0] sm:$0xff]
    %v1017 = vld [vmem:[#allocation5 + $0x1de8] sm:$0xff]
    %v1018 = vld [vmem:[#allocation5 + $0x1df0] sm:$0xff]
    %v1019 = vld [vmem:[#allocation5 + $0x1df8] sm:$0xff]
    %v1020 = vld [vmem:[#allocation5 + $0x1e00] sm:$0xff]
    %v1021 = vld [vmem:[#allocation5 + $0x1e08] sm:$0xff]
    %v1022 = vld [vmem:[#allocation5 + $0x1e10] sm:$0xff]
    %v1023 = vld [vmem:[#allocation5 + $0x1e18] sm:$0xff]
    %v1024 = vld [vmem:[#allocation5 + $0x1e20] sm:$0xff]
    %v1025 = vld [vmem:[#allocation5 + $0x1e28] sm:$0xff]
    %v1026 = vld [vmem:[#allocation5 + $0x1e30] sm:$0xff]
    %v1027 = vld [vmem:[#allocation5 + $0x1e38] sm:$0xff]
    %v1028 = vld [vmem:[#allocation5 + $0x1e40] sm:$0xff]
    %v1029 = vld [vmem:[#allocation5 + $0x1e48] sm:$0xff]
    %v1030 = vld [vmem:[#allocation5 + $0x1e50] sm:$0xff]
    %v1031 = vld [vmem:[#allocation5 + $0x1e58] sm:$0xff]
    %v1032 = vld [vmem:[#allocation5 + $0x1e60] sm:$0xff]
    %v1033 = vld [vmem:[#allocation5 + $0x1e68] sm:$0xff]
    %v1034 = vld [vmem:[#allocation5 + $0x1e70] sm:$0xff]
    %v1035 = vld [vmem:[#allocation5 + $0x1e78] sm:$0xff]
    %v1036 = vld [vmem:[#allocation5 + $0x1e80] sm:$0xff]
    %v1037 = vld [vmem:[#allocation5 + $0x1e88] sm:$0xff]
    %v1038 = vld [vmem:[#allocation5 + $0x1e90] sm:$0xff]
    %v1039 = vld [vmem:[#allocation5 + $0x1e98] sm:$0xff]
    %v1040 = vld [vmem:[#allocation5 + $0x1ea0] sm:$0xff]
    %v1041 = vld [vmem:[#allocation5 + $0x1ea8] sm:$0xff]
    %v1042 = vld [vmem:[#allocation5 + $0x1eb0] sm:$0xff]
    %v1043 = vld [vmem:[#allocation5 + $0x1eb8] sm:$0xff]
    %v1044 = vld [vmem:[#allocation5 + $0x1ec0] sm:$0xff]
    %v1045 = vld [vmem:[#allocation5 + $0x1ec8] sm:$0xff]
    %v1046 = vld [vmem:[#allocation5 + $0x1ed0] sm:$0xff]
    %v1047 = vld [vmem:[#allocation5 + $0x1ed8] sm:$0xff]
    %v1048 = vld [vmem:[#allocation5 + $0x1ee0] sm:$0xff]
    %v1049 = vld [vmem:[#allocation5 + $0x1ee8] sm:$0xff]
    %v1050 = vld [vmem:[#allocation5 + $0x1ef0] sm:$0xff]
    %v1051 = vld [vmem:[#allocation5 + $0x1ef8] sm:$0xff]
    %v1052 = vld [vmem:[#allocation5 + $0x1f00] sm:$0xff]
    %v1053 = vld [vmem:[#allocation5 + $0x1f08] sm:$0xff]
    %v1054 = vld [vmem:[#allocation5 + $0x1f10] sm:$0xff]
    %v1055 = vld [vmem:[#allocation5 + $0x1f18] sm:$0xff]
    %v1056 = vld [vmem:[#allocation5 + $0x1f20] sm:$0xff]
    %v1057 = vld [vmem:[#allocation5 + $0x1f28] sm:$0xff]
    %v1058 = vld [vmem:[#allocation5 + $0x1f30] sm:$0xff]
    %v1059 = vld [vmem:[#allocation5 + $0x1f38] sm:$0xff]
    %v1060 = vld [vmem:[#allocation5 + $0x1f40] sm:$0xff]
    %v1061 = vld [vmem:[#allocation5 + $0x1f48] sm:$0xff]
    %v1062 = vld [vmem:[#allocation5 + $0x1f50] sm:$0xff]
    %v1063 = vld [vmem:[#allocation5 + $0x1f58] sm:$0xff]
    %v1064 = vld [vmem:[#allocation5 + $0x1f60] sm:$0xff]
    %v1065 = vld [vmem:[#allocation5 + $0x1f68] sm:$0xff]
    %v1066 = vld [vmem:[#allocation5 + $0x1f70] sm:$0xff]
    %v1067 = vld [vmem:[#allocation5 + $0x1f78] sm:$0xff]
    %v1068 = vld [vmem:[#allocation5 + $0x1f80] sm:$0xff]
    %v1069 = vld [vmem:[#allocation5 + $0x1f88] sm:$0xff]
    %v1070 = vld [vmem:[#allocation5 + $0x1f90] sm:$0xff]
    %v1071 = vld [vmem:[#allocation5 + $0x1f98] sm:$0xff]
    %v1072 = vld [vmem:[#allocation5 + $0x1fa0] sm:$0xff]
    %v1073 = vld [vmem:[#allocation5 + $0x1fa8] sm:$0xff]
    %v1074 = vld [vmem:[#allocation5 + $0x1fb0] sm:$0xff]
    %v1075 = vld [vmem:[#allocation5 + $0x1fb8] sm:$0xff]
    %v1076 = vld [vmem:[#allocation5 + $0x1fc0] sm:$0xff]
    %v1077 = vld [vmem:[#allocation5 + $0x1fc8] sm:$0xff]
    %v1078 = vld [vmem:[#allocation5 + $0x1fd0] sm:$0xff]
    %v1079 = vld [vmem:[#allocation5 + $0x1fd8] sm:$0xff]
    %v1080 = vld [vmem:[#allocation5 + $0x1fe0] sm:$0xff]
    %v1081 = vld [vmem:[#allocation5 + $0x1fe8] sm:$0xff]
    %v1082 = vld [vmem:[#allocation5 + $0x1ff0] sm:$0xff]
    %v1083 = vld [vmem:[#allocation5 + $0x1ff8] sm:$0xff]
    %v1084 = vld [vmem:[#allocation5 + $0x2000] sm:$0xff]
    %v1085 = vld [vmem:[#allocation5 + $0x2008] sm:$0xff]
    %v1086 = vld [vmem:[#allocation5 + $0x2010] sm:$0xff]
    %v1087 = vld [vmem:[#allocation5 + $0x2018] sm:$0xff]
    %v1088 = vld [vmem:[#allocation5 + $0x2020] sm:$0xff]
    %v1089 = vld [vmem:[#allocation5 + $0x2028] sm:$0xff]
    %v1090 = vld [vmem:[#allocation5 + $0x2030] sm:$0xff]
    %v1091 = vld [vmem:[#allocation5 + $0x2038] sm:$0xff]
    %v1092 = vld [vmem:[#allocation5 + $0x2040] sm:$0xff]
    %v1093 = vld [vmem:[#allocation5 + $0x2048] sm:$0xff]
    %v1094 = vld [vmem:[#allocation5 + $0x2050] sm:$0xff]
    %v1095 = vld [vmem:[#allocation5 + $0x2058] sm:$0xff]
    %v1096 = vld [vmem:[#allocation5 + $0x2060] sm:$0xff]
    %v1097 = vld [vmem:[#allocation5 + $0x2068] sm:$0xff]
    %v1098 = vld [vmem:[#allocation5 + $0x2070] sm:$0xff]
    %v1099 = vld [vmem:[#allocation5 + $0x2078] sm:$0xff]
    %v1100 = vld [vmem:[#allocation5 + $0x2080] sm:$0xff]
    %v1101 = vld [vmem:[#allocation5 + $0x2088] sm:$0xff]
    %v1102 = vld [vmem:[#allocation5 + $0x2090] sm:$0xff]
    %v1103 = vld [vmem:[#allocation5 + $0x2098] sm:$0xff]
    %v1104 = vld [vmem:[#allocation5 + $0x20a0] sm:$0xff]
    %v1105 = vld [vmem:[#allocation5 + $0x20a8] sm:$0xff]
    %v1106 = vld [vmem:[#allocation5 + $0x20b0] sm:$0xff]
    %v1107 = vld [vmem:[#allocation5 + $0x20b8] sm:$0xff]
    %v1108 = vld [vmem:[#allocation5 + $0x20c0] sm:$0xff]
    %v1109 = vld [vmem:[#allocation5 + $0x20c8] sm:$0xff]
    %v1110 = vld [vmem:[#allocation5 + $0x20d0] sm:$0xff]
    %v1111 = vld [vmem:[#allocation5 + $0x20d8] sm:$0xff]
    %v1112 = vld [vmem:[#allocation5 + $0x20e0] sm:$0xff]
    %v1113 = vld [vmem:[#allocation5 + $0x20e8] sm:$0xff]
    %v1114 = vld [vmem:[#allocation5 + $0x20f0] sm:$0xff]
    %v1115 = vld [vmem:[#allocation5 + $0x20f8] sm:$0xff]
    %v1116 = vld [vmem:[#allocation5 + $0x2100] sm:$0xff]
    %v1117 = vld [vmem:[#allocation5 + $0x2108] sm:$0xff]
    %v1118 = vld [vmem:[#allocation5 + $0x2110] sm:$0xff]
    %v1119 = vld [vmem:[#allocation5 + $0x2118] sm:$0xff]
    %v1120 = vld [vmem:[#allocation5 + $0x2120] sm:$0xff]
    %v1121 = vld [vmem:[#allocation5 + $0x2128] sm:$0xff]
    %v1122 = vld [vmem:[#allocation5 + $0x2130] sm:$0xff]
    %v1123 = vld [vmem:[#allocation5 + $0x2138] sm:$0xff]
    %v1124 = vld [vmem:[#allocation5 + $0x2140] sm:$0xff]
    %v1125 = vld [vmem:[#allocation5 + $0x2148] sm:$0xff]
    %v1126 = vld [vmem:[#allocation5 + $0x2150] sm:$0xff]
    %v1127 = vld [vmem:[#allocation5 + $0x2158] sm:$0xff]
    %v1128 = vld [vmem:[#allocation5 + $0x2160] sm:$0xff]
    %v1129 = vld [vmem:[#allocation5 + $0x2168] sm:$0xff]
    %v1130 = vld [vmem:[#allocation5 + $0x2170] sm:$0xff]
    %v1131 = vld [vmem:[#allocation5 + $0x2178] sm:$0xff]
    %v1132 = vld [vmem:[#allocation5 + $0x2180] sm:$0xff]
    %v1133 = vld [vmem:[#allocation5 + $0x2188] sm:$0xff]
    %v1134 = vld [vmem:[#allocation5 + $0x2190] sm:$0xff]
    %v1135 = vld [vmem:[#allocation5 + $0x2198] sm:$0xff]
    %v1136 = vld [vmem:[#allocation5 + $0x21a0] sm:$0xff]
    %v1137 = vld [vmem:[#allocation5 + $0x21a8] sm:$0xff]
    %v1138 = vld [vmem:[#allocation5 + $0x21b0] sm:$0xff]
    %v1139 = vld [vmem:[#allocation5 + $0x21b8] sm:$0xff]
    %v1140 = vld [vmem:[#allocation5 + $0x21c0] sm:$0xff]
    %v1141 = vld [vmem:[#allocation5 + $0x21c8] sm:$0xff]
    %v1142 = vld [vmem:[#allocation5 + $0x21d0] sm:$0xff]
    %v1143 = vld [vmem:[#allocation5 + $0x21d8] sm:$0xff]
    %v1144 = vld [vmem:[#allocation5 + $0x21e0] sm:$0xff]
    %v1145 = vld [vmem:[#allocation5 + $0x21e8] sm:$0xff]
    %v1146 = vld [vmem:[#allocation5 + $0x21f0] sm:$0xff]
    %v1147 = vld [vmem:[#allocation5 + $0x21f8] sm:$0xff]
    %v1148 = vld [vmem:[#allocation5 + $0x2200] sm:$0xff]
    %v1149 = vld [vmem:[#allocation5 + $0x2208] sm:$0xff]
    %v1150 = vld [vmem:[#allocation5 + $0x2210] sm:$0xff]
    %v1151 = vld [vmem:[#allocation5 + $0x2218] sm:$0xff]
    %v1152 = vld [vmem:[#allocation5 + $0x2220] sm:$0xff]
    %v1153 = vld [vmem:[#allocation5 + $0x2228] sm:$0xff]
    %v1154 = vld [vmem:[#allocation5 + $0x2230] sm:$0xff]
    %v1155 = vld [vmem:[#allocation5 + $0x2238] sm:$0xff]
    %v1156 = vld [vmem:[#allocation5 + $0x2240] sm:$0xff]
    %v1157 = vld [vmem:[#allocation5 + $0x2248] sm:$0xff]
    %v1158 = vld [vmem:[#allocation5 + $0x2250] sm:$0xff]
    %v1159 = vld [vmem:[#allocation5 + $0x2258] sm:$0xff]
    %v1160 = vld [vmem:[#allocation5 + $0x2260] sm:$0xff]
    %v1161 = vld [vmem:[#allocation5 + $0x2268] sm:$0xff]
    %v1162 = vld [vmem:[#allocation5 + $0x2270] sm:$0xff]
    %v1163 = vld [vmem:[#allocation5 + $0x2278] sm:$0xff]
    %v1164 = vld [vmem:[#allocation5 + $0x2280] sm:$0xff]
    %v1165 = vld [vmem:[#allocation5 + $0x2288] sm:$0xff]
    %v1166 = vld [vmem:[#allocation5 + $0x2290] sm:$0xff]
    %v1167 = vld [vmem:[#allocation5 + $0x2298] sm:$0xff]
    %v1168 = vld [vmem:[#allocation5 + $0x22a0] sm:$0xff]
    %v1169 = vld [vmem:[#allocation5 + $0x22a8] sm:$0xff]
    %v1170 = vld [vmem:[#allocation5 + $0x22b0] sm:$0xff]
    %v1171 = vld [vmem:[#allocation5 + $0x22b8] sm:$0xff]
    %v1172 = vld [vmem:[#allocation5 + $0x22c0] sm:$0xff]
    %v1173 = vld [vmem:[#allocation5 + $0x22c8] sm:$0xff]
    %v1174 = vld [vmem:[#allocation5 + $0x22d0] sm:$0xff]
    %v1175 = vld [vmem:[#allocation5 + $0x22d8] sm:$0xff]
    %v1176 = vld [vmem:[#allocation5 + $0x22e0] sm:$0xff]
    %v1177 = vld [vmem:[#allocation5 + $0x22e8] sm:$0xff]
    %v1178 = vld [vmem:[#allocation5 + $0x22f0] sm:$0xff]
    %v1179 = vld [vmem:[#allocation5 + $0x22f8] sm:$0xff]
    %v1180 = vld [vmem:[#allocation5 + $0x2300] sm:$0xff]
    %v1181 = vld [vmem:[#allocation5 + $0x2308] sm:$0xff]
    %v1182 = vld [vmem:[#allocation5 + $0x2310] sm:$0xff]
    %v1183 = vld [vmem:[#allocation5 + $0x2318] sm:$0xff]
    %v1184 = vld [vmem:[#allocation5 + $0x2320] sm:$0xff]
    %v1185 = vld [vmem:[#allocation5 + $0x2328] sm:$0xff]
    %v1186 = vld [vmem:[#allocation5 + $0x2330] sm:$0xff]
    %v1187 = vld [vmem:[#allocation5 + $0x2338] sm:$0xff]
    %v1188 = vld [vmem:[#allocation5 + $0x2340] sm:$0xff]
    %v1189 = vld [vmem:[#allocation5 + $0x2348] sm:$0xff]
    %v1190 = vld [vmem:[#allocation5 + $0x2350] sm:$0xff]
    %v1191 = vld [vmem:[#allocation5 + $0x2358] sm:$0xff]
    %v1192 = vld [vmem:[#allocation5 + $0x2360] sm:$0xff]
    %v1193 = vld [vmem:[#allocation5 + $0x2368] sm:$0xff]
    %v1194 = vld [vmem:[#allocation5 + $0x2370] sm:$0xff]
    %v1195 = vld [vmem:[#allocation5 + $0x2378] sm:$0xff]
    %v1196 = vld [vmem:[#allocation5 + $0x2380] sm:$0xff]
    %v1197 = vld [vmem:[#allocation5 + $0x2388] sm:$0xff]
    %v1198 = vld [vmem:[#allocation5 + $0x2390] sm:$0xff]
    %v1199 = vld [vmem:[#allocation5 + $0x2398] sm:$0xff]
    %v1200 = vld [vmem:[#allocation5 + $0x23a0] sm:$0xff]
    %v1201 = vld [vmem:[#allocation5 + $0x23a8] sm:$0xff]
    %v1202 = vld [vmem:[#allocation5 + $0x23b0] sm:$0xff]
    %v1203 = vld [vmem:[#allocation5 + $0x23b8] sm:$0xff]
    %v1204 = vld [vmem:[#allocation5 + $0x23c0] sm:$0xff]
    %v1205 = vld [vmem:[#allocation5 + $0x23c8] sm:$0xff]
    %v1206 = vld [vmem:[#allocation5 + $0x23d0] sm:$0xff]
    %v1207 = vld [vmem:[#allocation5 + $0x23d8] sm:$0xff]
    %v1208 = vld [vmem:[#allocation5 + $0x23e0] sm:$0xff]
    %v1209 = vld [vmem:[#allocation5 + $0x23e8] sm:$0xff]
    %v1210 = vld [vmem:[#allocation5 + $0x23f0] sm:$0xff]
    %v1211 = vld [vmem:[#allocation5 + $0x23f8] sm:$0xff]
    %v1212 = vld [vmem:[#allocation5 + $0x2400] sm:$0xff]
    %v1213 = vld [vmem:[#allocation5 + $0x2408] sm:$0xff]
    %v1214 = vld [vmem:[#allocation5 + $0x2410] sm:$0xff]
    %v1215 = vld [vmem:[#allocation5 + $0x2418] sm:$0xff]
    %v1216 = vld [vmem:[#allocation5 + $0x2420] sm:$0xff]
    %v1217 = vld [vmem:[#allocation5 + $0x2428] sm:$0xff]
    %v1218 = vld [vmem:[#allocation5 + $0x2430] sm:$0xff]
    %v1219 = vld [vmem:[#allocation5 + $0x2438] sm:$0xff]
    %v1220 = vld [vmem:[#allocation5 + $0x2440] sm:$0xff]
    %v1221 = vld [vmem:[#allocation5 + $0x2448] sm:$0xff]
    %v1222 = vld [vmem:[#allocation5 + $0x2450] sm:$0xff]
    %v1223 = vld [vmem:[#allocation5 + $0x2458] sm:$0xff]
    %v1224 = vld [vmem:[#allocation5 + $0x2460] sm:$0xff]
    %v1225 = vld [vmem:[#allocation5 + $0x2468] sm:$0xff]
    %v1226 = vld [vmem:[#allocation5 + $0x2470] sm:$0xff]
    %v1227 = vld [vmem:[#allocation5 + $0x2478] sm:$0xff]
    %v1228 = vld [vmem:[#allocation5 + $0x2480] sm:$0xff]
    %v1229 = vld [vmem:[#allocation5 + $0x2488] sm:$0xff]
    %v1230 = vld [vmem:[#allocation5 + $0x2490] sm:$0xff]
    %v1231 = vld [vmem:[#allocation5 + $0x2498] sm:$0xff]
    %v1232 = vld [vmem:[#allocation5 + $0x24a0] sm:$0xff]
    %v1233 = vld [vmem:[#allocation5 + $0x24a8] sm:$0xff]
    %v1234 = vld [vmem:[#allocation5 + $0x24b0] sm:$0xff]
    %v1235 = vld [vmem:[#allocation5 + $0x24b8] sm:$0xff]
    %v1236 = vld [vmem:[#allocation5 + $0x24c0] sm:$0xff]
    %v1237 = vld [vmem:[#allocation5 + $0x24c8] sm:$0xff]
    %v1238 = vld [vmem:[#allocation5 + $0x24d0] sm:$0xff]
    %v1239 = vld [vmem:[#allocation5 + $0x24d8] sm:$0xff]
    %v1240 = vld [vmem:[#allocation5 + $0x24e0] sm:$0xff]
    %v1241 = vld [vmem:[#allocation5 + $0x24e8] sm:$0xff]
    %v1242 = vld [vmem:[#allocation5 + $0x24f0] sm:$0xff]
    %v1243 = vld [vmem:[#allocation5 + $0x24f8] sm:$0xff]
    %v1244 = vld [vmem:[#allocation5 + $0x2500] sm:$0xff]
    %v1245 = vld [vmem:[#allocation5 + $0x2508] sm:$0xff]
    %v1246 = vld [vmem:[#allocation5 + $0x2510] sm:$0xff]
    %v1247 = vld [vmem:[#allocation5 + $0x2518] sm:$0xff]
    %v1248 = vld [vmem:[#allocation5 + $0x2520] sm:$0xff]
    %v1249 = vld [vmem:[#allocation5 + $0x2528] sm:$0xff]
    %v1250 = vld [vmem:[#allocation5 + $0x2530] sm:$0xff]
    %v1251 = vld [vmem:[#allocation5 + $0x2538] sm:$0xff]
    %v1252 = vld [vmem:[#allocation5 + $0x2540] sm:$0xff]
    %v1253 = vld [vmem:[#allocation5 + $0x2548] sm:$0xff]
    %v1254 = vld [vmem:[#allocation5 + $0x2550] sm:$0xff]
    %v1255 = vld [vmem:[#allocation5 + $0x2558] sm:$0xff]
    %v1256 = vld [vmem:[#allocation5 + $0x2560] sm:$0xff]
    %v1257 = vld [vmem:[#allocation5 + $0x2568] sm:$0xff]
    %v1258 = vld [vmem:[#allocation5 + $0x2570] sm:$0xff]
    %v1259 = vld [vmem:[#allocation5 + $0x2578] sm:$0xff]
    %v1260 = vld [vmem:[#allocation5 + $0x2580] sm:$0xff]
    %v1261 = vld [vmem:[#allocation5 + $0x2588] sm:$0xff]
    %v1262 = vld [vmem:[#allocation5 + $0x2590] sm:$0xff]
    %v1263 = vld [vmem:[#allocation5 + $0x2598] sm:$0xff]
    %v1264 = vld [vmem:[#allocation5 + $0x25a0] sm:$0xff]
    %v1265 = vld [vmem:[#allocation5 + $0x25a8] sm:$0xff]
    %v1266 = vld [vmem:[#allocation5 + $0x25b0] sm:$0xff]
    %v1267 = vld [vmem:[#allocation5 + $0x25b8] sm:$0xff]
    %v1268 = vld [vmem:[#allocation5 + $0x25c0] sm:$0xff]
    %v1269 = vld [vmem:[#allocation5 + $0x25c8] sm:$0xff]
    %v1270 = vld [vmem:[#allocation5 + $0x25d0] sm:$0xff]
    %v1271 = vld [vmem:[#allocation5 + $0x25d8] sm:$0xff]
    %v1272 = vld [vmem:[#allocation5 + $0x25e0] sm:$0xff]
    %v1273 = vld [vmem:[#allocation5 + $0x25e8] sm:$0xff]
    %v1274 = vld [vmem:[#allocation5 + $0x25f0] sm:$0xff]
    %v1275 = vld [vmem:[#allocation5 + $0x25f8] sm:$0xff]
    %v1276 = vld [vmem:[#allocation5 + $0x2600] sm:$0xff]
    %v1277 = vld [vmem:[#allocation5 + $0x2608] sm:$0xff]
    %v1278 = vld [vmem:[#allocation5 + $0x2610] sm:$0xff]
    %v1279 = vld [vmem:[#allocation5 + $0x2618] sm:$0xff]
    %v1280 = vld [vmem:[#allocation5 + $0x2620] sm:$0xff]
    %v1281 = vld [vmem:[#allocation5 + $0x2628] sm:$0xff]
    %v1282 = vld [vmem:[#allocation5 + $0x2630] sm:$0xff]
    %v1283 = vld [vmem:[#allocation5 + $0x2638] sm:$0xff]
    %v1284 = vld [vmem:[#allocation5 + $0x2640] sm:$0xff]
    %v1285 = vld [vmem:[#allocation5 + $0x2648] sm:$0xff]
    %v1286 = vld [vmem:[#allocation5 + $0x2650] sm:$0xff]
    %v1287 = vld [vmem:[#allocation5 + $0x2658] sm:$0xff]
    %v1288 = vld [vmem:[#allocation5 + $0x2660] sm:$0xff]
    %v1289 = vld [vmem:[#allocation5 + $0x2668] sm:$0xff]
    %v1290 = vld [vmem:[#allocation5 + $0x2670] sm:$0xff]
    %v1291 = vld [vmem:[#allocation5 + $0x2678] sm:$0xff]
    %v1292 = vld [vmem:[#allocation5 + $0x2680] sm:$0xff]
    %v1293 = vld [vmem:[#allocation5 + $0x2688] sm:$0xff]
    %v1294 = vld [vmem:[#allocation5 + $0x2690] sm:$0xff]
    %v1295 = vld [vmem:[#allocation5 + $0x2698] sm:$0xff]
    %v1296 = vld [vmem:[#allocation5 + $0x26a0] sm:$0xff]
    %v1297 = vld [vmem:[#allocation5 + $0x26a8] sm:$0xff]
    %v1298 = vld [vmem:[#allocation5 + $0x26b0] sm:$0xff]
    %v1299 = vld [vmem:[#allocation5 + $0x26b8] sm:$0xff]
    %v1300 = vld [vmem:[#allocation5 + $0x26c0] sm:$0xff]
    %v1301 = vld [vmem:[#allocation5 + $0x26c8] sm:$0xff]
    %v1302 = vld [vmem:[#allocation5 + $0x26d0] sm:$0xff]
    %v1303 = vld [vmem:[#allocation5 + $0x26d8] sm:$0xff]
    %v1304 = vld [vmem:[#allocation5 + $0x26e0] sm:$0xff]
    %v1305 = vld [vmem:[#allocation5 + $0x26e8] sm:$0xff]
    %v1306 = vld [vmem:[#allocation5 + $0x26f0] sm:$0xff]
    %v1307 = vld [vmem:[#allocation5 + $0x26f8] sm:$0xff]
    %v1308 = vld [vmem:[#allocation5 + $0x2700] sm:$0xff]
    %v1309 = vld [vmem:[#allocation5 + $0x2708] sm:$0xff]
    %v1310 = vld [vmem:[#allocation5 + $0x2710] sm:$0xff]
    %v1311 = vld [vmem:[#allocation5 + $0x2718] sm:$0xff]
    %v1312 = vld [vmem:[#allocation5 + $0x2720] sm:$0xff]
    %v1313 = vld [vmem:[#allocation5 + $0x2728] sm:$0xff]
    %v1314 = vld [vmem:[#allocation5 + $0x2730] sm:$0xff]
    %v1315 = vld [vmem:[#allocation5 + $0x2738] sm:$0xff]
    %v1316 = vld [vmem:[#allocation5 + $0x2740] sm:$0xff]
    %v1317 = vld [vmem:[#allocation5 + $0x2748] sm:$0xff]
    %v1318 = vld [vmem:[#allocation5 + $0x2750] sm:$0xff]
    %v1319 = vld [vmem:[#allocation5 + $0x2758] sm:$0xff]
    %v1320 = vld [vmem:[#allocation5 + $0x2760] sm:$0xff]
    %v1321 = vld [vmem:[#allocation5 + $0x2768] sm:$0xff]
    %v1322 = vld [vmem:[#allocation5 + $0x2770] sm:$0xff]
    %v1323 = vld [vmem:[#allocation5 + $0x2778] sm:$0xff]
    %v1324 = vld [vmem:[#allocation5 + $0x2780] sm:$0xff]
    %v1325 = vld [vmem:[#allocation5 + $0x2788] sm:$0xff]
    %v1326 = vld [vmem:[#allocation5 + $0x2790] sm:$0xff]
    %v1327 = vld [vmem:[#allocation5 + $0x2798] sm:$0xff]
    %v1328 = vld [vmem:[#allocation5 + $0x27a0] sm:$0xff]
    %v1329 = vld [vmem:[#allocation5 + $0x27a8] sm:$0xff]
    %v1330 = vld [vmem:[#allocation5 + $0x27b0] sm:$0xff]
    %v1331 = vld [vmem:[#allocation5 + $0x27b8] sm:$0xff]
    %v1332 = vld [vmem:[#allocation5 + $0x27c0] sm:$0xff]
    %v1333 = vld [vmem:[#allocation5 + $0x27c8] sm:$0xff]
    %v1334 = vld [vmem:[#allocation5 + $0x27d0] sm:$0xff]
    %v1335 = vld [vmem:[#allocation5 + $0x27d8] sm:$0xff]
    %v1336 = vld [vmem:[#allocation5 + $0x27e0] sm:$0xff]
    %v1337 = vld [vmem:[#allocation5 + $0x27e8] sm:$0xff]
    %v1338 = vld [vmem:[#allocation5 + $0x27f0] sm:$0xff]
    %v1339 = vld [vmem:[#allocation5 + $0x27f8] sm:$0xff]
    %v1340 = vld [vmem:[#allocation5 + $0x2800] sm:$0xff]
    %v1341 = vld [vmem:[#allocation5 + $0x2808] sm:$0xff]
    %v1342 = vld [vmem:[#allocation5 + $0x2810] sm:$0xff]
    %v1343 = vld [vmem:[#allocation5 + $0x2818] sm:$0xff]
    %v1344 = vld [vmem:[#allocation5 + $0x2820] sm:$0xff]
    %v1345 = vld [vmem:[#allocation5 + $0x2828] sm:$0xff]
    %v1346 = vld [vmem:[#allocation5 + $0x2830] sm:$0xff]
    %v1347 = vld [vmem:[#allocation5 + $0x2838] sm:$0xff]
    %v1348 = vld [vmem:[#allocation5 + $0x2840] sm:$0xff]
    %v1349 = vld [vmem:[#allocation5 + $0x2848] sm:$0xff]
    %v1350 = vld [vmem:[#allocation5 + $0x2850] sm:$0xff]
    %v1351 = vld [vmem:[#allocation5 + $0x2858] sm:$0xff]
    %v1352 = vld [vmem:[#allocation5 + $0x2860] sm:$0xff]
    %v1353 = vld [vmem:[#allocation5 + $0x2868] sm:$0xff]
    %v1354 = vld [vmem:[#allocation5 + $0x2870] sm:$0xff]
    %v1355 = vld [vmem:[#allocation5 + $0x2878] sm:$0xff]
    %v1356 = vld [vmem:[#allocation5 + $0x2880] sm:$0xff]
    %v1357 = vld [vmem:[#allocation5 + $0x2888] sm:$0xff]
    %v1358 = vld [vmem:[#allocation5 + $0x2890] sm:$0xff]
    %v1359 = vld [vmem:[#allocation5 + $0x2898] sm:$0xff]
    %v1360 = vld [vmem:[#allocation5 + $0x28a0] sm:$0xff]
    %v1361 = vld [vmem:[#allocation5 + $0x28a8] sm:$0xff]
    %v1362 = vld [vmem:[#allocation5 + $0x28b0] sm:$0xff]
    %v1363 = vld [vmem:[#allocation5 + $0x28b8] sm:$0xff]
    %v1364 = vld [vmem:[#allocation5 + $0x28c0] sm:$0xff]
    %v1365 = vld [vmem:[#allocation5 + $0x28c8] sm:$0xff]
    %v1366 = vld [vmem:[#allocation5 + $0x28d0] sm:$0xff]
    %v1367 = vld [vmem:[#allocation5 + $0x28d8] sm:$0xff]
    %v1368 = vld [vmem:[#allocation5 + $0x28e0] sm:$0xff]
    %v1369 = vld [vmem:[#allocation5 + $0x28e8] sm:$0xff]
    %v1370 = vld [vmem:[#allocation5 + $0x28f0] sm:$0xff]
    %v1371 = vld [vmem:[#allocation5 + $0x28f8] sm:$0xff]
    %v1372 = vld [vmem:[#allocation5 + $0x2900] sm:$0xff]
    %v1373 = vld [vmem:[#allocation5 + $0x2908] sm:$0xff]
    %v1374 = vld [vmem:[#allocation5 + $0x2910] sm:$0xff]
    %v1375 = vld [vmem:[#allocation5 + $0x2918] sm:$0xff]
    %v1376 = vld [vmem:[#allocation5 + $0x2920] sm:$0xff]
    %v1377 = vld [vmem:[#allocation5 + $0x2928] sm:$0xff]
    %v1378 = vld [vmem:[#allocation5 + $0x2930] sm:$0xff]
    %v1379 = vld [vmem:[#allocation5 + $0x2938] sm:$0xff]
    %v1380 = vld [vmem:[#allocation5 + $0x2940] sm:$0xff]
    %v1381 = vld [vmem:[#allocation5 + $0x2948] sm:$0xff]
    %v1382 = vld [vmem:[#allocation5 + $0x2950] sm:$0xff]
    %v1383 = vld [vmem:[#allocation5 + $0x2958] sm:$0xff]
    %v1384 = vld [vmem:[#allocation5 + $0x2960] sm:$0xff]
    %v1385 = vld [vmem:[#allocation5 + $0x2968] sm:$0xff]
    %v1386 = vld [vmem:[#allocation5 + $0x2970] sm:$0xff]
    %v1387 = vld [vmem:[#allocation5 + $0x2978] sm:$0xff]
    %v1388 = vld [vmem:[#allocation5 + $0x2980] sm:$0xff]
    %v1389 = vld [vmem:[#allocation5 + $0x2988] sm:$0xff]
    %v1390 = vld [vmem:[#allocation5 + $0x2990] sm:$0xff]
    %v1391 = vld [vmem:[#allocation5 + $0x2998] sm:$0xff]
    %v1392 = vld [vmem:[#allocation5 + $0x29a0] sm:$0xff]
    %v1393 = vld [vmem:[#allocation5 + $0x29a8] sm:$0xff]
    %v1394 = vld [vmem:[#allocation5 + $0x29b0] sm:$0xff]
    %v1395 = vld [vmem:[#allocation5 + $0x29b8] sm:$0xff]
    %v1396 = vld [vmem:[#allocation5 + $0x29c0] sm:$0xff]
    %v1397 = vld [vmem:[#allocation5 + $0x29c8] sm:$0xff]
    %v1398 = vld [vmem:[#allocation5 + $0x29d0] sm:$0xff]
    %v1399 = vld [vmem:[#allocation5 + $0x29d8] sm:$0xff]
    %v1400 = vld [vmem:[#allocation5 + $0x29e0] sm:$0xff]
    %v1401 = vld [vmem:[#allocation5 + $0x29e8] sm:$0xff]
    %v1402 = vld [vmem:[#allocation5 + $0x29f0] sm:$0xff]
    %v1403 = vld [vmem:[#allocation5 + $0x29f8] sm:$0xff]
    %v1404 = vld [vmem:[#allocation5 + $0x2a00] sm:$0xff]
    %v1405 = vld [vmem:[#allocation5 + $0x2a08] sm:$0xff]
    %v1406 = vld [vmem:[#allocation5 + $0x2a10] sm:$0xff]
    %v1407 = vld [vmem:[#allocation5 + $0x2a18] sm:$0xff]
    %v1408 = vld [vmem:[#allocation5 + $0x2a20] sm:$0xff]
    %v1409 = vld [vmem:[#allocation5 + $0x2a28] sm:$0xff]
    %v1410 = vld [vmem:[#allocation5 + $0x2a30] sm:$0xff]
    %v1411 = vld [vmem:[#allocation5 + $0x2a38] sm:$0xff]
    %v1412 = vld [vmem:[#allocation5 + $0x2a40] sm:$0xff]
    %v1413 = vld [vmem:[#allocation5 + $0x2a48] sm:$0xff]
    %v1414 = vld [vmem:[#allocation5 + $0x2a50] sm:$0xff]
    %v1415 = vld [vmem:[#allocation5 + $0x2a58] sm:$0xff]
    %v1416 = vld [vmem:[#allocation5 + $0x2a60] sm:$0xff]
    %v1417 = vld [vmem:[#allocation5 + $0x2a68] sm:$0xff]
    %v1418 = vld [vmem:[#allocation5 + $0x2a70] sm:$0xff]
    %v1419 = vld [vmem:[#allocation5 + $0x2a78] sm:$0xff]
    %v1420 = vld [vmem:[#allocation5 + $0x2a80] sm:$0xff]
    %v1421 = vld [vmem:[#allocation5 + $0x2a88] sm:$0xff]
    %v1422 = vld [vmem:[#allocation5 + $0x2a90] sm:$0xff]
    %v1423 = vld [vmem:[#allocation5 + $0x2a98] sm:$0xff]
    %v1424 = vld [vmem:[#allocation5 + $0x2aa0] sm:$0xff]
    %v1425 = vld [vmem:[#allocation5 + $0x2aa8] sm:$0xff]
    %v1426 = vld [vmem:[#allocation5 + $0x2ab0] sm:$0xff]
    %v1427 = vld [vmem:[#allocation5 + $0x2ab8] sm:$0xff]
    %v1428 = vld [vmem:[#allocation5 + $0x2ac0] sm:$0xff]
    %v1429 = vld [vmem:[#allocation5 + $0x2ac8] sm:$0xff]
    %v1430 = vld [vmem:[#allocation5 + $0x2ad0] sm:$0xff]
    %v1431 = vld [vmem:[#allocation5 + $0x2ad8] sm:$0xff]
    %v1432 = vld [vmem:[#allocation5 + $0x2ae0] sm:$0xff]
    %v1433 = vld [vmem:[#allocation5 + $0x2ae8] sm:$0xff]
    %v1434 = vld [vmem:[#allocation5 + $0x2af0] sm:$0xff]
    %v1435 = vld [vmem:[#allocation5 + $0x2af8] sm:$0xff]
    %v1436 = vld [vmem:[#allocation5 + $0x2b00] sm:$0xff]
    %v1437 = vld [vmem:[#allocation5 + $0x2b08] sm:$0xff]
    %v1438 = vld [vmem:[#allocation5 + $0x2b10] sm:$0xff]
    %v1439 = vld [vmem:[#allocation5 + $0x2b18] sm:$0xff]
    %v1440 = vld [vmem:[#allocation5 + $0x2b20] sm:$0xff]
    %v1441 = vld [vmem:[#allocation5 + $0x2b28] sm:$0xff]
    %v1442 = vld [vmem:[#allocation5 + $0x2b30] sm:$0xff]
    %v1443 = vld [vmem:[#allocation5 + $0x2b38] sm:$0xff]
    %v1444 = vld [vmem:[#allocation5 + $0x2b40] sm:$0xff]
    %v1445 = vld [vmem:[#allocation5 + $0x2b48] sm:$0xff]
    %v1446 = vld [vmem:[#allocation5 + $0x2b50] sm:$0xff]
    %v1447 = vld [vmem:[#allocation5 + $0x2b58] sm:$0xff]
    %v1448 = vld [vmem:[#allocation5 + $0x2b60] sm:$0xff]
    %v1449 = vld [vmem:[#allocation5 + $0x2b68] sm:$0xff]
    %v1450 = vld [vmem:[#allocation5 + $0x2b70] sm:$0xff]
    %v1451 = vld [vmem:[#allocation5 + $0x2b78] sm:$0xff]
    %v1452 = vld [vmem:[#allocation5 + $0x2b80] sm:$0xff]
    %v1453 = vld [vmem:[#allocation5 + $0x2b88] sm:$0xff]
    %v1454 = vld [vmem:[#allocation5 + $0x2b90] sm:$0xff]
    %v1455 = vld [vmem:[#allocation5 + $0x2b98] sm:$0xff]
    %v1456 = vld [vmem:[#allocation5 + $0x2ba0] sm:$0xff]
    %v1457 = vld [vmem:[#allocation5 + $0x2ba8] sm:$0xff]
    %v1458 = vld [vmem:[#allocation5 + $0x2bb0] sm:$0xff]
    %v1459 = vld [vmem:[#allocation5 + $0x2bb8] sm:$0xff]
    %v1460 = vld [vmem:[#allocation5 + $0x2bc0] sm:$0xff]
    %v1461 = vld [vmem:[#allocation5 + $0x2bc8] sm:$0xff]
    %v1462 = vld [vmem:[#allocation5 + $0x2bd0] sm:$0xff]
    %v1463 = vld [vmem:[#allocation5 + $0x2bd8] sm:$0xff]
    %v1464 = vld [vmem:[#allocation5 + $0x2be0] sm:$0xff]
    %v1465 = vld [vmem:[#allocation5 + $0x2be8] sm:$0xff]
    %v1466 = vld [vmem:[#allocation5 + $0x2bf0] sm:$0xff]
    %v1467 = vld [vmem:[#allocation5 + $0x2bf8] sm:$0xff]
    %v1468 = vld [vmem:[#allocation5 + $0x2c00] sm:$0xff]
    %v1469 = vld [vmem:[#allocation5 + $0x2c08] sm:$0xff]
    %v1470 = vld [vmem:[#allocation5 + $0x2c10] sm:$0xff]
    %v1471 = vld [vmem:[#allocation5 + $0x2c18] sm:$0xff]
    %v1472 = vld [vmem:[#allocation5 + $0x2c20] sm:$0xff]
    %v1473 = vld [vmem:[#allocation5 + $0x2c28] sm:$0xff]
    %v1474 = vld [vmem:[#allocation5 + $0x2c30] sm:$0xff]
    %v1475 = vld [vmem:[#allocation5 + $0x2c38] sm:$0xff]
    %v1476 = vld [vmem:[#allocation5 + $0x2c40] sm:$0xff]
    %v1477 = vld [vmem:[#allocation5 + $0x2c48] sm:$0xff]
    %v1478 = vld [vmem:[#allocation5 + $0x2c50] sm:$0xff]
    %v1479 = vld [vmem:[#allocation5 + $0x2c58] sm:$0xff]
    %v1480 = vld [vmem:[#allocation5 + $0x2c60] sm:$0xff]
    %v1481 = vld [vmem:[#allocation5 + $0x2c68] sm:$0xff]
    %v1482 = vld [vmem:[#allocation5 + $0x2c70] sm:$0xff]
    %v1483 = vld [vmem:[#allocation5 + $0x2c78] sm:$0xff]
    %v1484 = vld [vmem:[#allocation5 + $0x2c80] sm:$0xff]
    %v1485 = vld [vmem:[#allocation5 + $0x2c88] sm:$0xff]
    %v1486 = vld [vmem:[#allocation5 + $0x2c90] sm:$0xff]
    %v1487 = vld [vmem:[#allocation5 + $0x2c98] sm:$0xff]
    %v1488 = vld [vmem:[#allocation5 + $0x2ca0] sm:$0xff]
    %v1489 = vld [vmem:[#allocation5 + $0x2ca8] sm:$0xff]
    %v1490 = vld [vmem:[#allocation5 + $0x2cb0] sm:$0xff]
    %v1491 = vld [vmem:[#allocation5 + $0x2cb8] sm:$0xff]
    %v1492 = vld [vmem:[#allocation5 + $0x2cc0] sm:$0xff]
    %v1493 = vld [vmem:[#allocation5 + $0x2cc8] sm:$0xff]
    %v1494 = vld [vmem:[#allocation5 + $0x2cd0] sm:$0xff]
    %v1495 = vld [vmem:[#allocation5 + $0x2cd8] sm:$0xff]
    %v1496 = vld [vmem:[#allocation5 + $0x2ce0] sm:$0xff]
    %v1497 = vld [vmem:[#allocation5 + $0x2ce8] sm:$0xff]
    %v1498 = vld [vmem:[#allocation5 + $0x2cf0] sm:$0xff]
    %v1499 = vld [vmem:[#allocation5 + $0x2cf8] sm:$0xff]
    %v1500 = vld [vmem:[#allocation5 + $0x2d00] sm:$0xff]
    %v1501 = vld [vmem:[#allocation5 + $0x2d08] sm:$0xff]
    %v1502 = vld [vmem:[#allocation5 + $0x2d10] sm:$0xff]
    %v1503 = vld [vmem:[#allocation5 + $0x2d18] sm:$0xff]
    %v1504 = vld [vmem:[#allocation5 + $0x2d20] sm:$0xff]
    %v1505 = vld [vmem:[#allocation5 + $0x2d28] sm:$0xff]
    %v1506 = vld [vmem:[#allocation5 + $0x2d30] sm:$0xff]
    %v1507 = vld [vmem:[#allocation5 + $0x2d38] sm:$0xff]
    %v1508 = vld [vmem:[#allocation5 + $0x2d40] sm:$0xff]
    %v1509 = vld [vmem:[#allocation5 + $0x2d48] sm:$0xff]
    %v1510 = vld [vmem:[#allocation5 + $0x2d50] sm:$0xff]
    %v1511 = vld [vmem:[#allocation5 + $0x2d58] sm:$0xff]
    %v1512 = vld [vmem:[#allocation5 + $0x2d60] sm:$0xff]
    %v1513 = vld [vmem:[#allocation5 + $0x2d68] sm:$0xff]
    %v1514 = vld [vmem:[#allocation5 + $0x2d70] sm:$0xff]
    %v1515 = vld [vmem:[#allocation5 + $0x2d78] sm:$0xff]
    %v1516 = vld [vmem:[#allocation5 + $0x2d80] sm:$0xff]
    %v1517 = vld [vmem:[#allocation5 + $0x2d88] sm:$0xff]
    %v1518 = vld [vmem:[#allocation5 + $0x2d90] sm:$0xff]
    %v1519 = vld [vmem:[#allocation5 + $0x2d98] sm:$0xff]
    %v1520 = vld [vmem:[#allocation5 + $0x2da0] sm:$0xff]
    %v1521 = vld [vmem:[#allocation5 + $0x2da8] sm:$0xff]
    %v1522 = vld [vmem:[#allocation5 + $0x2db0] sm:$0xff]
    %v1523 = vld [vmem:[#allocation5 + $0x2db8] sm:$0xff]
    %v1524 = vld [vmem:[#allocation5 + $0x2dc0] sm:$0xff]
    %v1525 = vld [vmem:[#allocation5 + $0x2dc8] sm:$0xff]
    %v1526 = vld [vmem:[#allocation5 + $0x2dd0] sm:$0xff]
    %v1527 = vld [vmem:[#allocation5 + $0x2dd8] sm:$0xff]
    %v1528 = vld [vmem:[#allocation5 + $0x2de0] sm:$0xff]
    %v1529 = vld [vmem:[#allocation5 + $0x2de8] sm:$0xff]
    %v1530 = vld [vmem:[#allocation5 + $0x2df0] sm:$0xff]
    %v1531 = vld [vmem:[#allocation5 + $0x2df8] sm:$0xff]
    %v1532 = vld [vmem:[#allocation5 + $0x2e00] sm:$0xff]
    %v1533 = vld [vmem:[#allocation5 + $0x2e08] sm:$0xff]
    %v1534 = vld [vmem:[#allocation5 + $0x2e10] sm:$0xff]
    %v1535 = vld [vmem:[#allocation5 + $0x2e18] sm:$0xff]
    %v1536 = vld [vmem:[#allocation5 + $0x2e20] sm:$0xff]
    %v1537 = vld [vmem:[#allocation5 + $0x2e28] sm:$0xff]
    %v1538 = vld [vmem:[#allocation5 + $0x2e30] sm:$0xff]
    %v1539 = vld [vmem:[#allocation5 + $0x2e38] sm:$0xff]
    %v1540 = vld [vmem:[#allocation5 + $0x2e40] sm:$0xff]
    %v1541 = vld [vmem:[#allocation5 + $0x2e48] sm:$0xff]
    %v1542 = vld [vmem:[#allocation5 + $0x2e50] sm:$0xff]
    %v1543 = vld [vmem:[#allocation5 + $0x2e58] sm:$0xff]
    %v1544 = vld [vmem:[#allocation5 + $0x2e60] sm:$0xff]
    %v1545 = vld [vmem:[#allocation5 + $0x2e68] sm:$0xff]
    %v1546 = vld [vmem:[#allocation5 + $0x2e70] sm:$0xff]
    %v1547 = vld [vmem:[#allocation5 + $0x2e78] sm:$0xff]
    %v1548 = vld [vmem:[#allocation5 + $0x2e80] sm:$0xff]
    %v1549 = vld [vmem:[#allocation5 + $0x2e88] sm:$0xff]
    %v1550 = vld [vmem:[#allocation5 + $0x2e90] sm:$0xff]
    %v1551 = vld [vmem:[#allocation5 + $0x2e98] sm:$0xff]
    %v1552 = vld [vmem:[#allocation5 + $0x2ea0] sm:$0xff]
    %v1553 = vld [vmem:[#allocation5 + $0x2ea8] sm:$0xff]
    %v1554 = vld [vmem:[#allocation5 + $0x2eb0] sm:$0xff]
    %v1555 = vld [vmem:[#allocation5 + $0x2eb8] sm:$0xff]
    %v1556 = vld [vmem:[#allocation5 + $0x2ec0] sm:$0xff]
    %v1557 = vld [vmem:[#allocation5 + $0x2ec8] sm:$0xff]
    %v1558 = vld [vmem:[#allocation5 + $0x2ed0] sm:$0xff]
    %v1559 = vld [vmem:[#allocation5 + $0x2ed8] sm:$0xff]
    %v1560 = vld [vmem:[#allocation5 + $0x2ee0] sm:$0xff]
    %v1561 = vld [vmem:[#allocation5 + $0x2ee8] sm:$0xff]
    %v1562 = vld [vmem:[#allocation5 + $0x2ef0] sm:$0xff]
    %v1563 = vld [vmem:[#allocation5 + $0x2ef8] sm:$0xff]
    %v1564 = vld [vmem:[#allocation5 + $0x2f00] sm:$0xff]
    %v1565 = vld [vmem:[#allocation5 + $0x2f08] sm:$0xff]
    %v1566 = vld [vmem:[#allocation5 + $0x2f10] sm:$0xff]
    %v1567 = vld [vmem:[#allocation5 + $0x2f18] sm:$0xff]
    %v1568 = vld [vmem:[#allocation5 + $0x2f20] sm:$0xff]
    %v1569 = vld [vmem:[#allocation5 + $0x2f28] sm:$0xff]
    %v1570 = vld [vmem:[#allocation5 + $0x2f30] sm:$0xff]
    %v1571 = vld [vmem:[#allocation5 + $0x2f38] sm:$0xff]
    %v1572 = vld [vmem:[#allocation5 + $0x2f40] sm:$0xff]
    %v1573 = vld [vmem:[#allocation5 + $0x2f48] sm:$0xff]
    %v1574 = vld [vmem:[#allocation5 + $0x2f50] sm:$0xff]
    %v1575 = vld [vmem:[#allocation5 + $0x2f58] sm:$0xff]
    %v1576 = vld [vmem:[#allocation5 + $0x2f60] sm:$0xff]
    %v1577 = vld [vmem:[#allocation5 + $0x2f68] sm:$0xff]
    %v1578 = vld [vmem:[#allocation5 + $0x2f70] sm:$0xff]
    %v1579 = vld [vmem:[#allocation5 + $0x2f78] sm:$0xff]
    %v1580 = vld [vmem:[#allocation5 + $0x2f80] sm:$0xff]
    %v1581 = vld [vmem:[#allocation5 + $0x2f88] sm:$0xff]
    %v1582 = vld [vmem:[#allocation5 + $0x2f90] sm:$0xff]
    %v1583 = vld [vmem:[#allocation5 + $0x2f98] sm:$0xff]
    %v1584 = vld [vmem:[#allocation5 + $0x2fa0] sm:$0xff]
    %v1585 = vld [vmem:[#allocation5 + $0x2fa8] sm:$0xff]
    %v1586 = vld [vmem:[#allocation5 + $0x2fb0] sm:$0xff]
    %v1587 = vld [vmem:[#allocation5 + $0x2fb8] sm:$0xff]
    %v1588 = vld [vmem:[#allocation5 + $0x2fc0] sm:$0xff]
    %v1589 = vld [vmem:[#allocation5 + $0x2fc8] sm:$0xff]
    %v1590 = vld [vmem:[#allocation5 + $0x2fd0] sm:$0xff]
    %v1591 = vld [vmem:[#allocation5 + $0x2fd8] sm:$0xff]
    %v1592 = vld [vmem:[#allocation5 + $0x2fe0] sm:$0xff]
    %v1593 = vld [vmem:[#allocation5 + $0x2fe8] sm:$0xff]
    %v1594 = vld [vmem:[#allocation5 + $0x2ff0] sm:$0xff]
    %v1595 = vld [vmem:[#allocation5 + $0x2ff8] sm:$0xff]
    %v1596 = vld [vmem:[#allocation5 + $0x3000] sm:$0xff]
    %v1597 = vld [vmem:[#allocation5 + $0x3008] sm:$0xff]
    %v1598 = vld [vmem:[#allocation5 + $0x3010] sm:$0xff]
    %v1599 = vld [vmem:[#allocation5 + $0x3018] sm:$0xff]
    %v1600 = vld [vmem:[#allocation5 + $0x3020] sm:$0xff]
    %v1601 = vld [vmem:[#allocation5 + $0x3028] sm:$0xff]
    %v1602 = vld [vmem:[#allocation5 + $0x3030] sm:$0xff]
    %v1603 = vld [vmem:[#allocation5 + $0x3038] sm:$0xff]
    %v1604 = vld [vmem:[#allocation5 + $0x3040] sm:$0xff]
    %v1605 = vld [vmem:[#allocation5 + $0x3048] sm:$0xff]
    %v1606 = vld [vmem:[#allocation5 + $0x3050] sm:$0xff]
    %v1607 = vld [vmem:[#allocation5 + $0x3058] sm:$0xff]
    %v1608 = vld [vmem:[#allocation5 + $0x3060] sm:$0xff]
    %v1609 = vld [vmem:[#allocation5 + $0x3068] sm:$0xff]
    %v1610 = vld [vmem:[#allocation5 + $0x3070] sm:$0xff]
    %v1611 = vld [vmem:[#allocation5 + $0x3078] sm:$0xff]
    %v1612 = vld [vmem:[#allocation5 + $0x3080] sm:$0xff]
    %v1613 = vld [vmem:[#allocation5 + $0x3088] sm:$0xff]
    %v1614 = vld [vmem:[#allocation5 + $0x3090] sm:$0xff]
    %v1615 = vld [vmem:[#allocation5 + $0x3098] sm:$0xff]
    %v1616 = vld [vmem:[#allocation5 + $0x30a0] sm:$0xff]
    %v1617 = vld [vmem:[#allocation5 + $0x30a8] sm:$0xff]
    %v1618 = vld [vmem:[#allocation5 + $0x30b0] sm:$0xff]
    %v1619 = vld [vmem:[#allocation5 + $0x30b8] sm:$0xff]
    %v1620 = vld [vmem:[#allocation5 + $0x30c0] sm:$0xff]
    %v1621 = vld [vmem:[#allocation5 + $0x30c8] sm:$0xff]
    %v1622 = vld [vmem:[#allocation5 + $0x30d0] sm:$0xff]
    %v1623 = vld [vmem:[#allocation5 + $0x30d8] sm:$0xff]
    %v1624 = vld [vmem:[#allocation5 + $0x30e0] sm:$0xff]
    %v1625 = vld [vmem:[#allocation5 + $0x30e8] sm:$0xff]
    %v1626 = vld [vmem:[#allocation5 + $0x30f0] sm:$0xff]
    %v1627 = vld [vmem:[#allocation5 + $0x30f8] sm:$0xff]
    %v1628 = vld [vmem:[#allocation5 + $0x3100] sm:$0xff]
    %v1629 = vld [vmem:[#allocation5 + $0x3108] sm:$0xff]
    %v1630 = vld [vmem:[#allocation5 + $0x3110] sm:$0xff]
    %v1631 = vld [vmem:[#allocation5 + $0x3118] sm:$0xff]
    %v1632 = vld [vmem:[#allocation5 + $0x3120] sm:$0xff]
    %v1633 = vld [vmem:[#allocation5 + $0x3128] sm:$0xff]
    %v1634 = vld [vmem:[#allocation5 + $0x3130] sm:$0xff]
    %v1635 = vld [vmem:[#allocation5 + $0x3138] sm:$0xff]
    %v1636 = vld [vmem:[#allocation5 + $0x3140] sm:$0xff]
    %v1637 = vld [vmem:[#allocation5 + $0x3148] sm:$0xff]
    %v1638 = vld [vmem:[#allocation5 + $0x3150] sm:$0xff]
    %v1639 = vld [vmem:[#allocation5 + $0x3158] sm:$0xff]
    %v1640 = vld [vmem:[#allocation5 + $0x3160] sm:$0xff]
    %v1641 = vld [vmem:[#allocation5 + $0x3168] sm:$0xff]
    %v1642 = vld [vmem:[#allocation5 + $0x3170] sm:$0xff]
    %v1643 = vld [vmem:[#allocation5 + $0x3178] sm:$0xff]
    %v1644 = vld [vmem:[#allocation5 + $0x3180] sm:$0xff]
    %v1645 = vld [vmem:[#allocation5 + $0x3188] sm:$0xff]
    %v1646 = vld [vmem:[#allocation5 + $0x3190] sm:$0xff]
    %v1647 = vld [vmem:[#allocation5 + $0x3198] sm:$0xff]
    %v1648 = vld [vmem:[#allocation5 + $0x31a0] sm:$0xff]
    %v1649 = vld [vmem:[#allocation5 + $0x31a8] sm:$0xff]
    %v1650 = vld [vmem:[#allocation5 + $0x31b0] sm:$0xff]
    %v1651 = vld [vmem:[#allocation5 + $0x31b8] sm:$0xff]
    %v1652 = vld [vmem:[#allocation5 + $0x31c0] sm:$0xff]
    %v1653 = vld [vmem:[#allocation5 + $0x31c8] sm:$0xff]
    %v1654 = vld [vmem:[#allocation5 + $0x31d0] sm:$0xff]
    %v1655 = vld [vmem:[#allocation5 + $0x31d8] sm:$0xff]
    %v1656 = vld [vmem:[#allocation5 + $0x31e0] sm:$0xff]
    %v1657 = vld [vmem:[#allocation5 + $0x31e8] sm:$0xff]
    %v1658 = vld [vmem:[#allocation5 + $0x31f0] sm:$0xff]
    %v1659 = vld [vmem:[#allocation5 + $0x31f8] sm:$0xff]
    %v1660 = vld [vmem:[#allocation5 + $0x3200] sm:$0xff]
    %v1661 = vld [vmem:[#allocation5 + $0x3208] sm:$0xff]
    %v1662 = vld [vmem:[#allocation5 + $0x3210] sm:$0xff]
    %v1663 = vld [vmem:[#allocation5 + $0x3218] sm:$0xff]
    %v1664 = vld [vmem:[#allocation5 + $0x3220] sm:$0xff]
    %v1665 = vld [vmem:[#allocation5 + $0x3228] sm:$0xff]
    %v1666 = vld [vmem:[#allocation5 + $0x3230] sm:$0xff]
    %v1667 = vld [vmem:[#allocation5 + $0x3238] sm:$0xff]
    %v1668 = vld [vmem:[#allocation5 + $0x3240] sm:$0xff]
    %v1669 = vld [vmem:[#allocation5 + $0x3248] sm:$0xff]
    %v1670 = vld [vmem:[#allocation5 + $0x3250] sm:$0xff]
    %v1671 = vld [vmem:[#allocation5 + $0x3258] sm:$0xff]
    %v1672 = vld [vmem:[#allocation5 + $0x3260] sm:$0xff]
    %v1673 = vld [vmem:[#allocation5 + $0x3268] sm:$0xff]
    %v1674 = vld [vmem:[#allocation5 + $0x3270] sm:$0xff]
    %v1675 = vld [vmem:[#allocation5 + $0x3278] sm:$0xff]
    %v1676 = vld [vmem:[#allocation5 + $0x3280] sm:$0xff]
    %v1677 = vld [vmem:[#allocation5 + $0x3288] sm:$0xff]
    %v1678 = vld [vmem:[#allocation5 + $0x3290] sm:$0xff]
    %v1679 = vld [vmem:[#allocation5 + $0x3298] sm:$0xff]
    %v1680 = vld [vmem:[#allocation5 + $0x32a0] sm:$0xff]
    %v1681 = vld [vmem:[#allocation5 + $0x32a8] sm:$0xff]
    %v1682 = vld [vmem:[#allocation5 + $0x32b0] sm:$0xff]
    %v1683 = vld [vmem:[#allocation5 + $0x32b8] sm:$0xff]
    %v1684 = vld [vmem:[#allocation5 + $0x32c0] sm:$0xff]
    %v1685 = vld [vmem:[#allocation5 + $0x32c8] sm:$0xff]
    %v1686 = vld [vmem:[#allocation5 + $0x32d0] sm:$0xff]
    %v1687 = vld [vmem:[#allocation5 + $0x32d8] sm:$0xff]
    %v1688 = vld [vmem:[#allocation5 + $0x32e0] sm:$0xff]
    %v1689 = vld [vmem:[#allocation5 + $0x32e8] sm:$0xff]
    %v1690 = vld [vmem:[#allocation5 + $0x32f0] sm:$0xff]
    %v1691 = vld [vmem:[#allocation5 + $0x32f8] sm:$0xff]
    %v1692 = vld [vmem:[#allocation5 + $0x3300] sm:$0xff]
    %v1693 = vld [vmem:[#allocation5 + $0x3308] sm:$0xff]
    %v1694 = vld [vmem:[#allocation5 + $0x3310] sm:$0xff]
    %v1695 = vld [vmem:[#allocation5 + $0x3318] sm:$0xff]
    %v1696 = vld [vmem:[#allocation5 + $0x3320] sm:$0xff]
    %v1697 = vld [vmem:[#allocation5 + $0x3328] sm:$0xff]
    %v1698 = vld [vmem:[#allocation5 + $0x3330] sm:$0xff]
    %v1699 = vld [vmem:[#allocation5 + $0x3338] sm:$0xff]
    %v1700 = vld [vmem:[#allocation5 + $0x3340] sm:$0xff]
    %v1701 = vld [vmem:[#allocation5 + $0x3348] sm:$0xff]
    %v1702 = vld [vmem:[#allocation5 + $0x3350] sm:$0xff]
    %v1703 = vld [vmem:[#allocation5 + $0x3358] sm:$0xff]
    %v1704 = vld [vmem:[#allocation5 + $0x3360] sm:$0xff]
    %v1705 = vld [vmem:[#allocation5 + $0x3368] sm:$0xff]
    %v1706 = vld [vmem:[#allocation5 + $0x3370] sm:$0xff]
    %v1707 = vld [vmem:[#allocation5 + $0x3378] sm:$0xff]
    %v1708 = vld [vmem:[#allocation5 + $0x3380] sm:$0xff]
    %v1709 = vld [vmem:[#allocation5 + $0x3388] sm:$0xff]
    %v1710 = vld [vmem:[#allocation5 + $0x3390] sm:$0xff]
    %v1711 = vld [vmem:[#allocation5 + $0x3398] sm:$0xff]
    %v1712 = vld [vmem:[#allocation5 + $0x33a0] sm:$0xff]
    %v1713 = vld [vmem:[#allocation5 + $0x33a8] sm:$0xff]
    %v1714 = vld [vmem:[#allocation5 + $0x33b0] sm:$0xff]
    %v1715 = vld [vmem:[#allocation5 + $0x33b8] sm:$0xff]
    %v1716 = vld [vmem:[#allocation5 + $0x33c0] sm:$0xff]
    %v1717 = vld [vmem:[#allocation5 + $0x33c8] sm:$0xff]
    %v1718 = vld [vmem:[#allocation5 + $0x33d0] sm:$0xff]
    %v1719 = vld [vmem:[#allocation5 + $0x33d8] sm:$0xff]
    %v1720 = vld [vmem:[#allocation5 + $0x33e0] sm:$0xff]
    %v1721 = vld [vmem:[#allocation5 + $0x33e8] sm:$0xff]
    %v1722 = vld [vmem:[#allocation5 + $0x33f0] sm:$0xff]
    %v1723 = vld [vmem:[#allocation5 + $0x33f8] sm:$0xff]
    %v1724 = vld [vmem:[#allocation5 + $0x3400] sm:$0xff]
    %v1725 = vld [vmem:[#allocation5 + $0x3408] sm:$0xff]
    %v1726 = vld [vmem:[#allocation5 + $0x3410] sm:$0xff]
    %v1727 = vld [vmem:[#allocation5 + $0x3418] sm:$0xff]
    %v1728 = vld [vmem:[#allocation5 + $0x3420] sm:$0xff]
    %v1729 = vld [vmem:[#allocation5 + $0x3428] sm:$0xff]
    %v1730 = vld [vmem:[#allocation5 + $0x3430] sm:$0xff]
    %v1731 = vld [vmem:[#allocation5 + $0x3438] sm:$0xff]
    %v1732 = vld [vmem:[#allocation5 + $0x3440] sm:$0xff]
    %v1733 = vld [vmem:[#allocation5 + $0x3448] sm:$0xff]
    %v1734 = vld [vmem:[#allocation5 + $0x3450] sm:$0xff]
    %v1735 = vld [vmem:[#allocation5 + $0x3458] sm:$0xff]
    %v1736 = vld [vmem:[#allocation5 + $0x3460] sm:$0xff]
    %v1737 = vld [vmem:[#allocation5 + $0x3468] sm:$0xff]
    %v1738 = vld [vmem:[#allocation5 + $0x3470] sm:$0xff]
    %v1739 = vld [vmem:[#allocation5 + $0x3478] sm:$0xff]
    %v1740 = vld [vmem:[#allocation5 + $0x3480] sm:$0xff]
    %v1741 = vld [vmem:[#allocation5 + $0x3488] sm:$0xff]
    %v1742 = vld [vmem:[#allocation5 + $0x3490] sm:$0xff]
    %v1743 = vld [vmem:[#allocation5 + $0x3498] sm:$0xff]
    %v1744 = vld [vmem:[#allocation5 + $0x34a0] sm:$0xff]
    %v1745 = vld [vmem:[#allocation5 + $0x34a8] sm:$0xff]
    %v1746 = vld [vmem:[#allocation5 + $0x34b0] sm:$0xff]
    %v1747 = vld [vmem:[#allocation5 + $0x34b8] sm:$0xff]
    %v1748 = vld [vmem:[#allocation5 + $0x34c0] sm:$0xff]
    %v1749 = vld [vmem:[#allocation5 + $0x34c8] sm:$0xff]
    %v1750 = vld [vmem:[#allocation5 + $0x34d0] sm:$0xff]
    %v1751 = vld [vmem:[#allocation5 + $0x34d8] sm:$0xff]
    %v1752 = vld [vmem:[#allocation5 + $0x34e0] sm:$0xff]
    %v1753 = vld [vmem:[#allocation5 + $0x34e8] sm:$0xff]
    %v1754 = vld [vmem:[#allocation5 + $0x34f0] sm:$0xff]
    %v1755 = vld [vmem:[#allocation5 + $0x34f8] sm:$0xff]
    %v1756 = vld [vmem:[#allocation5 + $0x3500] sm:$0xff]
    %v1757 = vld [vmem:[#allocation5 + $0x3508] sm:$0xff]
    %v1758 = vld [vmem:[#allocation5 + $0x3510] sm:$0xff]
    %v1759 = vld [vmem:[#allocation5 + $0x3518] sm:$0xff]
    %v1760 = vld [vmem:[#allocation5 + $0x3520] sm:$0xff]
    %v1761 = vld [vmem:[#allocation5 + $0x3528] sm:$0xff]
    %v1762 = vld [vmem:[#allocation5 + $0x3530] sm:$0xff]
    %v1763 = vld [vmem:[#allocation5 + $0x3538] sm:$0xff]
    %v1764 = vld [vmem:[#allocation5 + $0x3540] sm:$0xff]
    %v1765 = vld [vmem:[#allocation5 + $0x3548] sm:$0xff]
    %v1766 = vld [vmem:[#allocation5 + $0x3550] sm:$0xff]
    %v1767 = vld [vmem:[#allocation5 + $0x3558] sm:$0xff]
    %v1768 = vld [vmem:[#allocation5 + $0x3560] sm:$0xff]
    %v1769 = vld [vmem:[#allocation5 + $0x3568] sm:$0xff]
    %v1770 = vld [vmem:[#allocation5 + $0x3570] sm:$0xff]
    %v1771 = vld [vmem:[#allocation5 + $0x3578] sm:$0xff]
    %v1772 = vld [vmem:[#allocation5 + $0x3580] sm:$0xff]
    %v1773 = vld [vmem:[#allocation5 + $0x3588] sm:$0xff]
    %v1774 = vld [vmem:[#allocation5 + $0x3590] sm:$0xff]
    %v1775 = vld [vmem:[#allocation5 + $0x3598] sm:$0xff]
    %v1776 = vld [vmem:[#allocation5 + $0x35a0] sm:$0xff]
    %v1777 = vld [vmem:[#allocation5 + $0x35a8] sm:$0xff]
    %v1778 = vld [vmem:[#allocation5 + $0x35b0] sm:$0xff]
    %v1779 = vld [vmem:[#allocation5 + $0x35b8] sm:$0xff]
    %v1780 = vld [vmem:[#allocation5 + $0x35c0] sm:$0xff]
    %v1781 = vld [vmem:[#allocation5 + $0x35c8] sm:$0xff]
    %v1782 = vld [vmem:[#allocation5 + $0x35d0] sm:$0xff]
    %v1783 = vld [vmem:[#allocation5 + $0x35d8] sm:$0xff]
    %v1784 = vld [vmem:[#allocation5 + $0x35e0] sm:$0xff]
    %v1785 = vld [vmem:[#allocation5 + $0x35e8] sm:$0xff]
    %v1786 = vld [vmem:[#allocation5 + $0x35f0] sm:$0xff]
    %v1787 = vld [vmem:[#allocation5 + $0x35f8] sm:$0xff]
    %v1788 = vld [vmem:[#allocation5 + $0x3600] sm:$0xff]
    %v1789 = vld [vmem:[#allocation5 + $0x3608] sm:$0xff]
    %v1790 = vld [vmem:[#allocation5 + $0x3610] sm:$0xff]
    %v1791 = vld [vmem:[#allocation5 + $0x3618] sm:$0xff]
    %v1792 = vld [vmem:[#allocation5 + $0x3620] sm:$0xff]
    %v1793 = vld [vmem:[#allocation5 + $0x3628] sm:$0xff]
    %v1794 = vld [vmem:[#allocation5 + $0x3630] sm:$0xff]
    %v1795 = vld [vmem:[#allocation5 + $0x3638] sm:$0xff]
    %v1796 = vld [vmem:[#allocation5 + $0x3640] sm:$0xff]
    %v1797 = vld [vmem:[#allocation5 + $0x3648] sm:$0xff]
    %v1798 = vld [vmem:[#allocation5 + $0x3650] sm:$0xff]
    %v1799 = vld [vmem:[#allocation5 + $0x3658] sm:$0xff]
    %v1800 = vld [vmem:[#allocation5 + $0x3660] sm:$0xff]
    %v1801 = vld [vmem:[#allocation5 + $0x3668] sm:$0xff]
    %v1802 = vld [vmem:[#allocation5 + $0x3670] sm:$0xff]
    %v1803 = vld [vmem:[#allocation5 + $0x3678] sm:$0xff]
    %v1804 = vld [vmem:[#allocation5 + $0x3680] sm:$0xff]
    %v1805 = vld [vmem:[#allocation5 + $0x3688] sm:$0xff]
    %v1806 = vld [vmem:[#allocation5 + $0x3690] sm:$0xff]
    %v1807 = vld [vmem:[#allocation5 + $0x3698] sm:$0xff]
    %v1808 = vld [vmem:[#allocation5 + $0x36a0] sm:$0xff]
    %v1809 = vld [vmem:[#allocation5 + $0x36a8] sm:$0xff]
    %v1810 = vld [vmem:[#allocation5 + $0x36b0] sm:$0xff]
    %v1811 = vld [vmem:[#allocation5 + $0x36b8] sm:$0xff]
    %v1812 = vld [vmem:[#allocation5 + $0x36c0] sm:$0xff]
    %v1813 = vld [vmem:[#allocation5 + $0x36c8] sm:$0xff]
    %v1814 = vld [vmem:[#allocation5 + $0x36d0] sm:$0xff]
    %v1815 = vld [vmem:[#allocation5 + $0x36d8] sm:$0xff]
    %v1816 = vld [vmem:[#allocation5 + $0x36e0] sm:$0xff]
    %v1817 = vld [vmem:[#allocation5 + $0x36e8] sm:$0xff]
    %v1818 = vld [vmem:[#allocation5 + $0x36f0] sm:$0xff]
    %v1819 = vld [vmem:[#allocation5 + $0x36f8] sm:$0xff]
    %v1820 = vld [vmem:[#allocation5 + $0x3700] sm:$0xff]
    %v1821 = vld [vmem:[#allocation5 + $0x3708] sm:$0xff]
    %v1822 = vld [vmem:[#allocation5 + $0x3710] sm:$0xff]
    %v1823 = vld [vmem:[#allocation5 + $0x3718] sm:$0xff]
    %v1824 = vld [vmem:[#allocation5 + $0x3720] sm:$0xff]
    %v1825 = vld [vmem:[#allocation5 + $0x3728] sm:$0xff]
    %v1826 = vld [vmem:[#allocation5 + $0x3730] sm:$0xff]
    %v1827 = vld [vmem:[#allocation5 + $0x3738] sm:$0xff]
    %v1828 = vld [vmem:[#allocation5 + $0x3740] sm:$0xff]
    %v1829 = vld [vmem:[#allocation5 + $0x3748] sm:$0xff]
    %v1830 = vld [vmem:[#allocation5 + $0x3750] sm:$0xff]
    %v1831 = vld [vmem:[#allocation5 + $0x3758] sm:$0xff]
    %v1832 = vld [vmem:[#allocation5 + $0x3760] sm:$0xff]
    %v1833 = vld [vmem:[#allocation5 + $0x3768] sm:$0xff]
    %v1834 = vld [vmem:[#allocation5 + $0x3770] sm:$0xff]
    %v1835 = vld [vmem:[#allocation5 + $0x3778] sm:$0xff]
    %v1836 = vld [vmem:[#allocation5 + $0x3780] sm:$0xff]
    %v1837 = vld [vmem:[#allocation5 + $0x3788] sm:$0xff]
    %v1838 = vld [vmem:[#allocation5 + $0x3790] sm:$0xff]
    %v1839 = vld [vmem:[#allocation5 + $0x3798] sm:$0xff]
    %v1840 = vld [vmem:[#allocation5 + $0x37a0] sm:$0xff]
    %v1841 = vld [vmem:[#allocation5 + $0x37a8] sm:$0xff]
    %v1842 = vld [vmem:[#allocation5 + $0x37b0] sm:$0xff]
    %v1843 = vld [vmem:[#allocation5 + $0x37b8] sm:$0xff]
    %v1844 = vld [vmem:[#allocation5 + $0x37c0] sm:$0xff]
    %v1845 = vld [vmem:[#allocation5 + $0x37c8] sm:$0xff]
    %v1846 = vld [vmem:[#allocation5 + $0x37d0] sm:$0xff]
    %v1847 = vld [vmem:[#allocation5 + $0x37d8] sm:$0xff]
    %v1848 = vld [vmem:[#allocation5 + $0x37e0] sm:$0xff]
    %v1849 = vld [vmem:[#allocation5 + $0x37e8] sm:$0xff]
    %v1850 = vld [vmem:[#allocation5 + $0x37f0] sm:$0xff]
    %v1851 = vld [vmem:[#allocation5 + $0x37f8] sm:$0xff]
    %v1852 = vld [vmem:[#allocation5 + $0x3800] sm:$0xff]
    %v1853 = vld [vmem:[#allocation5 + $0x3808] sm:$0xff]
    %v1854 = vld [vmem:[#allocation5 + $0x3810] sm:$0xff]
    %v1855 = vld [vmem:[#allocation5 + $0x3818] sm:$0xff]
    %v1856 = vld [vmem:[#allocation5 + $0x3820] sm:$0xff]
    %v1857 = vld [vmem:[#allocation5 + $0x3828] sm:$0xff]
    %v1858 = vld [vmem:[#allocation5 + $0x3830] sm:$0xff]
    %v1859 = vld [vmem:[#allocation5 + $0x3838] sm:$0xff]
    %v1860 = vld [vmem:[#allocation5 + $0x3840] sm:$0xff]
    %v1861 = vld [vmem:[#allocation5 + $0x3848] sm:$0xff]
    %v1862 = vld [vmem:[#allocation5 + $0x3850] sm:$0xff]
    %v1863 = vld [vmem:[#allocation5 + $0x3858] sm:$0xff]
    %v1864 = vld [vmem:[#allocation5 + $0x3860] sm:$0xff]
    %v1865 = vld [vmem:[#allocation5 + $0x3868] sm:$0xff]
    %v1866 = vld [vmem:[#allocation5 + $0x3870] sm:$0xff]
    %v1867 = vld [vmem:[#allocation5 + $0x3878] sm:$0xff]
    %v1868 = vld [vmem:[#allocation5 + $0x3880] sm:$0xff]
    %v1869 = vld [vmem:[#allocation5 + $0x3888] sm:$0xff]
    %v1870 = vld [vmem:[#allocation5 + $0x3890] sm:$0xff]
    %v1871 = vld [vmem:[#allocation5 + $0x3898] sm:$0xff]
    %v1872 = vld [vmem:[#allocation5 + $0x38a0] sm:$0xff]
    %v1873 = vld [vmem:[#allocation5 + $0x38a8] sm:$0xff]
    %v1874 = vld [vmem:[#allocation5 + $0x38b0] sm:$0xff]
    %v1875 = vld [vmem:[#allocation5 + $0x38b8] sm:$0xff]
    %v1876 = vld [vmem:[#allocation5 + $0x38c0] sm:$0xff]
    %v1877 = vld [vmem:[#allocation5 + $0x38c8] sm:$0xff]
    %v1878 = vld [vmem:[#allocation5 + $0x38d0] sm:$0xff]
    %v1879 = vld [vmem:[#allocation5 + $0x38d8] sm:$0xff]
    %v1880 = vld [vmem:[#allocation5 + $0x38e0] sm:$0xff]
    %v1881 = vld [vmem:[#allocation5 + $0x38e8] sm:$0xff]
    %v1882 = vld [vmem:[#allocation5 + $0x38f0] sm:$0xff]
    %v1883 = vld [vmem:[#allocation5 + $0x38f8] sm:$0xff]
    %v1884 = vld [vmem:[#allocation5 + $0x3900] sm:$0xff]
    %v1885 = vld [vmem:[#allocation5 + $0x3908] sm:$0xff]
    %v1886 = vld [vmem:[#allocation5 + $0x3910] sm:$0xff]
    %v1887 = vld [vmem:[#allocation5 + $0x3918] sm:$0xff]
    %v1888 = vld [vmem:[#allocation5 + $0x3920] sm:$0xff]
    %v1889 = vld [vmem:[#allocation5 + $0x3928] sm:$0xff]
    %v1890 = vld [vmem:[#allocation5 + $0x3930] sm:$0xff]
    %v1891 = vld [vmem:[#allocation5 + $0x3938] sm:$0xff]
    %v1892 = vld [vmem:[#allocation5 + $0x3940] sm:$0xff]
    %v1893 = vld [vmem:[#allocation5 + $0x3948] sm:$0xff]
    %v1894 = vld [vmem:[#allocation5 + $0x3950] sm:$0xff]
    %v1895 = vld [vmem:[#allocation5 + $0x3958] sm:$0xff]
    %v1896 = vld [vmem:[#allocation5 + $0x3960] sm:$0xff]
    %v1897 = vld [vmem:[#allocation5 + $0x3968] sm:$0xff]
    %v1898 = vld [vmem:[#allocation5 + $0x3970] sm:$0xff]
    %v1899 = vld [vmem:[#allocation5 + $0x3978] sm:$0xff]
    %v1900 = vld [vmem:[#allocation5 + $0x3980] sm:$0xff]
    %v1901 = vld [vmem:[#allocation5 + $0x3988] sm:$0xff]
    %v1902 = vld [vmem:[#allocation5 + $0x3990] sm:$0xff]
    %v1903 = vld [vmem:[#allocation5 + $0x3998] sm:$0xff]
    %v1904 = vld [vmem:[#allocation5 + $0x39a0] sm:$0xff]
    %v1905 = vld [vmem:[#allocation5 + $0x39a8] sm:$0xff]
    %v1906 = vld [vmem:[#allocation5 + $0x39b0] sm:$0xff]
    %v1907 = vld [vmem:[#allocation5 + $0x39b8] sm:$0xff]
    %v1908 = vld [vmem:[#allocation5 + $0x39c0] sm:$0xff]
    %v1909 = vld [vmem:[#allocation5 + $0x39c8] sm:$0xff]
    %v1910 = vld [vmem:[#allocation5 + $0x39d0] sm:$0xff]
    %v1911 = vld [vmem:[#allocation5 + $0x39d8] sm:$0xff]
    %v1912 = vld [vmem:[#allocation5 + $0x39e0] sm:$0xff]
    %v1913 = vld [vmem:[#allocation5 + $0x39e8] sm:$0xff]
    %v1914 = vld [vmem:[#allocation5 + $0x39f0] sm:$0xff]
    %v1915 = vld [vmem:[#allocation5 + $0x39f8] sm:$0xff]
    %v1916 = vld [vmem:[#allocation5 + $0x3a00] sm:$0xff]
    %v1917 = vld [vmem:[#allocation5 + $0x3a08] sm:$0xff]
    %v1918 = vld [vmem:[#allocation5 + $0x3a10] sm:$0xff]
    %v1919 = vld [vmem:[#allocation5 + $0x3a18] sm:$0xff]
    %v1920 = vld [vmem:[#allocation5 + $0x3a20] sm:$0xff]
    %v1921 = vld [vmem:[#allocation5 + $0x3a28] sm:$0xff]
    %v1922 = vld [vmem:[#allocation5 + $0x3a30] sm:$0xff]
    %v1923 = vld [vmem:[#allocation5 + $0x3a38] sm:$0xff]
    %v1924 = vld [vmem:[#allocation5 + $0x3a40] sm:$0xff]
    %v1925 = vld [vmem:[#allocation5 + $0x3a48] sm:$0xff]
    %v1926 = vld [vmem:[#allocation5 + $0x3a50] sm:$0xff]
    %v1927 = vld [vmem:[#allocation5 + $0x3a58] sm:$0xff]
    %v1928 = vld [vmem:[#allocation5 + $0x3a60] sm:$0xff]
    %v1929 = vld [vmem:[#allocation5 + $0x3a68] sm:$0xff]
    %v1930 = vld [vmem:[#allocation5 + $0x3a70] sm:$0xff]
    %v1931 = vld [vmem:[#allocation5 + $0x3a78] sm:$0xff]
    %v1932 = vld [vmem:[#allocation5 + $0x3a80] sm:$0xff]
    %v1933 = vld [vmem:[#allocation5 + $0x3a88] sm:$0xff]
    %v1934 = vld [vmem:[#allocation5 + $0x3a90] sm:$0xff]
    %v1935 = vld [vmem:[#allocation5 + $0x3a98] sm:$0xff]
    %v1936 = vld [vmem:[#allocation5 + $0x3aa0] sm:$0xff]
    %v1937 = vld [vmem:[#allocation5 + $0x3aa8] sm:$0xff]
    %v1938 = vld [vmem:[#allocation5 + $0x3ab0] sm:$0xff]
    %v1939 = vld [vmem:[#allocation5 + $0x3ab8] sm:$0xff]
    %v1940 = vld [vmem:[#allocation5 + $0x3ac0] sm:$0xff]
    %v1941 = vld [vmem:[#allocation5 + $0x3ac8] sm:$0xff]
    %v1942 = vld [vmem:[#allocation5 + $0x3ad0] sm:$0xff]
    %v1943 = vld [vmem:[#allocation5 + $0x3ad8] sm:$0xff]
    %v1944 = vld [vmem:[#allocation5 + $0x3ae0] sm:$0xff]
    %v1945 = vld [vmem:[#allocation5 + $0x3ae8] sm:$0xff]
    %v1946 = vld [vmem:[#allocation5 + $0x3af0] sm:$0xff]
    %v1947 = vld [vmem:[#allocation5 + $0x3af8] sm:$0xff]
    %v1948 = vld [vmem:[#allocation5 + $0x3b00] sm:$0xff]
    %v1949 = vld [vmem:[#allocation5 + $0x3b08] sm:$0xff]
    %v1950 = vld [vmem:[#allocation5 + $0x3b10] sm:$0xff]
    %v1951 = vld [vmem:[#allocation5 + $0x3b18] sm:$0xff]
    %v1952 = vld [vmem:[#allocation5 + $0x3b20] sm:$0xff]
    %v1953 = vld [vmem:[#allocation5 + $0x3b28] sm:$0xff]
    %v1954 = vld [vmem:[#allocation5 + $0x3b30] sm:$0xff]
    %v1955 = vld [vmem:[#allocation5 + $0x3b38] sm:$0xff]
    %v1956 = vld [vmem:[#allocation5 + $0x3b40] sm:$0xff]
    %v1957 = vld [vmem:[#allocation5 + $0x3b48] sm:$0xff]
    %v1958 = vld [vmem:[#allocation5 + $0x3b50] sm:$0xff]
    %v1959 = vld [vmem:[#allocation5 + $0x3b58] sm:$0xff]
    %v1960 = vld [vmem:[#allocation5 + $0x3b60] sm:$0xff]
    %v1961 = vld [vmem:[#allocation5 + $0x3b68] sm:$0xff]
    %v1962 = vld [vmem:[#allocation5 + $0x3b70] sm:$0xff]
    %v1963 = vld [vmem:[#allocation5 + $0x3b78] sm:$0xff]
    %v1964 = vld [vmem:[#allocation5 + $0x3b80] sm:$0xff]
    %v1965 = vld [vmem:[#allocation5 + $0x3b88] sm:$0xff]
    %v1966 = vld [vmem:[#allocation5 + $0x3b90] sm:$0xff]
    %v1967 = vld [vmem:[#allocation5 + $0x3b98] sm:$0xff]
    %v1968 = vld [vmem:[#allocation5 + $0x3ba0] sm:$0xff]
    %v1969 = vld [vmem:[#allocation5 + $0x3ba8] sm:$0xff]
    %v1970 = vld [vmem:[#allocation5 + $0x3bb0] sm:$0xff]
    %v1971 = vld [vmem:[#allocation5 + $0x3bb8] sm:$0xff]
    %v1972 = vld [vmem:[#allocation5 + $0x3bc0] sm:$0xff]
    %v1973 = vld [vmem:[#allocation5 + $0x3bc8] sm:$0xff]
    %v1974 = vld [vmem:[#allocation5 + $0x3bd0] sm:$0xff]
    %v1975 = vld [vmem:[#allocation5 + $0x3bd8] sm:$0xff]
    %v1976 = vld [vmem:[#allocation5 + $0x3be0] sm:$0xff]
    %v1977 = vld [vmem:[#allocation5 + $0x3be8] sm:$0xff]
    %v1978 = vld [vmem:[#allocation5 + $0x3bf0] sm:$0xff]
    %v1979 = vld [vmem:[#allocation5 + $0x3bf8] sm:$0xff]
    %v1980 = vld [vmem:[#allocation5 + $0x3c00] sm:$0xff]
    %v1981 = vld [vmem:[#allocation5 + $0x3c08] sm:$0xff]
    %v1982 = vld [vmem:[#allocation5 + $0x3c10] sm:$0xff]
    %v1983 = vld [vmem:[#allocation5 + $0x3c18] sm:$0xff]
    %v1984 = vld [vmem:[#allocation5 + $0x3c20] sm:$0xff]
    %v1985 = vld [vmem:[#allocation5 + $0x3c28] sm:$0xff]
    %v1986 = vld [vmem:[#allocation5 + $0x3c30] sm:$0xff]
    %v1987 = vld [vmem:[#allocation5 + $0x3c38] sm:$0xff]
    %v1988 = vld [vmem:[#allocation5 + $0x3c40] sm:$0xff]
    %v1989 = vld [vmem:[#allocation5 + $0x3c48] sm:$0xff]
    %v1990 = vld [vmem:[#allocation5 + $0x3c50] sm:$0xff]
    %v1991 = vld [vmem:[#allocation5 + $0x3c58] sm:$0xff]
    %v1992 = vld [vmem:[#allocation5 + $0x3c60] sm:$0xff]
    %v1993 = vld [vmem:[#allocation5 + $0x3c68] sm:$0xff]
    %v1994 = vld [vmem:[#allocation5 + $0x3c70] sm:$0xff]
    %v1995 = vld [vmem:[#allocation5 + $0x3c78] sm:$0xff]
    %v1996 = vld [vmem:[#allocation5 + $0x3c80] sm:$0xff]
    %v1997 = vld [vmem:[#allocation5 + $0x3c88] sm:$0xff]
    %v1998 = vld [vmem:[#allocation5 + $0x3c90] sm:$0xff]
    %v1999 = vld [vmem:[#allocation5 + $0x3c98] sm:$0xff]
    %v2000 = vld [vmem:[#allocation5 + $0x3ca0] sm:$0xff]
    %v2001 = vld [vmem:[#allocation5 + $0x3ca8] sm:$0xff]
    %v2002 = vld [vmem:[#allocation5 + $0x3cb0] sm:$0xff]
    %v2003 = vld [vmem:[#allocation5 + $0x3cb8] sm:$0xff]
    %v2004 = vld [vmem:[#allocation5 + $0x3cc0] sm:$0xff]
    %v2005 = vld [vmem:[#allocation5 + $0x3cc8] sm:$0xff]
    %v2006 = vld [vmem:[#allocation5 + $0x3cd0] sm:$0xff]
    %v2007 = vld [vmem:[#allocation5 + $0x3cd8] sm:$0xff]
    %v2008 = vld [vmem:[#allocation5 + $0x3ce0] sm:$0xff]
    %v2009 = vld [vmem:[#allocation5 + $0x3ce8] sm:$0xff]
    %v2010 = vld [vmem:[#allocation5 + $0x3cf0] sm:$0xff]
    %v2011 = vld [vmem:[#allocation5 + $0x3cf8] sm:$0xff]
    %v2012 = vld [vmem:[#allocation5 + $0x3d00] sm:$0xff]
    %v2013 = vld [vmem:[#allocation5 + $0x3d08] sm:$0xff]
    %v2014 = vld [vmem:[#allocation5 + $0x3d10] sm:$0xff]
    %v2015 = vld [vmem:[#allocation5 + $0x3d18] sm:$0xff]
    %v2016 = vld [vmem:[#allocation5 + $0x3d20] sm:$0xff]
    %v2017 = vld [vmem:[#allocation5 + $0x3d28] sm:$0xff]
    %v2018 = vld [vmem:[#allocation5 + $0x3d30] sm:$0xff]
    %v2019 = vld [vmem:[#allocation5 + $0x3d38] sm:$0xff]
    %v2020 = vld [vmem:[#allocation5 + $0x3d40] sm:$0xff]
    %v2021 = vld [vmem:[#allocation5 + $0x3d48] sm:$0xff]
    %v2022 = vld [vmem:[#allocation5 + $0x3d50] sm:$0xff]
    %v2023 = vld [vmem:[#allocation5 + $0x3d58] sm:$0xff]
    %v2024 = vld [vmem:[#allocation5 + $0x3d60] sm:$0xff]
    %v2025 = vld [vmem:[#allocation5 + $0x3d68] sm:$0xff]
    %v2026 = vld [vmem:[#allocation5 + $0x3d70] sm:$0xff]
    %v2027 = vld [vmem:[#allocation5 + $0x3d78] sm:$0xff]
    %v2028 = vld [vmem:[#allocation5 + $0x3d80] sm:$0xff]
    %v2029 = vld [vmem:[#allocation5 + $0x3d88] sm:$0xff]
    %v2030 = vld [vmem:[#allocation5 + $0x3d90] sm:$0xff]
    %v2031 = vld [vmem:[#allocation5 + $0x3d98] sm:$0xff]
    %v2032 = vld [vmem:[#allocation5 + $0x3da0] sm:$0xff]
    %v2033 = vld [vmem:[#allocation5 + $0x3da8] sm:$0xff]
    %v2034 = vld [vmem:[#allocation5 + $0x3db0] sm:$0xff]
    %v2035 = vld [vmem:[#allocation5 + $0x3db8] sm:$0xff]
    %v2036 = vld [vmem:[#allocation5 + $0x3dc0] sm:$0xff]
    %v2037 = vld [vmem:[#allocation5 + $0x3dc8] sm:$0xff]
    %v2038 = vld [vmem:[#allocation5 + $0x3dd0] sm:$0xff]
    %v2039 = vld [vmem:[#allocation5 + $0x3dd8] sm:$0xff]
    %v2040 = vld [vmem:[#allocation5 + $0x3de0] sm:$0xff]
    %v2041 = vld [vmem:[#allocation5 + $0x3de8] sm:$0xff]
    %v2042 = vld [vmem:[#allocation5 + $0x3df0] sm:$0xff]
    %v2043 = vld [vmem:[#allocation5 + $0x3df8] sm:$0xff]
    %v2044 = vld [vmem:[#allocation5 + $0x3e00] sm:$0xff]
    %v2045 = vld [vmem:[#allocation5 + $0x3e08] sm:$0xff]
    %v2046 = vld [vmem:[#allocation5 + $0x3e10] sm:$0xff]
    %v2047 = vld [vmem:[#allocation5 + $0x3e18] sm:$0xff]
    %v2048 = vld [vmem:[#allocation5 + $0x3e20] sm:$0xff]
    %v2049 = vld [vmem:[#allocation5 + $0x3e28] sm:$0xff]
    %v2050 = vld [vmem:[#allocation5 + $0x3e30] sm:$0xff]
    %v2051 = vld [vmem:[#allocation5 + $0x3e38] sm:$0xff]
    %v2052 = vld [vmem:[#allocation5 + $0x3e40] sm:$0xff]
    %v2053 = vld [vmem:[#allocation5 + $0x3e48] sm:$0xff]
    %v2054 = vld [vmem:[#allocation5 + $0x3e50] sm:$0xff]
    %v2055 = vld [vmem:[#allocation5 + $0x3e58] sm:$0xff]
    %v2056 = vld [vmem:[#allocation5 + $0x3e60] sm:$0xff]
    %v2057 = vld [vmem:[#allocation5 + $0x3e68] sm:$0xff]
    %v2058 = vld [vmem:[#allocation5 + $0x3e70] sm:$0xff]
    %v2059 = vld [vmem:[#allocation5 + $0x3e78] sm:$0xff]
    %v2060 = vld [vmem:[#allocation5 + $0x3e80] sm:$0xff]
    %v2061 = vld [vmem:[#allocation5 + $0x3e88] sm:$0xff]
    %v2062 = vld [vmem:[#allocation5 + $0x3e90] sm:$0xff]
    %v2063 = vld [vmem:[#allocation5 + $0x3e98] sm:$0xff]
    %v2064 = vld [vmem:[#allocation5 + $0x3ea0] sm:$0xff]
    %v2065 = vld [vmem:[#allocation5 + $0x3ea8] sm:$0xff]
    %v2066 = vld [vmem:[#allocation5 + $0x3eb0] sm:$0xff]
    %v2067 = vld [vmem:[#allocation5 + $0x3eb8] sm:$0xff]
    %v2068 = vld [vmem:[#allocation5 + $0x3ec0] sm:$0xff]
    %v2069 = vld [vmem:[#allocation5 + $0x3ec8] sm:$0xff]
    %v2070 = vld [vmem:[#allocation5 + $0x3ed0] sm:$0xff]
    %v2071 = vld [vmem:[#allocation5 + $0x3ed8] sm:$0xff]
    %v2072 = vld [vmem:[#allocation5 + $0x3ee0] sm:$0xff]
    %v2073 = vld [vmem:[#allocation5 + $0x3ee8] sm:$0xff]
    %v2074 = vld [vmem:[#allocation5 + $0x3ef0] sm:$0xff]
    %v2075 = vld [vmem:[#allocation5 + $0x3ef8] sm:$0xff]
    %v2076 = vld [vmem:[#allocation5 + $0x3f00] sm:$0xff]
    %v2077 = vld [vmem:[#allocation5 + $0x3f08] sm:$0xff]
    %v2078 = vld [vmem:[#allocation5 + $0x3f10] sm:$0xff]
    %v2079 = vld [vmem:[#allocation5 + $0x3f18] sm:$0xff]
    %v2080 = vld [vmem:[#allocation5 + $0x3f20] sm:$0xff]
    %v2081 = vld [vmem:[#allocation5 + $0x3f28] sm:$0xff]
    %v2082 = vld [vmem:[#allocation5 + $0x3f30] sm:$0xff]
    %v2083 = vld [vmem:[#allocation5 + $0x3f38] sm:$0xff]
    %v2084 = vld [vmem:[#allocation5 + $0x3f40] sm:$0xff]
    %v2085 = vld [vmem:[#allocation5 + $0x3f48] sm:$0xff]
    %v2086 = vld [vmem:[#allocation5 + $0x3f50] sm:$0xff]
    %v2087 = vld [vmem:[#allocation5 + $0x3f58] sm:$0xff]
    %v2088 = vld [vmem:[#allocation5 + $0x3f60] sm:$0xff]
    %v2089 = vld [vmem:[#allocation5 + $0x3f68] sm:$0xff]
    %v2090 = vld [vmem:[#allocation5 + $0x3f70] sm:$0xff]
    %v2091 = vld [vmem:[#allocation5 + $0x3f78] sm:$0xff]
    %v2092 = vld [vmem:[#allocation5 + $0x3f80] sm:$0xff]
    %v2093 = vld [vmem:[#allocation5 + $0x3f88] sm:$0xff]
    %v2094 = vld [vmem:[#allocation5 + $0x3f90] sm:$0xff]
    %v2095 = vld [vmem:[#allocation5 + $0x3f98] sm:$0xff]
    %v2096 = vld [vmem:[#allocation5 + $0x3fa0] sm:$0xff]
    %v2097 = vld [vmem:[#allocation5 + $0x3fa8] sm:$0xff]
    %v2098 = vld [vmem:[#allocation5 + $0x3fb0] sm:$0xff]
    %v2099 = vld [vmem:[#allocation5 + $0x3fb8] sm:$0xff]
    %v2100 = vld [vmem:[#allocation5 + $0x3fc0] sm:$0xff]
    %v2101 = vld [vmem:[#allocation5 + $0x3fc8] sm:$0xff]
    %v2102 = vld [vmem:[#allocation5 + $0x3fd0] sm:$0xff]
    %v2103 = vld [vmem:[#allocation5 + $0x3fd8] sm:$0xff]
    %v2104 = vld [vmem:[#allocation5 + $0x3fe0] sm:$0xff]
    %v2105 = vld [vmem:[#allocation5 + $0x3fe8] sm:$0xff]
    %v2106 = vld [vmem:[#allocation5 + $0x3ff0] sm:$0xff]
    %v2107 = vld [vmem:[#allocation5 + $0x3ff8] sm:$0xff]
    %v2108 = vld [vmem:[#allocation5 + $0x4000] sm:$0xff]
    %v2109 = vld [vmem:[#allocation5 + $0x4008] sm:$0xff]
    %v2110 = vld [vmem:[#allocation5 + $0x4010] sm:$0xff]
    %v2111 = vld [vmem:[#allocation5 + $0x4018] sm:$0xff]
    %v2112 = vld [vmem:[#allocation5 + $0x4020] sm:$0xff]
    %v2113 = vld [vmem:[#allocation5 + $0x4028] sm:$0xff]
    %v2114 = vld [vmem:[#allocation5 + $0x4030] sm:$0xff]
    %v2115 = vld [vmem:[#allocation5 + $0x4038] sm:$0xff]
    %v2116 = vld [vmem:[#allocation5 + $0x4040] sm:$0xff]
    %v2117 = vld [vmem:[#allocation5 + $0x4048] sm:$0xff]
    %v2118 = vld [vmem:[#allocation5 + $0x4050] sm:$0xff]
    %v2119 = vld [vmem:[#allocation5 + $0x4058] sm:$0xff]
    %v2120 = vld [vmem:[#allocation5 + $0x4060] sm:$0xff]
    %v2121 = vld [vmem:[#allocation5 + $0x4068] sm:$0xff]
    %v2122 = vld [vmem:[#allocation5 + $0x4070] sm:$0xff]
    %v2123 = vld [vmem:[#allocation5 + $0x4078] sm:$0xff]
    %v2124 = vld [vmem:[#allocation5 + $0x4080] sm:$0xff]
    %v2125 = vld [vmem:[#allocation5 + $0x4088] sm:$0xff]
    %v2126 = vld [vmem:[#allocation5 + $0x4090] sm:$0xff]
    %v2127 = vld [vmem:[#allocation5 + $0x4098] sm:$0xff]
    %v2128 = vld [vmem:[#allocation5 + $0x40a0] sm:$0xff]
    %v2129 = vld [vmem:[#allocation5 + $0x40a8] sm:$0xff]
    %v2130 = vld [vmem:[#allocation5 + $0x40b0] sm:$0xff]
    %v2131 = vld [vmem:[#allocation5 + $0x40b8] sm:$0xff]
    %v2132 = vld [vmem:[#allocation5 + $0x40c0] sm:$0xff]
    %v2133 = vld [vmem:[#allocation5 + $0x40c8] sm:$0xff]
    %v2134 = vld [vmem:[#allocation5 + $0x40d0] sm:$0xff]
    %v2135 = vld [vmem:[#allocation5 + $0x40d8] sm:$0xff]
    %v2136 = vld [vmem:[#allocation5 + $0x40e0] sm:$0xff]
    %v2137 = vld [vmem:[#allocation5 + $0x40e8] sm:$0xff]
    %v2138 = vld [vmem:[#allocation5 + $0x40f0] sm:$0xff]
    %v2139 = vld [vmem:[#allocation5 + $0x40f8] sm:$0xff]
    %v2140 = vld [vmem:[#allocation5 + $0x4100] sm:$0xff]
    %v2141 = vld [vmem:[#allocation5 + $0x4108] sm:$0xff]
    %v2142 = vld [vmem:[#allocation5 + $0x4110] sm:$0xff]
    %v2143 = vld [vmem:[#allocation5 + $0x4118] sm:$0xff]
    %v2144 = vld [vmem:[#allocation5 + $0x4120] sm:$0xff]
    %v2145 = vld [vmem:[#allocation5 + $0x4128] sm:$0xff]
    %v2146 = vld [vmem:[#allocation5 + $0x4130] sm:$0xff]
    %v2147 = vld [vmem:[#allocation5 + $0x4138] sm:$0xff]
    %v2148 = vld [vmem:[#allocation5 + $0x4140] sm:$0xff]
    %v2149 = vld [vmem:[#allocation5 + $0x4148] sm:$0xff]
    %v2150 = vld [vmem:[#allocation5 + $0x4150] sm:$0xff]
    %v2151 = vld [vmem:[#allocation5 + $0x4158] sm:$0xff]
    %v2152 = vld [vmem:[#allocation5 + $0x4160] sm:$0xff]
    %v2153 = vld [vmem:[#allocation5 + $0x4168] sm:$0xff]
    %v2154 = vld [vmem:[#allocation5 + $0x4170] sm:$0xff]
    %v2155 = vld [vmem:[#allocation5 + $0x4178] sm:$0xff]
    %v2156 = vld [vmem:[#allocation5 + $0x4180] sm:$0xff]
    %v2157 = vld [vmem:[#allocation5 + $0x4188] sm:$0xff]
    %v2158 = vld [vmem:[#allocation5 + $0x4190] sm:$0xff]
    %v2159 = vld [vmem:[#allocation5 + $0x4198] sm:$0xff]
    %v2160 = vld [vmem:[#allocation5 + $0x41a0] sm:$0xff]
    %v2161 = vld [vmem:[#allocation5 + $0x41a8] sm:$0xff]
    %v2162 = vld [vmem:[#allocation5 + $0x41b0] sm:$0xff]
    %v2163 = vld [vmem:[#allocation5 + $0x41b8] sm:$0xff]
    %v2164 = vld [vmem:[#allocation5 + $0x41c0] sm:$0xff]
    %v2165 = vld [vmem:[#allocation5 + $0x41c8] sm:$0xff]
    %v2166 = vld [vmem:[#allocation5 + $0x41d0] sm:$0xff]
    %v2167 = vld [vmem:[#allocation5 + $0x41d8] sm:$0xff]
    %v2168 = vld [vmem:[#allocation5 + $0x41e0] sm:$0xff]
    %v2169 = vld [vmem:[#allocation5 + $0x41e8] sm:$0xff]
    %v2170 = vld [vmem:[#allocation5 + $0x41f0] sm:$0xff]
    %v2171 = vld [vmem:[#allocation5 + $0x41f8] sm:$0xff]
    %v2172 = vld [vmem:[#allocation5 + $0x4200] sm:$0xff]
    %v2173 = vld [vmem:[#allocation5 + $0x4208] sm:$0xff]
    %v2174 = vld [vmem:[#allocation5 + $0x4210] sm:$0xff]
    %v2175 = vld [vmem:[#allocation5 + $0x4218] sm:$0xff]
    %v2176 = vld [vmem:[#allocation5 + $0x4220] sm:$0xff]
    %v2177 = vld [vmem:[#allocation5 + $0x4228] sm:$0xff]
    %v2178 = vld [vmem:[#allocation5 + $0x4230] sm:$0xff]
    %v2179 = vld [vmem:[#allocation5 + $0x4238] sm:$0xff]
    %v2180 = vld [vmem:[#allocation5 + $0x4240] sm:$0xff]
    %v2181 = vld [vmem:[#allocation5 + $0x4248] sm:$0xff]
    %v2182 = vld [vmem:[#allocation5 + $0x4250] sm:$0xff]
    %v2183 = vld [vmem:[#allocation5 + $0x4258] sm:$0xff]
    %v2184 = vld [vmem:[#allocation5 + $0x4260] sm:$0xff]
    %v2185 = vld [vmem:[#allocation5 + $0x4268] sm:$0xff]
    %v2186 = vld [vmem:[#allocation5 + $0x4270] sm:$0xff]
    %v2187 = vld [vmem:[#allocation5 + $0x4278] sm:$0xff]
    %v2188 = vld [vmem:[#allocation5 + $0x4280] sm:$0xff]
    %v2189 = vld [vmem:[#allocation5 + $0x4288] sm:$0xff]
    %v2190 = vld [vmem:[#allocation5 + $0x4290] sm:$0xff]
    %v2191 = vld [vmem:[#allocation5 + $0x4298] sm:$0xff]
    %v2192 = vld [vmem:[#allocation5 + $0x42a0] sm:$0xff]
    %v2193 = vld [vmem:[#allocation5 + $0x42a8] sm:$0xff]
    %v2194 = vld [vmem:[#allocation5 + $0x42b0] sm:$0xff]
    %v2195 = vld [vmem:[#allocation5 + $0x42b8] sm:$0xff]
    %v2196 = vld [vmem:[#allocation5 + $0x42c0] sm:$0xff]
    %v2197 = vld [vmem:[#allocation5 + $0x42c8] sm:$0xff]
    %v2198 = vld [vmem:[#allocation5 + $0x42d0] sm:$0xff]
    %v2199 = vld [vmem:[#allocation5 + $0x42d8] sm:$0xff]
    %v2200 = vld [vmem:[#allocation5 + $0x42e0] sm:$0xff]
    %v2201 = vld [vmem:[#allocation5 + $0x42e8] sm:$0xff]
    %v2202 = vld [vmem:[#allocation5 + $0x42f0] sm:$0xff]
    %v2203 = vld [vmem:[#allocation5 + $0x42f8] sm:$0xff]
    %v2204 = vld [vmem:[#allocation5 + $0x4300] sm:$0xff]
    %v2205 = vld [vmem:[#allocation5 + $0x4308] sm:$0xff]
    %v2206 = vld [vmem:[#allocation5 + $0x4310] sm:$0xff]
    %v2207 = vld [vmem:[#allocation5 + $0x4318] sm:$0xff]
    %v2208 = vld [vmem:[#allocation5 + $0x4320] sm:$0xff]
    %v2209 = vld [vmem:[#allocation5 + $0x4328] sm:$0xff]
    %v2210 = vld [vmem:[#allocation5 + $0x4330] sm:$0xff]
    %v2211 = vld [vmem:[#allocation5 + $0x4338] sm:$0xff]
    %v2212 = vld [vmem:[#allocation5 + $0x4340] sm:$0xff]
    %v2213 = vld [vmem:[#allocation5 + $0x4348] sm:$0xff]
    %v2214 = vld [vmem:[#allocation5 + $0x4350] sm:$0xff]
    %v2215 = vld [vmem:[#allocation5 + $0x4358] sm:$0xff]
    %v2216 = vld [vmem:[#allocation5 + $0x4360] sm:$0xff]
    %v2217 = vld [vmem:[#allocation5 + $0x4368] sm:$0xff]
    %v2218 = vld [vmem:[#allocation5 + $0x4370] sm:$0xff]
    %v2219 = vld [vmem:[#allocation5 + $0x4378] sm:$0xff]
    %v2220 = vld [vmem:[#allocation5 + $0x4380] sm:$0xff]
    %v2221 = vld [vmem:[#allocation5 + $0x4388] sm:$0xff]
    %v2222 = vld [vmem:[#allocation5 + $0x4390] sm:$0xff]
    %v2223 = vld [vmem:[#allocation5 + $0x4398] sm:$0xff]
    %v2224 = vld [vmem:[#allocation5 + $0x43a0] sm:$0xff]
    %v2225 = vld [vmem:[#allocation5 + $0x43a8] sm:$0xff]
    %v2226 = vld [vmem:[#allocation5 + $0x43b0] sm:$0xff]
    %v2227 = vld [vmem:[#allocation5 + $0x43b8] sm:$0xff]
    %v2228 = vld [vmem:[#allocation5 + $0x43c0] sm:$0xff]
    %v2229 = vld [vmem:[#allocation5 + $0x43c8] sm:$0xff]
    %v2230 = vld [vmem:[#allocation5 + $0x43d0] sm:$0xff]
    %v2231 = vld [vmem:[#allocation5 + $0x43d8] sm:$0xff]
    %v2232 = vld [vmem:[#allocation5 + $0x43e0] sm:$0xff]
    %v2233 = vld [vmem:[#allocation5 + $0x43e8] sm:$0xff]
    %v2234 = vld [vmem:[#allocation5 + $0x43f0] sm:$0xff]
    %v2235 = vld [vmem:[#allocation5 + $0x43f8] sm:$0xff]
    %v2236 = vld [vmem:[#allocation5 + $0x4400] sm:$0xff]
    %v2237 = vld [vmem:[#allocation5 + $0x4408] sm:$0xff]
    %v2238 = vld [vmem:[#allocation5 + $0x4410] sm:$0xff]
    %v2239 = vld [vmem:[#allocation5 + $0x4418] sm:$0xff]
    %v2240 = vld [vmem:[#allocation5 + $0x4420] sm:$0xff]
    %v2241 = vld [vmem:[#allocation5 + $0x4428] sm:$0xff]
    %v2242 = vld [vmem:[#allocation5 + $0x4430] sm:$0xff]
    %v2243 = vld [vmem:[#allocation5 + $0x4438] sm:$0xff]
    %v2244 = vld [vmem:[#allocation5 + $0x4440] sm:$0xff]
    %v2245 = vld [vmem:[#allocation5 + $0x4448] sm:$0xff]
    %v2246 = vld [vmem:[#allocation5 + $0x4450] sm:$0xff]
    %v2247 = vld [vmem:[#allocation5 + $0x4458] sm:$0xff]
    %v2248 = vld [vmem:[#allocation5 + $0x4460] sm:$0xff]
    %v2249 = vld [vmem:[#allocation5 + $0x4468] sm:$0xff]
    %v2250 = vld [vmem:[#allocation5 + $0x4470] sm:$0xff]
    %v2251 = vld [vmem:[#allocation5 + $0x4478] sm:$0xff]
    %v2252 = vld [vmem:[#allocation5 + $0x4480] sm:$0xff]
    %v2253 = vld [vmem:[#allocation5 + $0x4488] sm:$0xff]
    %v2254 = vld [vmem:[#allocation5 + $0x4490] sm:$0xff]
    %v2255 = vld [vmem:[#allocation5 + $0x4498] sm:$0xff]
    %v2256 = vld [vmem:[#allocation5 + $0x44a0] sm:$0xff]
    %v2257 = vld [vmem:[#allocation5 + $0x44a8] sm:$0xff]
    %v2258 = vld [vmem:[#allocation5 + $0x44b0] sm:$0xff]
    %v2259 = vld [vmem:[#allocation5 + $0x44b8] sm:$0xff]
    %v2260 = vld [vmem:[#allocation5 + $0x44c0] sm:$0xff]
    %v2261 = vld [vmem:[#allocation5 + $0x44c8] sm:$0xff]
    %v2262 = vld [vmem:[#allocation5 + $0x44d0] sm:$0xff]
    %v2263 = vld [vmem:[#allocation5 + $0x44d8] sm:$0xff]
    %v2264 = vld [vmem:[#allocation5 + $0x44e0] sm:$0xff]
    %v2265 = vld [vmem:[#allocation5 + $0x44e8] sm:$0xff]
    %v2266 = vld [vmem:[#allocation5 + $0x44f0] sm:$0xff]
    %v2267 = vld [vmem:[#allocation5 + $0x44f8] sm:$0xff]
    %v2268 = vld [vmem:[#allocation5 + $0x4500] sm:$0xff]
    %v2269 = vld [vmem:[#allocation5 + $0x4508] sm:$0xff]
    %v2270 = vld [vmem:[#allocation5 + $0x4510] sm:$0xff]
    %v2271 = vld [vmem:[#allocation5 + $0x4518] sm:$0xff]
    %v2272 = vld [vmem:[#allocation5 + $0x4520] sm:$0xff]
    %v2273 = vld [vmem:[#allocation5 + $0x4528] sm:$0xff]
    %v2274 = vld [vmem:[#allocation5 + $0x4530] sm:$0xff]
    %v2275 = vld [vmem:[#allocation5 + $0x4538] sm:$0xff]
    %v2276 = vld [vmem:[#allocation5 + $0x4540] sm:$0xff]
    %v2277 = vld [vmem:[#allocation5 + $0x4548] sm:$0xff]
    %v2278 = vld [vmem:[#allocation5 + $0x4550] sm:$0xff]
    %v2279 = vld [vmem:[#allocation5 + $0x4558] sm:$0xff]
    %v2280 = vld [vmem:[#allocation5 + $0x4560] sm:$0xff]
    %v2281 = vld [vmem:[#allocation5 + $0x4568] sm:$0xff]
    %v2282 = vld [vmem:[#allocation5 + $0x4570] sm:$0xff]
    %v2283 = vld [vmem:[#allocation5 + $0x4578] sm:$0xff]
    %v2284 = vld [vmem:[#allocation5 + $0x4580] sm:$0xff]
    %v2285 = vld [vmem:[#allocation5 + $0x4588] sm:$0xff]
    %v2286 = vld [vmem:[#allocation5 + $0x4590] sm:$0xff]
    %v2287 = vld [vmem:[#allocation5 + $0x4598] sm:$0xff]
    %v2288 = vld [vmem:[#allocation5 + $0x45a0] sm:$0xff]
    %v2289 = vld [vmem:[#allocation5 + $0x45a8] sm:$0xff]
    %v2290 = vld [vmem:[#allocation5 + $0x45b0] sm:$0xff]
    %v2291 = vld [vmem:[#allocation5 + $0x45b8] sm:$0xff]
    %v2292 = vld [vmem:[#allocation5 + $0x45c0] sm:$0xff]
    %v2293 = vld [vmem:[#allocation5 + $0x45c8] sm:$0xff]
    %v2294 = vld [vmem:[#allocation5 + $0x45d0] sm:$0xff]
    %v2295 = vld [vmem:[#allocation5 + $0x45d8] sm:$0xff]
    %v2296 = vld [vmem:[#allocation5 + $0x45e0] sm:$0xff]
    %v2297 = vld [vmem:[#allocation5 + $0x45e8] sm:$0xff]
    %v2298 = vld [vmem:[#allocation5 + $0x45f0] sm:$0xff]
    %v2299 = vld [vmem:[#allocation5 + $0x45f8] sm:$0xff]
    %v2300 = vld [vmem:[#allocation5 + $0x4600] sm:$0xff]
    %v2301 = vld [vmem:[#allocation5 + $0x4608] sm:$0xff]
    %v2302 = vld [vmem:[#allocation5 + $0x4610] sm:$0xff]
    %v2303 = vld [vmem:[#allocation5 + $0x4618] sm:$0xff]
    %v2304 = vld [vmem:[#allocation5 + $0x4620] sm:$0xff]
    %v2305 = vld [vmem:[#allocation5 + $0x4628] sm:$0xff]
    %v2306 = vld [vmem:[#allocation5 + $0x4630] sm:$0xff]
    %v2307 = vld [vmem:[#allocation5 + $0x4638] sm:$0xff]
    %v2308 = vld [vmem:[#allocation5 + $0x4640] sm:$0xff]
    %v2309 = vld [vmem:[#allocation5 + $0x4648] sm:$0xff]
    %v2310 = vld [vmem:[#allocation5 + $0x4650] sm:$0xff]
    %v2311 = vld [vmem:[#allocation5 + $0x4658] sm:$0xff]
    %v2312 = vld [vmem:[#allocation5 + $0x4660] sm:$0xff]
    %v2313 = vld [vmem:[#allocation5 + $0x4668] sm:$0xff]
    %v2314 = vld [vmem:[#allocation5 + $0x4670] sm:$0xff]
    %v2315 = vld [vmem:[#allocation5 + $0x4678] sm:$0xff]
    %v2316 = vld [vmem:[#allocation5 + $0x4680] sm:$0xff]
    %v2317 = vld [vmem:[#allocation5 + $0x4688] sm:$0xff]
    %v2318 = vld [vmem:[#allocation5 + $0x4690] sm:$0xff]
    %v2319 = vld [vmem:[#allocation5 + $0x4698] sm:$0xff]
    %v2320 = vld [vmem:[#allocation5 + $0x46a0] sm:$0xff]
    %v2321 = vld [vmem:[#allocation5 + $0x46a8] sm:$0xff]
    %v2322 = vld [vmem:[#allocation5 + $0x46b0] sm:$0xff]
    %v2323 = vld [vmem:[#allocation5 + $0x46b8] sm:$0xff]
    %v2324 = vld [vmem:[#allocation5 + $0x46c0] sm:$0xff]
    %v2325 = vld [vmem:[#allocation5 + $0x46c8] sm:$0xff]
    %v2326 = vld [vmem:[#allocation5 + $0x46d0] sm:$0xff]
    %v2327 = vld [vmem:[#allocation5 + $0x46d8] sm:$0xff]
    %v2328 = vld [vmem:[#allocation5 + $0x46e0] sm:$0xff]
    %v2329 = vld [vmem:[#allocation5 + $0x46e8] sm:$0xff]
    %v2330 = vld [vmem:[#allocation5 + $0x46f0] sm:$0xff]
    %v2331 = vld [vmem:[#allocation5 + $0x46f8] sm:$0xff]
    %v2332 = vld [vmem:[#allocation5 + $0x4700] sm:$0xff]
    %v2333 = vld [vmem:[#allocation5 + $0x4708] sm:$0xff]
    %v2334 = vld [vmem:[#allocation5 + $0x4710] sm:$0xff]
    %v2335 = vld [vmem:[#allocation5 + $0x4718] sm:$0xff]
    %v2336 = vld [vmem:[#allocation5 + $0x4720] sm:$0xff]
    %v2337 = vld [vmem:[#allocation5 + $0x4728] sm:$0xff]
    %v2338 = vld [vmem:[#allocation5 + $0x4730] sm:$0xff]
    %v2339 = vld [vmem:[#allocation5 + $0x4738] sm:$0xff]
    %v2340 = vld [vmem:[#allocation5 + $0x4740] sm:$0xff]
    %v2341 = vld [vmem:[#allocation5 + $0x4748] sm:$0xff]
    %v2342 = vld [vmem:[#allocation5 + $0x4750] sm:$0xff]
    %v2343 = vld [vmem:[#allocation5 + $0x4758] sm:$0xff]
    %v2344 = vld [vmem:[#allocation5 + $0x4760] sm:$0xff]
    %v2345 = vld [vmem:[#allocation5 + $0x4768] sm:$0xff]
    %v2346 = vld [vmem:[#allocation5 + $0x4770] sm:$0xff]
    %v2347 = vld [vmem:[#allocation5 + $0x4778] sm:$0xff]
    %v2348 = vld [vmem:[#allocation5 + $0x4780] sm:$0xff]
    %v2349 = vld [vmem:[#allocation5 + $0x4788] sm:$0xff]
    %v2350 = vld [vmem:[#allocation5 + $0x4790] sm:$0xff]
    %v2351 = vld [vmem:[#allocation5 + $0x4798] sm:$0xff]
    %v2352 = vld [vmem:[#allocation5 + $0x47a0] sm:$0xff]
    %v2353 = vld [vmem:[#allocation5 + $0x47a8] sm:$0xff]
    %v2354 = vld [vmem:[#allocation5 + $0x47b0] sm:$0xff]
    %v2355 = vld [vmem:[#allocation5 + $0x47b8] sm:$0xff]
    %v2356 = vld [vmem:[#allocation5 + $0x47c0] sm:$0xff]
    %v2357 = vld [vmem:[#allocation5 + $0x47c8] sm:$0xff]
    %v2358 = vld [vmem:[#allocation5 + $0x47d0] sm:$0xff]
    %v2359 = vld [vmem:[#allocation5 + $0x47d8] sm:$0xff]
    %v2360 = vld [vmem:[#allocation5 + $0x47e0] sm:$0xff]
    %v2361 = vld [vmem:[#allocation5 + $0x47e8] sm:$0xff]
    %v2362 = vld [vmem:[#allocation5 + $0x47f0] sm:$0xff]
    %v2363 = vld [vmem:[#allocation5 + $0x47f8] sm:$0xff]
    %2364 = vmatprep.subr.mxu0 %v61
    %2365 = vmatpush1.msra.mxu0 %v60
    %2366 = vmatprep.subr.mxu0 %v133
    %2367 = vmatpush1.msra.mxu0 %v132
    %2368 = vmatprep.subr.mxu0 %v205
    %2369 = vmatpush1.msra.mxu0 %v204
    %2370 = vmatprep.subr.mxu0 %v277
    %2371 = vmatpush1.msra.mxu0 %v276
    %2372 = vmatprep.subr.mxu0 %v349
    %2373 = vmatpush1.msra.mxu0 %v348
    %2374 = vmatprep.subr.mxu0 %v421
    %2375 = vmatpush1.msra.mxu0 %v420
    %2376 = vmatprep.subr.mxu0 %v493
    %2377 = vmatpush1.msra.mxu0 %v492
    %2378 = vmatprep.subr.mxu0 %v565
    %2379 = vmatpush1.msra.mxu0 %v564
    %2380 = vmatprep.subr.mxu0 %v637
    %2381 = vmatpush1.msra.mxu0 %v636
    %2382 = vmatprep.subr.mxu0 %v709
    %2383 = vmatpush1.msra.mxu0 %v708
    %2384 = vmatprep.subr.mxu0 %v781
    %2385 = vmatpush1.msra.mxu0 %v780
    %2386 = vmatprep.subr.mxu0 %v853
    %2387 = vmatpush1.msra.mxu0 %v852
    %2388 = vmatprep.subr.mxu0 %v925
    %2389 = vmatpush1.msra.mxu0 %v924
    %2390 = vmatprep.subr.mxu0 %v997
    %2391 = vmatpush1.msra.mxu0 %v996
    %2392 = vmatprep.subr.mxu0 %v1069
    %2393 = vmatpush1.msra.mxu0 %v1068
    %2394 = vmatprep.subr.mxu0 %v1141
    %2395 = vmatpush1.msra.mxu0 %v1140
    %2396 = vmatprep.subr.mxu0 %v1213
    %2397 = vmatpush1.msra.mxu0 %v1212
    %2398 = vmatprep.subr.mxu0 %v1285
    %2399 = vmatpush1.msra.mxu0 %v1284
    %2400 = vmatprep.subr.mxu0 %v1357
    %2401 = vmatpush1.msra.mxu0 %v1356
    %2402 = vmatprep.subr.mxu0 %v1429
    %2403 = vmatpush1.msra.mxu0 %v1428
    %2404 = vmatprep.subr.mxu0 %v1501
    %2405 = vmatpush1.msra.mxu0 %v1500
    %2406 = vmatprep.subr.mxu0 %v1573
    %2407 = vmatpush1.msra.mxu0 %v1572
    %2408 = vmatprep.subr.mxu0 %v1645
    %2409 = vmatpush1.msra.mxu0 %v1644
    %2410 = vmatprep.subr.mxu0 %v1717
    %2411 = vmatpush1.msra.mxu0 %v1716
    %2412 = vmatprep.subr.mxu0 %v1789
    %2413 = vmatpush1.msra.mxu0 %v1788
    %2414 = vmatprep.subr.mxu0 %v1861
    %2415 = vmatpush1.msra.mxu0 %v1860
    %2416 = vmatprep.subr.mxu0 %v1933
    %2417 = vmatpush1.msra.mxu0 %v1932
    %2418 = vmatprep.subr.mxu0 %v2005
    %2419 = vmatpush1.msra.mxu0 %v2004
    %2420 = vmatprep.subr.mxu0 %v2077
    %2421 = vmatpush1.msra.mxu0 %v2076
    %2422 = vmatprep.subr.mxu0 %v2149
    %2423 = vmatpush1.msra.mxu0 %v2148
    %2424 = vmatprep.subr.mxu0 %v2221
    %2425 = vmatpush1.msra.mxu0 %v2220
    %2426 = vmatprep.subr.mxu0 %v2293
    %2427 = vmatpush1.msra.mxu0 %v2292
    %2428 = vmatprep.mubr.f32.mxu0 %v59
    %2429 = vmatmul.mubr.f32.gmra.mrb[0].mxu0 %v58
    %v2430 = vpop.f32.mrb[0].mxu0
    %v2431 = vadd.f32 0.0, %v2430
    %v2432 = vpop.f32.mrb[0].mxu0
    %v2433 = vadd.f32 0.0, %v2432
    %2434 = vdwg.mxu0
    %2435 = vmatprep.subr.mxu0 %v63
    %2436 = vmatpush1.msra.mxu0 %v62
    %2437 = vmatprep.subr.mxu0 %v135
    %2438 = vmatpush1.msra.mxu0 %v134
    %2439 = vmatprep.subr.mxu0 %v207
    %2440 = vmatpush1.msra.mxu0 %v206
    %2441 = vmatprep.subr.mxu0 %v279
    %2442 = vmatpush1.msra.mxu0 %v278
    %2443 = vmatprep.subr.mxu0 %v351
    %2444 = vmatpush1.msra.mxu0 %v350
    %2445 = vmatprep.subr.mxu0 %v423
    %2446 = vmatpush1.msra.mxu0 %v422
    %2447 = vmatprep.subr.mxu0 %v495
    %2448 = vmatpush1.msra.mxu0 %v494
    %2449 = vmatprep.subr.mxu0 %v567
    %2450 = vmatpush1.msra.mxu0 %v566
    %2451 = vmatprep.subr.mxu0 %v639
    %2452 = vmatpush1.msra.mxu0 %v638
    %2453 = vmatprep.subr.mxu0 %v711
    %2454 = vmatpush1.msra.mxu0 %v710
    %2455 = vmatprep.subr.mxu0 %v783
    %2456 = vmatpush1.msra.mxu0 %v782
    %2457 = vmatprep.subr.mxu0 %v855
    %2458 = vmatpush1.msra.mxu0 %v854
    %2459 = vmatprep.subr.mxu0 %v927
    %2460 = vmatpush1.msra.mxu0 %v926
    %2461 = vmatprep.subr.mxu0 %v999
    %2462 = vmatpush1.msra.mxu0 %v998
    %2463 = vmatprep.subr.mxu0 %v1071
    %2464 = vmatpush1.msra.mxu0 %v1070
    %2465 = vmatprep.subr.mxu0 %v1143
    %2466 = vmatpush1.msra.mxu0 %v1142
    %2467 = vmatprep.subr.mxu0 %v1215
    %2468 = vmatpush1.msra.mxu0 %v1214
    %2469 = vmatprep.subr.mxu0 %v1287
    %2470 = vmatpush1.msra.mxu0 %v1286
    %2471 = vmatprep.subr.mxu0 %v1359
    %2472 = vmatpush1.msra.mxu0 %v1358
    %2473 = vmatprep.subr.mxu0 %v1431
    %2474 = vmatpush1.msra.mxu0 %v1430
    %2475 = vmatprep.subr.mxu0 %v1503
    %2476 = vmatpush1.msra.mxu0 %v1502
    %2477 = vmatprep.subr.mxu0 %v1575
    %2478 = vmatpush1.msra.mxu0 %v1574
    %2479 = vmatprep.subr.mxu0 %v1647
    %2480 = vmatpush1.msra.mxu0 %v1646
    %2481 = vmatprep.subr.mxu0 %v1719
    %2482 = vmatpush1.msra.mxu0 %v1718
    %2483 = vmatprep.subr.mxu0 %v1791
    %2484 = vmatpush1.msra.mxu0 %v1790
    %2485 = vmatprep.subr.mxu0 %v1863
    %2486 = vmatpush1.msra.mxu0 %v1862
    %2487 = vmatprep.subr.mxu0 %v1935
    %2488 = vmatpush1.msra.mxu0 %v1934
    %2489 = vmatprep.subr.mxu0 %v2007
    %2490 = vmatpush1.msra.mxu0 %v2006
    %2491 = vmatprep.subr.mxu0 %v2079
    %2492 = vmatpush1.msra.mxu0 %v2078
    %2493 = vmatprep.subr.mxu0 %v2151
    %2494 = vmatpush1.msra.mxu0 %v2150
    %2495 = vmatprep.subr.mxu0 %v2223
    %2496 = vmatpush1.msra.mxu0 %v2222
    %2497 = vmatprep.subr.mxu0 %v2295
    %2498 = vmatpush1.msra.mxu0 %v2294
    %2499 = vmatprep.mubr.f32.mxu0 %v59
    %2500 = vmatmul.mubr.f32.gmra.mrb[0].mxu0 %v58
    %v2501 = vpop.f32.mrb[0].mxu0
    %v2502 = vadd.f32 0.0, %v2501
    %v2503 = vpop.f32.mrb[0].mxu0
    %v2504 = vadd.f32 0.0, %v2503
    %2505 = vdwg.mxu0
    %2506 = vmatprep.subr.mxu0 %v65
    %2507 = vmatpush1.msra.mxu0 %v64
    %2508 = vmatprep.subr.mxu0 %v137
    %2509 = vmatpush1.msra.mxu0 %v136
    %2510 = vmatprep.subr.mxu0 %v209
    %2511 = vmatpush1.msra.mxu0 %v208
    %2512 = vmatprep.subr.mxu0 %v281
    %2513 = vmatpush1.msra.mxu0 %v280
    %2514 = vmatprep.subr.mxu0 %v353
    %2515 = vmatpush1.msra.mxu0 %v352
    %2516 = vmatprep.subr.mxu0 %v425
    %2517 = vmatpush1.msra.mxu0 %v424
    %2518 = vmatprep.subr.mxu0 %v497
    %2519 = vmatpush1.msra.mxu0 %v496
    %2520 = vmatprep.subr.mxu0 %v569
    %2521 = vmatpush1.msra.mxu0 %v568
    %2522 = vmatprep.subr.mxu0 %v641
    %2523 = vmatpush1.msra.mxu0 %v640
    %2524 = vmatprep.subr.mxu0 %v713
    %2525 = vmatpush1.msra.mxu0 %v712
    %2526 = vmatprep.subr.mxu0 %v785
    %2527 = vmatpush1.msra.mxu0 %v784
    %2528 = vmatprep.subr.mxu0 %v857
    %2529 = vmatpush1.msra.mxu0 %v856
    %2530 = vmatprep.subr.mxu0 %v929
    %2531 = vmatpush1.msra.mxu0 %v928
    %2532 = vmatprep.subr.mxu0 %v1001
    %2533 = vmatpush1.msra.mxu0 %v1000
    %2534 = vmatprep.subr.mxu0 %v1073
    %2535 = vmatpush1.msra.mxu0 %v1072
    %2536 = vmatprep.subr.mxu0 %v1145
    %2537 = vmatpush1.msra.mxu0 %v1144
    %2538 = vmatprep.subr.mxu0 %v1217
    %2539 = vmatpush1.msra.mxu0 %v1216
    %2540 = vmatprep.subr.mxu0 %v1289
    %2541 = vmatpush1.msra.mxu0 %v1288
    %2542 = vmatprep.subr.mxu0 %v1361
    %2543 = vmatpush1.msra.mxu0 %v1360
    %2544 = vmatprep.subr.mxu0 %v1433
    %2545 = vmatpush1.msra.mxu0 %v1432
    %2546 = vmatprep.subr.mxu0 %v1505
    %2547 = vmatpush1.msra.mxu0 %v1504
    %2548 = vmatprep.subr.mxu0 %v1577
    %2549 = vmatpush1.msra.mxu0 %v1576
    %2550 = vmatprep.subr.mxu0 %v1649
    %2551 = vmatpush1.msra.mxu0 %v1648
    %2552 = vmatprep.subr.mxu0 %v1721
    %2553 = vmatpush1.msra.mxu0 %v1720
    %2554 = vmatprep.subr.mxu0 %v1793
    %2555 = vmatpush1.msra.mxu0 %v1792
    %2556 = vmatprep.subr.mxu0 %v1865
    %2557 = vmatpush1.msra.mxu0 %v1864
    %2558 = vmatprep.subr.mxu0 %v1937
    %2559 = vmatpush1.msra.mxu0 %v1936
    %2560 = vmatprep.subr.mxu0 %v2009
    %2561 = vmatpush1.msra.mxu0 %v2008
    %2562 = vmatprep.subr.mxu0 %v2081
    %2563 = vmatpush1.msra.mxu0 %v2080
    %2564 = vmatprep.subr.mxu0 %v2153
    %2565 = vmatpush1.msra.mxu0 %v2152
    %2566 = vmatprep.subr.mxu0 %v2225
    %2567 = vmatpush1.msra.mxu0 %v2224
    %2568 = vmatprep.subr.mxu0 %v2297
    %2569 = vmatpush1.msra.mxu0 %v2296
    %2570 = vmatprep.mubr.f32.mxu0 %v59
    %2571 = vmatmul.mubr.f32.gmra.mrb[0].mxu0 %v58
    %v2572 = vpop.f32.mrb[0].mxu0
    %v2573 = vadd.f32 0.0, %v2572
    %v2574 = vpop.f32.mrb[0].mxu0
    %v2575 = vadd.f32 0.0, %v2574
    %2576 = vdwg.mxu0
    %2577 = vmatprep.subr.mxu0 %v67
    %2578 = vmatpush1.msra.mxu0 %v66
    %2579 = vmatprep.subr.mxu0 %v139
    %2580 = vmatpush1.msra.mxu0 %v138
    %2581 = vmatprep.subr.mxu0 %v211
    %2582 = vmatpush1.msra.mxu0 %v210
    %2583 = vmatprep.subr.mxu0 %v283
    %2584 = vmatpush1.msra.mxu0 %v282
    %2585 = vmatprep.subr.mxu0 %v355
    %2586 = vmatpush1.msra.mxu0 %v354
    %2587 = vmatprep.subr.mxu0 %v427
    %2588 = vmatpush1.msra.mxu0 %v426
    %2589 = vmatprep.subr.mxu0 %v499
    %2590 = vmatpush1.msra.mxu0 %v498
    %2591 = vmatprep.subr.mxu0 %v571
    %2592 = vmatpush1.msra.mxu0 %v570
    %2593 = vmatprep.subr.mxu0 %v643
    %2594 = vmatpush1.msra.mxu0 %v642
    %2595 = vmatprep.subr.mxu0 %v715
    %2596 = vmatpush1.msra.mxu0 %v714
    %2597 = vmatprep.subr.mxu0 %v787
    %2598 = vmatpush1.msra.mxu0 %v786
    %2599 = vmatprep.subr.mxu0 %v859
    %2600 = vmatpush1.msra.mxu0 %v858
    %2601 = vmatprep.subr.mxu0 %v931
    %2602 = vmatpush1.msra.mxu0 %v930
    %2603 = vmatprep.subr.mxu0 %v1003
    %2604 = vmatpush1.msra.mxu0 %v1002
    %2605 = vmatprep.subr.mxu0 %v1075
    %2606 = vmatpush1.msra.mxu0 %v1074
    %2607 = vmatprep.subr.mxu0 %v1147
    %2608 = vmatpush1.msra.mxu0 %v1146
    %2609 = vmatprep.subr.mxu0 %v1219
    %2610 = vmatpush1.msra.mxu0 %v1218
    %2611 = vmatprep.subr.mxu0 %v1291
    %2612 = vmatpush1.msra.mxu0 %v1290
    %2613 = vmatprep.subr.mxu0 %v1363
    %2614 = vmatpush1.msra.mxu0 %v1362
    %2615 = vmatprep.subr.mxu0 %v1435
    %2616 = vmatpush1.msra.mxu0 %v1434
    %2617 = vmatprep.subr.mxu0 %v1507
    %2618 = vmatpush1.msra.mxu0 %v1506
    %2619 = vmatprep.subr.mxu0 %v1579
    %2620 = vmatpush1.msra.mxu0 %v1578
    %2621 = vmatprep.subr.mxu0 %v1651
    %2622 = vmatpush1.msra.mxu0 %v1650
    %2623 = vmatprep.subr.mxu0 %v1723
    %2624 = vmatpush1.msra.mxu0 %v1722
    %2625 = vmatprep.subr.mxu0 %v1795
    %2626 = vmatpush1.msra.mxu0 %v1794
    %2627 = vmatprep.subr.mxu0 %v1867
    %2628 = vmatpush1.msra.mxu0 %v1866
    %2629 = vmatprep.subr.mxu0 %v1939
    %2630 = vmatpush1.msra.mxu0 %v1938
    %2631 = vmatprep.subr.mxu0 %v2011
    %2632 = vmatpush1.msra.mxu0 %v2010
    %2633 = vmatprep.subr.mxu0 %v2083
    %2634 = vmatpush1.msra.mxu0 %v2082
    %2635 = vmatprep.subr.mxu0 %v2155
    %2636 = vmatpush1.msra.mxu0 %v2154
    %2637 = vmatprep.subr.mxu0 %v2227
    %2638 = vmatpush1.msra.mxu0 %v2226
    %2639 = vmatprep.subr.mxu0 %v2299
    %2640 = vmatpush1.msra.mxu0 %v2298
    %2641 = vmatprep.mubr.f32.mxu0 %v59
    %2642 = vmatmul.mubr.f32.gmra.mrb[0].mxu0 %v58
    %v2643 = vpop.f32.mrb[0].mxu0
    %v2644 = vadd.f32 0.0, %v2643
    %v2645 = vpop.f32.mrb[0].mxu0
    %v2646 = vadd.f32 0.0, %v2645
    %2647 = vdwg.mxu0
    %2648 = vmatprep.subr.mxu0 %v69
    %2649 = vmatpush1.msra.mxu0 %v68
    %2650 = vmatprep.subr.mxu0 %v141
    %2651 = vmatpush1.msra.mxu0 %v140
    %2652 = vmatprep.subr.mxu0 %v213
    %2653 = vmatpush1.msra.mxu0 %v212
    %2654 = vmatprep.subr.mxu0 %v285
    %2655 = vmatpush1.msra.mxu0 %v284
    %2656 = vmatprep.subr.mxu0 %v357
    %2657 = vmatpush1.msra.mxu0 %v356
    %2658 = vmatprep.subr.mxu0 %v429
    %2659 = vmatpush1.msra.mxu0 %v428
    %2660 = vmatprep.subr.mxu0 %v501
    %2661 = vmatpush1.msra.mxu0 %v500
    %2662 = vmatprep.subr.mxu0 %v573
    %2663 = vmatpush1.msra.mxu0 %v572
    %2664 = vmatprep.subr.mxu0 %v645
    %2665 = vmatpush1.msra.mxu0 %v644
    %2666 = vmatprep.subr.mxu0 %v717
    %2667 = vmatpush1.msra.mxu0 %v716
    %2668 = vmatprep.subr.mxu0 %v789
    %2669 = vmatpush1.msra.mxu0 %v788
    %2670 = vmatprep.subr.mxu0 %v861
    %2671 = vmatpush1.msra.mxu0 %v860
    %2672 = vmatprep.subr.mxu0 %v933
    %2673 = vmatpush1.msra.mxu0 %v932
    %2674 = vmatprep.subr.mxu0 %v1005
    %2675 = vmatpush1.msra.mxu0 %v1004
    %2676 = vmatprep.subr.mxu0 %v1077
    %2677 = vmatpush1.msra.mxu0 %v1076
    %2678 = vmatprep.subr.mxu0 %v1149
    %2679 = vmatpush1.msra.mxu0 %v1148
    %2680 = vmatprep.subr.mxu0 %v1221
    %2681 = vmatpush1.msra.mxu0 %v1220
    %2682 = vmatprep.subr.mxu0 %v1293
    %2683 = vmatpush1.msra.mxu0 %v1292
    %2684 = vmatprep.subr.mxu0 %v1365
    %2685 = vmatpush1.msra.mxu0 %v1364
    %2686 = vmatprep.subr.mxu0 %v1437
    %2687 = vmatpush1.msra.mxu0 %v1436
    %2688 = vmatprep.subr.mxu0 %v1509
    %2689 = vmatpush1.msra.mxu0 %v1508
    %2690 = vmatprep.subr.mxu0 %v1581
    %2691 = vmatpush1.msra.mxu0 %v1580
    %2692 = vmatprep.subr.mxu0 %v1653
    %2693 = vmatpush1.msra.mxu0 %v1652
    %2694 = vmatprep.subr.mxu0 %v1725
    %2695 = vmatpush1.msra.mxu0 %v1724
    %2696 = vmatprep.subr.mxu0 %v1797
    %2697 = vmatpush1.msra.mxu0 %v1796
    %2698 = vmatprep.subr.mxu0 %v1869
    %2699 = vmatpush1.msra.mxu0 %v1868
    %2700 = vmatprep.subr.mxu0 %v1941
    %2701 = vmatpush1.msra.mxu0 %v1940
    %2702 = vmatprep.subr.mxu0 %v2013
    %2703 = vmatpush1.msra.mxu0 %v2012
    %2704 = vmatprep.subr.mxu0 %v2085
    %2705 = vmatpush1.msra.mxu0 %v2084
    %2706 = vmatprep.subr.mxu0 %v2157
    %2707 = vmatpush1.msra.mxu0 %v2156
    %2708 = vmatprep.subr.mxu0 %v2229
    %2709 = vmatpush1.msra.mxu0 %v2228
    %2710 = vmatprep.subr.mxu0 %v2301
    %2711 = vmatpush1.msra.mxu0 %v2300
    %2712 = vmatprep.mubr.f32.mxu0 %v59
    %2713 = vmatmul.mubr.f32.gmra.mrb[0].mxu0 %v58
    %v2714 = vpop.f32.mrb[0].mxu0
    %v2715 = vadd.f32 0.0, %v2714
    %v2716 = vpop.f32.mrb[0].mxu0
    %v2717 = vadd.f32 0.0, %v2716
    %2718 = vdwg.mxu0
    %2719 = vmatprep.subr.mxu0 %v71
    %2720 = vmatpush1.msra.mxu0 %v70
    %2721 = vmatprep.subr.mxu0 %v143
    %2722 = vmatpush1.msra.mxu0 %v142
    %2723 = vmatprep.subr.mxu0 %v215
    %2724 = vmatpush1.msra.mxu0 %v214
    %2725 = vmatprep.subr.mxu0 %v287
    %2726 = vmatpush1.msra.mxu0 %v286
    %2727 = vmatprep.subr.mxu0 %v359
    %2728 = vmatpush1.msra.mxu0 %v358
    %2729 = vmatprep.subr.mxu0 %v431
    %2730 = vmatpush1.msra.mxu0 %v430
    %2731 = vmatprep.subr.mxu0 %v503
    %2732 = vmatpush1.msra.mxu0 %v502
    %2733 = vmatprep.subr.mxu0 %v575
    %2734 = vmatpush1.msra.mxu0 %v574
    %2735 = vmatprep.subr.mxu0 %v647
    %2736 = vmatpush1.msra.mxu0 %v646
    %2737 = vmatprep.subr.mxu0 %v719
    %2738 = vmatpush1.msra.mxu0 %v718
    %2739 = vmatprep.subr.mxu0 %v791
    %2740 = vmatpush1.msra.mxu0 %v790
    %2741 = vmatprep.subr.mxu0 %v863
    %2742 = vmatpush1.msra.mxu0 %v862
    %2743 = vmatprep.subr.mxu0 %v935
    %2744 = vmatpush1.msra.mxu0 %v934
    %2745 = vmatprep.subr.mxu0 %v1007
    %2746 = vmatpush1.msra.mxu0 %v1006
    %2747 = vmatprep.subr.mxu0 %v1079
    %2748 = vmatpush1.msra.mxu0 %v1078
    %2749 = vmatprep.subr.mxu0 %v1151
    %2750 = vmatpush1.msra.mxu0 %v1150
    %2751 = vmatprep.subr.mxu0 %v1223
    %2752 = vmatpush1.msra.mxu0 %v1222
    %2753 = vmatprep.subr.mxu0 %v1295
    %2754 = vmatpush1.msra.mxu0 %v1294
    %2755 = vmatprep.subr.mxu0 %v1367
    %2756 = vmatpush1.msra.mxu0 %v1366
    %2757 = vmatprep.subr.mxu0 %v1439
    %2758 = vmatpush1.msra.mxu0 %v1438
    %2759 = vmatprep.subr.mxu0 %v1511
    %2760 = vmatpush1.msra.mxu0 %v1510
    %2761 = vmatprep.subr.mxu0 %v1583
    %2762 = vmatpush1.msra.mxu0 %v1582
    %2763 = vmatprep.subr.mxu0 %v1655
    %2764 = vmatpush1.msra.mxu0 %v1654
    %2765 = vmatprep.subr.mxu0 %v1727
    %2766 = vmatpush1.msra.mxu0 %v1726
    %2767 = vmatprep.subr.mxu0 %v1799
    %2768 = vmatpush1.msra.mxu0 %v1798
    %2769 = vmatprep.subr.mxu0 %v1871
    %2770 = vmatpush1.msra.mxu0 %v1870
    %2771 = vmatprep.subr.mxu0 %v1943
    %2772 = vmatpush1.msra.mxu0 %v1942
    %2773 = vmatprep.subr.mxu0 %v2015
    %2774 = vmatpush1.msra.mxu0 %v2014
    %2775 = vmatprep.subr.mxu0 %v2087
    %2776 = vmatpush1.msra.mxu0 %v2086
    %2777 = vmatprep.subr.mxu0 %v2159
    %2778 = vmatpush1.msra.mxu0 %v2158
    %2779 = vmatprep.subr.mxu0 %v2231
    %2780 = vmatpush1.msra.mxu0 %v2230
    %2781 = vmatprep.subr.mxu0 %v2303
    %2782 = vmatpush1.msra.mxu0 %v2302
    %2783 = vmatprep.mubr.f32.mxu0 %v59
    %2784 = vmatmul.mubr.f32.gmra.mrb[0].mxu0 %v58
    %v2785 = vpop.f32.mrb[0].mxu0
    %v2786 = vadd.f32 0.0, %v2785
    %v2787 = vpop.f32.mrb[0].mxu0
    %v2788 = vadd.f32 0.0, %v2787
    %2789 = vdwg.mxu0
    %2790 = vmatprep.subr.mxu0 %v73
    %2791 = vmatpush1.msra.mxu0 %v72
    %2792 = vmatprep.subr.mxu0 %v145
    %2793 = vmatpush1.msra.mxu0 %v144
    %2794 = vmatprep.subr.mxu0 %v217
    %2795 = vmatpush1.msra.mxu0 %v216
    %2796 = vmatprep.subr.mxu0 %v289
    %2797 = vmatpush1.msra.mxu0 %v288
    %2798 = vmatprep.subr.mxu0 %v361
    %2799 = vmatpush1.msra.mxu0 %v360
    %2800 = vmatprep.subr.mxu0 %v433
    %2801 = vmatpush1.msra.mxu0 %v432
    %2802 = vmatprep.subr.mxu0 %v505
    %2803 = vmatpush1.msra.mxu0 %v504
    %2804 = vmatprep.subr.mxu0 %v577
    %2805 = vmatpush1.msra.mxu0 %v576
    %2806 = vmatprep.subr.mxu0 %v649
    %2807 = vmatpush1.msra.mxu0 %v648
    %2808 = vmatprep.subr.mxu0 %v721
    %2809 = vmatpush1.msra.mxu0 %v720
    %2810 = vmatprep.subr.mxu0 %v793
    %2811 = vmatpush1.msra.mxu0 %v792
    %2812 = vmatprep.subr.mxu0 %v865
    %2813 = vmatpush1.msra.mxu0 %v864
    %2814 = vmatprep.subr.mxu0 %v937
    %2815 = vmatpush1.msra.mxu0 %v936
    %2816 = vmatprep.subr.mxu0 %v1009
    %2817 = vmatpush1.msra.mxu0 %v1008
    %2818 = vmatprep.subr.mxu0 %v1081
    %2819 = vmatpush1.msra.mxu0 %v1080
    %2820 = vmatprep.subr.mxu0 %v1153
    %2821 = vmatpush1.msra.mxu0 %v1152
    %2822 = vmatprep.subr.mxu0 %v1225
    %2823 = vmatpush1.msra.mxu0 %v1224
    %2824 = vmatprep.subr.mxu0 %v1297
    %2825 = vmatpush1.msra.mxu0 %v1296
    %2826 = vmatprep.subr.mxu0 %v1369
    %2827 = vmatpush1.msra.mxu0 %v1368
    %2828 = vmatprep.subr.mxu0 %v1441
    %2829 = vmatpush1.msra.mxu0 %v1440
    %2830 = vmatprep.subr.mxu0 %v1513
    %2831 = vmatpush1.msra.mxu0 %v1512
    %2832 = vmatprep.subr.mxu0 %v1585
    %2833 = vmatpush1.msra.mxu0 %v1584
    %2834 = vmatprep.subr.mxu0 %v1657
    %2835 = vmatpush1.msra.mxu0 %v1656
    %2836 = vmatprep.subr.mxu0 %v1729
    %2837 = vmatpush1.msra.mxu0 %v1728
    %2838 = vmatprep.subr.mxu0 %v1801
    %2839 = vmatpush1.msra.mxu0 %v1800
    %2840 = vmatprep.subr.mxu0 %v1873
    %2841 = vmatpush1.msra.mxu0 %v1872
    %2842 = vmatprep.subr.mxu0 %v1945
    %2843 = vmatpush1.msra.mxu0 %v1944
    %2844 = vmatprep.subr.mxu0 %v2017
    %2845 = vmatpush1.msra.mxu0 %v2016
    %2846 = vmatprep.subr.mxu0 %v2089
    %2847 = vmatpush1.msra.mxu0 %v2088
    %2848 = vmatprep.subr.mxu0 %v2161
    %2849 = vmatpush1.msra.mxu0 %v2160
    %2850 = vmatprep.subr.mxu0 %v2233
    %2851 = vmatpush1.msra.mxu0 %v2232
    %2852 = vmatprep.subr.mxu0 %v2305
    %2853 = vmatpush1.msra.mxu0 %v2304
    %2854 = vmatprep.mubr.f32.mxu0 %v59
    %2855 = vmatmul.mubr.f32.gmra.mrb[0].mxu0 %v58
    %v2856 = vpop.f32.mrb[0].mxu0
    %v2857 = vadd.f32 0.0, %v2856
    %v2858 = vpop.f32.mrb[0].mxu0
    %v2859 = vadd.f32 0.0, %v2858
    %2860 = vdwg.mxu0
    %2861 = vmatprep.subr.mxu0 %v75
    %2862 = vmatpush1.msra.mxu0 %v74
    %2863 = vmatprep.subr.mxu0 %v147
    %2864 = vmatpush1.msra.mxu0 %v146
    %2865 = vmatprep.subr.mxu0 %v219
    %2866 = vmatpush1.msra.mxu0 %v218
    %2867 = vmatprep.subr.mxu0 %v291
    %2868 = vmatpush1.msra.mxu0 %v290
    %2869 = vmatprep.subr.mxu0 %v363
    %2870 = vmatpush1.msra.mxu0 %v362
    %2871 = vmatprep.subr.mxu0 %v435
    %2872 = vmatpush1.msra.mxu0 %v434
    %2873 = vmatprep.subr.mxu0 %v507
    %2874 = vmatpush1.msra.mxu0 %v506
    %2875 = vmatprep.subr.mxu0 %v579
    %2876 = vmatpush1.msra.mxu0 %v578
    %2877 = vmatprep.subr.mxu0 %v651
    %2878 = vmatpush1.msra.mxu0 %v650
    %2879 = vmatprep.subr.mxu0 %v723
    %2880 = vmatpush1.msra.mxu0 %v722
    %2881 = vmatprep.subr.mxu0 %v795
    %2882 = vmatpush1.msra.mxu0 %v794
    %2883 = vmatprep.subr.mxu0 %v867
    %2884 = vmatpush1.msra.mxu0 %v866
    %2885 = vmatprep.subr.mxu0 %v939
    %2886 = vmatpush1.msra.mxu0 %v938
    %2887 = vmatprep.subr.mxu0 %v1011
    %2888 = vmatpush1.msra.mxu0 %v1010
    %2889 = vmatprep.subr.mxu0 %v1083
    %2890 = vmatpush1.msra.mxu0 %v1082
    %2891 = vmatprep.subr.mxu0 %v1155
    %2892 = vmatpush1.msra.mxu0 %v1154
    %2893 = vmatprep.subr.mxu0 %v1227
    %2894 = vmatpush1.msra.mxu0 %v1226
    %2895 = vmatprep.subr.mxu0 %v1299
    %2896 = vmatpush1.msra.mxu0 %v1298
    %2897 = vmatprep.subr.mxu0 %v1371
    %2898 = vmatpush1.msra.mxu0 %v1370
    %2899 = vmatprep.subr.mxu0 %v1443
    %2900 = vmatpush1.msra.mxu0 %v1442
    %2901 = vmatprep.subr.mxu0 %v1515
    %2902 = vmatpush1.msra.mxu0 %v1514
    %2903 = vmatprep.subr.mxu0 %v1587
    %2904 = vmatpush1.msra.mxu0 %v1586
    %2905 = vmatprep.subr.mxu0 %v1659
    %2906 = vmatpush1.msra.mxu0 %v1658
    %2907 = vmatprep.subr.mxu0 %v1731
    %2908 = vmatpush1.msra.mxu0 %v1730
    %2909 = vmatprep.subr.mxu0 %v1803
    %2910 = vmatpush1.msra.mxu0 %v1802
    %2911 = vmatprep.subr.mxu0 %v1875
    %2912 = vmatpush1.msra.mxu0 %v1874
    %2913 = vmatprep.subr.mxu0 %v1947
    %2914 = vmatpush1.msra.mxu0 %v1946
    %2915 = vmatprep.subr.mxu0 %v2019
    %2916 = vmatpush1.msra.mxu0 %v2018
    %2917 = vmatprep.subr.mxu0 %v2091
    %2918 = vmatpush1.msra.mxu0 %v2090
    %2919 = vmatprep.subr.mxu0 %v2163
    %2920 = vmatpush1.msra.mxu0 %v2162
    %2921 = vmatprep.subr.mxu0 %v2235
    %2922 = vmatpush1.msra.mxu0 %v2234
    %2923 = vmatprep.subr.mxu0 %v2307
    %2924 = vmatpush1.msra.mxu0 %v2306
    %2925 = vmatprep.mubr.f32.mxu0 %v59
    %2926 = vmatmul.mubr.f32.gmra.mrb[0].mxu0 %v58
    %v2927 = vpop.f32.mrb[0].mxu0
    %v2928 = vadd.f32 0.0, %v2927
    %v2929 = vpop.f32.mrb[0].mxu0
    %v2930 = vadd.f32 0.0, %v2929
    %2931 = vdwg.mxu0
    %2932 = vmatprep.subr.mxu0 %v77
    %2933 = vmatpush1.msra.mxu0 %v76
    %2934 = vmatprep.subr.mxu0 %v149
    %2935 = vmatpush1.msra.mxu0 %v148
    %2936 = vmatprep.subr.mxu0 %v221
    %2937 = vmatpush1.msra.mxu0 %v220
    %2938 = vmatprep.subr.mxu0 %v293
    %2939 = vmatpush1.msra.mxu0 %v292
    %2940 = vmatprep.subr.mxu0 %v365
    %2941 = vmatpush1.msra.mxu0 %v364
    %2942 = vmatprep.subr.mxu0 %v437
    %2943 = vmatpush1.msra.mxu0 %v436
    %2944 = vmatprep.subr.mxu0 %v509
    %2945 = vmatpush1.msra.mxu0 %v508
    %2946 = vmatprep.subr.mxu0 %v581
    %2947 = vmatpush1.msra.mxu0 %v580
    %2948 = vmatprep.subr.mxu0 %v653
    %2949 = vmatpush1.msra.mxu0 %v652
    %2950 = vmatprep.subr.mxu0 %v725
    %2951 = vmatpush1.msra.mxu0 %v724
    %2952 = vmatprep.subr.mxu0 %v797
    %2953 = vmatpush1.msra.mxu0 %v796
    %2954 = vmatprep.subr.mxu0 %v869
    %2955 = vmatpush1.msra.mxu0 %v868
    %2956 = vmatprep.subr.mxu0 %v941
    %2957 = vmatpush1.msra.mxu0 %v940
    %2958 = vmatprep.subr.mxu0 %v1013
    %2959 = vmatpush1.msra.mxu0 %v1012
    %2960 = vmatprep.subr.mxu0 %v1085
    %2961 = vmatpush1.msra.mxu0 %v1084
    %2962 = vmatprep.subr.mxu0 %v1157
    %2963 = vmatpush1.msra.mxu0 %v1156
    %2964 = vmatprep.subr.mxu0 %v1229
    %2965 = vmatpush1.msra.mxu0 %v1228
    %2966 = vmatprep.subr.mxu0 %v1301
    %2967 = vmatpush1.msra.mxu0 %v1300
    %2968 = vmatprep.subr.mxu0 %v1373
    %2969 = vmatpush1.msra.mxu0 %v1372
    %2970 = vmatprep.subr.mxu0 %v1445
    %2971 = vmatpush1.msra.mxu0 %v1444
    %2972 = vmatprep.subr.mxu0 %v1517
    %2973 = vmatpush1.msra.mxu0 %v1516
    %2974 = vmatprep.subr.mxu0 %v1589
    %2975 = vmatpush1.msra.mxu0 %v1588
    %2976 = vmatprep.subr.mxu0 %v1661
    %2977 = vmatpush1.msra.mxu0 %v1660
    %2978 = vmatprep.subr.mxu0 %v1733
    %2979 = vmatpush1.msra.mxu0 %v1732
    %2980 = vmatprep.subr.mxu0 %v1805
    %2981 = vmatpush1.msra.mxu0 %v1804
    %2982 = vmatprep.subr.mxu0 %v1877
    %2983 = vmatpush1.msra.mxu0 %v1876
    %2984 = vmatprep.subr.mxu0 %v1949
    %2985 = vmatpush1.msra.mxu0 %v1948
    %2986 = vmatprep.subr.mxu0 %v2021
    %2987 = vmatpush1.msra.mxu0 %v2020
    %2988 = vmatprep.subr.mxu0 %v2093
    %2989 = vmatpush1.msra.mxu0 %v2092
    %2990 = vmatprep.subr.mxu0 %v2165
    %2991 = vmatpush1.msra.mxu0 %v2164
    %2992 = vmatprep.subr.mxu0 %v2237
    %2993 = vmatpush1.msra.mxu0 %v2236
    %2994 = vmatprep.subr.mxu0 %v2309
    %2995 = vmatpush1.msra.mxu0 %v2308
    %2996 = vmatprep.mubr.f32.mxu0 %v59
    %2997 = vmatmul.mubr.f32.gmra.mrb[0].mxu0 %v58
    %v2998 = vpop.f32.mrb[0].mxu0
    %v2999 = vadd.f32 0.0, %v2998
    %v3000 = vpop.f32.mrb[0].mxu0
    %v3001 = vadd.f32 0.0, %v3000
    %3002 = vdwg.mxu0
    %3003 = vmatprep.subr.mxu0 %v79
    %3004 = vmatpush1.msra.mxu0 %v78
    %3005 = vmatprep.subr.mxu0 %v151
    %3006 = vmatpush1.msra.mxu0 %v150
    %3007 = vmatprep.subr.mxu0 %v223
    %3008 = vmatpush1.msra.mxu0 %v222
    %3009 = vmatprep.subr.mxu0 %v295
    %3010 = vmatpush1.msra.mxu0 %v294
    %3011 = vmatprep.subr.mxu0 %v367
    %3012 = vmatpush1.msra.mxu0 %v366
    %3013 = vmatprep.subr.mxu0 %v439
    %3014 = vmatpush1.msra.mxu0 %v438
    %3015 = vmatprep.subr.mxu0 %v511
    %3016 = vmatpush1.msra.mxu0 %v510
    %3017 = vmatprep.subr.mxu0 %v583
    %3018 = vmatpush1.msra.mxu0 %v582
    %3019 = vmatprep.subr.mxu0 %v655
    %3020 = vmatpush1.msra.mxu0 %v654
    %3021 = vmatprep.subr.mxu0 %v727
    %3022 = vmatpush1.msra.mxu0 %v726
    %3023 = vmatprep.subr.mxu0 %v799
    %3024 = vmatpush1.msra.mxu0 %v798
    %3025 = vmatprep.subr.mxu0 %v871
    %3026 = vmatpush1.msra.mxu0 %v870
    %3027 = vmatprep.subr.mxu0 %v943
    %3028 = vmatpush1.msra.mxu0 %v942
    %3029 = vmatprep.subr.mxu0 %v1015
    %3030 = vmatpush1.msra.mxu0 %v1014
    %3031 = vmatprep.subr.mxu0 %v1087
    %3032 = vmatpush1.msra.mxu0 %v1086
    %3033 = vmatprep.subr.mxu0 %v1159
    %3034 = vmatpush1.msra.mxu0 %v1158
    %3035 = vmatprep.subr.mxu0 %v1231
    %3036 = vmatpush1.msra.mxu0 %v1230
    %3037 = vmatprep.subr.mxu0 %v1303
    %3038 = vmatpush1.msra.mxu0 %v1302
    %3039 = vmatprep.subr.mxu0 %v1375
    %3040 = vmatpush1.msra.mxu0 %v1374
    %3041 = vmatprep.subr.mxu0 %v1447
    %3042 = vmatpush1.msra.mxu0 %v1446
    %3043 = vmatprep.subr.mxu0 %v1519
    %3044 = vmatpush1.msra.mxu0 %v1518
    %3045 = vmatprep.subr.mxu0 %v1591
    %3046 = vmatpush1.msra.mxu0 %v1590
    %3047 = vmatprep.subr.mxu0 %v1663
    %3048 = vmatpush1.msra.mxu0 %v1662
    %3049 = vmatprep.subr.mxu0 %v1735
    %3050 = vmatpush1.msra.mxu0 %v1734
    %3051 = vmatprep.subr.mxu0 %v1807
    %3052 = vmatpush1.msra.mxu0 %v1806
    %3053 = vmatprep.subr.mxu0 %v1879
    %3054 = vmatpush1.msra.mxu0 %v1878
    %3055 = vmatprep.subr.mxu0 %v1951
    %3056 = vmatpush1.msra.mxu0 %v1950
    %3057 = vmatprep.subr.mxu0 %v2023
    %3058 = vmatpush1.msra.mxu0 %v2022
    %3059 = vmatprep.subr.mxu0 %v2095
    %3060 = vmatpush1.msra.mxu0 %v2094
    %3061 = vmatprep.subr.mxu0 %v2167
    %3062 = vmatpush1.msra.mxu0 %v2166
    %3063 = vmatprep.subr.mxu0 %v2239
    %3064 = vmatpush1.msra.mxu0 %v2238
    %3065 = vmatprep.subr.mxu0 %v2311
    %3066 = vmatpush1.msra.mxu0 %v2310
    %3067 = vmatprep.mubr.f32.mxu0 %v59
    %3068 = vmatmul.mubr.f32.gmra.mrb[0].mxu0 %v58
    %v3069 = vpop.f32.mrb[0].mxu0
    %v3070 = vadd.f32 0.0, %v3069
    %v3071 = vpop.f32.mrb[0].mxu0
    %v3072 = vadd.f32 0.0, %v3071
    %3073 = vdwg.mxu0
    %3074 = vmatprep.subr.mxu0 %v81
    %3075 = vmatpush1.msra.mxu0 %v80
    %3076 = vmatprep.subr.mxu0 %v153
    %3077 = vmatpush1.msra.mxu0 %v152
    %3078 = vmatprep.subr.mxu0 %v225
    %3079 = vmatpush1.msra.mxu0 %v224
    %3080 = vmatprep.subr.mxu0 %v297
    %3081 = vmatpush1.msra.mxu0 %v296
    %3082 = vmatprep.subr.mxu0 %v369
    %3083 = vmatpush1.msra.mxu0 %v368
    %3084 = vmatprep.subr.mxu0 %v441
    %3085 = vmatpush1.msra.mxu0 %v440
    %3086 = vmatprep.subr.mxu0 %v513
    %3087 = vmatpush1.msra.mxu0 %v512
    %3088 = vmatprep.subr.mxu0 %v585
    %3089 = vmatpush1.msra.mxu0 %v584
    %3090 = vmatprep.subr.mxu0 %v657
    %3091 = vmatpush1.msra.mxu0 %v656
    %3092 = vmatprep.subr.mxu0 %v729
    %3093 = vmatpush1.msra.mxu0 %v728
    %3094 = vmatprep.subr.mxu0 %v801
    %3095 = vmatpush1.msra.mxu0 %v800
    %3096 = vmatprep.subr.mxu0 %v873
    %3097 = vmatpush1.msra.mxu0 %v872
    %3098 = vmatprep.subr.mxu0 %v945
    %3099 = vmatpush1.msra.mxu0 %v944
    %3100 = vmatprep.subr.mxu0 %v1017
    %3101 = vmatpush1.msra.mxu0 %v1016
    %3102 = vmatprep.subr.mxu0 %v1089
    %3103 = vmatpush1.msra.mxu0 %v1088
    %3104 = vmatprep.subr.mxu0 %v1161
    %3105 = vmatpush1.msra.mxu0 %v1160
    %3106 = vmatprep.subr.mxu0 %v1233
    %3107 = vmatpush1.msra.mxu0 %v1232
    %3108 = vmatprep.subr.mxu0 %v1305
    %3109 = vmatpush1.msra.mxu0 %v1304
    %3110 = vmatprep.subr.mxu0 %v1377
    %3111 = vmatpush1.msra.mxu0 %v1376
    %3112 = vmatprep.subr.mxu0 %v1449
    %3113 = vmatpush1.msra.mxu0 %v1448
    %3114 = vmatprep.subr.mxu0 %v1521
    %3115 = vmatpush1.msra.mxu0 %v1520
    %3116 = vmatprep.subr.mxu0 %v1593
    %3117 = vmatpush1.msra.mxu0 %v1592
    %3118 = vmatprep.subr.mxu0 %v1665
    %3119 = vmatpush1.msra.mxu0 %v1664
    %3120 = vmatprep.subr.mxu0 %v1737
    %3121 = vmatpush1.msra.mxu0 %v1736
    %3122 = vmatprep.subr.mxu0 %v1809
    %3123 = vmatpush1.msra.mxu0 %v1808
    %3124 = vmatprep.subr.mxu0 %v1881
    %3125 = vmatpush1.msra.mxu0 %v1880
    %3126 = vmatprep.subr.mxu0 %v1953
    %3127 = vmatpush1.msra.mxu0 %v1952
    %3128 = vmatprep.subr.mxu0 %v2025
    %3129 = vmatpush1.msra.mxu0 %v2024
    %3130 = vmatprep.subr.mxu0 %v2097
    %3131 = vmatpush1.msra.mxu0 %v2096
    %3132 = vmatprep.subr.mxu0 %v2169
    %3133 = vmatpush1.msra.mxu0 %v2168
    %3134 = vmatprep.subr.mxu0 %v2241
    %3135 = vmatpush1.msra.mxu0 %v2240
    %3136 = vmatprep.subr.mxu0 %v2313
    %3137 = vmatpush1.msra.mxu0 %v2312
    %3138 = vmatprep.mubr.f32.mxu0 %v59
    %3139 = vmatmul.mubr.f32.gmra.mrb[0].mxu0 %v58
    %v3140 = vpop.f32.mrb[0].mxu0
    %v3141 = vadd.f32 0.0, %v3140
    %v3142 = vpop.f32.mrb[0].mxu0
    %v3143 = vadd.f32 0.0, %v3142
    %3144 = vdwg.mxu0
    %3145 = vmatprep.subr.mxu0 %v83
    %3146 = vmatpush1.msra.mxu0 %v82
    %3147 = vmatprep.subr.mxu0 %v155
    %3148 = vmatpush1.msra.mxu0 %v154
    %3149 = vmatprep.subr.mxu0 %v227
    %3150 = vmatpush1.msra.mxu0 %v226
    %3151 = vmatprep.subr.mxu0 %v299
    %3152 = vmatpush1.msra.mxu0 %v298
    %3153 = vmatprep.subr.mxu0 %v371
    %3154 = vmatpush1.msra.mxu0 %v370
    %3155 = vmatprep.subr.mxu0 %v443
    %3156 = vmatpush1.msra.mxu0 %v442
    %3157 = vmatprep.subr.mxu0 %v515
    %3158 = vmatpush1.msra.mxu0 %v514
    %3159 = vmatprep.subr.mxu0 %v587
    %3160 = vmatpush1.msra.mxu0 %v586
    %3161 = vmatprep.subr.mxu0 %v659
    %3162 = vmatpush1.msra.mxu0 %v658
    %3163 = vmatprep.subr.mxu0 %v731
    %3164 = vmatpush1.msra.mxu0 %v730
    %3165 = vmatprep.subr.mxu0 %v803
    %3166 = vmatpush1.msra.mxu0 %v802
    %3167 = vmatprep.subr.mxu0 %v875
    %3168 = vmatpush1.msra.mxu0 %v874
    %3169 = vmatprep.subr.mxu0 %v947
    %3170 = vmatpush1.msra.mxu0 %v946
    %3171 = vmatprep.subr.mxu0 %v1019
    %3172 = vmatpush1.msra.mxu0 %v1018
    %3173 = vmatprep.subr.mxu0 %v1091
    %3174 = vmatpush1.msra.mxu0 %v1090
    %3175 = vmatprep.subr.mxu0 %v1163
    %3176 = vmatpush1.msra.mxu0 %v1162
    %3177 = vmatprep.subr.mxu0 %v1235
    %3178 = vmatpush1.msra.mxu0 %v1234
    %3179 = vmatprep.subr.mxu0 %v1307
    %3180 = vmatpush1.msra.mxu0 %v1306
    %3181 = vmatprep.subr.mxu0 %v1379
    %3182 = vmatpush1.msra.mxu0 %v1378
    %3183 = vmatprep.subr.mxu0 %v1451
    %3184 = vmatpush1.msra.mxu0 %v1450
    %3185 = vmatprep.subr.mxu0 %v1523
    %3186 = vmatpush1.msra.mxu0 %v1522
    %3187 = vmatprep.subr.mxu0 %v1595
    %3188 = vmatpush1.msra.mxu0 %v1594
    %3189 = vmatprep.subr.mxu0 %v1667
    %3190 = vmatpush1.msra.mxu0 %v1666
    %3191 = vmatprep.subr.mxu0 %v1739
    %3192 = vmatpush1.msra.mxu0 %v1738
    %3193 = vmatprep.subr.mxu0 %v1811
    %3194 = vmatpush1.msra.mxu0 %v1810
    %3195 = vmatprep.subr.mxu0 %v1883
    %3196 = vmatpush1.msra.mxu0 %v1882
    %3197 = vmatprep.subr.mxu0 %v1955
    %3198 = vmatpush1.msra.mxu0 %v1954
    %3199 = vmatprep.subr.mxu0 %v2027
    %3200 = vmatpush1.msra.mxu0 %v2026
    %3201 = vmatprep.subr.mxu0 %v2099
    %3202 = vmatpush1.msra.mxu0 %v2098
    %3203 = vmatprep.subr.mxu0 %v2171
    %3204 = vmatpush1.msra.mxu0 %v2170
    %3205 = vmatprep.subr.mxu0 %v2243
    %3206 = vmatpush1.msra.mxu0 %v2242
    %3207 = vmatprep.subr.mxu0 %v2315
    %3208 = vmatpush1.msra.mxu0 %v2314
    %3209 = vmatprep.mubr.f32.mxu0 %v59
    %3210 = vmatmul.mubr.f32.gmra.mrb[0].mxu0 %v58
    %v3211 = vpop.f32.mrb[0].mxu0
    %v3212 = vadd.f32 0.0, %v3211
    %v3213 = vpop.f32.mrb[0].mxu0
    %v3214 = vadd.f32 0.0, %v3213
    %3215 = vdwg.mxu0
    %3216 = vmatprep.subr.mxu0 %v85
    %3217 = vmatpush1.msra.mxu0 %v84
    %3218 = vmatprep.subr.mxu0 %v157
    %3219 = vmatpush1.msra.mxu0 %v156
    %3220 = vmatprep.subr.mxu0 %v229
    %3221 = vmatpush1.msra.mxu0 %v228
    %3222 = vmatprep.subr.mxu0 %v301
    %3223 = vmatpush1.msra.mxu0 %v300
    %3224 = vmatprep.subr.mxu0 %v373
    %3225 = vmatpush1.msra.mxu0 %v372
    %3226 = vmatprep.subr.mxu0 %v445
    %3227 = vmatpush1.msra.mxu0 %v444
    %3228 = vmatprep.subr.mxu0 %v517
    %3229 = vmatpush1.msra.mxu0 %v516
    %3230 = vmatprep.subr.mxu0 %v589
    %3231 = vmatpush1.msra.mxu0 %v588
    %3232 = vmatprep.subr.mxu0 %v661
    %3233 = vmatpush1.msra.mxu0 %v660
    %3234 = vmatprep.subr.mxu0 %v733
    %3235 = vmatpush1.msra.mxu0 %v732
    %3236 = vmatprep.subr.mxu0 %v805
    %3237 = vmatpush1.msra.mxu0 %v804
    %3238 = vmatprep.subr.mxu0 %v877
    %3239 = vmatpush1.msra.mxu0 %v876
    %3240 = vmatprep.subr.mxu0 %v949
    %3241 = vmatpush1.msra.mxu0 %v948
    %3242 = vmatprep.subr.mxu0 %v1021
    %3243 = vmatpush1.msra.mxu0 %v1020
    %3244 = vmatprep.subr.mxu0 %v1093
    %3245 = vmatpush1.msra.mxu0 %v1092
    %3246 = vmatprep.subr.mxu0 %v1165
    %3247 = vmatpush1.msra.mxu0 %v1164
    %3248 = vmatprep.subr.mxu0 %v1237
    %3249 = vmatpush1.msra.mxu0 %v1236
    %3250 = vmatprep.subr.mxu0 %v1309
    %3251 = vmatpush1.msra.mxu0 %v1308
    %3252 = vmatprep.subr.mxu0 %v1381
    %3253 = vmatpush1.msra.mxu0 %v1380
    %3254 = vmatprep.subr.mxu0 %v1453
    %3255 = vmatpush1.msra.mxu0 %v1452
    %3256 = vmatprep.subr.mxu0 %v1525
    %3257 = vmatpush1.msra.mxu0 %v1524
    %3258 = vmatprep.subr.mxu0 %v1597
    %3259 = vmatpush1.msra.mxu0 %v1596
    %3260 = vmatprep.subr.mxu0 %v1669
    %3261 = vmatpush1.msra.mxu0 %v1668
    %3262 = vmatprep.subr.mxu0 %v1741
    %3263 = vmatpush1.msra.mxu0 %v1740
    %3264 = vmatprep.subr.mxu0 %v1813
    %3265 = vmatpush1.msra.mxu0 %v1812
    %3266 = vmatprep.subr.mxu0 %v1885
    %3267 = vmatpush1.msra.mxu0 %v1884
    %3268 = vmatprep.subr.mxu0 %v1957
    %3269 = vmatpush1.msra.mxu0 %v1956
    %3270 = vmatprep.subr.mxu0 %v2029
    %3271 = vmatpush1.msra.mxu0 %v2028
    %3272 = vmatprep.subr.mxu0 %v2101
    %3273 = vmatpush1.msra.mxu0 %v2100
    %3274 = vmatprep.subr.mxu0 %v2173
    %3275 = vmatpush1.msra.mxu0 %v2172
    %3276 = vmatprep.subr.mxu0 %v2245
    %3277 = vmatpush1.msra.mxu0 %v2244
    %3278 = vmatprep.subr.mxu0 %v2317
    %3279 = vmatpush1.msra.mxu0 %v2316
    %3280 = vmatprep.mubr.f32.mxu0 %v59
    %3281 = vmatmul.mubr.f32.gmra.mrb[0].mxu0 %v58
    %v3282 = vpop.f32.mrb[0].mxu0
    %v3283 = vadd.f32 0.0, %v3282
    %v3284 = vpop.f32.mrb[0].mxu0
    %v3285 = vadd.f32 0.0, %v3284
    %3286 = vdwg.mxu0
    %3287 = vmatprep.subr.mxu0 %v87
    %3288 = vmatpush1.msra.mxu0 %v86
    %3289 = vmatprep.subr.mxu0 %v159
    %3290 = vmatpush1.msra.mxu0 %v158
    %3291 = vmatprep.subr.mxu0 %v231
    %3292 = vmatpush1.msra.mxu0 %v230
    %3293 = vmatprep.subr.mxu0 %v303
    %3294 = vmatpush1.msra.mxu0 %v302
    %3295 = vmatprep.subr.mxu0 %v375
    %3296 = vmatpush1.msra.mxu0 %v374
    %3297 = vmatprep.subr.mxu0 %v447
    %3298 = vmatpush1.msra.mxu0 %v446
    %3299 = vmatprep.subr.mxu0 %v519
    %3300 = vmatpush1.msra.mxu0 %v518
    %3301 = vmatprep.subr.mxu0 %v591
    %3302 = vmatpush1.msra.mxu0 %v590
    %3303 = vmatprep.subr.mxu0 %v663
    %3304 = vmatpush1.msra.mxu0 %v662
    %3305 = vmatprep.subr.mxu0 %v735
    %3306 = vmatpush1.msra.mxu0 %v734
    %3307 = vmatprep.subr.mxu0 %v807
    %3308 = vmatpush1.msra.mxu0 %v806
    %3309 = vmatprep.subr.mxu0 %v879
    %3310 = vmatpush1.msra.mxu0 %v878
    %3311 = vmatprep.subr.mxu0 %v951
    %3312 = vmatpush1.msra.mxu0 %v950
    %3313 = vmatprep.subr.mxu0 %v1023
    %3314 = vmatpush1.msra.mxu0 %v1022
    %3315 = vmatprep.subr.mxu0 %v1095
    %3316 = vmatpush1.msra.mxu0 %v1094
    %3317 = vmatprep.subr.mxu0 %v1167
    %3318 = vmatpush1.msra.mxu0 %v1166
    %3319 = vmatprep.subr.mxu0 %v1239
    %3320 = vmatpush1.msra.mxu0 %v1238
    %3321 = vmatprep.subr.mxu0 %v1311
    %3322 = vmatpush1.msra.mxu0 %v1310
    %3323 = vmatprep.subr.mxu0 %v1383
    %3324 = vmatpush1.msra.mxu0 %v1382
    %3325 = vmatprep.subr.mxu0 %v1455
    %3326 = vmatpush1.msra.mxu0 %v1454
    %3327 = vmatprep.subr.mxu0 %v1527
    %3328 = vmatpush1.msra.mxu0 %v1526
    %3329 = vmatprep.subr.mxu0 %v1599
    %3330 = vmatpush1.msra.mxu0 %v1598
    %3331 = vmatprep.subr.mxu0 %v1671
    %3332 = vmatpush1.msra.mxu0 %v1670
    %3333 = vmatprep.subr.mxu0 %v1743
    %3334 = vmatpush1.msra.mxu0 %v1742
    %3335 = vmatprep.subr.mxu0 %v1815
    %3336 = vmatpush1.msra.mxu0 %v1814
    %3337 = vmatprep.subr.mxu0 %v1887
    %3338 = vmatpush1.msra.mxu0 %v1886
    %3339 = vmatprep.subr.mxu0 %v1959
    %3340 = vmatpush1.msra.mxu0 %v1958
    %3341 = vmatprep.subr.mxu0 %v2031
    %3342 = vmatpush1.msra.mxu0 %v2030
    %3343 = vmatprep.subr.mxu0 %v2103
    %3344 = vmatpush1.msra.mxu0 %v2102
    %3345 = vmatprep.subr.mxu0 %v2175
    %3346 = vmatpush1.msra.mxu0 %v2174
    %3347 = vmatprep.subr.mxu0 %v2247
    %3348 = vmatpush1.msra.mxu0 %v2246
    %3349 = vmatprep.subr.mxu0 %v2319
    %3350 = vmatpush1.msra.mxu0 %v2318
    %3351 = vmatprep.mubr.f32.mxu0 %v59
    %3352 = vmatmul.mubr.f32.gmra.mrb[0].mxu0 %v58
    %v3353 = vpop.f32.mrb[0].mxu0
    %v3354 = vadd.f32 0.0, %v3353
    %v3355 = vpop.f32.mrb[0].mxu0
    %v3356 = vadd.f32 0.0, %v3355
    %3357 = vdwg.mxu0
    %3358 = vmatprep.subr.mxu0 %v89
    %3359 = vmatpush1.msra.mxu0 %v88
    %3360 = vmatprep.subr.mxu0 %v161
    %3361 = vmatpush1.msra.mxu0 %v160
    %3362 = vmatprep.subr.mxu0 %v233
    %3363 = vmatpush1.msra.mxu0 %v232
    %3364 = vmatprep.subr.mxu0 %v305
    %3365 = vmatpush1.msra.mxu0 %v304
    %3366 = vmatprep.subr.mxu0 %v377
    %3367 = vmatpush1.msra.mxu0 %v376
    %3368 = vmatprep.subr.mxu0 %v449
    %3369 = vmatpush1.msra.mxu0 %v448
    %3370 = vmatprep.subr.mxu0 %v521
    %3371 = vmatpush1.msra.mxu0 %v520
    %3372 = vmatprep.subr.mxu0 %v593
    %3373 = vmatpush1.msra.mxu0 %v592
    %3374 = vmatprep.subr.mxu0 %v665
    %3375 = vmatpush1.msra.mxu0 %v664
    %3376 = vmatprep.subr.mxu0 %v737
    %3377 = vmatpush1.msra.mxu0 %v736
    %3378 = vmatprep.subr.mxu0 %v809
    %3379 = vmatpush1.msra.mxu0 %v808
    %3380 = vmatprep.subr.mxu0 %v881
    %3381 = vmatpush1.msra.mxu0 %v880
    %3382 = vmatprep.subr.mxu0 %v953
    %3383 = vmatpush1.msra.mxu0 %v952
    %3384 = vmatprep.subr.mxu0 %v1025
    %3385 = vmatpush1.msra.mxu0 %v1024
    %3386 = vmatprep.subr.mxu0 %v1097
    %3387 = vmatpush1.msra.mxu0 %v1096
    %3388 = vmatprep.subr.mxu0 %v1169
    %3389 = vmatpush1.msra.mxu0 %v1168
    %3390 = vmatprep.subr.mxu0 %v1241
    %3391 = vmatpush1.msra.mxu0 %v1240
    %3392 = vmatprep.subr.mxu0 %v1313
    %3393 = vmatpush1.msra.mxu0 %v1312
    %3394 = vmatprep.subr.mxu0 %v1385
    %3395 = vmatpush1.msra.mxu0 %v1384
    %3396 = vmatprep.subr.mxu0 %v1457
    %3397 = vmatpush1.msra.mxu0 %v1456
    %3398 = vmatprep.subr.mxu0 %v1529
    %3399 = vmatpush1.msra.mxu0 %v1528
    %3400 = vmatprep.subr.mxu0 %v1601
    %3401 = vmatpush1.msra.mxu0 %v1600
    %3402 = vmatprep.subr.mxu0 %v1673
    %3403 = vmatpush1.msra.mxu0 %v1672
    %3404 = vmatprep.subr.mxu0 %v1745
    %3405 = vmatpush1.msra.mxu0 %v1744
    %3406 = vmatprep.subr.mxu0 %v1817
    %3407 = vmatpush1.msra.mxu0 %v1816
    %3408 = vmatprep.subr.mxu0 %v1889
    %3409 = vmatpush1.msra.mxu0 %v1888
    %3410 = vmatprep.subr.mxu0 %v1961
    %3411 = vmatpush1.msra.mxu0 %v1960
    %3412 = vmatprep.subr.mxu0 %v2033
    %3413 = vmatpush1.msra.mxu0 %v2032
    %3414 = vmatprep.subr.mxu0 %v2105
    %3415 = vmatpush1.msra.mxu0 %v2104
    %3416 = vmatprep.subr.mxu0 %v2177
    %3417 = vmatpush1.msra.mxu0 %v2176
    %3418 = vmatprep.subr.mxu0 %v2249
    %3419 = vmatpush1.msra.mxu0 %v2248
    %3420 = vmatprep.subr.mxu0 %v2321
    %3421 = vmatpush1.msra.mxu0 %v2320
    %3422 = vmatprep.mubr.f32.mxu0 %v59
    %3423 = vmatmul.mubr.f32.gmra.mrb[0].mxu0 %v58
    %v3424 = vpop.f32.mrb[0].mxu0
    %v3425 = vadd.f32 0.0, %v3424
    %v3426 = vpop.f32.mrb[0].mxu0
    %v3427 = vadd.f32 0.0, %v3426
    %3428 = vdwg.mxu0
    %3429 = vmatprep.subr.mxu0 %v91
    %3430 = vmatpush1.msra.mxu0 %v90
    %3431 = vmatprep.subr.mxu0 %v163
    %3432 = vmatpush1.msra.mxu0 %v162
    %3433 = vmatprep.subr.mxu0 %v235
    %3434 = vmatpush1.msra.mxu0 %v234
    %3435 = vmatprep.subr.mxu0 %v307
    %3436 = vmatpush1.msra.mxu0 %v306
    %3437 = vmatprep.subr.mxu0 %v379
    %3438 = vmatpush1.msra.mxu0 %v378
    %3439 = vmatprep.subr.mxu0 %v451
    %3440 = vmatpush1.msra.mxu0 %v450
    %3441 = vmatprep.subr.mxu0 %v523
    %3442 = vmatpush1.msra.mxu0 %v522
    %3443 = vmatprep.subr.mxu0 %v595
    %3444 = vmatpush1.msra.mxu0 %v594
    %3445 = vmatprep.subr.mxu0 %v667
    %3446 = vmatpush1.msra.mxu0 %v666
    %3447 = vmatprep.subr.mxu0 %v739
    %3448 = vmatpush1.msra.mxu0 %v738
    %3449 = vmatprep.subr.mxu0 %v811
    %3450 = vmatpush1.msra.mxu0 %v810
    %3451 = vmatprep.subr.mxu0 %v883
    %3452 = vmatpush1.msra.mxu0 %v882
    %3453 = vmatprep.subr.mxu0 %v955
    %3454 = vmatpush1.msra.mxu0 %v954
    %3455 = vmatprep.subr.mxu0 %v1027
    %3456 = vmatpush1.msra.mxu0 %v1026
    %3457 = vmatprep.subr.mxu0 %v1099
    %3458 = vmatpush1.msra.mxu0 %v1098
    %3459 = vmatprep.subr.mxu0 %v1171
    %3460 = vmatpush1.msra.mxu0 %v1170
    %3461 = vmatprep.subr.mxu0 %v1243
    %3462 = vmatpush1.msra.mxu0 %v1242
    %3463 = vmatprep.subr.mxu0 %v1315
    %3464 = vmatpush1.msra.mxu0 %v1314
    %3465 = vmatprep.subr.mxu0 %v1387
    %3466 = vmatpush1.msra.mxu0 %v1386
    %3467 = vmatprep.subr.mxu0 %v1459
    %3468 = vmatpush1.msra.mxu0 %v1458
    %3469 = vmatprep.subr.mxu0 %v1531
    %3470 = vmatpush1.msra.mxu0 %v1530
    %3471 = vmatprep.subr.mxu0 %v1603
    %3472 = vmatpush1.msra.mxu0 %v1602
    %3473 = vmatprep.subr.mxu0 %v1675
    %3474 = vmatpush1.msra.mxu0 %v1674
    %3475 = vmatprep.subr.mxu0 %v1747
    %3476 = vmatpush1.msra.mxu0 %v1746
    %3477 = vmatprep.subr.mxu0 %v1819
    %3478 = vmatpush1.msra.mxu0 %v1818
    %3479 = vmatprep.subr.mxu0 %v1891
    %3480 = vmatpush1.msra.mxu0 %v1890
    %3481 = vmatprep.subr.mxu0 %v1963
    %3482 = vmatpush1.msra.mxu0 %v1962
    %3483 = vmatprep.subr.mxu0 %v2035
    %3484 = vmatpush1.msra.mxu0 %v2034
    %3485 = vmatprep.subr.mxu0 %v2107
    %3486 = vmatpush1.msra.mxu0 %v2106
    %3487 = vmatprep.subr.mxu0 %v2179
    %3488 = vmatpush1.msra.mxu0 %v2178
    %3489 = vmatprep.subr.mxu0 %v2251
    %3490 = vmatpush1.msra.mxu0 %v2250
    %3491 = vmatprep.subr.mxu0 %v2323
    %3492 = vmatpush1.msra.mxu0 %v2322
    %3493 = vmatprep.mubr.f32.mxu0 %v59
    %3494 = vmatmul.mubr.f32.gmra.mrb[0].mxu0 %v58
    %v3495 = vpop.f32.mrb[0].mxu0
    %v3496 = vadd.f32 0.0, %v3495
    %v3497 = vpop.f32.mrb[0].mxu0
    %v3498 = vadd.f32 0.0, %v3497
    %3499 = vdwg.mxu0
    %3500 = vmatprep.subr.mxu0 %v93
    %3501 = vmatpush1.msra.mxu0 %v92
    %3502 = vmatprep.subr.mxu0 %v165
    %3503 = vmatpush1.msra.mxu0 %v164
    %3504 = vmatprep.subr.mxu0 %v237
    %3505 = vmatpush1.msra.mxu0 %v236
    %3506 = vmatprep.subr.mxu0 %v309
    %3507 = vmatpush1.msra.mxu0 %v308
    %3508 = vmatprep.subr.mxu0 %v381
    %3509 = vmatpush1.msra.mxu0 %v380
    %3510 = vmatprep.subr.mxu0 %v453
    %3511 = vmatpush1.msra.mxu0 %v452
    %3512 = vmatprep.subr.mxu0 %v525
    %3513 = vmatpush1.msra.mxu0 %v524
    %3514 = vmatprep.subr.mxu0 %v597
    %3515 = vmatpush1.msra.mxu0 %v596
    %3516 = vmatprep.subr.mxu0 %v669
    %3517 = vmatpush1.msra.mxu0 %v668
    %3518 = vmatprep.subr.mxu0 %v741
    %3519 = vmatpush1.msra.mxu0 %v740
    %3520 = vmatprep.subr.mxu0 %v813
    %3521 = vmatpush1.msra.mxu0 %v812
    %3522 = vmatprep.subr.mxu0 %v885
    %3523 = vmatpush1.msra.mxu0 %v884
    %3524 = vmatprep.subr.mxu0 %v957
    %3525 = vmatpush1.msra.mxu0 %v956
    %3526 = vmatprep.subr.mxu0 %v1029
    %3527 = vmatpush1.msra.mxu0 %v1028
    %3528 = vmatprep.subr.mxu0 %v1101
    %3529 = vmatpush1.msra.mxu0 %v1100
    %3530 = vmatprep.subr.mxu0 %v1173
    %3531 = vmatpush1.msra.mxu0 %v1172
    %3532 = vmatprep.subr.mxu0 %v1245
    %3533 = vmatpush1.msra.mxu0 %v1244
    %3534 = vmatprep.subr.mxu0 %v1317
    %3535 = vmatpush1.msra.mxu0 %v1316
    %3536 = vmatprep.subr.mxu0 %v1389
    %3537 = vmatpush1.msra.mxu0 %v1388
    %3538 = vmatprep.subr.mxu0 %v1461
    %3539 = vmatpush1.msra.mxu0 %v1460
    %3540 = vmatprep.subr.mxu0 %v1533
    %3541 = vmatpush1.msra.mxu0 %v1532
    %3542 = vmatprep.subr.mxu0 %v1605
    %3543 = vmatpush1.msra.mxu0 %v1604
    %3544 = vmatprep.subr.mxu0 %v1677
    %3545 = vmatpush1.msra.mxu0 %v1676
    %3546 = vmatprep.subr.mxu0 %v1749
    %3547 = vmatpush1.msra.mxu0 %v1748
    %3548 = vmatprep.subr.mxu0 %v1821
    %3549 = vmatpush1.msra.mxu0 %v1820
    %3550 = vmatprep.subr.mxu0 %v1893
    %3551 = vmatpush1.msra.mxu0 %v1892
    %3552 = vmatprep.subr.mxu0 %v1965
    %3553 = vmatpush1.msra.mxu0 %v1964
    %3554 = vmatprep.subr.mxu0 %v2037
    %3555 = vmatpush1.msra.mxu0 %v2036
    %3556 = vmatprep.subr.mxu0 %v2109
    %3557 = vmatpush1.msra.mxu0 %v2108
    %3558 = vmatprep.subr.mxu0 %v2181
    %3559 = vmatpush1.msra.mxu0 %v2180
    %3560 = vmatprep.subr.mxu0 %v2253
    %3561 = vmatpush1.msra.mxu0 %v2252
    %3562 = vmatprep.subr.mxu0 %v2325
    %3563 = vmatpush1.msra.mxu0 %v2324
    %3564 = vmatprep.mubr.f32.mxu0 %v59
    %3565 = vmatmul.mubr.f32.gmra.mrb[0].mxu0 %v58
    %v3566 = vpop.f32.mrb[0].mxu0
    %v3567 = vadd.f32 0.0, %v3566
    %v3568 = vpop.f32.mrb[0].mxu0
    %v3569 = vadd.f32 0.0, %v3568
    %3570 = vdwg.mxu0
    %3571 = vmatprep.subr.mxu0 %v95
    %3572 = vmatpush1.msra.mxu0 %v94
    %3573 = vmatprep.subr.mxu0 %v167
    %3574 = vmatpush1.msra.mxu0 %v166
    %3575 = vmatprep.subr.mxu0 %v239
    %3576 = vmatpush1.msra.mxu0 %v238
    %3577 = vmatprep.subr.mxu0 %v311
    %3578 = vmatpush1.msra.mxu0 %v310
    %3579 = vmatprep.subr.mxu0 %v383
    %3580 = vmatpush1.msra.mxu0 %v382
    %3581 = vmatprep.subr.mxu0 %v455
    %3582 = vmatpush1.msra.mxu0 %v454
    %3583 = vmatprep.subr.mxu0 %v527
    %3584 = vmatpush1.msra.mxu0 %v526
    %3585 = vmatprep.subr.mxu0 %v599
    %3586 = vmatpush1.msra.mxu0 %v598
    %3587 = vmatprep.subr.mxu0 %v671
    %3588 = vmatpush1.msra.mxu0 %v670
    %3589 = vmatprep.subr.mxu0 %v743
    %3590 = vmatpush1.msra.mxu0 %v742
    %3591 = vmatprep.subr.mxu0 %v815
    %3592 = vmatpush1.msra.mxu0 %v814
    %3593 = vmatprep.subr.mxu0 %v887
    %3594 = vmatpush1.msra.mxu0 %v886
    %3595 = vmatprep.subr.mxu0 %v959
    %3596 = vmatpush1.msra.mxu0 %v958
    %3597 = vmatprep.subr.mxu0 %v1031
    %3598 = vmatpush1.msra.mxu0 %v1030
    %3599 = vmatprep.subr.mxu0 %v1103
    %3600 = vmatpush1.msra.mxu0 %v1102
    %3601 = vmatprep.subr.mxu0 %v1175
    %3602 = vmatpush1.msra.mxu0 %v1174
    %3603 = vmatprep.subr.mxu0 %v1247
    %3604 = vmatpush1.msra.mxu0 %v1246
    %3605 = vmatprep.subr.mxu0 %v1319
    %3606 = vmatpush1.msra.mxu0 %v1318
    %3607 = vmatprep.subr.mxu0 %v1391
    %3608 = vmatpush1.msra.mxu0 %v1390
    %3609 = vmatprep.subr.mxu0 %v1463
    %3610 = vmatpush1.msra.mxu0 %v1462
    %3611 = vmatprep.subr.mxu0 %v1535
    %3612 = vmatpush1.msra.mxu0 %v1534
    %3613 = vmatprep.subr.mxu0 %v1607
    %3614 = vmatpush1.msra.mxu0 %v1606
    %3615 = vmatprep.subr.mxu0 %v1679
    %3616 = vmatpush1.msra.mxu0 %v1678
    %3617 = vmatprep.subr.mxu0 %v1751
    %3618 = vmatpush1.msra.mxu0 %v1750
    %3619 = vmatprep.subr.mxu0 %v1823
    %3620 = vmatpush1.msra.mxu0 %v1822
    %3621 = vmatprep.subr.mxu0 %v1895
    %3622 = vmatpush1.msra.mxu0 %v1894
    %3623 = vmatprep.subr.mxu0 %v1967
    %3624 = vmatpush1.msra.mxu0 %v1966
    %3625 = vmatprep.subr.mxu0 %v2039
    %3626 = vmatpush1.msra.mxu0 %v2038
    %3627 = vmatprep.subr.mxu0 %v2111
    %3628 = vmatpush1.msra.mxu0 %v2110
    %3629 = vmatprep.subr.mxu0 %v2183
    %3630 = vmatpush1.msra.mxu0 %v2182
    %3631 = vmatprep.subr.mxu0 %v2255
    %3632 = vmatpush1.msra.mxu0 %v2254
    %3633 = vmatprep.subr.mxu0 %v2327
    %3634 = vmatpush1.msra.mxu0 %v2326
    %3635 = vmatprep.mubr.f32.mxu0 %v59
    %3636 = vmatmul.mubr.f32.gmra.mrb[0].mxu0 %v58
    %v3637 = vpop.f32.mrb[0].mxu0
    %v3638 = vadd.f32 0.0, %v3637
    %v3639 = vpop.f32.mrb[0].mxu0
    %v3640 = vadd.f32 0.0, %v3639
    %3641 = vdwg.mxu0
    %3642 = vmatprep.subr.mxu0 %v97
    %3643 = vmatpush1.msra.mxu0 %v96
    %3644 = vmatprep.subr.mxu0 %v169
    %3645 = vmatpush1.msra.mxu0 %v168
    %3646 = vmatprep.subr.mxu0 %v241
    %3647 = vmatpush1.msra.mxu0 %v240
    %3648 = vmatprep.subr.mxu0 %v313
    %3649 = vmatpush1.msra.mxu0 %v312
    %3650 = vmatprep.subr.mxu0 %v385
    %3651 = vmatpush1.msra.mxu0 %v384
    %3652 = vmatprep.subr.mxu0 %v457
    %3653 = vmatpush1.msra.mxu0 %v456
    %3654 = vmatprep.subr.mxu0 %v529
    %3655 = vmatpush1.msra.mxu0 %v528
    %3656 = vmatprep.subr.mxu0 %v601
    %3657 = vmatpush1.msra.mxu0 %v600
    %3658 = vmatprep.subr.mxu0 %v673
    %3659 = vmatpush1.msra.mxu0 %v672
    %3660 = vmatprep.subr.mxu0 %v745
    %3661 = vmatpush1.msra.mxu0 %v744
    %3662 = vmatprep.subr.mxu0 %v817
    %3663 = vmatpush1.msra.mxu0 %v816
    %3664 = vmatprep.subr.mxu0 %v889
    %3665 = vmatpush1.msra.mxu0 %v888
    %3666 = vmatprep.subr.mxu0 %v961
    %3667 = vmatpush1.msra.mxu0 %v960
    %3668 = vmatprep.subr.mxu0 %v1033
    %3669 = vmatpush1.msra.mxu0 %v1032
    %3670 = vmatprep.subr.mxu0 %v1105
    %3671 = vmatpush1.msra.mxu0 %v1104
    %3672 = vmatprep.subr.mxu0 %v1177
    %3673 = vmatpush1.msra.mxu0 %v1176
    %3674 = vmatprep.subr.mxu0 %v1249
    %3675 = vmatpush1.msra.mxu0 %v1248
    %3676 = vmatprep.subr.mxu0 %v1321
    %3677 = vmatpush1.msra.mxu0 %v1320
    %3678 = vmatprep.subr.mxu0 %v1393
    %3679 = vmatpush1.msra.mxu0 %v1392
    %3680 = vmatprep.subr.mxu0 %v1465
    %3681 = vmatpush1.msra.mxu0 %v1464
    %3682 = vmatprep.subr.mxu0 %v1537
    %3683 = vmatpush1.msra.mxu0 %v1536
    %3684 = vmatprep.subr.mxu0 %v1609
    %3685 = vmatpush1.msra.mxu0 %v1608
    %3686 = vmatprep.subr.mxu0 %v1681
    %3687 = vmatpush1.msra.mxu0 %v1680
    %3688 = vmatprep.subr.mxu0 %v1753
    %3689 = vmatpush1.msra.mxu0 %v1752
    %3690 = vmatprep.subr.mxu0 %v1825
    %3691 = vmatpush1.msra.mxu0 %v1824
    %3692 = vmatprep.subr.mxu0 %v1897
    %3693 = vmatpush1.msra.mxu0 %v1896
    %3694 = vmatprep.subr.mxu0 %v1969
    %3695 = vmatpush1.msra.mxu0 %v1968
    %3696 = vmatprep.subr.mxu0 %v2041
    %3697 = vmatpush1.msra.mxu0 %v2040
    %3698 = vmatprep.subr.mxu0 %v2113
    %3699 = vmatpush1.msra.mxu0 %v2112
    %3700 = vmatprep.subr.mxu0 %v2185
    %3701 = vmatpush1.msra.mxu0 %v2184
    %3702 = vmatprep.subr.mxu0 %v2257
    %3703 = vmatpush1.msra.mxu0 %v2256
    %3704 = vmatprep.subr.mxu0 %v2329
    %3705 = vmatpush1.msra.mxu0 %v2328
    %3706 = vmatprep.mubr.f32.mxu0 %v59
    %3707 = vmatmul.mubr.f32.gmra.mrb[0].mxu0 %v58
    %v3708 = vpop.f32.mrb[0].mxu0
    %v3709 = vadd.f32 0.0, %v3708
    %v3710 = vpop.f32.mrb[0].mxu0
    %v3711 = vadd.f32 0.0, %v3710
    %3712 = vdwg.mxu0
    %3713 = vmatprep.subr.mxu0 %v99
    %3714 = vmatpush1.msra.mxu0 %v98
    %3715 = vmatprep.subr.mxu0 %v171
    %3716 = vmatpush1.msra.mxu0 %v170
    %3717 = vmatprep.subr.mxu0 %v243
    %3718 = vmatpush1.msra.mxu0 %v242
    %3719 = vmatprep.subr.mxu0 %v315
    %3720 = vmatpush1.msra.mxu0 %v314
    %3721 = vmatprep.subr.mxu0 %v387
    %3722 = vmatpush1.msra.mxu0 %v386
    %3723 = vmatprep.subr.mxu0 %v459
    %3724 = vmatpush1.msra.mxu0 %v458
    %3725 = vmatprep.subr.mxu0 %v531
    %3726 = vmatpush1.msra.mxu0 %v530
    %3727 = vmatprep.subr.mxu0 %v603
    %3728 = vmatpush1.msra.mxu0 %v602
    %3729 = vmatprep.subr.mxu0 %v675
    %3730 = vmatpush1.msra.mxu0 %v674
    %3731 = vmatprep.subr.mxu0 %v747
    %3732 = vmatpush1.msra.mxu0 %v746
    %3733 = vmatprep.subr.mxu0 %v819
    %3734 = vmatpush1.msra.mxu0 %v818
    %3735 = vmatprep.subr.mxu0 %v891
    %3736 = vmatpush1.msra.mxu0 %v890
    %3737 = vmatprep.subr.mxu0 %v963
    %3738 = vmatpush1.msra.mxu0 %v962
    %3739 = vmatprep.subr.mxu0 %v1035
    %3740 = vmatpush1.msra.mxu0 %v1034
    %3741 = vmatprep.subr.mxu0 %v1107
    %3742 = vmatpush1.msra.mxu0 %v1106
    %3743 = vmatprep.subr.mxu0 %v1179
    %3744 = vmatpush1.msra.mxu0 %v1178
    %3745 = vmatprep.subr.mxu0 %v1251
    %3746 = vmatpush1.msra.mxu0 %v1250
    %3747 = vmatprep.subr.mxu0 %v1323
    %3748 = vmatpush1.msra.mxu0 %v1322
    %3749 = vmatprep.subr.mxu0 %v1395
    %3750 = vmatpush1.msra.mxu0 %v1394
    %3751 = vmatprep.subr.mxu0 %v1467
    %3752 = vmatpush1.msra.mxu0 %v1466
    %3753 = vmatprep.subr.mxu0 %v1539
    %3754 = vmatpush1.msra.mxu0 %v1538
    %3755 = vmatprep.subr.mxu0 %v1611
    %3756 = vmatpush1.msra.mxu0 %v1610
    %3757 = vmatprep.subr.mxu0 %v1683
    %3758 = vmatpush1.msra.mxu0 %v1682
    %3759 = vmatprep.subr.mxu0 %v1755
    %3760 = vmatpush1.msra.mxu0 %v1754
    %3761 = vmatprep.subr.mxu0 %v1827
    %3762 = vmatpush1.msra.mxu0 %v1826
    %3763 = vmatprep.subr.mxu0 %v1899
    %3764 = vmatpush1.msra.mxu0 %v1898
    %3765 = vmatprep.subr.mxu0 %v1971
    %3766 = vmatpush1.msra.mxu0 %v1970
    %3767 = vmatprep.subr.mxu0 %v2043
    %3768 = vmatpush1.msra.mxu0 %v2042
    %3769 = vmatprep.subr.mxu0 %v2115
    %3770 = vmatpush1.msra.mxu0 %v2114
    %3771 = vmatprep.subr.mxu0 %v2187
    %3772 = vmatpush1.msra.mxu0 %v2186
    %3773 = vmatprep.subr.mxu0 %v2259
    %3774 = vmatpush1.msra.mxu0 %v2258
    %3775 = vmatprep.subr.mxu0 %v2331
    %3776 = vmatpush1.msra.mxu0 %v2330
    %3777 = vmatprep.mubr.f32.mxu0 %v59
    %3778 = vmatmul.mubr.f32.gmra.mrb[0].mxu0 %v58
    %v3779 = vpop.f32.mrb[0].mxu0
    %v3780 = vadd.f32 0.0, %v3779
    %v3781 = vpop.f32.mrb[0].mxu0
    %v3782 = vadd.f32 0.0, %v3781
    %3783 = vdwg.mxu0
    %3784 = vmatprep.subr.mxu0 %v101
    %3785 = vmatpush1.msra.mxu0 %v100
    %3786 = vmatprep.subr.mxu0 %v173
    %3787 = vmatpush1.msra.mxu0 %v172
    %3788 = vmatprep.subr.mxu0 %v245
    %3789 = vmatpush1.msra.mxu0 %v244
    %3790 = vmatprep.subr.mxu0 %v317
    %3791 = vmatpush1.msra.mxu0 %v316
    %3792 = vmatprep.subr.mxu0 %v389
    %3793 = vmatpush1.msra.mxu0 %v388
    %3794 = vmatprep.subr.mxu0 %v461
    %3795 = vmatpush1.msra.mxu0 %v460
    %3796 = vmatprep.subr.mxu0 %v533
    %3797 = vmatpush1.msra.mxu0 %v532
    %3798 = vmatprep.subr.mxu0 %v605
    %3799 = vmatpush1.msra.mxu0 %v604
    %3800 = vmatprep.subr.mxu0 %v677
    %3801 = vmatpush1.msra.mxu0 %v676
    %3802 = vmatprep.subr.mxu0 %v749
    %3803 = vmatpush1.msra.mxu0 %v748
    %3804 = vmatprep.subr.mxu0 %v821
    %3805 = vmatpush1.msra.mxu0 %v820
    %3806 = vmatprep.subr.mxu0 %v893
    %3807 = vmatpush1.msra.mxu0 %v892
    %3808 = vmatprep.subr.mxu0 %v965
    %3809 = vmatpush1.msra.mxu0 %v964
    %3810 = vmatprep.subr.mxu0 %v1037
    %3811 = vmatpush1.msra.mxu0 %v1036
    %3812 = vmatprep.subr.mxu0 %v1109
    %3813 = vmatpush1.msra.mxu0 %v1108
    %3814 = vmatprep.subr.mxu0 %v1181
    %3815 = vmatpush1.msra.mxu0 %v1180
    %3816 = vmatprep.subr.mxu0 %v1253
    %3817 = vmatpush1.msra.mxu0 %v1252
    %3818 = vmatprep.subr.mxu0 %v1325
    %3819 = vmatpush1.msra.mxu0 %v1324
    %3820 = vmatprep.subr.mxu0 %v1397
    %3821 = vmatpush1.msra.mxu0 %v1396
    %3822 = vmatprep.subr.mxu0 %v1469
    %3823 = vmatpush1.msra.mxu0 %v1468
    %3824 = vmatprep.subr.mxu0 %v1541
    %3825 = vmatpush1.msra.mxu0 %v1540
    %3826 = vmatprep.subr.mxu0 %v1613
    %3827 = vmatpush1.msra.mxu0 %v1612
    %3828 = vmatprep.subr.mxu0 %v1685
    %3829 = vmatpush1.msra.mxu0 %v1684
    %3830 = vmatprep.subr.mxu0 %v1757
    %3831 = vmatpush1.msra.mxu0 %v1756
    %3832 = vmatprep.subr.mxu0 %v1829
    %3833 = vmatpush1.msra.mxu0 %v1828
    %3834 = vmatprep.subr.mxu0 %v1901
    %3835 = vmatpush1.msra.mxu0 %v1900
    %3836 = vmatprep.subr.mxu0 %v1973
    %3837 = vmatpush1.msra.mxu0 %v1972
    %3838 = vmatprep.subr.mxu0 %v2045
    %3839 = vmatpush1.msra.mxu0 %v2044
    %3840 = vmatprep.subr.mxu0 %v2117
    %3841 = vmatpush1.msra.mxu0 %v2116
    %3842 = vmatprep.subr.mxu0 %v2189
    %3843 = vmatpush1.msra.mxu0 %v2188
    %3844 = vmatprep.subr.mxu0 %v2261
    %3845 = vmatpush1.msra.mxu0 %v2260
    %3846 = vmatprep.subr.mxu0 %v2333
    %3847 = vmatpush1.msra.mxu0 %v2332
    %3848 = vmatprep.mubr.f32.mxu0 %v59
    %3849 = vmatmul.mubr.f32.gmra.mrb[0].mxu0 %v58
    %v3850 = vpop.f32.mrb[0].mxu0
    %v3851 = vadd.f32 0.0, %v3850
    %v3852 = vpop.f32.mrb[0].mxu0
    %v3853 = vadd.f32 0.0, %v3852
    %3854 = vdwg.mxu0
    %3855 = vmatprep.subr.mxu0 %v103
    %3856 = vmatpush1.msra.mxu0 %v102
    %3857 = vmatprep.subr.mxu0 %v175
    %3858 = vmatpush1.msra.mxu0 %v174
    %3859 = vmatprep.subr.mxu0 %v247
    %3860 = vmatpush1.msra.mxu0 %v246
    %3861 = vmatprep.subr.mxu0 %v319
    %3862 = vmatpush1.msra.mxu0 %v318
    %3863 = vmatprep.subr.mxu0 %v391
    %3864 = vmatpush1.msra.mxu0 %v390
    %3865 = vmatprep.subr.mxu0 %v463
    %3866 = vmatpush1.msra.mxu0 %v462
    %3867 = vmatprep.subr.mxu0 %v535
    %3868 = vmatpush1.msra.mxu0 %v534
    %3869 = vmatprep.subr.mxu0 %v607
    %3870 = vmatpush1.msra.mxu0 %v606
    %3871 = vmatprep.subr.mxu0 %v679
    %3872 = vmatpush1.msra.mxu0 %v678
    %3873 = vmatprep.subr.mxu0 %v751
    %3874 = vmatpush1.msra.mxu0 %v750
    %3875 = vmatprep.subr.mxu0 %v823
    %3876 = vmatpush1.msra.mxu0 %v822
    %3877 = vmatprep.subr.mxu0 %v895
    %3878 = vmatpush1.msra.mxu0 %v894
    %3879 = vmatprep.subr.mxu0 %v967
    %3880 = vmatpush1.msra.mxu0 %v966
    %3881 = vmatprep.subr.mxu0 %v1039
    %3882 = vmatpush1.msra.mxu0 %v1038
    %3883 = vmatprep.subr.mxu0 %v1111
    %3884 = vmatpush1.msra.mxu0 %v1110
    %3885 = vmatprep.subr.mxu0 %v1183
    %3886 = vmatpush1.msra.mxu0 %v1182
    %3887 = vmatprep.subr.mxu0 %v1255
    %3888 = vmatpush1.msra.mxu0 %v1254
    %3889 = vmatprep.subr.mxu0 %v1327
    %3890 = vmatpush1.msra.mxu0 %v1326
    %3891 = vmatprep.subr.mxu0 %v1399
    %3892 = vmatpush1.msra.mxu0 %v1398
    %3893 = vmatprep.subr.mxu0 %v1471
    %3894 = vmatpush1.msra.mxu0 %v1470
    %3895 = vmatprep.subr.mxu0 %v1543
    %3896 = vmatpush1.msra.mxu0 %v1542
    %3897 = vmatprep.subr.mxu0 %v1615
    %3898 = vmatpush1.msra.mxu0 %v1614
    %3899 = vmatprep.subr.mxu0 %v1687
    %3900 = vmatpush1.msra.mxu0 %v1686
    %3901 = vmatprep.subr.mxu0 %v1759
    %3902 = vmatpush1.msra.mxu0 %v1758
    %3903 = vmatprep.subr.mxu0 %v1831
    %3904 = vmatpush1.msra.mxu0 %v1830
    %3905 = vmatprep.subr.mxu0 %v1903
    %3906 = vmatpush1.msra.mxu0 %v1902
    %3907 = vmatprep.subr.mxu0 %v1975
    %3908 = vmatpush1.msra.mxu0 %v1974
    %3909 = vmatprep.subr.mxu0 %v2047
    %3910 = vmatpush1.msra.mxu0 %v2046
    %3911 = vmatprep.subr.mxu0 %v2119
    %3912 = vmatpush1.msra.mxu0 %v2118
    %3913 = vmatprep.subr.mxu0 %v2191
    %3914 = vmatpush1.msra.mxu0 %v2190
    %3915 = vmatprep.subr.mxu0 %v2263
    %3916 = vmatpush1.msra.mxu0 %v2262
    %3917 = vmatprep.subr.mxu0 %v2335
    %3918 = vmatpush1.msra.mxu0 %v2334
    %3919 = vmatprep.mubr.f32.mxu0 %v59
    %3920 = vmatmul.mubr.f32.gmra.mrb[0].mxu0 %v58
    %v3921 = vpop.f32.mrb[0].mxu0
    %v3922 = vadd.f32 0.0, %v3921
    %v3923 = vpop.f32.mrb[0].mxu0
    %v3924 = vadd.f32 0.0, %v3923
    %3925 = vdwg.mxu0
    %3926 = vmatprep.subr.mxu0 %v105
    %3927 = vmatpush1.msra.mxu0 %v104
    %3928 = vmatprep.subr.mxu0 %v177
    %3929 = vmatpush1.msra.mxu0 %v176
    %3930 = vmatprep.subr.mxu0 %v249
    %3931 = vmatpush1.msra.mxu0 %v248
    %3932 = vmatprep.subr.mxu0 %v321
    %3933 = vmatpush1.msra.mxu0 %v320
    %3934 = vmatprep.subr.mxu0 %v393
    %3935 = vmatpush1.msra.mxu0 %v392
    %3936 = vmatprep.subr.mxu0 %v465
    %3937 = vmatpush1.msra.mxu0 %v464
    %3938 = vmatprep.subr.mxu0 %v537
    %3939 = vmatpush1.msra.mxu0 %v536
    %3940 = vmatprep.subr.mxu0 %v609
    %3941 = vmatpush1.msra.mxu0 %v608
    %3942 = vmatprep.subr.mxu0 %v681
    %3943 = vmatpush1.msra.mxu0 %v680
    %3944 = vmatprep.subr.mxu0 %v753
    %3945 = vmatpush1.msra.mxu0 %v752
    %3946 = vmatprep.subr.mxu0 %v825
    %3947 = vmatpush1.msra.mxu0 %v824
    %3948 = vmatprep.subr.mxu0 %v897
    %3949 = vmatpush1.msra.mxu0 %v896
    %3950 = vmatprep.subr.mxu0 %v969
    %3951 = vmatpush1.msra.mxu0 %v968
    %3952 = vmatprep.subr.mxu0 %v1041
    %3953 = vmatpush1.msra.mxu0 %v1040
    %3954 = vmatprep.subr.mxu0 %v1113
    %3955 = vmatpush1.msra.mxu0 %v1112
    %3956 = vmatprep.subr.mxu0 %v1185
    %3957 = vmatpush1.msra.mxu0 %v1184
    %3958 = vmatprep.subr.mxu0 %v1257
    %3959 = vmatpush1.msra.mxu0 %v1256
    %3960 = vmatprep.subr.mxu0 %v1329
    %3961 = vmatpush1.msra.mxu0 %v1328
    %3962 = vmatprep.subr.mxu0 %v1401
    %3963 = vmatpush1.msra.mxu0 %v1400
    %3964 = vmatprep.subr.mxu0 %v1473
    %3965 = vmatpush1.msra.mxu0 %v1472
    %3966 = vmatprep.subr.mxu0 %v1545
    %3967 = vmatpush1.msra.mxu0 %v1544
    %3968 = vmatprep.subr.mxu0 %v1617
    %3969 = vmatpush1.msra.mxu0 %v1616
    %3970 = vmatprep.subr.mxu0 %v1689
    %3971 = vmatpush1.msra.mxu0 %v1688
    %3972 = vmatprep.subr.mxu0 %v1761
    %3973 = vmatpush1.msra.mxu0 %v1760
    %3974 = vmatprep.subr.mxu0 %v1833
    %3975 = vmatpush1.msra.mxu0 %v1832
    %3976 = vmatprep.subr.mxu0 %v1905
    %3977 = vmatpush1.msra.mxu0 %v1904
    %3978 = vmatprep.subr.mxu0 %v1977
    %3979 = vmatpush1.msra.mxu0 %v1976
    %3980 = vmatprep.subr.mxu0 %v2049
    %3981 = vmatpush1.msra.mxu0 %v2048
    %3982 = vmatprep.subr.mxu0 %v2121
    %3983 = vmatpush1.msra.mxu0 %v2120
    %3984 = vmatprep.subr.mxu0 %v2193
    %3985 = vmatpush1.msra.mxu0 %v2192
    %3986 = vmatprep.subr.mxu0 %v2265
    %3987 = vmatpush1.msra.mxu0 %v2264
    %3988 = vmatprep.subr.mxu0 %v2337
    %3989 = vmatpush1.msra.mxu0 %v2336
    %3990 = vmatprep.mubr.f32.mxu0 %v59
    %3991 = vmatmul.mubr.f32.gmra.mrb[0].mxu0 %v58
    %v3992 = vpop.f32.mrb[0].mxu0
    %v3993 = vadd.f32 0.0, %v3992
    %v3994 = vpop.f32.mrb[0].mxu0
    %v3995 = vadd.f32 0.0, %v3994
    %3996 = vdwg.mxu0
    %3997 = vmatprep.subr.mxu0 %v107
    %3998 = vmatpush1.msra.mxu0 %v106
    %3999 = vmatprep.subr.mxu0 %v179
    %4000 = vmatpush1.msra.mxu0 %v178
    %4001 = vmatprep.subr.mxu0 %v251
    %4002 = vmatpush1.msra.mxu0 %v250
    %4003 = vmatprep.subr.mxu0 %v323
    %4004 = vmatpush1.msra.mxu0 %v322
    %4005 = vmatprep.subr.mxu0 %v395
    %4006 = vmatpush1.msra.mxu0 %v394
    %4007 = vmatprep.subr.mxu0 %v467
    %4008 = vmatpush1.msra.mxu0 %v466
    %4009 = vmatprep.subr.mxu0 %v539
    %4010 = vmatpush1.msra.mxu0 %v538
    %4011 = vmatprep.subr.mxu0 %v611
    %4012 = vmatpush1.msra.mxu0 %v610
    %4013 = vmatprep.subr.mxu0 %v683
    %4014 = vmatpush1.msra.mxu0 %v682
    %4015 = vmatprep.subr.mxu0 %v755
    %4016 = vmatpush1.msra.mxu0 %v754
    %4017 = vmatprep.subr.mxu0 %v827
    %4018 = vmatpush1.msra.mxu0 %v826
    %4019 = vmatprep.subr.mxu0 %v899
    %4020 = vmatpush1.msra.mxu0 %v898
    %4021 = vmatprep.subr.mxu0 %v971
    %4022 = vmatpush1.msra.mxu0 %v970
    %4023 = vmatprep.subr.mxu0 %v1043
    %4024 = vmatpush1.msra.mxu0 %v1042
    %4025 = vmatprep.subr.mxu0 %v1115
    %4026 = vmatpush1.msra.mxu0 %v1114
    %4027 = vmatprep.subr.mxu0 %v1187
    %4028 = vmatpush1.msra.mxu0 %v1186
    %4029 = vmatprep.subr.mxu0 %v1259
    %4030 = vmatpush1.msra.mxu0 %v1258
    %4031 = vmatprep.subr.mxu0 %v1331
    %4032 = vmatpush1.msra.mxu0 %v1330
    %4033 = vmatprep.subr.mxu0 %v1403
    %4034 = vmatpush1.msra.mxu0 %v1402
    %4035 = vmatprep.subr.mxu0 %v1475
    %4036 = vmatpush1.msra.mxu0 %v1474
    %4037 = vmatprep.subr.mxu0 %v1547
    %4038 = vmatpush1.msra.mxu0 %v1546
    %4039 = vmatprep.subr.mxu0 %v1619
    %4040 = vmatpush1.msra.mxu0 %v1618
    %4041 = vmatprep.subr.mxu0 %v1691
    %4042 = vmatpush1.msra.mxu0 %v1690
    %4043 = vmatprep.subr.mxu0 %v1763
    %4044 = vmatpush1.msra.mxu0 %v1762
    %4045 = vmatprep.subr.mxu0 %v1835
    %4046 = vmatpush1.msra.mxu0 %v1834
    %4047 = vmatprep.subr.mxu0 %v1907
    %4048 = vmatpush1.msra.mxu0 %v1906
    %4049 = vmatprep.subr.mxu0 %v1979
    %4050 = vmatpush1.msra.mxu0 %v1978
    %4051 = vmatprep.subr.mxu0 %v2051
    %4052 = vmatpush1.msra.mxu0 %v2050
    %4053 = vmatprep.subr.mxu0 %v2123
    %4054 = vmatpush1.msra.mxu0 %v2122
    %4055 = vmatprep.subr.mxu0 %v2195
    %4056 = vmatpush1.msra.mxu0 %v2194
    %4057 = vmatprep.subr.mxu0 %v2267
    %4058 = vmatpush1.msra.mxu0 %v2266
    %4059 = vmatprep.subr.mxu0 %v2339
    %4060 = vmatpush1.msra.mxu0 %v2338
    %4061 = vmatprep.mubr.f32.mxu0 %v59
    %4062 = vmatmul.mubr.f32.gmra.mrb[0].mxu0 %v58
    %v4063 = vpop.f32.mrb[0].mxu0
    %v4064 = vadd.f32 0.0, %v4063
    %v4065 = vpop.f32.mrb[0].mxu0
    %v4066 = vadd.f32 0.0, %v4065
    %4067 = vdwg.mxu0
    %4068 = vmatprep.subr.mxu0 %v109
    %4069 = vmatpush1.msra.mxu0 %v108
    %4070 = vmatprep.subr.mxu0 %v181
    %4071 = vmatpush1.msra.mxu0 %v180
    %4072 = vmatprep.subr.mxu0 %v253
    %4073 = vmatpush1.msra.mxu0 %v252
    %4074 = vmatprep.subr.mxu0 %v325
    %4075 = vmatpush1.msra.mxu0 %v324
    %4076 = vmatprep.subr.mxu0 %v397
    %4077 = vmatpush1.msra.mxu0 %v396
    %4078 = vmatprep.subr.mxu0 %v469
    %4079 = vmatpush1.msra.mxu0 %v468
    %4080 = vmatprep.subr.mxu0 %v541
    %4081 = vmatpush1.msra.mxu0 %v540
    %4082 = vmatprep.subr.mxu0 %v613
    %4083 = vmatpush1.msra.mxu0 %v612
    %4084 = vmatprep.subr.mxu0 %v685
    %4085 = vmatpush1.msra.mxu0 %v684
    %4086 = vmatprep.subr.mxu0 %v757
    %4087 = vmatpush1.msra.mxu0 %v756
    %4088 = vmatprep.subr.mxu0 %v829
    %4089 = vmatpush1.msra.mxu0 %v828
    %4090 = vmatprep.subr.mxu0 %v901
    %4091 = vmatpush1.msra.mxu0 %v900
    %4092 = vmatprep.subr.mxu0 %v973
    %4093 = vmatpush1.msra.mxu0 %v972
    %4094 = vmatprep.subr.mxu0 %v1045
    %4095 = vmatpush1.msra.mxu0 %v1044
    %4096 = vmatprep.subr.mxu0 %v1117
    %4097 = vmatpush1.msra.mxu0 %v1116
    %4098 = vmatprep.subr.mxu0 %v1189
    %4099 = vmatpush1.msra.mxu0 %v1188
    %4100 = vmatprep.subr.mxu0 %v1261
    %4101 = vmatpush1.msra.mxu0 %v1260
    %4102 = vmatprep.subr.mxu0 %v1333
    %4103 = vmatpush1.msra.mxu0 %v1332
    %4104 = vmatprep.subr.mxu0 %v1405
    %4105 = vmatpush1.msra.mxu0 %v1404
    %4106 = vmatprep.subr.mxu0 %v1477
    %4107 = vmatpush1.msra.mxu0 %v1476
    %4108 = vmatprep.subr.mxu0 %v1549
    %4109 = vmatpush1.msra.mxu0 %v1548
    %4110 = vmatprep.subr.mxu0 %v1621
    %4111 = vmatpush1.msra.mxu0 %v1620
    %4112 = vmatprep.subr.mxu0 %v1693
    %4113 = vmatpush1.msra.mxu0 %v1692
    %4114 = vmatprep.subr.mxu0 %v1765
    %4115 = vmatpush1.msra.mxu0 %v1764
    %4116 = vmatprep.subr.mxu0 %v1837
    %4117 = vmatpush1.msra.mxu0 %v1836
    %4118 = vmatprep.subr.mxu0 %v1909
    %4119 = vmatpush1.msra.mxu0 %v1908
    %4120 = vmatprep.subr.mxu0 %v1981
    %4121 = vmatpush1.msra.mxu0 %v1980
    %4122 = vmatprep.subr.mxu0 %v2053
    %4123 = vmatpush1.msra.mxu0 %v2052
    %4124 = vmatprep.subr.mxu0 %v2125
    %4125 = vmatpush1.msra.mxu0 %v2124
    %4126 = vmatprep.subr.mxu0 %v2197
    %4127 = vmatpush1.msra.mxu0 %v2196
    %4128 = vmatprep.subr.mxu0 %v2269
    %4129 = vmatpush1.msra.mxu0 %v2268
    %4130 = vmatprep.subr.mxu0 %v2341
    %4131 = vmatpush1.msra.mxu0 %v2340
    %4132 = vmatprep.mubr.f32.mxu0 %v59
    %4133 = vmatmul.mubr.f32.gmra.mrb[0].mxu0 %v58
    %v4134 = vpop.f32.mrb[0].mxu0
    %v4135 = vadd.f32 0.0, %v4134
    %v4136 = vpop.f32.mrb[0].mxu0
    %v4137 = vadd.f32 0.0, %v4136
    %4138 = vdwg.mxu0
    %4139 = vmatprep.subr.mxu0 %v111
    %4140 = vmatpush1.msra.mxu0 %v110
    %4141 = vmatprep.subr.mxu0 %v183
    %4142 = vmatpush1.msra.mxu0 %v182
    %4143 = vmatprep.subr.mxu0 %v255
    %4144 = vmatpush1.msra.mxu0 %v254
    %4145 = vmatprep.subr.mxu0 %v327
    %4146 = vmatpush1.msra.mxu0 %v326
    %4147 = vmatprep.subr.mxu0 %v399
    %4148 = vmatpush1.msra.mxu0 %v398
    %4149 = vmatprep.subr.mxu0 %v471
    %4150 = vmatpush1.msra.mxu0 %v470
    %4151 = vmatprep.subr.mxu0 %v543
    %4152 = vmatpush1.msra.mxu0 %v542
    %4153 = vmatprep.subr.mxu0 %v615
    %4154 = vmatpush1.msra.mxu0 %v614
    %4155 = vmatprep.subr.mxu0 %v687
    %4156 = vmatpush1.msra.mxu0 %v686
    %4157 = vmatprep.subr.mxu0 %v759
    %4158 = vmatpush1.msra.mxu0 %v758
    %4159 = vmatprep.subr.mxu0 %v831
    %4160 = vmatpush1.msra.mxu0 %v830
    %4161 = vmatprep.subr.mxu0 %v903
    %4162 = vmatpush1.msra.mxu0 %v902
    %4163 = vmatprep.subr.mxu0 %v975
    %4164 = vmatpush1.msra.mxu0 %v974
    %4165 = vmatprep.subr.mxu0 %v1047
    %4166 = vmatpush1.msra.mxu0 %v1046
    %4167 = vmatprep.subr.mxu0 %v1119
    %4168 = vmatpush1.msra.mxu0 %v1118
    %4169 = vmatprep.subr.mxu0 %v1191
    %4170 = vmatpush1.msra.mxu0 %v1190
    %4171 = vmatprep.subr.mxu0 %v1263
    %4172 = vmatpush1.msra.mxu0 %v1262
    %4173 = vmatprep.subr.mxu0 %v1335
    %4174 = vmatpush1.msra.mxu0 %v1334
    %4175 = vmatprep.subr.mxu0 %v1407
    %4176 = vmatpush1.msra.mxu0 %v1406
    %4177 = vmatprep.subr.mxu0 %v1479
    %4178 = vmatpush1.msra.mxu0 %v1478
    %4179 = vmatprep.subr.mxu0 %v1551
    %4180 = vmatpush1.msra.mxu0 %v1550
    %4181 = vmatprep.subr.mxu0 %v1623
    %4182 = vmatpush1.msra.mxu0 %v1622
    %4183 = vmatprep.subr.mxu0 %v1695
    %4184 = vmatpush1.msra.mxu0 %v1694
    %4185 = vmatprep.subr.mxu0 %v1767
    %4186 = vmatpush1.msra.mxu0 %v1766
    %4187 = vmatprep.subr.mxu0 %v1839
    %4188 = vmatpush1.msra.mxu0 %v1838
    %4189 = vmatprep.subr.mxu0 %v1911
    %4190 = vmatpush1.msra.mxu0 %v1910
    %4191 = vmatprep.subr.mxu0 %v1983
    %4192 = vmatpush1.msra.mxu0 %v1982
    %4193 = vmatprep.subr.mxu0 %v2055
    %4194 = vmatpush1.msra.mxu0 %v2054
    %4195 = vmatprep.subr.mxu0 %v2127
    %4196 = vmatpush1.msra.mxu0 %v2126
    %4197 = vmatprep.subr.mxu0 %v2199
    %4198 = vmatpush1.msra.mxu0 %v2198
    %4199 = vmatprep.subr.mxu0 %v2271
    %4200 = vmatpush1.msra.mxu0 %v2270
    %4201 = vmatprep.subr.mxu0 %v2343
    %4202 = vmatpush1.msra.mxu0 %v2342
    %4203 = vmatprep.mubr.f32.mxu0 %v59
    %4204 = vmatmul.mubr.f32.gmra.mrb[0].mxu0 %v58
    %v4205 = vpop.f32.mrb[0].mxu0
    %v4206 = vadd.f32 0.0, %v4205
    %v4207 = vpop.f32.mrb[0].mxu0
    %v4208 = vadd.f32 0.0, %v4207
    %4209 = vdwg.mxu0
    %4210 = vmatprep.subr.mxu0 %v113
    %4211 = vmatpush1.msra.mxu0 %v112
    %4212 = vmatprep.subr.mxu0 %v185
    %4213 = vmatpush1.msra.mxu0 %v184
    %4214 = vmatprep.subr.mxu0 %v257
    %4215 = vmatpush1.msra.mxu0 %v256
    %4216 = vmatprep.subr.mxu0 %v329
    %4217 = vmatpush1.msra.mxu0 %v328
    %4218 = vmatprep.subr.mxu0 %v401
    %4219 = vmatpush1.msra.mxu0 %v400
    %4220 = vmatprep.subr.mxu0 %v473
    %4221 = vmatpush1.msra.mxu0 %v472
    %4222 = vmatprep.subr.mxu0 %v545
    %4223 = vmatpush1.msra.mxu0 %v544
    %4224 = vmatprep.subr.mxu0 %v617
    %4225 = vmatpush1.msra.mxu0 %v616
    %4226 = vmatprep.subr.mxu0 %v689
    %4227 = vmatpush1.msra.mxu0 %v688
    %4228 = vmatprep.subr.mxu0 %v761
    %4229 = vmatpush1.msra.mxu0 %v760
    %4230 = vmatprep.subr.mxu0 %v833
    %4231 = vmatpush1.msra.mxu0 %v832
    %4232 = vmatprep.subr.mxu0 %v905
    %4233 = vmatpush1.msra.mxu0 %v904
    %4234 = vmatprep.subr.mxu0 %v977
    %4235 = vmatpush1.msra.mxu0 %v976
    %4236 = vmatprep.subr.mxu0 %v1049
    %4237 = vmatpush1.msra.mxu0 %v1048
    %4238 = vmatprep.subr.mxu0 %v1121
    %4239 = vmatpush1.msra.mxu0 %v1120
    %4240 = vmatprep.subr.mxu0 %v1193
    %4241 = vmatpush1.msra.mxu0 %v1192
    %4242 = vmatprep.subr.mxu0 %v1265
    %4243 = vmatpush1.msra.mxu0 %v1264
    %4244 = vmatprep.subr.mxu0 %v1337
    %4245 = vmatpush1.msra.mxu0 %v1336
    %4246 = vmatprep.subr.mxu0 %v1409
    %4247 = vmatpush1.msra.mxu0 %v1408
    %4248 = vmatprep.subr.mxu0 %v1481
    %4249 = vmatpush1.msra.mxu0 %v1480
    %4250 = vmatprep.subr.mxu0 %v1553
    %4251 = vmatpush1.msra.mxu0 %v1552
    %4252 = vmatprep.subr.mxu0 %v1625
    %4253 = vmatpush1.msra.mxu0 %v1624
    %4254 = vmatprep.subr.mxu0 %v1697
    %4255 = vmatpush1.msra.mxu0 %v1696
    %4256 = vmatprep.subr.mxu0 %v1769
    %4257 = vmatpush1.msra.mxu0 %v1768
    %4258 = vmatprep.subr.mxu0 %v1841
    %4259 = vmatpush1.msra.mxu0 %v1840
    %4260 = vmatprep.subr.mxu0 %v1913
    %4261 = vmatpush1.msra.mxu0 %v1912
    %4262 = vmatprep.subr.mxu0 %v1985
    %4263 = vmatpush1.msra.mxu0 %v1984
    %4264 = vmatprep.subr.mxu0 %v2057
    %4265 = vmatpush1.msra.mxu0 %v2056
    %4266 = vmatprep.subr.mxu0 %v2129
    %4267 = vmatpush1.msra.mxu0 %v2128
    %4268 = vmatprep.subr.mxu0 %v2201
    %4269 = vmatpush1.msra.mxu0 %v2200
    %4270 = vmatprep.subr.mxu0 %v2273
    %4271 = vmatpush1.msra.mxu0 %v2272
    %4272 = vmatprep.subr.mxu0 %v2345
    %4273 = vmatpush1.msra.mxu0 %v2344
    %4274 = vmatprep.mubr.f32.mxu0 %v59
    %4275 = vmatmul.mubr.f32.gmra.mrb[0].mxu0 %v58
    %v4276 = vpop.f32.mrb[0].mxu0
    %v4277 = vadd.f32 0.0, %v4276
    %v4278 = vpop.f32.mrb[0].mxu0
    %v4279 = vadd.f32 0.0, %v4278
    %4280 = vdwg.mxu0
    %4281 = vmatprep.subr.mxu0 %v115
    %4282 = vmatpush1.msra.mxu0 %v114
    %4283 = vmatprep.subr.mxu0 %v187
    %4284 = vmatpush1.msra.mxu0 %v186
    %4285 = vmatprep.subr.mxu0 %v259
    %4286 = vmatpush1.msra.mxu0 %v258
    %4287 = vmatprep.subr.mxu0 %v331
    %4288 = vmatpush1.msra.mxu0 %v330
    %4289 = vmatprep.subr.mxu0 %v403
    %4290 = vmatpush1.msra.mxu0 %v402
    %4291 = vmatprep.subr.mxu0 %v475
    %4292 = vmatpush1.msra.mxu0 %v474
    %4293 = vmatprep.subr.mxu0 %v547
    %4294 = vmatpush1.msra.mxu0 %v546
    %4295 = vmatprep.subr.mxu0 %v619
    %4296 = vmatpush1.msra.mxu0 %v618
    %4297 = vmatprep.subr.mxu0 %v691
    %4298 = vmatpush1.msra.mxu0 %v690
    %4299 = vmatprep.subr.mxu0 %v763
    %4300 = vmatpush1.msra.mxu0 %v762
    %4301 = vmatprep.subr.mxu0 %v835
    %4302 = vmatpush1.msra.mxu0 %v834
    %4303 = vmatprep.subr.mxu0 %v907
    %4304 = vmatpush1.msra.mxu0 %v906
    %4305 = vmatprep.subr.mxu0 %v979
    %4306 = vmatpush1.msra.mxu0 %v978
    %4307 = vmatprep.subr.mxu0 %v1051
    %4308 = vmatpush1.msra.mxu0 %v1050
    %4309 = vmatprep.subr.mxu0 %v1123
    %4310 = vmatpush1.msra.mxu0 %v1122
    %4311 = vmatprep.subr.mxu0 %v1195
    %4312 = vmatpush1.msra.mxu0 %v1194
    %4313 = vmatprep.subr.mxu0 %v1267
    %4314 = vmatpush1.msra.mxu0 %v1266
    %4315 = vmatprep.subr.mxu0 %v1339
    %4316 = vmatpush1.msra.mxu0 %v1338
    %4317 = vmatprep.subr.mxu0 %v1411
    %4318 = vmatpush1.msra.mxu0 %v1410
    %4319 = vmatprep.subr.mxu0 %v1483
    %4320 = vmatpush1.msra.mxu0 %v1482
    %4321 = vmatprep.subr.mxu0 %v1555
    %4322 = vmatpush1.msra.mxu0 %v1554
    %4323 = vmatprep.subr.mxu0 %v1627
    %4324 = vmatpush1.msra.mxu0 %v1626
    %4325 = vmatprep.subr.mxu0 %v1699
    %4326 = vmatpush1.msra.mxu0 %v1698
    %4327 = vmatprep.subr.mxu0 %v1771
    %4328 = vmatpush1.msra.mxu0 %v1770
    %4329 = vmatprep.subr.mxu0 %v1843
    %4330 = vmatpush1.msra.mxu0 %v1842
    %4331 = vmatprep.subr.mxu0 %v1915
    %4332 = vmatpush1.msra.mxu0 %v1914
    %4333 = vmatprep.subr.mxu0 %v1987
    %4334 = vmatpush1.msra.mxu0 %v1986
    %4335 = vmatprep.subr.mxu0 %v2059
    %4336 = vmatpush1.msra.mxu0 %v2058
    %4337 = vmatprep.subr.mxu0 %v2131
    %4338 = vmatpush1.msra.mxu0 %v2130
    %4339 = vmatprep.subr.mxu0 %v2203
    %4340 = vmatpush1.msra.mxu0 %v2202
    %4341 = vmatprep.subr.mxu0 %v2275
    %4342 = vmatpush1.msra.mxu0 %v2274
    %4343 = vmatprep.subr.mxu0 %v2347
    %4344 = vmatpush1.msra.mxu0 %v2346
    %4345 = vmatprep.mubr.f32.mxu0 %v59
    %4346 = vmatmul.mubr.f32.gmra.mrb[0].mxu0 %v58
    %v4347 = vpop.f32.mrb[0].mxu0
    %v4348 = vadd.f32 0.0, %v4347
    %v4349 = vpop.f32.mrb[0].mxu0
    %v4350 = vadd.f32 0.0, %v4349
    %4351 = vdwg.mxu0
    %4352 = vmatprep.subr.mxu0 %v117
    %4353 = vmatpush1.msra.mxu0 %v116
    %4354 = vmatprep.subr.mxu0 %v189
    %4355 = vmatpush1.msra.mxu0 %v188
    %4356 = vmatprep.subr.mxu0 %v261
    %4357 = vmatpush1.msra.mxu0 %v260
    %4358 = vmatprep.subr.mxu0 %v333
    %4359 = vmatpush1.msra.mxu0 %v332
    %4360 = vmatprep.subr.mxu0 %v405
    %4361 = vmatpush1.msra.mxu0 %v404
    %4362 = vmatprep.subr.mxu0 %v477
    %4363 = vmatpush1.msra.mxu0 %v476
    %4364 = vmatprep.subr.mxu0 %v549
    %4365 = vmatpush1.msra.mxu0 %v548
    %4366 = vmatprep.subr.mxu0 %v621
    %4367 = vmatpush1.msra.mxu0 %v620
    %4368 = vmatprep.subr.mxu0 %v693
    %4369 = vmatpush1.msra.mxu0 %v692
    %4370 = vmatprep.subr.mxu0 %v765
    %4371 = vmatpush1.msra.mxu0 %v764
    %4372 = vmatprep.subr.mxu0 %v837
    %4373 = vmatpush1.msra.mxu0 %v836
    %4374 = vmatprep.subr.mxu0 %v909
    %4375 = vmatpush1.msra.mxu0 %v908
    %4376 = vmatprep.subr.mxu0 %v981
    %4377 = vmatpush1.msra.mxu0 %v980
    %4378 = vmatprep.subr.mxu0 %v1053
    %4379 = vmatpush1.msra.mxu0 %v1052
    %4380 = vmatprep.subr.mxu0 %v1125
    %4381 = vmatpush1.msra.mxu0 %v1124
    %4382 = vmatprep.subr.mxu0 %v1197
    %4383 = vmatpush1.msra.mxu0 %v1196
    %4384 = vmatprep.subr.mxu0 %v1269
    %4385 = vmatpush1.msra.mxu0 %v1268
    %4386 = vmatprep.subr.mxu0 %v1341
    %4387 = vmatpush1.msra.mxu0 %v1340
    %4388 = vmatprep.subr.mxu0 %v1413
    %4389 = vmatpush1.msra.mxu0 %v1412
    %4390 = vmatprep.subr.mxu0 %v1485
    %4391 = vmatpush1.msra.mxu0 %v1484
    %4392 = vmatprep.subr.mxu0 %v1557
    %4393 = vmatpush1.msra.mxu0 %v1556
    %4394 = vmatprep.subr.mxu0 %v1629
    %4395 = vmatpush1.msra.mxu0 %v1628
    %4396 = vmatprep.subr.mxu0 %v1701
    %4397 = vmatpush1.msra.mxu0 %v1700
    %4398 = vmatprep.subr.mxu0 %v1773
    %4399 = vmatpush1.msra.mxu0 %v1772
    %4400 = vmatprep.subr.mxu0 %v1845
    %4401 = vmatpush1.msra.mxu0 %v1844
    %4402 = vmatprep.subr.mxu0 %v1917
    %4403 = vmatpush1.msra.mxu0 %v1916
    %4404 = vmatprep.subr.mxu0 %v1989
    %4405 = vmatpush1.msra.mxu0 %v1988
    %4406 = vmatprep.subr.mxu0 %v2061
    %4407 = vmatpush1.msra.mxu0 %v2060
    %4408 = vmatprep.subr.mxu0 %v2133
    %4409 = vmatpush1.msra.mxu0 %v2132
    %4410 = vmatprep.subr.mxu0 %v2205
    %4411 = vmatpush1.msra.mxu0 %v2204
    %4412 = vmatprep.subr.mxu0 %v2277
    %4413 = vmatpush1.msra.mxu0 %v2276
    %4414 = vmatprep.subr.mxu0 %v2349
    %4415 = vmatpush1.msra.mxu0 %v2348
    %4416 = vmatprep.mubr.f32.mxu0 %v59
    %4417 = vmatmul.mubr.f32.gmra.mrb[0].mxu0 %v58
    %v4418 = vpop.f32.mrb[0].mxu0
    %v4419 = vadd.f32 0.0, %v4418
    %v4420 = vpop.f32.mrb[0].mxu0
    %v4421 = vadd.f32 0.0, %v4420
    %4422 = vdwg.mxu0
    %4423 = vmatprep.subr.mxu0 %v119
    %4424 = vmatpush1.msra.mxu0 %v118
    %4425 = vmatprep.subr.mxu0 %v191
    %4426 = vmatpush1.msra.mxu0 %v190
    %4427 = vmatprep.subr.mxu0 %v263
    %4428 = vmatpush1.msra.mxu0 %v262
    %4429 = vmatprep.subr.mxu0 %v335
    %4430 = vmatpush1.msra.mxu0 %v334
    %4431 = vmatprep.subr.mxu0 %v407
    %4432 = vmatpush1.msra.mxu0 %v406
    %4433 = vmatprep.subr.mxu0 %v479
    %4434 = vmatpush1.msra.mxu0 %v478
    %4435 = vmatprep.subr.mxu0 %v551
    %4436 = vmatpush1.msra.mxu0 %v550
    %4437 = vmatprep.subr.mxu0 %v623
    %4438 = vmatpush1.msra.mxu0 %v622
    %4439 = vmatprep.subr.mxu0 %v695
    %4440 = vmatpush1.msra.mxu0 %v694
    %4441 = vmatprep.subr.mxu0 %v767
    %4442 = vmatpush1.msra.mxu0 %v766
    %4443 = vmatprep.subr.mxu0 %v839
    %4444 = vmatpush1.msra.mxu0 %v838
    %4445 = vmatprep.subr.mxu0 %v911
    %4446 = vmatpush1.msra.mxu0 %v910
    %4447 = vmatprep.subr.mxu0 %v983
    %4448 = vmatpush1.msra.mxu0 %v982
    %4449 = vmatprep.subr.mxu0 %v1055
    %4450 = vmatpush1.msra.mxu0 %v1054
    %4451 = vmatprep.subr.mxu0 %v1127
    %4452 = vmatpush1.msra.mxu0 %v1126
    %4453 = vmatprep.subr.mxu0 %v1199
    %4454 = vmatpush1.msra.mxu0 %v1198
    %4455 = vmatprep.subr.mxu0 %v1271
    %4456 = vmatpush1.msra.mxu0 %v1270
    %4457 = vmatprep.subr.mxu0 %v1343
    %4458 = vmatpush1.msra.mxu0 %v1342
    %4459 = vmatprep.subr.mxu0 %v1415
    %4460 = vmatpush1.msra.mxu0 %v1414
    %4461 = vmatprep.subr.mxu0 %v1487
    %4462 = vmatpush1.msra.mxu0 %v1486
    %4463 = vmatprep.subr.mxu0 %v1559
    %4464 = vmatpush1.msra.mxu0 %v1558
    %4465 = vmatprep.subr.mxu0 %v1631
    %4466 = vmatpush1.msra.mxu0 %v1630
    %4467 = vmatprep.subr.mxu0 %v1703
    %4468 = vmatpush1.msra.mxu0 %v1702
    %4469 = vmatprep.subr.mxu0 %v1775
    %4470 = vmatpush1.msra.mxu0 %v1774
    %4471 = vmatprep.subr.mxu0 %v1847
    %4472 = vmatpush1.msra.mxu0 %v1846
    %4473 = vmatprep.subr.mxu0 %v1919
    %4474 = vmatpush1.msra.mxu0 %v1918
    %4475 = vmatprep.subr.mxu0 %v1991
    %4476 = vmatpush1.msra.mxu0 %v1990
    %4477 = vmatprep.subr.mxu0 %v2063
    %4478 = vmatpush1.msra.mxu0 %v2062
    %4479 = vmatprep.subr.mxu0 %v2135
    %4480 = vmatpush1.msra.mxu0 %v2134
    %4481 = vmatprep.subr.mxu0 %v2207
    %4482 = vmatpush1.msra.mxu0 %v2206
    %4483 = vmatprep.subr.mxu0 %v2279
    %4484 = vmatpush1.msra.mxu0 %v2278
    %4485 = vmatprep.subr.mxu0 %v2351
    %4486 = vmatpush1.msra.mxu0 %v2350
    %4487 = vmatprep.mubr.f32.mxu0 %v59
    %4488 = vmatmul.mubr.f32.gmra.mrb[0].mxu0 %v58
    %v4489 = vpop.f32.mrb[0].mxu0
    %v4490 = vadd.f32 0.0, %v4489
    %v4491 = vpop.f32.mrb[0].mxu0
    %v4492 = vadd.f32 0.0, %v4491
    %4493 = vdwg.mxu0
    %4494 = vmatprep.subr.mxu0 %v121
    %4495 = vmatpush1.msra.mxu0 %v120
    %4496 = vmatprep.subr.mxu0 %v193
    %4497 = vmatpush1.msra.mxu0 %v192
    %4498 = vmatprep.subr.mxu0 %v265
    %4499 = vmatpush1.msra.mxu0 %v264
    %4500 = vmatprep.subr.mxu0 %v337
    %4501 = vmatpush1.msra.mxu0 %v336
    %4502 = vmatprep.subr.mxu0 %v409
    %4503 = vmatpush1.msra.mxu0 %v408
    %4504 = vmatprep.subr.mxu0 %v481
    %4505 = vmatpush1.msra.mxu0 %v480
    %4506 = vmatprep.subr.mxu0 %v553
    %4507 = vmatpush1.msra.mxu0 %v552
    %4508 = vmatprep.subr.mxu0 %v625
    %4509 = vmatpush1.msra.mxu0 %v624
    %4510 = vmatprep.subr.mxu0 %v697
    %4511 = vmatpush1.msra.mxu0 %v696
    %4512 = vmatprep.subr.mxu0 %v769
    %4513 = vmatpush1.msra.mxu0 %v768
    %4514 = vmatprep.subr.mxu0 %v841
    %4515 = vmatpush1.msra.mxu0 %v840
    %4516 = vmatprep.subr.mxu0 %v913
    %4517 = vmatpush1.msra.mxu0 %v912
    %4518 = vmatprep.subr.mxu0 %v985
    %4519 = vmatpush1.msra.mxu0 %v984
    %4520 = vmatprep.subr.mxu0 %v1057
    %4521 = vmatpush1.msra.mxu0 %v1056
    %4522 = vmatprep.subr.mxu0 %v1129
    %4523 = vmatpush1.msra.mxu0 %v1128
    %4524 = vmatprep.subr.mxu0 %v1201
    %4525 = vmatpush1.msra.mxu0 %v1200
    %4526 = vmatprep.subr.mxu0 %v1273
    %4527 = vmatpush1.msra.mxu0 %v1272
    %4528 = vmatprep.subr.mxu0 %v1345
    %4529 = vmatpush1.msra.mxu0 %v1344
    %4530 = vmatprep.subr.mxu0 %v1417
    %4531 = vmatpush1.msra.mxu0 %v1416
    %4532 = vmatprep.subr.mxu0 %v1489
    %4533 = vmatpush1.msra.mxu0 %v1488
    %4534 = vmatprep.subr.mxu0 %v1561
    %4535 = vmatpush1.msra.mxu0 %v1560
    %4536 = vmatprep.subr.mxu0 %v1633
    %4537 = vmatpush1.msra.mxu0 %v1632
    %4538 = vmatprep.subr.mxu0 %v1705
    %4539 = vmatpush1.msra.mxu0 %v1704
    %4540 = vmatprep.subr.mxu0 %v1777
    %4541 = vmatpush1.msra.mxu0 %v1776
    %4542 = vmatprep.subr.mxu0 %v1849
    %4543 = vmatpush1.msra.mxu0 %v1848
    %4544 = vmatprep.subr.mxu0 %v1921
    %4545 = vmatpush1.msra.mxu0 %v1920
    %4546 = vmatprep.subr.mxu0 %v1993
    %4547 = vmatpush1.msra.mxu0 %v1992
    %4548 = vmatprep.subr.mxu0 %v2065
    %4549 = vmatpush1.msra.mxu0 %v2064
    %4550 = vmatprep.subr.mxu0 %v2137
    %4551 = vmatpush1.msra.mxu0 %v2136
    %4552 = vmatprep.subr.mxu0 %v2209
    %4553 = vmatpush1.msra.mxu0 %v2208
    %4554 = vmatprep.subr.mxu0 %v2281
    %4555 = vmatpush1.msra.mxu0 %v2280
    %4556 = vmatprep.subr.mxu0 %v2353
    %4557 = vmatpush1.msra.mxu0 %v2352
    %4558 = vmatprep.mubr.f32.mxu0 %v59
    %4559 = vmatmul.mubr.f32.gmra.mrb[0].mxu0 %v58
    %v4560 = vpop.f32.mrb[0].mxu0
    %v4561 = vadd.f32 0.0, %v4560
    %v4562 = vpop.f32.mrb[0].mxu0
    %v4563 = vadd.f32 0.0, %v4562
    %4564 = vdwg.mxu0
    %4565 = vmatprep.subr.mxu0 %v123
    %4566 = vmatpush1.msra.mxu0 %v122
    %4567 = vmatprep.subr.mxu0 %v195
    %4568 = vmatpush1.msra.mxu0 %v194
    %4569 = vmatprep.subr.mxu0 %v267
    %4570 = vmatpush1.msra.mxu0 %v266
    %4571 = vmatprep.subr.mxu0 %v339
    %4572 = vmatpush1.msra.mxu0 %v338
    %4573 = vmatprep.subr.mxu0 %v411
    %4574 = vmatpush1.msra.mxu0 %v410
    %4575 = vmatprep.subr.mxu0 %v483
    %4576 = vmatpush1.msra.mxu0 %v482
    %4577 = vmatprep.subr.mxu0 %v555
    %4578 = vmatpush1.msra.mxu0 %v554
    %4579 = vmatprep.subr.mxu0 %v627
    %4580 = vmatpush1.msra.mxu0 %v626
    %4581 = vmatprep.subr.mxu0 %v699
    %4582 = vmatpush1.msra.mxu0 %v698
    %4583 = vmatprep.subr.mxu0 %v771
    %4584 = vmatpush1.msra.mxu0 %v770
    %4585 = vmatprep.subr.mxu0 %v843
    %4586 = vmatpush1.msra.mxu0 %v842
    %4587 = vmatprep.subr.mxu0 %v915
    %4588 = vmatpush1.msra.mxu0 %v914
    %4589 = vmatprep.subr.mxu0 %v987
    %4590 = vmatpush1.msra.mxu0 %v986
    %4591 = vmatprep.subr.mxu0 %v1059
    %4592 = vmatpush1.msra.mxu0 %v1058
    %4593 = vmatprep.subr.mxu0 %v1131
    %4594 = vmatpush1.msra.mxu0 %v1130
    %4595 = vmatprep.subr.mxu0 %v1203
    %4596 = vmatpush1.msra.mxu0 %v1202
    %4597 = vmatprep.subr.mxu0 %v1275
    %4598 = vmatpush1.msra.mxu0 %v1274
    %4599 = vmatprep.subr.mxu0 %v1347
    %4600 = vmatpush1.msra.mxu0 %v1346
    %4601 = vmatprep.subr.mxu0 %v1419
    %4602 = vmatpush1.msra.mxu0 %v1418
    %4603 = vmatprep.subr.mxu0 %v1491
    %4604 = vmatpush1.msra.mxu0 %v1490
    %4605 = vmatprep.subr.mxu0 %v1563
    %4606 = vmatpush1.msra.mxu0 %v1562
    %4607 = vmatprep.subr.mxu0 %v1635
    %4608 = vmatpush1.msra.mxu0 %v1634
    %4609 = vmatprep.subr.mxu0 %v1707
    %4610 = vmatpush1.msra.mxu0 %v1706
    %4611 = vmatprep.subr.mxu0 %v1779
    %4612 = vmatpush1.msra.mxu0 %v1778
    %4613 = vmatprep.subr.mxu0 %v1851
    %4614 = vmatpush1.msra.mxu0 %v1850
    %4615 = vmatprep.subr.mxu0 %v1923
    %4616 = vmatpush1.msra.mxu0 %v1922
    %4617 = vmatprep.subr.mxu0 %v1995
    %4618 = vmatpush1.msra.mxu0 %v1994
    %4619 = vmatprep.subr.mxu0 %v2067
    %4620 = vmatpush1.msra.mxu0 %v2066
    %4621 = vmatprep.subr.mxu0 %v2139
    %4622 = vmatpush1.msra.mxu0 %v2138
    %4623 = vmatprep.subr.mxu0 %v2211
    %4624 = vmatpush1.msra.mxu0 %v2210
    %4625 = vmatprep.subr.mxu0 %v2283
    %4626 = vmatpush1.msra.mxu0 %v2282
    %4627 = vmatprep.subr.mxu0 %v2355
    %4628 = vmatpush1.msra.mxu0 %v2354
    %4629 = vmatprep.mubr.f32.mxu0 %v59
    %4630 = vmatmul.mubr.f32.gmra.mrb[0].mxu0 %v58
    %v4631 = vpop.f32.mrb[0].mxu0
    %v4632 = vadd.f32 0.0, %v4631
    %v4633 = vpop.f32.mrb[0].mxu0
    %v4634 = vadd.f32 0.0, %v4633
    %4635 = vdwg.mxu0
    %4636 = vmatprep.subr.mxu0 %v125
    %4637 = vmatpush1.msra.mxu0 %v124
    %4638 = vmatprep.subr.mxu0 %v197
    %4639 = vmatpush1.msra.mxu0 %v196
    %4640 = vmatprep.subr.mxu0 %v269
    %4641 = vmatpush1.msra.mxu0 %v268
    %4642 = vmatprep.subr.mxu0 %v341
    %4643 = vmatpush1.msra.mxu0 %v340
    %4644 = vmatprep.subr.mxu0 %v413
    %4645 = vmatpush1.msra.mxu0 %v412
    %4646 = vmatprep.subr.mxu0 %v485
    %4647 = vmatpush1.msra.mxu0 %v484
    %4648 = vmatprep.subr.mxu0 %v557
    %4649 = vmatpush1.msra.mxu0 %v556
    %4650 = vmatprep.subr.mxu0 %v629
    %4651 = vmatpush1.msra.mxu0 %v628
    %4652 = vmatprep.subr.mxu0 %v701
    %4653 = vmatpush1.msra.mxu0 %v700
    %4654 = vmatprep.subr.mxu0 %v773
    %4655 = vmatpush1.msra.mxu0 %v772
    %4656 = vmatprep.subr.mxu0 %v845
    %4657 = vmatpush1.msra.mxu0 %v844
    %4658 = vmatprep.subr.mxu0 %v917
    %4659 = vmatpush1.msra.mxu0 %v916
    %4660 = vmatprep.subr.mxu0 %v989
    %4661 = vmatpush1.msra.mxu0 %v988
    %4662 = vmatprep.subr.mxu0 %v1061
    %4663 = vmatpush1.msra.mxu0 %v1060
    %4664 = vmatprep.subr.mxu0 %v1133
    %4665 = vmatpush1.msra.mxu0 %v1132
    %4666 = vmatprep.subr.mxu0 %v1205
    %4667 = vmatpush1.msra.mxu0 %v1204
    %4668 = vmatprep.subr.mxu0 %v1277
    %4669 = vmatpush1.msra.mxu0 %v1276
    %4670 = vmatprep.subr.mxu0 %v1349
    %4671 = vmatpush1.msra.mxu0 %v1348
    %4672 = vmatprep.subr.mxu0 %v1421
    %4673 = vmatpush1.msra.mxu0 %v1420
    %4674 = vmatprep.subr.mxu0 %v1493
    %4675 = vmatpush1.msra.mxu0 %v1492
    %4676 = vmatprep.subr.mxu0 %v1565
    %4677 = vmatpush1.msra.mxu0 %v1564
    %4678 = vmatprep.subr.mxu0 %v1637
    %4679 = vmatpush1.msra.mxu0 %v1636
    %4680 = vmatprep.subr.mxu0 %v1709
    %4681 = vmatpush1.msra.mxu0 %v1708
    %4682 = vmatprep.subr.mxu0 %v1781
    %4683 = vmatpush1.msra.mxu0 %v1780
    %4684 = vmatprep.subr.mxu0 %v1853
    %4685 = vmatpush1.msra.mxu0 %v1852
    %4686 = vmatprep.subr.mxu0 %v1925
    %4687 = vmatpush1.msra.mxu0 %v1924
    %4688 = vmatprep.subr.mxu0 %v1997
    %4689 = vmatpush1.msra.mxu0 %v1996
    %4690 = vmatprep.subr.mxu0 %v2069
    %4691 = vmatpush1.msra.mxu0 %v2068
    %4692 = vmatprep.subr.mxu0 %v2141
    %4693 = vmatpush1.msra.mxu0 %v2140
    %4694 = vmatprep.subr.mxu0 %v2213
    %4695 = vmatpush1.msra.mxu0 %v2212
    %4696 = vmatprep.subr.mxu0 %v2285
    %4697 = vmatpush1.msra.mxu0 %v2284
    %4698 = vmatprep.subr.mxu0 %v2357
    %4699 = vmatpush1.msra.mxu0 %v2356
    %4700 = vmatprep.mubr.f32.mxu0 %v59
    %4701 = vmatmul.mubr.f32.gmra.mrb[0].mxu0 %v58
    %v4702 = vpop.f32.mrb[0].mxu0
    %v4703 = vadd.f32 0.0, %v4702
    %v4704 = vpop.f32.mrb[0].mxu0
    %v4705 = vadd.f32 0.0, %v4704
    %4706 = vdwg.mxu0
    %4707 = vmatprep.subr.mxu0 %v127
    %4708 = vmatpush1.msra.mxu0 %v126
    %4709 = vmatprep.subr.mxu0 %v199
    %4710 = vmatpush1.msra.mxu0 %v198
    %4711 = vmatprep.subr.mxu0 %v271
    %4712 = vmatpush1.msra.mxu0 %v270
    %4713 = vmatprep.subr.mxu0 %v343
    %4714 = vmatpush1.msra.mxu0 %v342
    %4715 = vmatprep.subr.mxu0 %v415
    %4716 = vmatpush1.msra.mxu0 %v414
    %4717 = vmatprep.subr.mxu0 %v487
    %4718 = vmatpush1.msra.mxu0 %v486
    %4719 = vmatprep.subr.mxu0 %v559
    %4720 = vmatpush1.msra.mxu0 %v558
    %4721 = vmatprep.subr.mxu0 %v631
    %4722 = vmatpush1.msra.mxu0 %v630
    %4723 = vmatprep.subr.mxu0 %v703
    %4724 = vmatpush1.msra.mxu0 %v702
    %4725 = vmatprep.subr.mxu0 %v775
    %4726 = vmatpush1.msra.mxu0 %v774
    %4727 = vmatprep.subr.mxu0 %v847
    %4728 = vmatpush1.msra.mxu0 %v846
    %4729 = vmatprep.subr.mxu0 %v919
    %4730 = vmatpush1.msra.mxu0 %v918
    %4731 = vmatprep.subr.mxu0 %v991
    %4732 = vmatpush1.msra.mxu0 %v990
    %4733 = vmatprep.subr.mxu0 %v1063
    %4734 = vmatpush1.msra.mxu0 %v1062
    %4735 = vmatprep.subr.mxu0 %v1135
    %4736 = vmatpush1.msra.mxu0 %v1134
    %4737 = vmatprep.subr.mxu0 %v1207
    %4738 = vmatpush1.msra.mxu0 %v1206
    %4739 = vmatprep.subr.mxu0 %v1279
    %4740 = vmatpush1.msra.mxu0 %v1278
    %4741 = vmatprep.subr.mxu0 %v1351
    %4742 = vmatpush1.msra.mxu0 %v1350
    %4743 = vmatprep.subr.mxu0 %v1423
    %4744 = vmatpush1.msra.mxu0 %v1422
    %4745 = vmatprep.subr.mxu0 %v1495
    %4746 = vmatpush1.msra.mxu0 %v1494
    %4747 = vmatprep.subr.mxu0 %v1567
    %4748 = vmatpush1.msra.mxu0 %v1566
    %4749 = vmatprep.subr.mxu0 %v1639
    %4750 = vmatpush1.msra.mxu0 %v1638
    %4751 = vmatprep.subr.mxu0 %v1711
    %4752 = vmatpush1.msra.mxu0 %v1710
    %4753 = vmatprep.subr.mxu0 %v1783
    %4754 = vmatpush1.msra.mxu0 %v1782
    %4755 = vmatprep.subr.mxu0 %v1855
    %4756 = vmatpush1.msra.mxu0 %v1854
    %4757 = vmatprep.subr.mxu0 %v1927
    %4758 = vmatpush1.msra.mxu0 %v1926
    %4759 = vmatprep.subr.mxu0 %v1999
    %4760 = vmatpush1.msra.mxu0 %v1998
    %4761 = vmatprep.subr.mxu0 %v2071
    %4762 = vmatpush1.msra.mxu0 %v2070
    %4763 = vmatprep.subr.mxu0 %v2143
    %4764 = vmatpush1.msra.mxu0 %v2142
    %4765 = vmatprep.subr.mxu0 %v2215
    %4766 = vmatpush1.msra.mxu0 %v2214
    %4767 = vmatprep.subr.mxu0 %v2287
    %4768 = vmatpush1.msra.mxu0 %v2286
    %4769 = vmatprep.subr.mxu0 %v2359
    %4770 = vmatpush1.msra.mxu0 %v2358
    %4771 = vmatprep.mubr.f32.mxu0 %v59
    %4772 = vmatmul.mubr.f32.gmra.mrb[0].mxu0 %v58
    %v4773 = vpop.f32.mrb[0].mxu0
    %v4774 = vadd.f32 0.0, %v4773
    %v4775 = vpop.f32.mrb[0].mxu0
    %v4776 = vadd.f32 0.0, %v4775
    %4777 = vdwg.mxu0
    %4778 = vmatprep.subr.mxu0 %v129
    %4779 = vmatpush1.msra.mxu0 %v128
    %4780 = vmatprep.subr.mxu0 %v201
    %4781 = vmatpush1.msra.mxu0 %v200
    %4782 = vmatprep.subr.mxu0 %v273
    %4783 = vmatpush1.msra.mxu0 %v272
    %4784 = vmatprep.subr.mxu0 %v345
    %4785 = vmatpush1.msra.mxu0 %v344
    %4786 = vmatprep.subr.mxu0 %v417
    %4787 = vmatpush1.msra.mxu0 %v416
    %4788 = vmatprep.subr.mxu0 %v489
    %4789 = vmatpush1.msra.mxu0 %v488
    %4790 = vmatprep.subr.mxu0 %v561
    %4791 = vmatpush1.msra.mxu0 %v560
    %4792 = vmatprep.subr.mxu0 %v633
    %4793 = vmatpush1.msra.mxu0 %v632
    %4794 = vmatprep.subr.mxu0 %v705
    %4795 = vmatpush1.msra.mxu0 %v704
    %4796 = vmatprep.subr.mxu0 %v777
    %4797 = vmatpush1.msra.mxu0 %v776
    %4798 = vmatprep.subr.mxu0 %v849
    %4799 = vmatpush1.msra.mxu0 %v848
    %4800 = vmatprep.subr.mxu0 %v921
    %4801 = vmatpush1.msra.mxu0 %v920
    %4802 = vmatprep.subr.mxu0 %v993
    %4803 = vmatpush1.msra.mxu0 %v992
    %4804 = vmatprep.subr.mxu0 %v1065
    %4805 = vmatpush1.msra.mxu0 %v1064
    %4806 = vmatprep.subr.mxu0 %v1137
    %4807 = vmatpush1.msra.mxu0 %v1136
    %4808 = vmatprep.subr.mxu0 %v1209
    %4809 = vmatpush1.msra.mxu0 %v1208
    %4810 = vmatprep.subr.mxu0 %v1281
    %4811 = vmatpush1.msra.mxu0 %v1280
    %4812 = vmatprep.subr.mxu0 %v1353
    %4813 = vmatpush1.msra.mxu0 %v1352
    %4814 = vmatprep.subr.mxu0 %v1425
    %4815 = vmatpush1.msra.mxu0 %v1424
    %4816 = vmatprep.subr.mxu0 %v1497
    %4817 = vmatpush1.msra.mxu0 %v1496
    %4818 = vmatprep.subr.mxu0 %v1569
    %4819 = vmatpush1.msra.mxu0 %v1568
    %4820 = vmatprep.subr.mxu0 %v1641
    %4821 = vmatpush1.msra.mxu0 %v1640
    %4822 = vmatprep.subr.mxu0 %v1713
    %4823 = vmatpush1.msra.mxu0 %v1712
    %4824 = vmatprep.subr.mxu0 %v1785
    %4825 = vmatpush1.msra.mxu0 %v1784
    %4826 = vmatprep.subr.mxu0 %v1857
    %4827 = vmatpush1.msra.mxu0 %v1856
    %4828 = vmatprep.subr.mxu0 %v1929
    %4829 = vmatpush1.msra.mxu0 %v1928
    %4830 = vmatprep.subr.mxu0 %v2001
    %4831 = vmatpush1.msra.mxu0 %v2000
    %4832 = vmatprep.subr.mxu0 %v2073
    %4833 = vmatpush1.msra.mxu0 %v2072
    %4834 = vmatprep.subr.mxu0 %v2145
    %4835 = vmatpush1.msra.mxu0 %v2144
    %4836 = vmatprep.subr.mxu0 %v2217
    %4837 = vmatpush1.msra.mxu0 %v2216
    %4838 = vmatprep.subr.mxu0 %v2289
    %4839 = vmatpush1.msra.mxu0 %v2288
    %4840 = vmatprep.subr.mxu0 %v2361
    %4841 = vmatpush1.msra.mxu0 %v2360
    %4842 = vmatprep.mubr.f32.mxu0 %v59
    %4843 = vmatmul.mubr.f32.gmra.mrb[0].mxu0 %v58
    %v4844 = vpop.f32.mrb[0].mxu0
    %v4845 = vadd.f32 0.0, %v4844
    %v4846 = vpop.f32.mrb[0].mxu0
    %v4847 = vadd.f32 0.0, %v4846
    %4848 = vdwg.mxu0
    %4849 = vmatprep.subr.mxu0 %v131
    %4850 = vmatpush1.msra.mxu0 %v130
    %4851 = vmatprep.subr.mxu0 %v203
    %4852 = vmatpush1.msra.mxu0 %v202
    %4853 = vmatprep.subr.mxu0 %v275
    %4854 = vmatpush1.msra.mxu0 %v274
    %4855 = vmatprep.subr.mxu0 %v347
    %4856 = vmatpush1.msra.mxu0 %v346
    %4857 = vmatprep.subr.mxu0 %v419
    %4858 = vmatpush1.msra.mxu0 %v418
    %4859 = vmatprep.subr.mxu0 %v491
    %4860 = vmatpush1.msra.mxu0 %v490
    %4861 = vmatprep.subr.mxu0 %v563
    %4862 = vmatpush1.msra.mxu0 %v562
    %4863 = vmatprep.subr.mxu0 %v635
    %4864 = vmatpush1.msra.mxu0 %v634
    %4865 = vmatprep.subr.mxu0 %v707
    %4866 = vmatpush1.msra.mxu0 %v706
    %4867 = vmatprep.subr.mxu0 %v779
    %4868 = vmatpush1.msra.mxu0 %v778
    %4869 = vmatprep.subr.mxu0 %v851
    %4870 = vmatpush1.msra.mxu0 %v850
    %4871 = vmatprep.subr.mxu0 %v923
    %4872 = vmatpush1.msra.mxu0 %v922
    %4873 = vmatprep.subr.mxu0 %v995
    %4874 = vmatpush1.msra.mxu0 %v994
    %4875 = vmatprep.subr.mxu0 %v1067
    %4876 = vmatpush1.msra.mxu0 %v1066
    %4877 = vmatprep.subr.mxu0 %v1139
    %4878 = vmatpush1.msra.mxu0 %v1138
    %4879 = vmatprep.subr.mxu0 %v1211
    %4880 = vmatpush1.msra.mxu0 %v1210
    %4881 = vmatprep.subr.mxu0 %v1283
    %4882 = vmatpush1.msra.mxu0 %v1282
    %4883 = vmatprep.subr.mxu0 %v1355
    %4884 = vmatpush1.msra.mxu0 %v1354
    %4885 = vmatprep.subr.mxu0 %v1427
    %4886 = vmatpush1.msra.mxu0 %v1426
    %4887 = vmatprep.subr.mxu0 %v1499
    %4888 = vmatpush1.msra.mxu0 %v1498
    %4889 = vmatprep.subr.mxu0 %v1571
    %4890 = vmatpush1.msra.mxu0 %v1570
    %4891 = vmatprep.subr.mxu0 %v1643
    %4892 = vmatpush1.msra.mxu0 %v1642
    %4893 = vmatprep.subr.mxu0 %v1715
    %4894 = vmatpush1.msra.mxu0 %v1714
    %4895 = vmatprep.subr.mxu0 %v1787
    %4896 = vmatpush1.msra.mxu0 %v1786
    %4897 = vmatprep.subr.mxu0 %v1859
    %4898 = vmatpush1.msra.mxu0 %v1858
    %4899 = vmatprep.subr.mxu0 %v1931
    %4900 = vmatpush1.msra.mxu0 %v1930
    %4901 = vmatprep.subr.mxu0 %v2003
    %4902 = vmatpush1.msra.mxu0 %v2002
    %4903 = vmatprep.subr.mxu0 %v2075
    %4904 = vmatpush1.msra.mxu0 %v2074
    %4905 = vmatprep.subr.mxu0 %v2147
    %4906 = vmatpush1.msra.mxu0 %v2146
    %4907 = vmatprep.subr.mxu0 %v2219
    %4908 = vmatpush1.msra.mxu0 %v2218
    %4909 = vmatprep.subr.mxu0 %v2291
    %4910 = vmatpush1.msra.mxu0 %v2290
    %4911 = vmatprep.subr.mxu0 %v2363
    %4912 = vmatpush1.msra.mxu0 %v2362
    %4913 = vmatprep.mubr.f32.mxu0 %v59
    %4914 = vmatmul.mubr.f32.gmra.mrb[0].mxu0 %v58
    %v4915 = vpop.f32.mrb[0].mxu0
    %v4916 = vadd.f32 0.0, %v4915
    %v4917 = vpop.f32.mrb[0].mxu0
    %v4918 = vadd.f32 0.0, %v4917
    %4919 = vdwg.mxu0
    %v4920 = vld [vmem:[#allocation7] sm:$0xff]
    %4922 = vset.pattern.permute.xlu0 0
    %4923 = vperm.xlu0 %4922, %v4920
    %v4924 = vpop.permute.xlu0 %4923
    %v4926 = vmul.f32 %v4924, %v2431
    %v4927 = vmul.f32 %v4924, %v2433
    %v4928 = vmul.f32 %v4924, %v2502
    %v4929 = vmul.f32 %v4924, %v2504
    %v4930 = vmul.f32 %v4924, %v2573
    %v4931 = vmul.f32 %v4924, %v2575
    %v4932 = vmul.f32 %v4924, %v2644
    %v4933 = vmul.f32 %v4924, %v2646
    %4934 = vset.pattern.permute.xlu0 1
    %4935 = vperm.xlu0 %4934, %v4920
    %v4936 = vpop.permute.xlu0 %4935
    %v4938 = vmul.f32 %v4936, %v2715
    %v4939 = vmul.f32 %v4936, %v2717
    %v4940 = vmul.f32 %v4936, %v2786
    %v4941 = vmul.f32 %v4936, %v2788
    %v4942 = vmul.f32 %v4936, %v2857
    %v4943 = vmul.f32 %v4936, %v2859
    %v4944 = vmul.f32 %v4936, %v2928
    %v4945 = vmul.f32 %v4936, %v2930
    %v4946 = vadd.f32 %v4926, %v4938
    %v4947 = vadd.f32 %v4927, %v4939
    %v4948 = vadd.f32 %v4928, %v4940
    %v4949 = vadd.f32 %v4929, %v4941
    %v4950 = vadd.f32 %v4930, %v4942
    %v4951 = vadd.f32 %v4931, %v4943
    %v4952 = vadd.f32 %v4932, %v4944
    %v4953 = vadd.f32 %v4933, %v4945
    %4954 = vset.pattern.permute.xlu0 2
    %4955 = vperm.xlu0 %4954, %v4920
    %v4956 = vpop.permute.xlu0 %4955
    %v4958 = vmul.f32 %v4956, %v2999
    %v4959 = vmul.f32 %v4956, %v3001
    %v4960 = vmul.f32 %v4956, %v3070
    %v4961 = vmul.f32 %v4956, %v3072
    %v4962 = vmul.f32 %v4956, %v3141
    %v4963 = vmul.f32 %v4956, %v3143
    %v4964 = vmul.f32 %v4956, %v3212
    %v4965 = vmul.f32 %v4956, %v3214
    %v4966 = vadd.f32 %v4946, %v4958
    %v4967 = vadd.f32 %v4947, %v4959
    %v4968 = vadd.f32 %v4948, %v4960
    %v4969 = vadd.f32 %v4949, %v4961
    %v4970 = vadd.f32 %v4950, %v4962
    %v4971 = vadd.f32 %v4951, %v4963
    %v4972 = vadd.f32 %v4952, %v4964
    %v4973 = vadd.f32 %v4953, %v4965
    %4974 = vset.pattern.permute.xlu0 3
    %4975 = vperm.xlu0 %4974, %v4920
    %v4976 = vpop.permute.xlu0 %4975
    %v4978 = vmul.f32 %v4976, %v3283
    %v4979 = vmul.f32 %v4976, %v3285
    %v4980 = vmul.f32 %v4976, %v3354
    %v4981 = vmul.f32 %v4976, %v3356
    %v4982 = vmul.f32 %v4976, %v3425
    %v4983 = vmul.f32 %v4976, %v3427
    %v4984 = vmul.f32 %v4976, %v3496
    %v4985 = vmul.f32 %v4976, %v3498
    %v4986 = vadd.f32 %v4966, %v4978
    %v4987 = vadd.f32 %v4967, %v4979
    %v4988 = vadd.f32 %v4968, %v4980
    %v4989 = vadd.f32 %v4969, %v4981
    %v4990 = vadd.f32 %v4970, %v4982
    %v4991 = vadd.f32 %v4971, %v4983
    %v4992 = vadd.f32 %v4972, %v4984
    %v4993 = vadd.f32 %v4973, %v4985
    %4994 = vset.pattern.permute.xlu0 4
    %4995 = vperm.xlu0 %4994, %v4920
    %v4996 = vpop.permute.xlu0 %4995
    %v4998 = vmul.f32 %v4996, %v3567
    %v4999 = vmul.f32 %v4996, %v3569
    %v5000 = vmul.f32 %v4996, %v3638
    %v5001 = vmul.f32 %v4996, %v3640
    %v5002 = vmul.f32 %v4996, %v3709
    %v5003 = vmul.f32 %v4996, %v3711
    %v5004 = vmul.f32 %v4996, %v3780
    %v5005 = vmul.f32 %v4996, %v3782
    %v5006 = vadd.f32 %v4986, %v4998
    %v5007 = vadd.f32 %v4987, %v4999
    %v5008 = vadd.f32 %v4988, %v5000
    %v5009 = vadd.f32 %v4989, %v5001
    %v5010 = vadd.f32 %v4990, %v5002
    %v5011 = vadd.f32 %v4991, %v5003
    %v5012 = vadd.f32 %v4992, %v5004
    %v5013 = vadd.f32 %v4993, %v5005
    %5014 = vset.pattern.permute.xlu0 5
    %5015 = vperm.xlu0 %5014, %v4920
    %v5016 = vpop.permute.xlu0 %5015
    %v5018 = vmul.f32 %v5016, %v3851
    %v5019 = vmul.f32 %v5016, %v3853
    %v5020 = vmul.f32 %v5016, %v3922
    %v5021 = vmul.f32 %v5016, %v3924
    %v5022 = vmul.f32 %v5016, %v3993
    %v5023 = vmul.f32 %v5016, %v3995
    %v5024 = vmul.f32 %v5016, %v4064
    %v5025 = vmul.f32 %v5016, %v4066
    %v5026 = vadd.f32 %v5006, %v5018
    %v5027 = vadd.f32 %v5007, %v5019
    %v5028 = vadd.f32 %v5008, %v5020
    %v5029 = vadd.f32 %v5009, %v5021
    %v5030 = vadd.f32 %v5010, %v5022
    %v5031 = vadd.f32 %v5011, %v5023
    %v5032 = vadd.f32 %v5012, %v5024
    %v5033 = vadd.f32 %v5013, %v5025
    %5034 = vset.pattern.permute.xlu0 6
    %5035 = vperm.xlu0 %5034, %v4920
    %v5036 = vpop.permute.xlu0 %5035
    %v5038 = vmul.f32 %v5036, %v4135
    %v5039 = vmul.f32 %v5036, %v4137
    %v5040 = vmul.f32 %v5036, %v4206
    %v5041 = vmul.f32 %v5036, %v4208
    %v5042 = vmul.f32 %v5036, %v4277
    %v5043 = vmul.f32 %v5036, %v4279
    %v5044 = vmul.f32 %v5036, %v4348
    %v5045 = vmul.f32 %v5036, %v4350
    %v5046 = vadd.f32 %v5026, %v5038
    %v5047 = vadd.f32 %v5027, %v5039
    %v5048 = vadd.f32 %v5028, %v5040
    %v5049 = vadd.f32 %v5029, %v5041
    %v5050 = vadd.f32 %v5030, %v5042
    %v5051 = vadd.f32 %v5031, %v5043
    %v5052 = vadd.f32 %v5032, %v5044
    %v5053 = vadd.f32 %v5033, %v5045
    %5054 = vset.pattern.permute.xlu0 7
    %5055 = vperm.xlu0 %5054, %v4920
    %v5056 = vpop.permute.xlu0 %5055
    %v5058 = vmul.f32 %v5056, %v4419
    %v5059 = vmul.f32 %v5056, %v4421
    %v5060 = vmul.f32 %v5056, %v4490
    %v5061 = vmul.f32 %v5056, %v4492
    %v5062 = vmul.f32 %v5056, %v4561
    %v5063 = vmul.f32 %v5056, %v4563
    %v5064 = vmul.f32 %v5056, %v4632
    %v5065 = vmul.f32 %v5056, %v4634
    %v5066 = vadd.f32 %v5046, %v5058
    %v5067 = vadd.f32 %v5047, %v5059
    %v5068 = vadd.f32 %v5048, %v5060
    %v5069 = vadd.f32 %v5049, %v5061
    %v5070 = vadd.f32 %v5050, %v5062
    %v5071 = vadd.f32 %v5051, %v5063
    %v5072 = vadd.f32 %v5052, %v5064
    %v5073 = vadd.f32 %v5053, %v5065
    %5074 = vset.pattern.permute.xlu0 8
    %5075 = vperm.xlu0 %5074, %v4920
    %v5076 = vpop.permute.xlu0 %5075
    %v5078 = vmul.f32 %v5076, %v4703
    %v5079 = vmul.f32 %v5076, %v4705
    %v5080 = vmul.f32 %v5076, %v4774
    %v5081 = vmul.f32 %v5076, %v4776
    %v5082 = vmul.f32 %v5076, %v4845
    %v5083 = vmul.f32 %v5076, %v4847
    %v5084 = vmul.f32 %v5076, %v4916
    %v5085 = vmul.f32 %v5076, %v4918
    %v5086 = vadd.f32 %v5066, %v5078
    %v5087 = vadd.f32 %v5067, %v5079
    %v5088 = vadd.f32 %v5068, %v5080
    %v5089 = vadd.f32 %v5069, %v5081
    %v5090 = vadd.f32 %v5070, %v5082
    %v5091 = vadd.f32 %v5071, %v5083
    %v5092 = vadd.f32 %v5072, %v5084
    %v5093 = vadd.f32 %v5073, %v5085
    %v5094 = vld [vmem:[%s3] sm:$0xff]
    %v5095 = vld [vmem:[%s3 + $0x8] sm:$0xff]
    %v5096 = vld [vmem:[%s4] sm:$0xff]
    %v5097 = vld [vmem:[%s4 + $0x8] sm:$0xff]
    %5099 = vset.pattern.permute.xlu0 0
    %5100 = vperm.xlu0 %5099, %v5096
    %v5101 = vpop.permute.xlu0 %5100
    %5104 = vset.pattern.permute.xlu0 0
    %5105 = vperm.xlu0 %5104, %v5097
    %v5106 = vpop.permute.xlu0 %5105
    %vm5108 = vcmask 64512
    %v5110 = vsel %vm5108, %v5094, 0
    %v5113 = vsel %vm5108, %v5095, 0
    %5115 = vmatprep.subr.mxu0 %v5087
    %5116 = vmatpush1.msra.mxu0 %v5086
    %5117 = vmatprep.subr.mxu0 0.0
    %5118 = vmatpush1.msra.mxu0 0.0
    %5119 = vmatprep.subr.mxu0 0.0
    %5120 = vmatpush1.msra.mxu0 0.0
    %5121 = vmatprep.subr.mxu0 0.0
    %5122 = vmatpush1.msra.mxu0 0.0
    %5123 = vmatprep.subr.mxu0 0.0
    %5124 = vmatpush1.msra.mxu0 0.0
    %5125 = vmatprep.subr.mxu0 0.0
    %5126 = vmatpush1.msra.mxu0 0.0
    %5127 = vmatprep.subr.mxu0 0.0
    %5128 = vmatpush1.msra.mxu0 0.0
    %5129 = vmatprep.subr.mxu0 0.0
    %5130 = vmatpush1.msra.mxu0 0.0
    %5131 = vmatprep.subr.mxu0 0.0
    %5132 = vmatpush1.msra.mxu0 0.0
    %5133 = vmatprep.subr.mxu0 0.0
    %5134 = vmatpush1.msra.mxu0 0.0
    %5135 = vmatprep.subr.mxu0 0.0
    %5136 = vmatpush1.msra.mxu0 0.0
    %5137 = vmatprep.subr.mxu0 0.0
    %5138 = vmatpush1.msra.mxu0 0.0
    %5139 = vmatprep.subr.mxu0 0.0
    %5140 = vmatpush1.msra.mxu0 0.0
    %5141 = vmatprep.subr.mxu0 0.0
    %5142 = vmatpush1.msra.mxu0 0.0
    %5143 = vmatprep.subr.mxu0 0.0
    %5144 = vmatpush1.msra.mxu0 0.0
    %5145 = vmatprep.subr.mxu0 0.0
    %5146 = vmatpush1.msra.mxu0 0.0
    %5147 = vmatprep.subr.mxu0 0.0
    %5148 = vmatpush1.msra.mxu0 0.0
    %5149 = vmatprep.subr.mxu0 0.0
    %5150 = vmatpush1.msra.mxu0 0.0
    %5151 = vmatprep.subr.mxu0 0.0
    %5152 = vmatpush1.msra.mxu0 0.0
    %5153 = vmatprep.subr.mxu0 0.0
    %5154 = vmatpush1.msra.mxu0 0.0
    %5155 = vmatprep.subr.mxu0 0.0
    %5156 = vmatpush1.msra.mxu0 0.0
    %5157 = vmatprep.subr.mxu0 0.0
    %5158 = vmatpush1.msra.mxu0 0.0
    %5159 = vmatprep.subr.mxu0 0.0
    %5160 = vmatpush1.msra.mxu0 0.0
    %5161 = vmatprep.subr.mxu0 0.0
    %5162 = vmatpush1.msra.mxu0 0.0
    %5163 = vmatprep.subr.mxu0 0.0
    %5164 = vmatpush1.msra.mxu0 0.0
    %5165 = vmatprep.subr.mxu0 0.0
    %5166 = vmatpush1.msra.mxu0 0.0
    %5167 = vmatprep.subr.mxu0 0.0
    %5168 = vmatpush1.msra.mxu0 0.0
    %5169 = vmatprep.subr.mxu0 0.0
    %5170 = vmatpush1.msra.mxu0 0.0
    %5171 = vmatprep.subr.mxu0 0.0
    %5172 = vmatpush1.msra.mxu0 0.0
    %5173 = vmatprep.subr.mxu0 0.0
    %5174 = vmatpush1.msra.mxu0 0.0
    %5175 = vmatprep.subr.mxu0 0.0
    %5176 = vmatpush1.msra.mxu0 0.0
    %5177 = vmatprep.subr.mxu0 0.0
    %5178 = vmatpush1.msra.mxu0 0.0
    %5179 = vmatprep.mubr.f32.mxu0 0.0
    %5180 = vmatmul.mubr.f32.gmra.mrb[0].mxu0 %v5110
    %v5181 = vpop.f32.mrb[0].mxu0
    %v5182 = vadd.f32 %v5101, %v5181
    %v5183 = vpop.f32.mrb[0].mxu0
    %v5184 = vadd.f32 %v5101, %v5183
    %5185 = vmatprep.mubr.f32.mxu0 0.0
    %5186 = vmatmul.mubr.f32.gmra.mrb[0].mxu0 %v5113
    %v5187 = vpop.f32.mrb[0].mxu0
    %v5188 = vadd.f32 %v5106, %v5187
    %v5189 = vpop.f32.mrb[0].mxu0
    %v5190 = vadd.f32 %v5106, %v5189
    %5191 = vdwg.mxu0
    %5192 = vmatprep.subr.mxu0 %v5089
    %5193 = vmatpush1.msra.mxu0 %v5088
    %5194 = vmatprep.subr.mxu0 0.0
    %5195 = vmatpush1.msra.mxu0 0.0
    %5196 = vmatprep.subr.mxu0 0.0
    %5197 = vmatpush1.msra.mxu0 0.0
    %5198 = vmatprep.subr.mxu0 0.0
    %5199 = vmatpush1.msra.mxu0 0.0
    %5200 = vmatprep.subr.mxu0 0.0
    %5201 = vmatpush1.msra.mxu0 0.0
    %5202 = vmatprep.subr.mxu0 0.0
    %5203 = vmatpush1.msra.mxu0 0.0
    %5204 = vmatprep.subr.mxu0 0.0
    %5205 = vmatpush1.msra.mxu0 0.0
    %5206 = vmatprep.subr.mxu0 0.0
    %5207 = vmatpush1.msra.mxu0 0.0
    %5208 = vmatprep.subr.mxu0 0.0
    %5209 = vmatpush1.msra.mxu0 0.0
    %5210 = vmatprep.subr.mxu0 0.0
    %5211 = vmatpush1.msra.mxu0 0.0
    %5212 = vmatprep.subr.mxu0 0.0
    %5213 = vmatpush1.msra.mxu0 0.0
    %5214 = vmatprep.subr.mxu0 0.0
    %5215 = vmatpush1.msra.mxu0 0.0
    %5216 = vmatprep.subr.mxu0 0.0
    %5217 = vmatpush1.msra.mxu0 0.0
    %5218 = vmatprep.subr.mxu0 0.0
    %5219 = vmatpush1.msra.mxu0 0.0
    %5220 = vmatprep.subr.mxu0 0.0
    %5221 = vmatpush1.msra.mxu0 0.0
    %5222 = vmatprep.subr.mxu0 0.0
    %5223 = vmatpush1.msra.mxu0 0.0
    %5224 = vmatprep.subr.mxu0 0.0
    %5225 = vmatpush1.msra.mxu0 0.0
    %5226 = vmatprep.subr.mxu0 0.0
    %5227 = vmatpush1.msra.mxu0 0.0
    %5228 = vmatprep.subr.mxu0 0.0
    %5229 = vmatpush1.msra.mxu0 0.0
    %5230 = vmatprep.subr.mxu0 0.0
    %5231 = vmatpush1.msra.mxu0 0.0
    %5232 = vmatprep.subr.mxu0 0.0
    %5233 = vmatpush1.msra.mxu0 0.0
    %5234 = vmatprep.subr.mxu0 0.0
    %5235 = vmatpush1.msra.mxu0 0.0
    %5236 = vmatprep.subr.mxu0 0.0
    %5237 = vmatpush1.msra.mxu0 0.0
    %5238 = vmatprep.subr.mxu0 0.0
    %5239 = vmatpush1.msra.mxu0 0.0
    %5240 = vmatprep.subr.mxu0 0.0
    %5241 = vmatpush1.msra.mxu0 0.0
    %5242 = vmatprep.subr.mxu0 0.0
    %5243 = vmatpush1.msra.mxu0 0.0
    %5244 = vmatprep.subr.mxu0 0.0
    %5245 = vmatpush1.msra.mxu0 0.0
    %5246 = vmatprep.subr.mxu0 0.0
    %5247 = vmatpush1.msra.mxu0 0.0
    %5248 = vmatprep.subr.mxu0 0.0
    %5249 = vmatpush1.msra.mxu0 0.0
    %5250 = vmatprep.subr.mxu0 0.0
    %5251 = vmatpush1.msra.mxu0 0.0
    %5252 = vmatprep.subr.mxu0 0.0
    %5253 = vmatpush1.msra.mxu0 0.0
    %5254 = vmatprep.subr.mxu0 0.0
    %5255 = vmatpush1.msra.mxu0 0.0
    %5256 = vmatprep.mubr.f32.mxu0 0.0
    %5257 = vmatmul.mubr.f32.gmra.mrb[0].mxu0 %v5110
    %v5258 = vpop.f32.mrb[0].mxu0
    %v5259 = vadd.f32 %v5101, %v5258
    %v5260 = vpop.f32.mrb[0].mxu0
    %v5261 = vadd.f32 %v5101, %v5260
    %5262 = vmatprep.mubr.f32.mxu0 0.0
    %5263 = vmatmul.mubr.f32.gmra.mrb[0].mxu0 %v5113
    %v5264 = vpop.f32.mrb[0].mxu0
    %v5265 = vadd.f32 %v5106, %v5264
    %v5266 = vpop.f32.mrb[0].mxu0
    %v5267 = vadd.f32 %v5106, %v5266
    %5268 = vdwg.mxu0
    %5269 = vmatprep.subr.mxu0 %v5091
    %5270 = vmatpush1.msra.mxu0 %v5090
    %5271 = vmatprep.subr.mxu0 0.0
    %5272 = vmatpush1.msra.mxu0 0.0
    %5273 = vmatprep.subr.mxu0 0.0
    %5274 = vmatpush1.msra.mxu0 0.0
    %5275 = vmatprep.subr.mxu0 0.0
    %5276 = vmatpush1.msra.mxu0 0.0
    %5277 = vmatprep.subr.mxu0 0.0
    %5278 = vmatpush1.msra.mxu0 0.0
    %5279 = vmatprep.subr.mxu0 0.0
    %5280 = vmatpush1.msra.mxu0 0.0
    %5281 = vmatprep.subr.mxu0 0.0
    %5282 = vmatpush1.msra.mxu0 0.0
    %5283 = vmatprep.subr.mxu0 0.0
    %5284 = vmatpush1.msra.mxu0 0.0
    %5285 = vmatprep.subr.mxu0 0.0
    %5286 = vmatpush1.msra.mxu0 0.0
    %5287 = vmatprep.subr.mxu0 0.0
    %5288 = vmatpush1.msra.mxu0 0.0
    %5289 = vmatprep.subr.mxu0 0.0
    %5290 = vmatpush1.msra.mxu0 0.0
    %5291 = vmatprep.subr.mxu0 0.0
    %5292 = vmatpush1.msra.mxu0 0.0
    %5293 = vmatprep.subr.mxu0 0.0
    %5294 = vmatpush1.msra.mxu0 0.0
    %5295 = vmatprep.subr.mxu0 0.0
    %5296 = vmatpush1.msra.mxu0 0.0
    %5297 = vmatprep.subr.mxu0 0.0
    %5298 = vmatpush1.msra.mxu0 0.0
    %5299 = vmatprep.subr.mxu0 0.0
    %5300 = vmatpush1.msra.mxu0 0.0
    %5301 = vmatprep.subr.mxu0 0.0
    %5302 = vmatpush1.msra.mxu0 0.0
    %5303 = vmatprep.subr.mxu0 0.0
    %5304 = vmatpush1.msra.mxu0 0.0
    %5305 = vmatprep.subr.mxu0 0.0
    %5306 = vmatpush1.msra.mxu0 0.0
    %5307 = vmatprep.subr.mxu0 0.0
    %5308 = vmatpush1.msra.mxu0 0.0
    %5309 = vmatprep.subr.mxu0 0.0
    %5310 = vmatpush1.msra.mxu0 0.0
    %5311 = vmatprep.subr.mxu0 0.0
    %5312 = vmatpush1.msra.mxu0 0.0
    %5313 = vmatprep.subr.mxu0 0.0
    %5314 = vmatpush1.msra.mxu0 0.0
    %5315 = vmatprep.subr.mxu0 0.0
    %5316 = vmatpush1.msra.mxu0 0.0
    %5317 = vmatprep.subr.mxu0 0.0
    %5318 = vmatpush1.msra.mxu0 0.0
    %5319 = vmatprep.subr.mxu0 0.0
    %5320 = vmatpush1.msra.mxu0 0.0
    %5321 = vmatprep.subr.mxu0 0.0
    %5322 = vmatpush1.msra.mxu0 0.0
    %5323 = vmatprep.subr.mxu0 0.0
    %5324 = vmatpush1.msra.mxu0 0.0
    %5325 = vmatprep.subr.mxu0 0.0
    %5326 = vmatpush1.msra.mxu0 0.0
    %5327 = vmatprep.subr.mxu0 0.0
    %5328 = vmatpush1.msra.mxu0 0.0
    %5329 = vmatprep.subr.mxu0 0.0
    %5330 = vmatpush1.msra.mxu0 0.0
    %5331 = vmatprep.subr.mxu0 0.0
    %5332 = vmatpush1.msra.mxu0 0.0
    %5333 = vmatprep.mubr.f32.mxu0 0.0
    %5334 = vmatmul.mubr.f32.gmra.mrb[0].mxu0 %v5110
    %v5335 = vpop.f32.mrb[0].mxu0
    %v5336 = vadd.f32 %v5101, %v5335
    %v5337 = vpop.f32.mrb[0].mxu0
    %v5338 = vadd.f32 %v5101, %v5337
    %5339 = vmatprep.mubr.f32.mxu0 0.0
    %5340 = vmatmul.mubr.f32.gmra.mrb[0].mxu0 %v5113
    %v5341 = vpop.f32.mrb[0].mxu0
    %v5342 = vadd.f32 %v5106, %v5341
    %v5343 = vpop.f32.mrb[0].mxu0
    %v5344 = vadd.f32 %v5106, %v5343
    %5345 = vdwg.mxu0
    %5346 = vmatprep.subr.mxu0 %v5093
    %5347 = vmatpush1.msra.mxu0 %v5092
    %5348 = vmatprep.subr.mxu0 0.0
    %5349 = vmatpush1.msra.mxu0 0.0
    %5350 = vmatprep.subr.mxu0 0.0
    %5351 = vmatpush1.msra.mxu0 0.0
    %5352 = vmatprep.subr.mxu0 0.0
    %5353 = vmatpush1.msra.mxu0 0.0
    %5354 = vmatprep.subr.mxu0 0.0
    %5355 = vmatpush1.msra.mxu0 0.0
    %5356 = vmatprep.subr.mxu0 0.0
    %5357 = vmatpush1.msra.mxu0 0.0
    %5358 = vmatprep.subr.mxu0 0.0
    %5359 = vmatpush1.msra.mxu0 0.0
    %5360 = vmatprep.subr.mxu0 0.0
    %5361 = vmatpush1.msra.mxu0 0.0
    %5362 = vmatprep.subr.mxu0 0.0
    %5363 = vmatpush1.msra.mxu0 0.0
    %5364 = vmatprep.subr.mxu0 0.0
    %5365 = vmatpush1.msra.mxu0 0.0
    %5366 = vmatprep.subr.mxu0 0.0
    %5367 = vmatpush1.msra.mxu0 0.0
    %5368 = vmatprep.subr.mxu0 0.0
    %5369 = vmatpush1.msra.mxu0 0.0
    %5370 = vmatprep.subr.mxu0 0.0
    %5371 = vmatpush1.msra.mxu0 0.0
    %5372 = vmatprep.subr.mxu0 0.0
    %5373 = vmatpush1.msra.mxu0 0.0
    %5374 = vmatprep.subr.mxu0 0.0
    %5375 = vmatpush1.msra.mxu0 0.0
    %5376 = vmatprep.subr.mxu0 0.0
    %5377 = vmatpush1.msra.mxu0 0.0
    %5378 = vmatprep.subr.mxu0 0.0
    %5379 = vmatpush1.msra.mxu0 0.0
    %5380 = vmatprep.subr.mxu0 0.0
    %5381 = vmatpush1.msra.mxu0 0.0
    %5382 = vmatprep.subr.mxu0 0.0
    %5383 = vmatpush1.msra.mxu0 0.0
    %5384 = vmatprep.subr.mxu0 0.0
    %5385 = vmatpush1.msra.mxu0 0.0
    %5386 = vmatprep.subr.mxu0 0.0
    %5387 = vmatpush1.msra.mxu0 0.0
    %5388 = vmatprep.subr.mxu0 0.0
    %5389 = vmatpush1.msra.mxu0 0.0
    %5390 = vmatprep.subr.mxu0 0.0
    %5391 = vmatpush1.msra.mxu0 0.0
    %5392 = vmatprep.subr.mxu0 0.0
    %5393 = vmatpush1.msra.mxu0 0.0
    %5394 = vmatprep.subr.mxu0 0.0
    %5395 = vmatpush1.msra.mxu0 0.0
    %5396 = vmatprep.subr.mxu0 0.0
    %5397 = vmatpush1.msra.mxu0 0.0
    %5398 = vmatprep.subr.mxu0 0.0
    %5399 = vmatpush1.msra.mxu0 0.0
    %5400 = vmatprep.subr.mxu0 0.0
    %5401 = vmatpush1.msra.mxu0 0.0
    %5402 = vmatprep.subr.mxu0 0.0
    %5403 = vmatpush1.msra.mxu0 0.0
    %5404 = vmatprep.subr.mxu0 0.0
    %5405 = vmatpush1.msra.mxu0 0.0
    %5406 = vmatprep.subr.mxu0 0.0
    %5407 = vmatpush1.msra.mxu0 0.0
    %5408 = vmatprep.subr.mxu0 0.0
    %5409 = vmatpush1.msra.mxu0 0.0
    %5410 = vmatprep.mubr.f32.mxu0 0.0
    %5411 = vmatmul.mubr.f32.gmra.mrb[0].mxu0 %v5110
    %v5412 = vpop.f32.mrb[0].mxu0
    %v5413 = vadd.f32 %v5101, %v5412
    %v5414 = vpop.f32.mrb[0].mxu0
    %v5415 = vadd.f32 %v5101, %v5414
    %5416 = vmatprep.mubr.f32.mxu0 0.0
    %5417 = vmatmul.mubr.f32.gmra.mrb[0].mxu0 %v5113
    %v5418 = vpop.f32.mrb[0].mxu0
    %v5419 = vadd.f32 %v5106, %v5418
    %v5420 = vpop.f32.mrb[0].mxu0
    %v5421 = vadd.f32 %v5106, %v5420
    %5422 = vdwg.mxu0
    %v5423 = vmax.f32 %v5182, 0.0
    %v5424 = vmax.f32 %v5184, 0.0
    %v5425 = vmax.f32 %v5259, 0.0
    %v5426 = vmax.f32 %v5261, 0.0
    %v5427 = vmax.f32 %v5336, 0.0
    %v5428 = vmax.f32 %v5338, 0.0
    %v5429 = vmax.f32 %v5413, 0.0
    %v5430 = vmax.f32 %v5415, 0.0
    %v5431 = vmax.f32 %v5188, 0.0
    %v5432 = vmax.f32 %v5190, 0.0
    %v5433 = vmax.f32 %v5265, 0.0
    %v5434 = vmax.f32 %v5267, 0.0
    %v5435 = vmax.f32 %v5342, 0.0
    %v5436 = vmax.f32 %v5344, 0.0
    %v5437 = vmax.f32 %v5419, 0.0
    %v5438 = vmax.f32 %v5421, 0.0
    %5439 = vst [vmem:[#allocation8] sm:$0xff] %v5423
    %5440 = vst [vmem:[#allocation8 + $0x8] sm:$0xff] %v5424
    %5441 = vst [vmem:[#allocation8 + $0x10] sm:$0xff] %v5425
    %5442 = vst [vmem:[#allocation8 + $0x18] sm:$0xff] %v5426
    %5443 = vst [vmem:[#allocation8 + $0x20] sm:$0xff] %v5427
    %5444 = vst [vmem:[#allocation8 + $0x28] sm:$0xff] %v5428
    %5445 = vst [vmem:[#allocation8 + $0x30] sm:$0xff] %v5429
    %5446 = vst [vmem:[#allocation8 + $0x38] sm:$0xff] %v5430
    %5447 = vst [vmem:[#allocation8 + $0x40] sm:$0xff] %v5431
    %5448 = vst [vmem:[#allocation8 + $0x48] sm:$0xff] %v5432
    %5449 = vst [vmem:[#allocation8 + $0x50] sm:$0xff] %v5433
    %5450 = vst [vmem:[#allocation8 + $0x58] sm:$0xff] %v5434
    %5451 = vst [vmem:[#allocation8 + $0x60] sm:$0xff] %v5435
    %5452 = vst [vmem:[#allocation8 + $0x68] sm:$0xff] %v5436
    %5453 = vst [vmem:[#allocation8 + $0x70] sm:$0xff] %v5437
    %5454 = vst [vmem:[#allocation8 + $0x78] sm:$0xff] %v5438
    // Predicated region
    $region34: #{tpu_custom_call.1} parent=1 // pred_check
      _
    $region35: #{tpu_custom_call.1} parent=1 // pred_check_branch
      %5456 = sbr.rel (0) target = $region37
    $region36: #{tpu_custom_call.1} parent=1 // pred_region
      %s5458 = ssub.s32 2048, 2048
      %5459 = vsyncadd [#allocation4], %s5458
      %s5460 = sshll.u32 [#allocation8], 4
      %s5461 = int_to_ptr.vmem [resolvable:$true] %s5460
      %5466 = dma.vmem_to_hbm [thread:$0]  %s5461, 2048, %s5, [#allocation4], 1024, 1024, 64
    $region37: #{tpu_custom_call.1} parent=1 // pred_fallthru
      _
    // Predicated region
    $region38: #{tpu_custom_call.1} parent=1 // pred_check
      _
    $region39: #{tpu_custom_call.1} parent=1 // pred_check_branch
      %5468 = sbr.rel (0) target = $region41
    $region40: #{tpu_custom_call.1} parent=1 // pred_region
      %5469 = dma.done [#allocation4], 2048
    $region41: #{tpu_custom_call.1} parent=1 // pred_fallthru
      _
    %5470 = vsyncpa [#allocation3], 1
    %5471 = vsyncpa [#allocation6], 1
    %5472 = vsyncpa [#allocation4], 1

</llo_original>
